<compile_context>
chip_gen: v5e
topology: v5e:2x2
jax: 0.10.0
libtpu: 0.0.40
codegen_flags: <defaults>
</compile_context>

<pallas_src>
import functools
import math

import jax
import jax.numpy as jnp
import numpy as np
from jax.experimental import pallas as pl
from jax.experimental.pallas import tpu as pltpu

LANE = 128
OUT_LANES = 128          # lane-padded classifier output width (>= num_class)
NODE_MULT = 256          # node-dim padding: bf16 sublane packing + 256-wide MXU


def _vmem():
    return pl.BlockSpec(memory_space=pltpu.MemorySpace.VMEM)


def _ceil_to(n, m):
    return ((n + m - 1) // m) * m


def _ceil_lane(n):
    return _ceil_to(n, LANE)


def _pad2(x, rows, cols):
    return jnp.zeros((rows, cols), x.dtype).at[: x.shape[0], : x.shape[1]].set(x)


def _vmem_limit_bytes():
    cap = None
    try:
        info = pltpu.get_tpu_info()
        for name in ("vmem_capacity_bytes", "vmem_size_bytes", "vmem_bytes"):
            cap = getattr(info, name, None)
            if cap:
                break
    except Exception:
        cap = None
    if not cap:
        return 48 * 1024 * 1024           # conservative: fits v7x's 64 MiB/TC
    return int(min(cap * 0.85, 100 * 1024 * 1024))


# ----------------------------- fused Pallas kernel -----------------------------

def _hcl_fused_kernel(a_ref, x_ref,
                      wqkv_ref, bqkv_ref, wo_ref, bo_ref, lng_ref, lnb_ref,
                      w1_ref, b1_ref, w2_ref, b2_ref,
                      wc1_ref, bc1_ref, wc2_ref, bc2_ref,
                      out_ref, fe_ref,
                      *, n_layers, d_k, dkp, dvp, f_real, n_real, eps):
    f32 = jnp.float32
    bf16 = jnp.bfloat16
    scale = 1.0 / math.sqrt(float(d_k))
    inv_f = 1.0 / float(f_real)

    a = a_ref[...]                      # (N, N)  bf16 normalized adjacency (zero pad)
    x = x_ref[...]                      # (N, FP) f32 activations (padded lanes == 0)
    n = x.shape[0]

    # Additive key mask: padded key columns get -1e30 so their softmax weight
    # underflows to exactly 0 -> real-node attention matches the unpadded graph.
    col = jax.lax.broadcasted_iota(jnp.int32, (1, n), 1)
    key_bias = jnp.where(col < n_real, 0.0, -1e30).astype(f32)

    def gconv(inp_f32, w_bf16, b_f32):
        # GraphConv: A_hat @ (X @ W) + b   -- bf16 MXU inputs, f32 accumulation
        xw = jnp.dot(inp_f32.astype(bf16), w_bf16, preferred_element_type=f32)
        return jnp.dot(a, xw.astype(bf16), preferred_element_type=f32) + b_f32

    def layer_norm(t, g_ln, b_ln):
        # one-pass LN; padded lanes are exactly 0 so the sums only see the
        # real f_real features, and gamma/beta padding keeps them 0 after LN.
        # (Two-pass centered form would break the zero-pad invariant.)
        mu = jnp.sum(t, axis=-1, keepdims=True) * inv_f
        ms = jnp.sum(t * t, axis=-1, keepdims=True) * inv_f
        return (t - mu) * jax.lax.rsqrt(ms - mu * mu + eps) * g_ln + b_ln

    # first layer: softmax(scores + 0) == softmax(scores)  (h_attn is None)
    prior = jnp.zeros((n, n), bf16)     # carried in bf16 (pre-softmax bias)

    for l in range(n_layers):           # static unroll; all weights resident in VMEM
        g_ln = lng_ref[l]
        b_ln = lnb_ref[l]

        # --- Self attention (Q/K/V are GraphConvs, fused into one projection) ---
        qkv = gconv(x, wqkv_ref[l], bqkv_ref[l])            # (N, 2*dkp + dvp)
        q = qkv[:, :dkp]
        k = qkv[:, dkp:2 * dkp]
        v = qkv[:, 2 * dkp:2 * dkp + dvp]

        # contracting K on dim 1 == trans_b matmul; f32 accumulation for scores
        s = jax.lax.dot_general(q.astype(bf16), k.astype(bf16),
                                (((1,), (1,)), ((), ())),
                                preferred_element_type=f32) * scale
        s = s + prior.astype(f32) + key_bias                 # prev attn + pad mask
        s = s - jnp.max(s, axis=-1, keepdims=True)
        e = jnp.exp(s)
        attn = e * pl.reciprocal(jnp.sum(e, axis=-1, keepdims=True), approx=True)
        prior = attn.astype(bf16)                            # carried in-register

        attn_out = jnp.dot(attn.astype(bf16), v.astype(bf16),
                           preferred_element_type=f32)       # (N, dvp)
        attn_out = gconv(attn_out, wo_ref[l], bo_ref[l])     # W_O GraphConv
        attn_out = layer_norm(attn_out, g_ln, b_ln)

        # --- GCN feed-forward (dropout = identity in eval) ---
        ff_in = attn_out + x
        h = jnp.maximum(gconv(ff_in, w1_ref[l], b1_ref[l]), 0.0)
        out_l = gconv(h, w2_ref[l], b2_ref[l])
        x = layer_norm(out_l, g_ln, b_ln)   # same ln module reused, as in torch

    # --- classifier head: fe = relu(cla1(x)); out = cla2(fe) ---
    # wc2/bc2 are lane-padded to 128 output columns -> unmasked 128-lane stores.
    fe = jnp.maximum(
        jnp.dot(x.astype(bf16), wc1_ref[...], preferred_element_type=f32)
        + bc1_ref[...], 0.0)
    fe_ref[...] = fe
    out_ref[...] = (jnp.dot(fe.astype(bf16), wc2_ref[...],
                            preferred_element_type=f32) + bc2_ref[...])


def _cost_model(n, p, n_layers):
    fp, dkp, dvp, hp = p["fp"], p["dkp"], p["dvp"], p["hp"]
    qkv = 2 * dkp + dvp
    per_layer = 0
    per_layer += 2 * n * fp * qkv + 2 * n * n * qkv            # QKV GraphConv
    per_layer += 2 * n * n * dkp + 2 * n * n * dvp             # QK^T + attn@V
    per_layer += 2 * n * dvp * fp + 2 * n * n * fp             # W_O GraphConv
    per_layer += 2 * (n * fp * hp + n * n * hp)                # FFN conv1
    per_layer += 2 * (n * hp * fp + n * n * fp)                # FFN conv2
    flops = n_layers * per_layer + 2 * n * fp * 128 + 2 * n * 128 * OUT_LANES
    transcendentals = n_layers * (n * n + 3 * n)               # exp + rsqrt + recip
    return int(flops), int(transcendentals)


def hcl_forward(a_hat_bf16, x_pad, p, *, d_k, in_feats, n_real, n_layers, num_class):
    n = x_pad.shape[0]
    kern = functools.partial(
        _hcl_fused_kernel, n_layers=n_layers, d_k=d_k,
        dkp=p["dkp"], dvp=p["dvp"], f_real=in_feats, n_real=n_real, eps=1e-5)

    args = (a_hat_bf16, x_pad,
            p["wqkv"], p["bqkv"], p["wo"], p["bo"], p["lng"], p["lnb"],
            p["w1"], p["b1"], p["w2"], p["b2"],
            p["wc1"], p["bc1"], p["wc2"], p["bc2"])
    out_shapes = (jax.ShapeDtypeStruct((n, OUT_LANES), jnp.float32),
                  jax.ShapeDtypeStruct((n, p["fe_dim"]), jnp.float32))

    bytes_accessed = sum(int(a.size) * a.dtype.itemsize for a in args)
    bytes_accessed += sum(int(np.prod(o.shape)) * 4 for o in out_shapes)
    flops, transcendentals = _cost_model(n, p, n_layers)

    out_pad, fe_pad = pl.pallas_call(
        kern,
        out_shape=out_shapes,
        in_specs=[_vmem() for _ in range(len(args))],
        out_specs=(_vmem(), _vmem()),
        compiler_params=pltpu.CompilerParams(
            vmem_limit_bytes=_vmem_limit_bytes()),
        cost_estimate=pl.CostEstimate(flops=flops,
                                      transcendentals=transcendentals,
                                      bytes_accessed=bytes_accessed),
    )(*args)
    # lane-dense kernel outputs; slice to the real nodes / classes host-side
    return out_pad[:n_real, :num_class], fe_pad[:n_real, :]


# ----------------------------- deterministic init -----------------------------

def init_params(key, in_feats, d_k, d_v, hidden, n_layers, num_class):
    fp, dkp, dvp, hp = (_ceil_lane(v) for v in (in_feats, d_k, d_v, hidden))

    def dense(k, fin, fout, scl=0.1):
        kw, kb = jax.random.split(k)
        w = scl * jax.random.normal(kw, (fin, fout), jnp.float32)
        b = scl * jax.random.normal(kb, (1, fout), jnp.float32)
        return w, b

    wqkv, bqkv, wo, bo, lng, lnb, w1, b1, w2, b2 = ([] for _ in range(10))
    for i in range(n_layers):
        ks = jax.random.split(jax.random.fold_in(key, i), 6)
        wq, bq_ = dense(ks[0], in_feats, d_k)
        wk, bk_ = dense(ks[1], in_feats, d_k)
        wv, bv_ = dense(ks[2], in_feats, d_v)
        wo_i, bo_i = dense(ks[3], d_v, in_feats)
        w1_i, b1_i = dense(ks[4], in_feats, hidden)
        w2_i, b2_i = dense(ks[5], hidden, in_feats)

        # fused, lane-padded QKV projection weight: [Q | K | V] along out axis
        wqkv.append(jnp.concatenate(
            [_pad2(wq, fp, dkp), _pad2(wk, fp, dkp), _pad2(wv, fp, dvp)], axis=1))
        bqkv.append(jnp.concatenate(
            [_pad2(bq_, 1, dkp), _pad2(bk_, 1, dkp), _pad2(bv_, 1, dvp)], axis=1))
        wo.append(_pad2(wo_i, dvp, fp))
        bo.append(_pad2(bo_i, 1, fp))
        lng.append(_pad2(jnp.ones((1, in_feats), jnp.float32), 1, fp))
        lnb.append(jnp.zeros((1, fp), jnp.float32))
        w1.append(_pad2(w1_i, fp, hp))
        b1.append(_pad2(b1_i, 1, hp))
        w2.append(_pad2(w2_i, hp, fp))
        b2.append(_pad2(b2_i, 1, fp))

    kc = jax.random.split(jax.random.fold_in(key, 1000), 2)
    wc1_, bc1_ = dense(kc[0], in_feats, 128)
    wc2_, bc2_ = dense(kc[1], 128, num_class)

    bf = jnp.bfloat16
    return dict(
        fp=fp, dkp=dkp, dvp=dvp, hp=hp, fe_dim=128,
        wqkv=jnp.stack(wqkv).astype(bf), bqkv=jnp.stack(bqkv),
        wo=jnp.stack(wo).astype(bf), bo=jnp.stack(bo),
        lng=jnp.stack(lng), lnb=jnp.stack(lnb),
        w1=jnp.stack(w1).astype(bf), b1=jnp.stack(b1),
        w2=jnp.stack(w2).astype(bf), b2=jnp.stack(b2),
        wc1=_pad2(wc1_, fp, 128).astype(bf), bc1=bc1_,
        # lane-padded classifier head (columns beyond num_class stay exactly 0)
        wc2=_pad2(wc2_, 128, OUT_LANES).astype(bf), bc2=_pad2(bc2_, 1, OUT_LANES),
    )


def build_graph(n):
    """Ring graph + self loops, symmetrically normalized (DGL norm='both')."""
    a = np.zeros((n, n), np.float32)
    for i in range(n):
        a[i, i] = 1.0
        a[i, (i + 1) % n] = 1.0
        a[(i + 1) % n, i] = 1.0
    deg = a.sum(axis=1)
    d_inv_sqrt = 1.0 / np.sqrt(np.maximum(deg, 1.0))
    return jnp.asarray(a * d_inv_sqrt[:, None] * d_inv_sqrt[None, :], jnp.float32)


# ----------------------------- demo -----------------------------

if __name__ == "__main__":
    in_feats, d_k, d_v, hidden = 32, 32, 32, 64
    n_layers, num_class = 2, 4
    n_nodes = 8
    n_path_node = 2

    key = jax.random.PRNGKey(0)
    k_emb, k_path, k_par = jax.random.split(key, 3)

    node_emb = jax.random.normal(k_emb, (n_nodes, in_feats), jnp.float32)
    path_emb = jax.random.normal(k_path, (1, in_feats), jnp.float32)
    path_node_dict = {0: [0, 1, 2], 1: [4, 5, 6]}

    # torch: path_emb = path_emb.repeat(n_path_node, 1);
    #        for path: for node: node_emb[node] += path_emb[path]
    # expressed as a dense scatter-matrix matmul (host-side input plumbing).
    path_rep = jnp.tile(path_emb, (n_path_node, 1))
    scatter = np.zeros((n_nodes, n_path_node), np.float32)
    for pth, nodes in path_node_dict.items():
        for nd in nodes:
            scatter[nd, pth] += 1.0
    node_emb = node_emb + jnp.asarray(scatter) @ path_rep

    params = init_params(k_par, in_feats, d_k, d_v, hidden, n_layers, num_class)

    # pad node dim to a multiple of 256 (sublane packing + MXU feed) and
    # feature dim to 128 lanes; padded rows/cols/lanes are zero and are masked
    # out of the softmax inside the kernel, so real-node results are unchanged.
    n_pad = _ceil_to(n_nodes, NODE_MULT)
    a_hat = build_graph(n_nodes)
    a_pad = jnp.zeros((n_pad, n_pad), jnp.float32).at[:n_nodes, :n_nodes].set(a_hat)
    x_pad = jnp.zeros((n_pad, params["fp"]), jnp.float32).at[:n_nodes, :in_feats].set(node_emb)

    out, fe = hcl_forward(a_pad.astype(jnp.bfloat16), x_pad, params,
                          d_k=d_k, in_feats=in_feats, n_real=n_nodes,
                          n_layers=n_layers, num_class=num_class)
    jax.block_until_ready((out, fe))
    assert out.shape == (n_nodes, num_class)
    assert fe.shape == (n_nodes, 128)
    assert bool(jnp.all(jnp.isfinite(out))) and bool(jnp.all(jnp.isfinite(fe)))
    print("KERNEL_OK")
</pallas_src>

<mosaic_0001>
module attributes {stable_mosaic.version = 11 : i64} {
  func.func @_hcl_fused_kernel(%arg0: memref<256x256xbf16, #tpu.memory_space<vmem>>, %arg1: memref<256x128xf32, #tpu.memory_space<vmem>>, %arg2: memref<2x128x384xbf16, #tpu.memory_space<vmem>>, %arg3: memref<2x1x384xf32, #tpu.memory_space<vmem>>, %arg4: memref<2x128x128xbf16, #tpu.memory_space<vmem>>, %arg5: memref<2x1x128xf32, #tpu.memory_space<vmem>>, %arg6: memref<2x1x128xf32, #tpu.memory_space<vmem>>, %arg7: memref<2x1x128xf32, #tpu.memory_space<vmem>>, %arg8: memref<2x128x128xbf16, #tpu.memory_space<vmem>>, %arg9: memref<2x1x128xf32, #tpu.memory_space<vmem>>, %arg10: memref<2x128x128xbf16, #tpu.memory_space<vmem>>, %arg11: memref<2x1x128xf32, #tpu.memory_space<vmem>>, %arg12: memref<128x128xbf16, #tpu.memory_space<vmem>>, %arg13: memref<1x128xf32, #tpu.memory_space<vmem>>, %arg14: memref<128x128xbf16, #tpu.memory_space<vmem>>, %arg15: memref<1x128xf32, #tpu.memory_space<vmem>>, %arg16: memref<256x128xf32, #tpu.memory_space<vmem>>, %arg17: memref<256x128xf32, #tpu.memory_space<vmem>>) attributes {dimension_semantics = [], scalar_prefetch = 0 : i64, scratch_operands = 0 : i64, tpu.core_type = #tpu.core_type<tc>} {
    %c0 = arith.constant 0 : index
    %c0_0 = arith.constant 0 : index
    %0 = vector.load %arg0[%c0, %c0_0] : memref<256x256xbf16, #tpu.memory_space<vmem>>, vector<256x256xbf16>
    %c0_1 = arith.constant 0 : index
    %c0_2 = arith.constant 0 : index
    %1 = vector.load %arg1[%c0_1, %c0_2] : memref<256x128xf32, #tpu.memory_space<vmem>>, vector<256x128xf32>
    %2 = tpu.iota {dimensions = array<i32: 1>} : vector<1x256xi32>
    %c8_i32 = arith.constant 8 : i32
    %3 = vector.broadcast %c8_i32 : i32 to vector<1x256xi32>
    %4 = arith.cmpi slt, %2, %3 : vector<1x256xi32>
    %cst = arith.constant 0.000000e+00 : f32
    %cst_3 = arith.constant -1.000000e+30 : f32
    %5 = vector.broadcast %cst : f32 to vector<1x256xf32>
    %6 = vector.broadcast %cst_3 : f32 to vector<1x256xf32>
    %7 = arith.select %4, %5, %6 : vector<1x256xi1>, vector<1x256xf32>
    %cst_4 = arith.constant 0.000000e+00 : bf16
    %8 = vector.broadcast %cst_4 : bf16 to vector<256x256xbf16>
    %c0_5 = arith.constant 0 : index
    %c0_6 = arith.constant 0 : index
    %c0_7 = arith.constant 0 : index
    %9 = vector.load %arg6[%c0_5, %c0_6, %c0_7] : memref<2x1x128xf32, #tpu.memory_space<vmem>>, vector<1x1x128xf32>
    %10 = vector.shape_cast %9 : vector<1x1x128xf32> to vector<1x128xf32>
    %c0_8 = arith.constant 0 : index
    %c0_9 = arith.constant 0 : index
    %c0_10 = arith.constant 0 : index
    %11 = vector.load %arg7[%c0_8, %c0_9, %c0_10] : memref<2x1x128xf32, #tpu.memory_space<vmem>>, vector<1x1x128xf32>
    %12 = vector.shape_cast %11 : vector<1x1x128xf32> to vector<1x128xf32>
    %c0_11 = arith.constant 0 : index
    %c0_12 = arith.constant 0 : index
    %c0_13 = arith.constant 0 : index
    %13 = vector.load %arg2[%c0_11, %c0_12, %c0_13] : memref<2x128x384xbf16, #tpu.memory_space<vmem>>, vector<1x128x384xbf16>
    %14 = vector.shape_cast %13 : vector<1x128x384xbf16> to vector<128x384xbf16>
    %c0_14 = arith.constant 0 : index
    %c0_15 = arith.constant 0 : index
    %c0_16 = arith.constant 0 : index
    %15 = vector.load %arg3[%c0_14, %c0_15, %c0_16] : memref<2x1x384xf32, #tpu.memory_space<vmem>>, vector<1x1x384xf32>
    %16 = vector.shape_cast %15 : vector<1x1x384xf32> to vector<1x384xf32>
    %17 = arith.truncf %1 : vector<256x128xf32> to vector<256x128xbf16>
    %cst_17 = arith.constant dense<0.000000e+00> : vector<256x384xf32>
    %18 = tpu.matmul %17, %14, %cst_17 {dimension_numbers = #tpu.dot_dimension_numbers<[1], [0], [0], [1], [0, 0, 1, 1], [], []>} : vector<256x128xbf16>, vector<128x384xbf16>, vector<256x384xf32> -> vector<256x384xf32>
    %19 = arith.truncf %18 : vector<256x384xf32> to vector<256x384xbf16>
    %cst_18 = arith.constant dense<0.000000e+00> : vector<256x384xf32>
    %20 = tpu.matmul %0, %19, %cst_18 {dimension_numbers = #tpu.dot_dimension_numbers<[1], [0], [0], [1], [0, 0, 1, 1], [], []>} : vector<256x256xbf16>, vector<256x384xbf16>, vector<256x384xf32> -> vector<256x384xf32>
    %21 = vector.broadcast %16 : vector<1x384xf32> to vector<256x384xf32>
    %22 = arith.addf %20, %21 : vector<256x384xf32>
    %23 = vector.extract_strided_slice %22 {offsets = [0, 0], sizes = [256, 128], strides = [1, 1]} : vector<256x384xf32> to vector<256x128xf32>
    %24 = vector.extract_strided_slice %22 {offsets = [0, 128], sizes = [256, 128], strides = [1, 1]} : vector<256x384xf32> to vector<256x128xf32>
    %25 = vector.extract_strided_slice %22 {offsets = [0, 256], sizes = [256, 128], strides = [1, 1]} : vector<256x384xf32> to vector<256x128xf32>
    %26 = arith.truncf %23 : vector<256x128xf32> to vector<256x128xbf16>
    %27 = arith.truncf %24 : vector<256x128xf32> to vector<256x128xbf16>
    %cst_19 = arith.constant dense<0.000000e+00> : vector<256x256xf32>
    %28 = tpu.matmul %26, %27, %cst_19 {dimension_numbers = #tpu.dot_dimension_numbers<[1], [1], [0], [0], [0, 0, 1, 0], [], []>} : vector<256x128xbf16>, vector<256x128xbf16>, vector<256x256xf32> -> vector<256x256xf32>
    %cst_20 = arith.constant 0.176776692 : f32
    %29 = vector.broadcast %cst_20 : f32 to vector<256x256xf32>
    %30 = arith.mulf %28, %29 : vector<256x256xf32>
    %31 = arith.extf %8 : vector<256x256xbf16> to vector<256x256xf32>
    %32 = arith.addf %30, %31 : vector<256x256xf32>
    %33 = vector.broadcast %7 : vector<1x256xf32> to vector<256x256xf32>
    %34 = arith.addf %32, %33 : vector<256x256xf32>
    %cst_21 = arith.constant dense<0xFF800000> : vector<256xf32>
    %35 = vector.multi_reduction <maximumf>, %34, %cst_21 [1] : vector<256x256xf32> to vector<256xf32>
    %36 = vector.shape_cast %35 : vector<256xf32> to vector<256x1xf32>
    %37 = vector.broadcast %36 : vector<256x1xf32> to vector<256x256xf32>
    %38 = arith.subf %34, %37 : vector<256x256xf32>
    %39 = math.exp %38 : vector<256x256xf32>
    %cst_22 = arith.constant dense<0.000000e+00> : vector<256xf32>
    %40 = vector.multi_reduction <add>, %39, %cst_22 [1] : vector<256x256xf32> to vector<256xf32>
    %41 = vector.shape_cast %40 : vector<256xf32> to vector<256x1xf32>
    %42 = tpu.reciprocal %41 {approx = true} : vector<256x1xf32> -> vector<256x1xf32>
    %43 = vector.broadcast %42 : vector<256x1xf32> to vector<256x256xf32>
    %44 = arith.mulf %39, %43 : vector<256x256xf32>
    %45 = arith.truncf %44 : vector<256x256xf32> to vector<256x256xbf16>
    %46 = arith.truncf %44 : vector<256x256xf32> to vector<256x256xbf16>
    %47 = arith.truncf %25 : vector<256x128xf32> to vector<256x128xbf16>
    %cst_23 = arith.constant dense<0.000000e+00> : vector<256x128xf32>
    %48 = tpu.matmul %46, %47, %cst_23 {dimension_numbers = #tpu.dot_dimension_numbers<[1], [0], [0], [1], [0, 0, 1, 1], [], []>} : vector<256x256xbf16>, vector<256x128xbf16>, vector<256x128xf32> -> vector<256x128xf32>
    %c0_24 = arith.constant 0 : index
    %c0_25 = arith.constant 0 : index
    %c0_26 = arith.constant 0 : index
    %49 = vector.load %arg4[%c0_24, %c0_25, %c0_26] : memref<2x128x128xbf16, #tpu.memory_space<vmem>>, vector<1x128x128xbf16>
    %50 = vector.shape_cast %49 : vector<1x128x128xbf16> to vector<128x128xbf16>
    %c0_27 = arith.constant 0 : index
    %c0_28 = arith.constant 0 : index
    %c0_29 = arith.constant 0 : index
    %51 = vector.load %arg5[%c0_27, %c0_28, %c0_29] : memref<2x1x128xf32, #tpu.memory_space<vmem>>, vector<1x1x128xf32>
    %52 = vector.shape_cast %51 : vector<1x1x128xf32> to vector<1x128xf32>
    %53 = arith.truncf %48 : vector<256x128xf32> to vector<256x128xbf16>
    %cst_30 = arith.constant dense<0.000000e+00> : vector<256x128xf32>
    %54 = tpu.matmul %53, %50, %cst_30 {dimension_numbers = #tpu.dot_dimension_numbers<[1], [0], [0], [1], [0, 0, 1, 1], [], []>} : vector<256x128xbf16>, vector<128x128xbf16>, vector<256x128xf32> -> vector<256x128xf32>
    %55 = arith.truncf %54 : vector<256x128xf32> to vector<256x128xbf16>
    %cst_31 = arith.constant dense<0.000000e+00> : vector<256x128xf32>
    %56 = tpu.matmul %0, %55, %cst_31 {dimension_numbers = #tpu.dot_dimension_numbers<[1], [0], [0], [1], [0, 0, 1, 1], [], []>} : vector<256x256xbf16>, vector<256x128xbf16>, vector<256x128xf32> -> vector<256x128xf32>
    %57 = vector.broadcast %52 : vector<1x128xf32> to vector<256x128xf32>
    %58 = arith.addf %56, %57 : vector<256x128xf32>
    %cst_32 = arith.constant dense<0.000000e+00> : vector<256xf32>
    %59 = vector.multi_reduction <add>, %58, %cst_32 [1] : vector<256x128xf32> to vector<256xf32>
    %60 = vector.shape_cast %59 : vector<256xf32> to vector<256x1xf32>
    %cst_33 = arith.constant 3.125000e-02 : f32
    %61 = vector.broadcast %cst_33 : f32 to vector<256x1xf32>
    %62 = arith.mulf %60, %61 : vector<256x1xf32>
    %63 = arith.mulf %58, %58 : vector<256x128xf32>
    %cst_34 = arith.constant dense<0.000000e+00> : vector<256xf32>
    %64 = vector.multi_reduction <add>, %63, %cst_34 [1] : vector<256x128xf32> to vector<256xf32>
    %65 = vector.shape_cast %64 : vector<256xf32> to vector<256x1xf32>
    %cst_35 = arith.constant 3.125000e-02 : f32
    %66 = vector.broadcast %cst_35 : f32 to vector<256x1xf32>
    %67 = arith.mulf %65, %66 : vector<256x1xf32>
    %68 = vector.broadcast %62 : vector<256x1xf32> to vector<256x128xf32>
    %69 = arith.subf %58, %68 : vector<256x128xf32>
    %70 = arith.mulf %62, %62 : vector<256x1xf32>
    %71 = arith.subf %67, %70 : vector<256x1xf32>
    %cst_36 = arith.constant 9.99999974E-6 : f32
    %72 = vector.broadcast %cst_36 : f32 to vector<256x1xf32>
    %73 = arith.addf %71, %72 : vector<256x1xf32>
    %74 = math.rsqrt %73 : vector<256x1xf32>
    %75 = vector.broadcast %74 : vector<256x1xf32> to vector<256x128xf32>
    %76 = arith.mulf %69, %75 : vector<256x128xf32>
    %77 = vector.broadcast %10 : vector<1x128xf32> to vector<256x128xf32>
    %78 = arith.mulf %76, %77 : vector<256x128xf32>
    %79 = vector.broadcast %12 : vector<1x128xf32> to vector<256x128xf32>
    %80 = arith.addf %78, %79 : vector<256x128xf32>
    %81 = arith.addf %80, %1 : vector<256x128xf32>
    %c0_37 = arith.constant 0 : index
    %c0_38 = arith.constant 0 : index
    %c0_39 = arith.constant 0 : index
    %82 = vector.load %arg8[%c0_37, %c0_38, %c0_39] : memref<2x128x128xbf16, #tpu.memory_space<vmem>>, vector<1x128x128xbf16>
    %83 = vector.shape_cast %82 : vector<1x128x128xbf16> to vector<128x128xbf16>
    %c0_40 = arith.constant 0 : index
    %c0_41 = arith.constant 0 : index
    %c0_42 = arith.constant 0 : index
    %84 = vector.load %arg9[%c0_40, %c0_41, %c0_42] : memref<2x1x128xf32, #tpu.memory_space<vmem>>, vector<1x1x128xf32>
    %85 = vector.shape_cast %84 : vector<1x1x128xf32> to vector<1x128xf32>
    %86 = arith.truncf %81 : vector<256x128xf32> to vector<256x128xbf16>
    %cst_43 = arith.constant dense<0.000000e+00> : vector<256x128xf32>
    %87 = tpu.matmul %86, %83, %cst_43 {dimension_numbers = #tpu.dot_dimension_numbers<[1], [0], [0], [1], [0, 0, 1, 1], [], []>} : vector<256x128xbf16>, vector<128x128xbf16>, vector<256x128xf32> -> vector<256x128xf32>
    %88 = arith.truncf %87 : vector<256x128xf32> to vector<256x128xbf16>
    %cst_44 = arith.constant dense<0.000000e+00> : vector<256x128xf32>
    %89 = tpu.matmul %0, %88, %cst_44 {dimension_numbers = #tpu.dot_dimension_numbers<[1], [0], [0], [1], [0, 0, 1, 1], [], []>} : vector<256x256xbf16>, vector<256x128xbf16>, vector<256x128xf32> -> vector<256x128xf32>
    %90 = vector.broadcast %85 : vector<1x128xf32> to vector<256x128xf32>
    %91 = arith.addf %89, %90 : vector<256x128xf32>
    %cst_45 = arith.constant 0.000000e+00 : f32
    %92 = vector.broadcast %cst_45 : f32 to vector<256x128xf32>
    %93 = arith.maximumf %91, %92 : vector<256x128xf32>
    %c0_46 = arith.constant 0 : index
    %c0_47 = arith.constant 0 : index
    %c0_48 = arith.constant 0 : index
    %94 = vector.load %arg10[%c0_46, %c0_47, %c0_48] : memref<2x128x128xbf16, #tpu.memory_space<vmem>>, vector<1x128x128xbf16>
    %95 = vector.shape_cast %94 : vector<1x128x128xbf16> to vector<128x128xbf16>
    %c0_49 = arith.constant 0 : index
    %c0_50 = arith.constant 0 : index
    %c0_51 = arith.constant 0 : index
    %96 = vector.load %arg11[%c0_49, %c0_50, %c0_51] : memref<2x1x128xf32, #tpu.memory_space<vmem>>, vector<1x1x128xf32>
    %97 = vector.shape_cast %96 : vector<1x1x128xf32> to vector<1x128xf32>
    %98 = arith.truncf %93 : vector<256x128xf32> to vector<256x128xbf16>
    %cst_52 = arith.constant dense<0.000000e+00> : vector<256x128xf32>
    %99 = tpu.matmul %98, %95, %cst_52 {dimension_numbers = #tpu.dot_dimension_numbers<[1], [0], [0], [1], [0, 0, 1, 1], [], []>} : vector<256x128xbf16>, vector<128x128xbf16>, vector<256x128xf32> -> vector<256x128xf32>
    %100 = arith.truncf %99 : vector<256x128xf32> to vector<256x128xbf16>
    %cst_53 = arith.constant dense<0.000000e+00> : vector<256x128xf32>
    %101 = tpu.matmul %0, %100, %cst_53 {dimension_numbers = #tpu.dot_dimension_numbers<[1], [0], [0], [1], [0, 0, 1, 1], [], []>} : vector<256x256xbf16>, vector<256x128xbf16>, vector<256x128xf32> -> vector<256x128xf32>
    %102 = vector.broadcast %97 : vector<1x128xf32> to vector<256x128xf32>
    %103 = arith.addf %101, %102 : vector<256x128xf32>
    %cst_54 = arith.constant dense<0.000000e+00> : vector<256xf32>
    %104 = vector.multi_reduction <add>, %103, %cst_54 [1] : vector<256x128xf32> to vector<256xf32>
    %105 = vector.shape_cast %104 : vector<256xf32> to vector<256x1xf32>
    %cst_55 = arith.constant 3.125000e-02 : f32
    %106 = vector.broadcast %cst_55 : f32 to vector<256x1xf32>
    %107 = arith.mulf %105, %106 : vector<256x1xf32>
    %108 = arith.mulf %103, %103 : vector<256x128xf32>
    %cst_56 = arith.constant dense<0.000000e+00> : vector<256xf32>
    %109 = vector.multi_reduction <add>, %108, %cst_56 [1] : vector<256x128xf32> to vector<256xf32>
    %110 = vector.shape_cast %109 : vector<256xf32> to vector<256x1xf32>
    %cst_57 = arith.constant 3.125000e-02 : f32
    %111 = vector.broadcast %cst_57 : f32 to vector<256x1xf32>
    %112 = arith.mulf %110, %111 : vector<256x1xf32>
    %113 = vector.broadcast %107 : vector<256x1xf32> to vector<256x128xf32>
    %114 = arith.subf %103, %113 : vector<256x128xf32>
    %115 = arith.mulf %107, %107 : vector<256x1xf32>
    %116 = arith.subf %112, %115 : vector<256x1xf32>
    %cst_58 = arith.constant 9.99999974E-6 : f32
    %117 = vector.broadcast %cst_58 : f32 to vector<256x1xf32>
    %118 = arith.addf %116, %117 : vector<256x1xf32>
    %119 = math.rsqrt %118 : vector<256x1xf32>
    %120 = vector.broadcast %119 : vector<256x1xf32> to vector<256x128xf32>
    %121 = arith.mulf %114, %120 : vector<256x128xf32>
    %122 = vector.broadcast %10 : vector<1x128xf32> to vector<256x128xf32>
    %123 = arith.mulf %121, %122 : vector<256x128xf32>
    %124 = vector.broadcast %12 : vector<1x128xf32> to vector<256x128xf32>
    %125 = arith.addf %123, %124 : vector<256x128xf32>
    %c1 = arith.constant 1 : index
    %c0_59 = arith.constant 0 : index
    %c0_60 = arith.constant 0 : index
    %126 = vector.load %arg6[%c1, %c0_59, %c0_60] : memref<2x1x128xf32, #tpu.memory_space<vmem>>, vector<1x1x128xf32>
    %127 = vector.shape_cast %126 : vector<1x1x128xf32> to vector<1x128xf32>
    %c1_61 = arith.constant 1 : index
    %c0_62 = arith.constant 0 : index
    %c0_63 = arith.constant 0 : index
    %128 = vector.load %arg7[%c1_61, %c0_62, %c0_63] : memref<2x1x128xf32, #tpu.memory_space<vmem>>, vector<1x1x128xf32>
    %129 = vector.shape_cast %128 : vector<1x1x128xf32> to vector<1x128xf32>
    %c1_64 = arith.constant 1 : index
    %c0_65 = arith.constant 0 : index
    %c0_66 = arith.constant 0 : index
    %130 = vector.load %arg2[%c1_64, %c0_65, %c0_66] : memref<2x128x384xbf16, #tpu.memory_space<vmem>>, vector<1x128x384xbf16>
    %131 = vector.shape_cast %130 : vector<1x128x384xbf16> to vector<128x384xbf16>
    %c1_67 = arith.constant 1 : index
    %c0_68 = arith.constant 0 : index
    %c0_69 = arith.constant 0 : index
    %132 = vector.load %arg3[%c1_67, %c0_68, %c0_69] : memref<2x1x384xf32, #tpu.memory_space<vmem>>, vector<1x1x384xf32>
    %133 = vector.shape_cast %132 : vector<1x1x384xf32> to vector<1x384xf32>
    %134 = arith.truncf %125 : vector<256x128xf32> to vector<256x128xbf16>
    %cst_70 = arith.constant dense<0.000000e+00> : vector<256x384xf32>
    %135 = tpu.matmul %134, %131, %cst_70 {dimension_numbers = #tpu.dot_dimension_numbers<[1], [0], [0], [1], [0, 0, 1, 1], [], []>} : vector<256x128xbf16>, vector<128x384xbf16>, vector<256x384xf32> -> vector<256x384xf32>
    %136 = arith.truncf %135 : vector<256x384xf32> to vector<256x384xbf16>
    %cst_71 = arith.constant dense<0.000000e+00> : vector<256x384xf32>
    %137 = tpu.matmul %0, %136, %cst_71 {dimension_numbers = #tpu.dot_dimension_numbers<[1], [0], [0], [1], [0, 0, 1, 1], [], []>} : vector<256x256xbf16>, vector<256x384xbf16>, vector<256x384xf32> -> vector<256x384xf32>
    %138 = vector.broadcast %133 : vector<1x384xf32> to vector<256x384xf32>
    %139 = arith.addf %137, %138 : vector<256x384xf32>
    %140 = vector.extract_strided_slice %139 {offsets = [0, 0], sizes = [256, 128], strides = [1, 1]} : vector<256x384xf32> to vector<256x128xf32>
    %141 = vector.extract_strided_slice %139 {offsets = [0, 128], sizes = [256, 128], strides = [1, 1]} : vector<256x384xf32> to vector<256x128xf32>
    %142 = vector.extract_strided_slice %139 {offsets = [0, 256], sizes = [256, 128], strides = [1, 1]} : vector<256x384xf32> to vector<256x128xf32>
    %143 = arith.truncf %140 : vector<256x128xf32> to vector<256x128xbf16>
    %144 = arith.truncf %141 : vector<256x128xf32> to vector<256x128xbf16>
    %cst_72 = arith.constant dense<0.000000e+00> : vector<256x256xf32>
    %145 = tpu.matmul %143, %144, %cst_72 {dimension_numbers = #tpu.dot_dimension_numbers<[1], [1], [0], [0], [0, 0, 1, 0], [], []>} : vector<256x128xbf16>, vector<256x128xbf16>, vector<256x256xf32> -> vector<256x256xf32>
    %cst_73 = arith.constant 0.176776692 : f32
    %146 = vector.broadcast %cst_73 : f32 to vector<256x256xf32>
    %147 = arith.mulf %145, %146 : vector<256x256xf32>
    %148 = arith.extf %45 : vector<256x256xbf16> to vector<256x256xf32>
    %149 = arith.addf %147, %148 : vector<256x256xf32>
    %150 = vector.broadcast %7 : vector<1x256xf32> to vector<256x256xf32>
    %151 = arith.addf %149, %150 : vector<256x256xf32>
    %cst_74 = arith.constant dense<0xFF800000> : vector<256xf32>
    %152 = vector.multi_reduction <maximumf>, %151, %cst_74 [1] : vector<256x256xf32> to vector<256xf32>
    %153 = vector.shape_cast %152 : vector<256xf32> to vector<256x1xf32>
    %154 = vector.broadcast %153 : vector<256x1xf32> to vector<256x256xf32>
    %155 = arith.subf %151, %154 : vector<256x256xf32>
    %156 = math.exp %155 : vector<256x256xf32>
    %cst_75 = arith.constant dense<0.000000e+00> : vector<256xf32>
    %157 = vector.multi_reduction <add>, %156, %cst_75 [1] : vector<256x256xf32> to vector<256xf32>
    %158 = vector.shape_cast %157 : vector<256xf32> to vector<256x1xf32>
    %159 = tpu.reciprocal %158 {approx = true} : vector<256x1xf32> -> vector<256x1xf32>
    %160 = vector.broadcast %159 : vector<256x1xf32> to vector<256x256xf32>
    %161 = arith.mulf %156, %160 : vector<256x256xf32>
    %162 = arith.truncf %161 : vector<256x256xf32> to vector<256x256xbf16>
    %163 = arith.truncf %142 : vector<256x128xf32> to vector<256x128xbf16>
    %cst_76 = arith.constant dense<0.000000e+00> : vector<256x128xf32>
    %164 = tpu.matmul %162, %163, %cst_76 {dimension_numbers = #tpu.dot_dimension_numbers<[1], [0], [0], [1], [0, 0, 1, 1], [], []>} : vector<256x256xbf16>, vector<256x128xbf16>, vector<256x128xf32> -> vector<256x128xf32>
    %c1_77 = arith.constant 1 : index
    %c0_78 = arith.constant 0 : index
    %c0_79 = arith.constant 0 : index
    %165 = vector.load %arg4[%c1_77, %c0_78, %c0_79] : memref<2x128x128xbf16, #tpu.memory_space<vmem>>, vector<1x128x128xbf16>
    %166 = vector.shape_cast %165 : vector<1x128x128xbf16> to vector<128x128xbf16>
    %c1_80 = arith.constant 1 : index
    %c0_81 = arith.constant 0 : index
    %c0_82 = arith.constant 0 : index
    %167 = vector.load %arg5[%c1_80, %c0_81, %c0_82] : memref<2x1x128xf32, #tpu.memory_space<vmem>>, vector<1x1x128xf32>
    %168 = vector.shape_cast %167 : vector<1x1x128xf32> to vector<1x128xf32>
    %169 = arith.truncf %164 : vector<256x128xf32> to vector<256x128xbf16>
    %cst_83 = arith.constant dense<0.000000e+00> : vector<256x128xf32>
    %170 = tpu.matmul %169, %166, %cst_83 {dimension_numbers = #tpu.dot_dimension_numbers<[1], [0], [0], [1], [0, 0, 1, 1], [], []>} : vector<256x128xbf16>, vector<128x128xbf16>, vector<256x128xf32> -> vector<256x128xf32>
    %171 = arith.truncf %170 : vector<256x128xf32> to vector<256x128xbf16>
    %cst_84 = arith.constant dense<0.000000e+00> : vector<256x128xf32>
    %172 = tpu.matmul %0, %171, %cst_84 {dimension_numbers = #tpu.dot_dimension_numbers<[1], [0], [0], [1], [0, 0, 1, 1], [], []>} : vector<256x256xbf16>, vector<256x128xbf16>, vector<256x128xf32> -> vector<256x128xf32>
    %173 = vector.broadcast %168 : vector<1x128xf32> to vector<256x128xf32>
    %174 = arith.addf %172, %173 : vector<256x128xf32>
    %cst_85 = arith.constant dense<0.000000e+00> : vector<256xf32>
    %175 = vector.multi_reduction <add>, %174, %cst_85 [1] : vector<256x128xf32> to vector<256xf32>
    %176 = vector.shape_cast %175 : vector<256xf32> to vector<256x1xf32>
    %cst_86 = arith.constant 3.125000e-02 : f32
    %177 = vector.broadcast %cst_86 : f32 to vector<256x1xf32>
    %178 = arith.mulf %176, %177 : vector<256x1xf32>
    %179 = arith.mulf %174, %174 : vector<256x128xf32>
    %cst_87 = arith.constant dense<0.000000e+00> : vector<256xf32>
    %180 = vector.multi_reduction <add>, %179, %cst_87 [1] : vector<256x128xf32> to vector<256xf32>
    %181 = vector.shape_cast %180 : vector<256xf32> to vector<256x1xf32>
    %cst_88 = arith.constant 3.125000e-02 : f32
    %182 = vector.broadcast %cst_88 : f32 to vector<256x1xf32>
    %183 = arith.mulf %181, %182 : vector<256x1xf32>
    %184 = vector.broadcast %178 : vector<256x1xf32> to vector<256x128xf32>
    %185 = arith.subf %174, %184 : vector<256x128xf32>
    %186 = arith.mulf %178, %178 : vector<256x1xf32>
    %187 = arith.subf %183, %186 : vector<256x1xf32>
    %cst_89 = arith.constant 9.99999974E-6 : f32
    %188 = vector.broadcast %cst_89 : f32 to vector<256x1xf32>
    %189 = arith.addf %187, %188 : vector<256x1xf32>
    %190 = math.rsqrt %189 : vector<256x1xf32>
    %191 = vector.broadcast %190 : vector<256x1xf32> to vector<256x128xf32>
    %192 = arith.mulf %185, %191 : vector<256x128xf32>
    %193 = vector.broadcast %127 : vector<1x128xf32> to vector<256x128xf32>
    %194 = arith.mulf %192, %193 : vector<256x128xf32>
    %195 = vector.broadcast %129 : vector<1x128xf32> to vector<256x128xf32>
    %196 = arith.addf %194, %195 : vector<256x128xf32>
    %197 = arith.addf %196, %125 : vector<256x128xf32>
    %c1_90 = arith.constant 1 : index
    %c0_91 = arith.constant 0 : index
    %c0_92 = arith.constant 0 : index
    %198 = vector.load %arg8[%c1_90, %c0_91, %c0_92] : memref<2x128x128xbf16, #tpu.memory_space<vmem>>, vector<1x128x128xbf16>
    %199 = vector.shape_cast %198 : vector<1x128x128xbf16> to vector<128x128xbf16>
    %c1_93 = arith.constant 1 : index
    %c0_94 = arith.constant 0 : index
    %c0_95 = arith.constant 0 : index
    %200 = vector.load %arg9[%c1_93, %c0_94, %c0_95] : memref<2x1x128xf32, #tpu.memory_space<vmem>>, vector<1x1x128xf32>
    %201 = vector.shape_cast %200 : vector<1x1x128xf32> to vector<1x128xf32>
    %202 = arith.truncf %197 : vector<256x128xf32> to vector<256x128xbf16>
    %cst_96 = arith.constant dense<0.000000e+00> : vector<256x128xf32>
    %203 = tpu.matmul %202, %199, %cst_96 {dimension_numbers = #tpu.dot_dimension_numbers<[1], [0], [0], [1], [0, 0, 1, 1], [], []>} : vector<256x128xbf16>, vector<128x128xbf16>, vector<256x128xf32> -> vector<256x128xf32>
    %204 = arith.truncf %203 : vector<256x128xf32> to vector<256x128xbf16>
    %cst_97 = arith.constant dense<0.000000e+00> : vector<256x128xf32>
    %205 = tpu.matmul %0, %204, %cst_97 {dimension_numbers = #tpu.dot_dimension_numbers<[1], [0], [0], [1], [0, 0, 1, 1], [], []>} : vector<256x256xbf16>, vector<256x128xbf16>, vector<256x128xf32> -> vector<256x128xf32>
    %206 = vector.broadcast %201 : vector<1x128xf32> to vector<256x128xf32>
    %207 = arith.addf %205, %206 : vector<256x128xf32>
    %cst_98 = arith.constant 0.000000e+00 : f32
    %208 = vector.broadcast %cst_98 : f32 to vector<256x128xf32>
    %209 = arith.maximumf %207, %208 : vector<256x128xf32>
    %c1_99 = arith.constant 1 : index
    %c0_100 = arith.constant 0 : index
    %c0_101 = arith.constant 0 : index
    %210 = vector.load %arg10[%c1_99, %c0_100, %c0_101] : memref<2x128x128xbf16, #tpu.memory_space<vmem>>, vector<1x128x128xbf16>
    %211 = vector.shape_cast %210 : vector<1x128x128xbf16> to vector<128x128xbf16>
    %c1_102 = arith.constant 1 : index
    %c0_103 = arith.constant 0 : index
    %c0_104 = arith.constant 0 : index
    %212 = vector.load %arg11[%c1_102, %c0_103, %c0_104] : memref<2x1x128xf32, #tpu.memory_space<vmem>>, vector<1x1x128xf32>
    %213 = vector.shape_cast %212 : vector<1x1x128xf32> to vector<1x128xf32>
    %214 = arith.truncf %209 : vector<256x128xf32> to vector<256x128xbf16>
    %cst_105 = arith.constant dense<0.000000e+00> : vector<256x128xf32>
    %215 = tpu.matmul %214, %211, %cst_105 {dimension_numbers = #tpu.dot_dimension_numbers<[1], [0], [0], [1], [0, 0, 1, 1], [], []>} : vector<256x128xbf16>, vector<128x128xbf16>, vector<256x128xf32> -> vector<256x128xf32>
    %216 = arith.truncf %215 : vector<256x128xf32> to vector<256x128xbf16>
    %cst_106 = arith.constant dense<0.000000e+00> : vector<256x128xf32>
    %217 = tpu.matmul %0, %216, %cst_106 {dimension_numbers = #tpu.dot_dimension_numbers<[1], [0], [0], [1], [0, 0, 1, 1], [], []>} : vector<256x256xbf16>, vector<256x128xbf16>, vector<256x128xf32> -> vector<256x128xf32>
    %218 = vector.broadcast %213 : vector<1x128xf32> to vector<256x128xf32>
    %219 = arith.addf %217, %218 : vector<256x128xf32>
    %cst_107 = arith.constant dense<0.000000e+00> : vector<256xf32>
    %220 = vector.multi_reduction <add>, %219, %cst_107 [1] : vector<256x128xf32> to vector<256xf32>
    %221 = vector.shape_cast %220 : vector<256xf32> to vector<256x1xf32>
    %cst_108 = arith.constant 3.125000e-02 : f32
    %222 = vector.broadcast %cst_108 : f32 to vector<256x1xf32>
    %223 = arith.mulf %221, %222 : vector<256x1xf32>
    %224 = arith.mulf %219, %219 : vector<256x128xf32>
    %cst_109 = arith.constant dense<0.000000e+00> : vector<256xf32>
    %225 = vector.multi_reduction <add>, %224, %cst_109 [1] : vector<256x128xf32> to vector<256xf32>
    %226 = vector.shape_cast %225 : vector<256xf32> to vector<256x1xf32>
    %cst_110 = arith.constant 3.125000e-02 : f32
    %227 = vector.broadcast %cst_110 : f32 to vector<256x1xf32>
    %228 = arith.mulf %226, %227 : vector<256x1xf32>
    %229 = vector.broadcast %223 : vector<256x1xf32> to vector<256x128xf32>
    %230 = arith.subf %219, %229 : vector<256x128xf32>
    %231 = arith.mulf %223, %223 : vector<256x1xf32>
    %232 = arith.subf %228, %231 : vector<256x1xf32>
    %cst_111 = arith.constant 9.99999974E-6 : f32
    %233 = vector.broadcast %cst_111 : f32 to vector<256x1xf32>
    %234 = arith.addf %232, %233 : vector<256x1xf32>
    %235 = math.rsqrt %234 : vector<256x1xf32>
    %236 = vector.broadcast %235 : vector<256x1xf32> to vector<256x128xf32>
    %237 = arith.mulf %230, %236 : vector<256x128xf32>
    %238 = vector.broadcast %127 : vector<1x128xf32> to vector<256x128xf32>
    %239 = arith.mulf %237, %238 : vector<256x128xf32>
    %240 = vector.broadcast %129 : vector<1x128xf32> to vector<256x128xf32>
    %241 = arith.addf %239, %240 : vector<256x128xf32>
    %242 = arith.truncf %241 : vector<256x128xf32> to vector<256x128xbf16>
    %c0_112 = arith.constant 0 : index
    %c0_113 = arith.constant 0 : index
    %243 = vector.load %arg12[%c0_112, %c0_113] : memref<128x128xbf16, #tpu.memory_space<vmem>>, vector<128x128xbf16>
    %cst_114 = arith.constant dense<0.000000e+00> : vector<256x128xf32>
    %244 = tpu.matmul %242, %243, %cst_114 {dimension_numbers = #tpu.dot_dimension_numbers<[1], [0], [0], [1], [0, 0, 1, 1], [], []>} : vector<256x128xbf16>, vector<128x128xbf16>, vector<256x128xf32> -> vector<256x128xf32>
    %c0_115 = arith.constant 0 : index
    %c0_116 = arith.constant 0 : index
    %245 = vector.load %arg13[%c0_115, %c0_116] : memref<1x128xf32, #tpu.memory_space<vmem>>, vector<1x128xf32>
    %246 = vector.broadcast %245 : vector<1x128xf32> to vector<256x128xf32>
    %247 = arith.addf %244, %246 : vector<256x128xf32>
    %cst_117 = arith.constant 0.000000e+00 : f32
    %248 = vector.broadcast %cst_117 : f32 to vector<256x128xf32>
    %249 = arith.maximumf %247, %248 : vector<256x128xf32>
    %c0_118 = arith.constant 0 : index
    %c0_119 = arith.constant 0 : index
    %250 = vector.load %arg17[%c0_118, %c0_119] : memref<256x128xf32, #tpu.memory_space<vmem>>, vector<256x128xf32>
    tpu.vector_store %arg17[%c0_118, %c0_119], %249 {strides = array<i32>} : memref<256x128xf32, #tpu.memory_space<vmem>>, vector<256x128xf32>,
    %251 = arith.truncf %249 : vector<256x128xf32> to vector<256x128xbf16>
    %c0_120 = arith.constant 0 : index
    %c0_121 = arith.constant 0 : index
    %252 = vector.load %arg14[%c0_120, %c0_121] : memref<128x128xbf16, #tpu.memory_space<vmem>>, vector<128x128xbf16>
    %cst_122 = arith.constant dense<0.000000e+00> : vector<256x128xf32>
    %253 = tpu.matmul %251, %252, %cst_122 {dimension_numbers = #tpu.dot_dimension_numbers<[1], [0], [0], [1], [0, 0, 1, 1], [], []>} : vector<256x128xbf16>, vector<128x128xbf16>, vector<256x128xf32> -> vector<256x128xf32>
    %c0_123 = arith.constant 0 : index
    %c0_124 = arith.constant 0 : index
    %254 = vector.load %arg15[%c0_123, %c0_124] : memref<1x128xf32, #tpu.memory_space<vmem>>, vector<1x128xf32>
    %255 = vector.broadcast %254 : vector<1x128xf32> to vector<256x128xf32>
    %256 = arith.addf %253, %255 : vector<256x128xf32>
    %c0_125 = arith.constant 0 : index
    %c0_126 = arith.constant 0 : index
    %257 = vector.load %arg16[%c0_125, %c0_126] : memref<256x128xf32, #tpu.memory_space<vmem>>, vector<256x128xf32>
    tpu.vector_store %arg16[%c0_125, %c0_126], %256 {strides = array<i32>} : memref<256x128xf32, #tpu.memory_space<vmem>>, vector<256x128xf32>,
    return
  }
}

</mosaic_0001>

<llo_original>
// kernel: tpu_custom_call.1
$region0: #{tpu_custom_call.1}
  #allocation0 [shape = 'u32[]', space=smem, size = 0x4, offset = 0x4, fixed_abs, tag = 'smem constant byte address 0x4 - core index']
  #allocation1 [shape = 'u32[72,128]{1,0:T(1,128)}', space=vmem, size = 0x9000, scoped, tag = 'internal scratch']
  %s0 = inlined_call_operand.hbm [shape: bf16[256,256], index: 0, kind: input, shape index: {}]
  %s1 = inlined_call_operand.hbm [shape: f32[256,128], index: 1, kind: input, shape index: {}]
  %s2 = inlined_call_operand.hbm [shape: bf16[2,128,384], index: 2, kind: input, shape index: {}]
  %s3 = inlined_call_operand.hbm [shape: f32[2,1,384], index: 3, kind: input, shape index: {}]
  %s4 = inlined_call_operand.hbm [shape: bf16[2,128,128], index: 4, kind: input, shape index: {}]
  %s5 = inlined_call_operand.vmem [shape: f32[2,1,128], index: 5, kind: input, shape index: {}]
  %s6 = inlined_call_operand.vmem [shape: f32[2,1,128], index: 6, kind: input, shape index: {}]
  %s7 = inlined_call_operand.vmem [shape: f32[2,1,128], index: 7, kind: input, shape index: {}]
  %s8 = inlined_call_operand.hbm [shape: bf16[2,128,128], index: 8, kind: input, shape index: {}]
  %s9 = inlined_call_operand.vmem [shape: f32[2,1,128], index: 9, kind: input, shape index: {}]
  %s10 = inlined_call_operand.hbm [shape: bf16[2,128,128], index: 10, kind: input, shape index: {}]
  %s11 = inlined_call_operand.vmem [shape: f32[2,1,128], index: 11, kind: input, shape index: {}]
  %s12 = inlined_call_operand.hbm [shape: bf16[128,128], index: 12, kind: input, shape index: {}]
  %s13 = inlined_call_operand.vmem [shape: f32[1,128], index: 13, kind: input, shape index: {}]
  %s14 = inlined_call_operand.hbm [shape: bf16[128,128], index: 14, kind: input, shape index: {}]
  %s15 = inlined_call_operand.vmem [shape: f32[1,128], index: 15, kind: input, shape index: {}]
  %s16 = inlined_call_operand.hbm [shape: f32[256,128], index: 16, kind: output, shape index: {0}]
  %s17 = inlined_call_operand.hbm [shape: f32[256,128], index: 17, kind: output, shape index: {1}]
  %18 = xla_tuple %s16, %s17
  %s19 = sld [smem:[#allocation0]]
  $region118: #{tpu_custom_call.1} parent=0
    _
  %s21 = ssub.s32 1, %s19
  %s22 = scalar_select 0, %s21, %s19
  $region1: #{tpu_custom_call.1} parent=0
    #allocation2 [shape = 'u8[131072]{0}', space=vmem, size = 0x20000, scoped, tag = 'input window, operand 0, single buffered']
    #allocation3 [shape = 's32[1]{0}', space=sflag, size = 0x4, scoped, tag = 'scoped memory for tpu_custom_call.1']
    #allocation4 [shape = 's32[1]{0}', space=sflag, size = 0x4, scoped, tag = 'scoped memory for tpu_custom_call.1']
    #allocation5 [shape = 'u8[131072]{0}', space=vmem, size = 0x20000, scoped, tag = 'input window, operand 1, single buffered']
    #allocation6 [shape = 's32[1]{0}', space=sflag, size = 0x4, scoped, tag = 'scoped memory for tpu_custom_call.1']
    #allocation7 [shape = 'u8[196608]{0}', space=vmem, size = 0x30000, scoped, tag = 'input window, operand 2, single buffered']
    #allocation8 [shape = 'u8[3072]{0}', space=vmem, size = 0xc00, scoped, tag = 'input window, operand 3, single buffered']
    #allocation9 [shape = 's32[1]{0}', space=sflag, size = 0x4, scoped, tag = 'scoped memory for tpu_custom_call.1']
    #allocation10 [shape = 'u8[65536]{0}', space=vmem, size = 0x10000, scoped, tag = 'input window, operand 4, single buffered']
    #allocation11 [shape = 'u8[65536]{0}', space=vmem, size = 0x10000, scoped, tag = 'input window, operand 8, single buffered']
    #allocation12 [shape = 's32[1]{0}', space=sflag, size = 0x4, scoped, tag = 'scoped memory for tpu_custom_call.1']
    #allocation13 [shape = 'u8[65536]{0}', space=vmem, size = 0x10000, scoped, tag = 'input window, operand 10, single buffered']
    #allocation14 [shape = 'u8[32768]{0}', space=vmem, size = 0x8000, scoped, tag = 'input window, operand 12, single buffered']
    #allocation15 [shape = 's32[1]{0}', space=sflag, size = 0x4, scoped, tag = 'scoped memory for tpu_custom_call.1']
    #allocation16 [shape = 'u8[32768]{0}', space=vmem, size = 0x8000, scoped, tag = 'input window, operand 14, single buffered']
    #allocation17 [shape = 'u8[131072]{0}', space=vmem, size = 0x20000, scoped, tag = 'output window, operand 0, single buffered']
    #allocation18 [shape = 'u8[131072]{0}', space=vmem, size = 0x20000, scoped, tag = 'output window, operand 1, single buffered']
    #allocation19 [shape = 's32[1]{0}', space=sflag, size = 0x4, scoped, tag = 'scoped memory for tpu_custom_call.1']
    %23 = vsyncpa [#allocation3], 0
    %24 = vsyncpa [#allocation6], 0
    %25 = vsyncpa [#allocation9], 0
    %26 = vsyncpa [#allocation12], 0
    %27 = vsyncpa [#allocation15], 0
    %28 = vsyncpa [#allocation4], 0
    %29 = vsyncpa [#allocation19], 0
    // Predicated region
    $region2: #{tpu_custom_call.1} parent=1 // pred_check
      _
    $region3: #{tpu_custom_call.1} parent=1 // pred_check_branch
      %31 = sbr.rel (0) target = $region5
    $region4: #{tpu_custom_call.1} parent=1 // pred_region
      %33 = vsyncadd [#allocation3], 0
      %s34 = sshll.u32 %s0, 4
      %s35 = int_to_ptr.hbm [resolvable:$true] %s34
      %s36 = sshll.u32 [#allocation2], 4
      %s37 = int_to_ptr.vmem [resolvable:$true] %s36
      %42 = dma.hbm_to_vmem [thread:$0]  %s35, 4096, %s37, [#allocation3], 128, 128, 8
    $region5: #{tpu_custom_call.1} parent=1 // pred_fallthru
      _
    // Predicated region
    $region6: #{tpu_custom_call.1} parent=1 // pred_check
      _
    $region7: #{tpu_custom_call.1} parent=1 // pred_check_branch
      %44 = sbr.rel (0) target = $region9
    $region8: #{tpu_custom_call.1} parent=1 // pred_region
      %46 = vsyncadd [#allocation6], 0
      %s47 = sshll.u32 %s1, 4
      %s48 = int_to_ptr.hbm [resolvable:$true] %s47
      %s49 = sshll.u32 [#allocation5], 4
      %s50 = int_to_ptr.vmem [resolvable:$true] %s49
      %55 = dma.hbm_to_vmem [thread:$0]  %s48, 4096, %s50, [#allocation6], 128, 128, 8
    $region9: #{tpu_custom_call.1} parent=1 // pred_fallthru
      _
    // Predicated region
    $region10: #{tpu_custom_call.1} parent=1 // pred_check
      _
    $region11: #{tpu_custom_call.1} parent=1 // pred_check_branch
      %57 = sbr.rel (0) target = $region13
    $region12: #{tpu_custom_call.1} parent=1 // pred_region
      %59 = vsyncadd [#allocation6], 0
      %s60 = sshll.u32 %s2, 4
      %s61 = int_to_ptr.hbm [resolvable:$true] %s60
      %s62 = sshll.u32 [#allocation7], 4
      %s63 = int_to_ptr.vmem [resolvable:$true] %s62
      %68 = dma.hbm_to_vmem [thread:$0]  %s61, 6144, %s63, [#allocation6], 192, 192, 12
    $region13: #{tpu_custom_call.1} parent=1 // pred_fallthru
      _
    // Predicated region
    $region14: #{tpu_custom_call.1} parent=1 // pred_check
      _
    $region15: #{tpu_custom_call.1} parent=1 // pred_check_branch
      %70 = sbr.rel (0) target = $region17
    $region16: #{tpu_custom_call.1} parent=1 // pred_region
      %72 = vsyncadd [#allocation9], 0
      %s73 = sshll.u32 %s3, 4
      %s74 = int_to_ptr.hbm [resolvable:$true] %s73
      %s75 = sshll.u32 [#allocation8], 4
      %s76 = int_to_ptr.vmem [resolvable:$true] %s75
      %81 = dma.hbm_to_vmem [thread:$0]  %s74, 96, %s76, [#allocation9], 48, 48, 3
    $region17: #{tpu_custom_call.1} parent=1 // pred_fallthru
      _
    // Predicated region
    $region18: #{tpu_custom_call.1} parent=1 // pred_check
      _
    $region19: #{tpu_custom_call.1} parent=1 // pred_check_branch
      %83 = sbr.rel (0) target = $region21
    $region20: #{tpu_custom_call.1} parent=1 // pred_region
      %85 = vsyncadd [#allocation9], 0
      %s86 = sshll.u32 %s4, 4
      %s87 = int_to_ptr.hbm [resolvable:$true] %s86
      %s88 = sshll.u32 [#allocation10], 4
      %s89 = int_to_ptr.vmem [resolvable:$true] %s88
      %94 = dma.hbm_to_vmem [thread:$0]  %s87, 2048, %s89, [#allocation9], 64, 64, 4
    $region21: #{tpu_custom_call.1} parent=1 // pred_fallthru
      _
    // Predicated region
    $region22: #{tpu_custom_call.1} parent=1 // pred_check
      _
    $region23: #{tpu_custom_call.1} parent=1 // pred_check_branch
      %96 = sbr.rel (0) target = $region25
    $region24: #{tpu_custom_call.1} parent=1 // pred_region
      _
    $region25: #{tpu_custom_call.1} parent=1 // pred_fallthru
      _
    // Predicated region
    $region26: #{tpu_custom_call.1} parent=1 // pred_check
      _
    $region27: #{tpu_custom_call.1} parent=1 // pred_check_branch
      %98 = sbr.rel (0) target = $region29
    $region28: #{tpu_custom_call.1} parent=1 // pred_region
      _
    $region29: #{tpu_custom_call.1} parent=1 // pred_fallthru
      _
    // Predicated region
    $region30: #{tpu_custom_call.1} parent=1 // pred_check
      _
    $region31: #{tpu_custom_call.1} parent=1 // pred_check_branch
      %100 = sbr.rel (0) target = $region33
    $region32: #{tpu_custom_call.1} parent=1 // pred_region
      _
    $region33: #{tpu_custom_call.1} parent=1 // pred_fallthru
      _
    // Predicated region
    $region34: #{tpu_custom_call.1} parent=1 // pred_check
      _
    $region35: #{tpu_custom_call.1} parent=1 // pred_check_branch
      %102 = sbr.rel (0) target = $region37
    $region36: #{tpu_custom_call.1} parent=1 // pred_region
      %104 = vsyncadd [#allocation12], 0
      %s105 = sshll.u32 %s8, 4
      %s106 = int_to_ptr.hbm [resolvable:$true] %s105
      %s107 = sshll.u32 [#allocation11], 4
      %s108 = int_to_ptr.vmem [resolvable:$true] %s107
      %113 = dma.hbm_to_vmem [thread:$0]  %s106, 2048, %s108, [#allocation12], 64, 64, 4
    $region37: #{tpu_custom_call.1} parent=1 // pred_fallthru
      _
    // Predicated region
    $region38: #{tpu_custom_call.1} parent=1 // pred_check
      _
    $region39: #{tpu_custom_call.1} parent=1 // pred_check_branch
      %115 = sbr.rel (0) target = $region41
    $region40: #{tpu_custom_call.1} parent=1 // pred_region
      _
    $region41: #{tpu_custom_call.1} parent=1 // pred_fallthru
      _
    // Predicated region
    $region42: #{tpu_custom_call.1} parent=1 // pred_check
      _
    $region43: #{tpu_custom_call.1} parent=1 // pred_check_branch
      %117 = sbr.rel (0) target = $region45
    $region44: #{tpu_custom_call.1} parent=1 // pred_region
      %119 = vsyncadd [#allocation12], 0
      %s120 = sshll.u32 %s10, 4
      %s121 = int_to_ptr.hbm [resolvable:$true] %s120
      %s122 = sshll.u32 [#allocation13], 4
      %s123 = int_to_ptr.vmem [resolvable:$true] %s122
      %128 = dma.hbm_to_vmem [thread:$0]  %s121, 2048, %s123, [#allocation12], 64, 64, 4
    $region45: #{tpu_custom_call.1} parent=1 // pred_fallthru
      _
    // Predicated region
    $region46: #{tpu_custom_call.1} parent=1 // pred_check
      _
    $region47: #{tpu_custom_call.1} parent=1 // pred_check_branch
      %130 = sbr.rel (0) target = $region49
    $region48: #{tpu_custom_call.1} parent=1 // pred_region
      _
    $region49: #{tpu_custom_call.1} parent=1 // pred_fallthru
      _
    // Predicated region
    $region50: #{tpu_custom_call.1} parent=1 // pred_check
      _
    $region51: #{tpu_custom_call.1} parent=1 // pred_check_branch
      %132 = sbr.rel (0) target = $region53
    $region52: #{tpu_custom_call.1} parent=1 // pred_region
      %134 = vsyncadd [#allocation15], 0
      %s135 = sshll.u32 %s12, 4
      %s136 = int_to_ptr.hbm [resolvable:$true] %s135
      %s137 = sshll.u32 [#allocation14], 4
      %s138 = int_to_ptr.vmem [resolvable:$true] %s137
      %143 = dma.hbm_to_vmem [thread:$0]  %s136, 1024, %s138, [#allocation15], 64, 64, 4
    $region53: #{tpu_custom_call.1} parent=1 // pred_fallthru
      _
    // Predicated region
    $region54: #{tpu_custom_call.1} parent=1 // pred_check
      _
    $region55: #{tpu_custom_call.1} parent=1 // pred_check_branch
      %145 = sbr.rel (0) target = $region57
    $region56: #{tpu_custom_call.1} parent=1 // pred_region
      _
    $region57: #{tpu_custom_call.1} parent=1 // pred_fallthru
      _
    // Predicated region
    $region58: #{tpu_custom_call.1} parent=1 // pred_check
      _
    $region59: #{tpu_custom_call.1} parent=1 // pred_check_branch
      %147 = sbr.rel (0) target = $region61
    $region60: #{tpu_custom_call.1} parent=1 // pred_region
      %149 = vsyncadd [#allocation15], 0
      %s150 = sshll.u32 %s14, 4
      %s151 = int_to_ptr.hbm [resolvable:$true] %s150
      %s152 = sshll.u32 [#allocation16], 4
      %s153 = int_to_ptr.vmem [resolvable:$true] %s152
      %158 = dma.hbm_to_vmem [thread:$0]  %s151, 1024, %s153, [#allocation15], 64, 64, 4
    $region61: #{tpu_custom_call.1} parent=1 // pred_fallthru
      _
    // Predicated region
    $region62: #{tpu_custom_call.1} parent=1 // pred_check
      _
    $region63: #{tpu_custom_call.1} parent=1 // pred_check_branch
      %160 = sbr.rel (0) target = $region65
    $region64: #{tpu_custom_call.1} parent=1 // pred_region
      _
    $region65: #{tpu_custom_call.1} parent=1 // pred_fallthru
      _
    // Predicated region
    $region66: #{tpu_custom_call.1} parent=1 // pred_check
      _
    $region67: #{tpu_custom_call.1} parent=1 // pred_check_branch
      %162 = sbr.rel (0) target = $region69
    $region68: #{tpu_custom_call.1} parent=1 // pred_region
      %164 = dma.done [#allocation3], 4096
    $region69: #{tpu_custom_call.1} parent=1 // pred_fallthru
      _
    // Predicated region
    $region70: #{tpu_custom_call.1} parent=1 // pred_check
      _
    $region71: #{tpu_custom_call.1} parent=1 // pred_check_branch
      %166 = sbr.rel (0) target = $region73
    $region72: #{tpu_custom_call.1} parent=1 // pred_region
      %168 = dma.done [#allocation6], 4096
    $region73: #{tpu_custom_call.1} parent=1 // pred_fallthru
      _
    // Predicated region
    $region74: #{tpu_custom_call.1} parent=1 // pred_check
      _
    $region75: #{tpu_custom_call.1} parent=1 // pred_check_branch
      %170 = sbr.rel (0) target = $region77
    $region76: #{tpu_custom_call.1} parent=1 // pred_region
      %172 = dma.done [#allocation6], 6144
    $region77: #{tpu_custom_call.1} parent=1 // pred_fallthru
      _
    // Predicated region
    $region78: #{tpu_custom_call.1} parent=1 // pred_check
      _
    $region79: #{tpu_custom_call.1} parent=1 // pred_check_branch
      %174 = sbr.rel (0) target = $region81
    $region80: #{tpu_custom_call.1} parent=1 // pred_region
      %176 = dma.done [#allocation9], 96
    $region81: #{tpu_custom_call.1} parent=1 // pred_fallthru
      _
    // Predicated region
    $region82: #{tpu_custom_call.1} parent=1 // pred_check
      _
    $region83: #{tpu_custom_call.1} parent=1 // pred_check_branch
      %178 = sbr.rel (0) target = $region85
    $region84: #{tpu_custom_call.1} parent=1 // pred_region
      %180 = dma.done [#allocation9], 2048
    $region85: #{tpu_custom_call.1} parent=1 // pred_fallthru
      _
    // Predicated region
    $region86: #{tpu_custom_call.1} parent=1 // pred_check
      _
    $region87: #{tpu_custom_call.1} parent=1 // pred_check_branch
      %182 = sbr.rel (0) target = $region89
    $region88: #{tpu_custom_call.1} parent=1 // pred_region
      %184 = dma.done [#allocation12], 2048
    $region89: #{tpu_custom_call.1} parent=1 // pred_fallthru
      _
    // Predicated region
    $region90: #{tpu_custom_call.1} parent=1 // pred_check
      _
    $region91: #{tpu_custom_call.1} parent=1 // pred_check_branch
      %186 = sbr.rel (0) target = $region93
    $region92: #{tpu_custom_call.1} parent=1 // pred_region
      %188 = dma.done [#allocation12], 2048
    $region93: #{tpu_custom_call.1} parent=1 // pred_fallthru
      _
    // Predicated region
    $region94: #{tpu_custom_call.1} parent=1 // pred_check
      _
    $region95: #{tpu_custom_call.1} parent=1 // pred_check_branch
      %190 = sbr.rel (0) target = $region97
    $region96: #{tpu_custom_call.1} parent=1 // pred_region
      %192 = dma.done [#allocation15], 1024
    $region97: #{tpu_custom_call.1} parent=1 // pred_fallthru
      _
    // Predicated region
    $region98: #{tpu_custom_call.1} parent=1 // pred_check
      _
    $region99: #{tpu_custom_call.1} parent=1 // pred_check_branch
      %194 = sbr.rel (0) target = $region101
    $region100: #{tpu_custom_call.1} parent=1 // pred_region
      %196 = dma.done [#allocation15], 1024
    $region101: #{tpu_custom_call.1} parent=1 // pred_fallthru
      _
    %v197 = vld [vmem:[#allocation2] sm:$0xff]
    %v198 = vld [vmem:[#allocation2 + $0x8] sm:$0xff]
    %v199 = vld [vmem:[#allocation2 + $0x10] sm:$0xff]
    %v200 = vld [vmem:[#allocation2 + $0x18] sm:$0xff]
    %v201 = vld [vmem:[#allocation2 + $0x20] sm:$0xff]
    %v202 = vld [vmem:[#allocation2 + $0x28] sm:$0xff]
    %v203 = vld [vmem:[#allocation2 + $0x30] sm:$0xff]
    %v204 = vld [vmem:[#allocation2 + $0x38] sm:$0xff]
    %v205 = vld [vmem:[#allocation2 + $0x40] sm:$0xff]
    %v206 = vld [vmem:[#allocation2 + $0x48] sm:$0xff]
    %v207 = vld [vmem:[#allocation2 + $0x50] sm:$0xff]
    %v208 = vld [vmem:[#allocation2 + $0x58] sm:$0xff]
    %v209 = vld [vmem:[#allocation2 + $0x60] sm:$0xff]
    %v210 = vld [vmem:[#allocation2 + $0x68] sm:$0xff]
    %v211 = vld [vmem:[#allocation2 + $0x70] sm:$0xff]
    %v212 = vld [vmem:[#allocation2 + $0x78] sm:$0xff]
    %v213 = vld [vmem:[#allocation2 + $0x80] sm:$0xff]
    %v214 = vld [vmem:[#allocation2 + $0x88] sm:$0xff]
    %v215 = vld [vmem:[#allocation2 + $0x90] sm:$0xff]
    %v216 = vld [vmem:[#allocation2 + $0x98] sm:$0xff]
    %v217 = vld [vmem:[#allocation2 + $0xa0] sm:$0xff]
    %v218 = vld [vmem:[#allocation2 + $0xa8] sm:$0xff]
    %v219 = vld [vmem:[#allocation2 + $0xb0] sm:$0xff]
    %v220 = vld [vmem:[#allocation2 + $0xb8] sm:$0xff]
    %v221 = vld [vmem:[#allocation2 + $0xc0] sm:$0xff]
    %v222 = vld [vmem:[#allocation2 + $0xc8] sm:$0xff]
    %v223 = vld [vmem:[#allocation2 + $0xd0] sm:$0xff]
    %v224 = vld [vmem:[#allocation2 + $0xd8] sm:$0xff]
    %v225 = vld [vmem:[#allocation2 + $0xe0] sm:$0xff]
    %v226 = vld [vmem:[#allocation2 + $0xe8] sm:$0xff]
    %v227 = vld [vmem:[#allocation2 + $0xf0] sm:$0xff]
    %v228 = vld [vmem:[#allocation2 + $0xf8] sm:$0xff]
    %v229 = vld [vmem:[#allocation5] sm:$0xff]
    %v230 = vld [vmem:[#allocation5 + $0x8] sm:$0xff]
    %v231 = vld [vmem:[#allocation5 + $0x10] sm:$0xff]
    %v232 = vld [vmem:[#allocation5 + $0x18] sm:$0xff]
    %v233 = vld [vmem:[#allocation5 + $0x20] sm:$0xff]
    %v234 = vld [vmem:[#allocation5 + $0x28] sm:$0xff]
    %v235 = vld [vmem:[#allocation5 + $0x30] sm:$0xff]
    %v236 = vld [vmem:[#allocation5 + $0x38] sm:$0xff]
    %v237 = vld [vmem:[#allocation5 + $0x40] sm:$0xff]
    %v238 = vld [vmem:[#allocation5 + $0x48] sm:$0xff]
    %v239 = vld [vmem:[#allocation5 + $0x50] sm:$0xff]
    %v240 = vld [vmem:[#allocation5 + $0x58] sm:$0xff]
    %v241 = vld [vmem:[#allocation5 + $0x60] sm:$0xff]
    %v242 = vld [vmem:[#allocation5 + $0x68] sm:$0xff]
    %v243 = vld [vmem:[#allocation5 + $0x70] sm:$0xff]
    %v244 = vld [vmem:[#allocation5 + $0x78] sm:$0xff]
    %v245 = vld [vmem:[#allocation5 + $0x80] sm:$0xff]
    %v246 = vld [vmem:[#allocation5 + $0x88] sm:$0xff]
    %v247 = vld [vmem:[#allocation5 + $0x90] sm:$0xff]
    %v248 = vld [vmem:[#allocation5 + $0x98] sm:$0xff]
    %v249 = vld [vmem:[#allocation5 + $0xa0] sm:$0xff]
    %v250 = vld [vmem:[#allocation5 + $0xa8] sm:$0xff]
    %v251 = vld [vmem:[#allocation5 + $0xb0] sm:$0xff]
    %v252 = vld [vmem:[#allocation5 + $0xb8] sm:$0xff]
    %v253 = vld [vmem:[#allocation5 + $0xc0] sm:$0xff]
    %v254 = vld [vmem:[#allocation5 + $0xc8] sm:$0xff]
    %v255 = vld [vmem:[#allocation5 + $0xd0] sm:$0xff]
    %v256 = vld [vmem:[#allocation5 + $0xd8] sm:$0xff]
    %v257 = vld [vmem:[#allocation5 + $0xe0] sm:$0xff]
    %v258 = vld [vmem:[#allocation5 + $0xe8] sm:$0xff]
    %v259 = vld [vmem:[#allocation5 + $0xf0] sm:$0xff]
    %v260 = vld [vmem:[#allocation5 + $0xf8] sm:$0xff]
    %v261 = vlaneseq
    %v262 = vand.u32 %v261, 127
    %v263 = vadd.s32 %v262, 128
    %vm264 = vcmp.lt.s32.totalorder %v262, 8
    %vm265 = vcmp.lt.s32.totalorder %v263, 8
    %v266 = vsel %vm264, 0.0, -1e+30
    %v267 = vsel %vm265, 0.0, -1e+30
    %v268 = vld [vmem:[%s6] sm:$0x1]
    %v269 = vld [vmem:[%s7] sm:$0x1]
    %v270 = vld [vmem:[#allocation7] sm:$0xff]
    %v271 = vld [vmem:[#allocation7 + $0x8] sm:$0xf]
    %v272 = vld [vmem:[#allocation7 + $0xc] sm:$0xff]
    %v273 = vld [vmem:[#allocation7 + $0x14] sm:$0xf]
    %v274 = vld [vmem:[#allocation7 + $0x18] sm:$0xff]
    %v275 = vld [vmem:[#allocation7 + $0x20] sm:$0xf]
    %v276 = vld [vmem:[#allocation7 + $0x24] sm:$0xff]
    %v277 = vld [vmem:[#allocation7 + $0x2c] sm:$0xf]
    %v278 = vld [vmem:[#allocation7 + $0x30] sm:$0xff]
    %v279 = vld [vmem:[#allocation7 + $0x38] sm:$0xf]
    %v280 = vld [vmem:[#allocation7 + $0x3c] sm:$0xff]
    %v281 = vld [vmem:[#allocation7 + $0x44] sm:$0xf]
    %v282 = vld [vmem:[#allocation7 + $0x48] sm:$0xff]
    %v283 = vld [vmem:[#allocation7 + $0x50] sm:$0xf]
    %v284 = vld [vmem:[#allocation7 + $0x54] sm:$0xff]
    %v285 = vld [vmem:[#allocation7 + $0x5c] sm:$0xf]
    %v286 = vld [vmem:[#allocation7 + $0x60] sm:$0xff]
    %v287 = vld [vmem:[#allocation7 + $0x68] sm:$0xf]
    %v288 = vld [vmem:[#allocation7 + $0x6c] sm:$0xff]
    %v289 = vld [vmem:[#allocation7 + $0x74] sm:$0xf]
    %v290 = vld [vmem:[#allocation7 + $0x78] sm:$0xff]
    %v291 = vld [vmem:[#allocation7 + $0x80] sm:$0xf]
    %v292 = vld [vmem:[#allocation7 + $0x84] sm:$0xff]
    %v293 = vld [vmem:[#allocation7 + $0x8c] sm:$0xf]
    %v294 = vld [vmem:[#allocation7 + $0x90] sm:$0xff]
    %v295 = vld [vmem:[#allocation7 + $0x98] sm:$0xf]
    %v296 = vld [vmem:[#allocation7 + $0x9c] sm:$0xff]
    %v297 = vld [vmem:[#allocation7 + $0xa4] sm:$0xf]
    %v298 = vld [vmem:[#allocation7 + $0xa8] sm:$0xff]
    %v299 = vld [vmem:[#allocation7 + $0xb0] sm:$0xf]
    %v300 = vld [vmem:[#allocation7 + $0xb4] sm:$0xff]
    %v301 = vld [vmem:[#allocation7 + $0xbc] sm:$0xf]
    %v302 = vld [vmem:[#allocation8] sm:$0x7]
    %v303 = vpack.c.bf16 %v230, %v229
    %v304 = vpack.c.bf16 %v232, %v231
    %v305 = vpack.c.bf16 %v234, %v233
    %v306 = vpack.c.bf16 %v236, %v235
    %v307 = vpack.c.bf16 %v238, %v237
    %v308 = vpack.c.bf16 %v240, %v239
    %v309 = vpack.c.bf16 %v242, %v241
    %v310 = vpack.c.bf16 %v244, %v243
    %v311 = vpack.c.bf16 %v246, %v245
    %v312 = vpack.c.bf16 %v248, %v247
    %v313 = vpack.c.bf16 %v250, %v249
    %v314 = vpack.c.bf16 %v252, %v251
    %v315 = vpack.c.bf16 %v254, %v253
    %v316 = vpack.c.bf16 %v256, %v255
    %v317 = vpack.c.bf16 %v258, %v257
    %v318 = vpack.c.bf16 %v260, %v259
    %v351 = vunpack.c.l.b16 %v270
    %v352 = vunpack.c.h.b16 %v270
    %v353 = vunpack.c.l.b16 %v271
    %v354 = vunpack.c.l.b16 %v272
    %v355 = vunpack.c.h.b16 %v272
    %v356 = vunpack.c.l.b16 %v273
    %v357 = vunpack.c.l.b16 %v274
    %v358 = vunpack.c.h.b16 %v274
    %v359 = vunpack.c.l.b16 %v275
    %v360 = vunpack.c.l.b16 %v276
    %v361 = vunpack.c.h.b16 %v276
    %v362 = vunpack.c.l.b16 %v277
    %v363 = vunpack.c.l.b16 %v278
    %v364 = vunpack.c.h.b16 %v278
    %v365 = vunpack.c.l.b16 %v279
    %v366 = vunpack.c.l.b16 %v280
    %v367 = vunpack.c.h.b16 %v280
    %v368 = vunpack.c.l.b16 %v281
    %v369 = vunpack.c.l.b16 %v282
    %v370 = vunpack.c.h.b16 %v282
    %v371 = vunpack.c.l.b16 %v283
    %v372 = vunpack.c.l.b16 %v284
    %v373 = vunpack.c.h.b16 %v284
    %v374 = vunpack.c.l.b16 %v285
    %v375 = vunpack.c.l.b16 %v286
    %v376 = vunpack.c.h.b16 %v286
    %v377 = vunpack.c.l.b16 %v287
    %v378 = vunpack.c.l.b16 %v288
    %v379 = vunpack.c.h.b16 %v288
    %v380 = vunpack.c.l.b16 %v289
    %v381 = vunpack.c.l.b16 %v290
    %v382 = vunpack.c.h.b16 %v290
    %v383 = vunpack.c.l.b16 %v291
    %v384 = vunpack.c.l.b16 %v292
    %v385 = vunpack.c.h.b16 %v292
    %v386 = vunpack.c.l.b16 %v293
    %v387 = vunpack.c.l.b16 %v294
    %v388 = vunpack.c.h.b16 %v294
    %v389 = vunpack.c.l.b16 %v295
    %v390 = vunpack.c.l.b16 %v296
    %v391 = vunpack.c.h.b16 %v296
    %v392 = vunpack.c.l.b16 %v297
    %v393 = vunpack.c.l.b16 %v298
    %v394 = vunpack.c.h.b16 %v298
    %v395 = vunpack.c.l.b16 %v299
    %v396 = vunpack.c.l.b16 %v300
    %v397 = vunpack.c.h.b16 %v300
    %v398 = vunpack.c.l.b16 %v301
    %v399 = vpack.c.b16 %v354, %v351
    %v400 = vpack.c.b16 %v355, %v352
    %v401 = vpack.c.b16 %v356, %v353
    %v402 = vpack.c.b16 %v360, %v357
    %v403 = vpack.c.b16 %v361, %v358
    %v404 = vpack.c.b16 %v362, %v359
    %v405 = vpack.c.b16 %v366, %v363
    %v406 = vpack.c.b16 %v367, %v364
    %v407 = vpack.c.b16 %v368, %v365
    %v408 = vpack.c.b16 %v372, %v369
    %v409 = vpack.c.b16 %v373, %v370
    %v410 = vpack.c.b16 %v374, %v371
    %v411 = vpack.c.b16 %v378, %v375
    %v412 = vpack.c.b16 %v379, %v376
    %v413 = vpack.c.b16 %v380, %v377
    %v414 = vpack.c.b16 %v384, %v381
    %v415 = vpack.c.b16 %v385, %v382
    %v416 = vpack.c.b16 %v386, %v383
    %v417 = vpack.c.b16 %v390, %v387
    %v418 = vpack.c.b16 %v391, %v388
    %v419 = vpack.c.b16 %v392, %v389
    %v420 = vpack.c.b16 %v396, %v393
    %v421 = vpack.c.b16 %v397, %v394
    %v422 = vpack.c.b16 %v398, %v395
    %447 = vmatpush.bf16.msra.mxu0 %v420
    %448 = vmatpush.bf16.msra.mxu0 %v417
    %449 = vmatpush.bf16.msra.mxu0 %v414
    %450 = vmatpush.bf16.msra.mxu0 %v411
    %451 = vmatpush.bf16.msra.mxu0 %v408
    %452 = vmatpush.bf16.msra.mxu0 %v405
    %453 = vmatpush.bf16.msra.mxu0 %v402
    %454 = vmatpush.bf16.msra.mxu0 %v399
    %455 = vmatmul.bf16.gmra.mxu0 %v303
    %v456 = vpop.f32.mrf.mxu0
    %v457 = vadd.f32 0.0, %v456
    %v458 = vpop.f32.mrf.mxu0
    %v459 = vadd.f32 0.0, %v458
    %460 = vmatmul.bf16.gmra.mxu0 %v304
    %v461 = vpop.f32.mrf.mxu0
    %v462 = vadd.f32 0.0, %v461
    %v463 = vpop.f32.mrf.mxu0
    %v464 = vadd.f32 0.0, %v463
    %465 = vmatmul.bf16.gmra.mxu0 %v305
    %v466 = vpop.f32.mrf.mxu0
    %v467 = vadd.f32 0.0, %v466
    %v468 = vpop.f32.mrf.mxu0
    %v469 = vadd.f32 0.0, %v468
    %470 = vmatmul.bf16.gmra.mxu0 %v306
    %v471 = vpop.f32.mrf.mxu0
    %v472 = vadd.f32 0.0, %v471
    %v473 = vpop.f32.mrf.mxu0
    %v474 = vadd.f32 0.0, %v473
    %475 = vmatmul.bf16.gmra.mxu0 %v307
    %v476 = vpop.f32.mrf.mxu0
    %v477 = vadd.f32 0.0, %v476
    %v478 = vpop.f32.mrf.mxu0
    %v479 = vadd.f32 0.0, %v478
    %480 = vmatmul.bf16.gmra.mxu0 %v308
    %v481 = vpop.f32.mrf.mxu0
    %v482 = vadd.f32 0.0, %v481
    %v483 = vpop.f32.mrf.mxu0
    %v484 = vadd.f32 0.0, %v483
    %485 = vmatmul.bf16.gmra.mxu0 %v309
    %v486 = vpop.f32.mrf.mxu0
    %v487 = vadd.f32 0.0, %v486
    %v488 = vpop.f32.mrf.mxu0
    %v489 = vadd.f32 0.0, %v488
    %490 = vmatmul.bf16.gmra.mxu0 %v310
    %v491 = vpop.f32.mrf.mxu0
    %v492 = vadd.f32 0.0, %v491
    %v493 = vpop.f32.mrf.mxu0
    %v494 = vadd.f32 0.0, %v493
    %495 = vmatmul.bf16.gmra.mxu0 %v311
    %v496 = vpop.f32.mrf.mxu0
    %v497 = vadd.f32 0.0, %v496
    %v498 = vpop.f32.mrf.mxu0
    %v499 = vadd.f32 0.0, %v498
    %500 = vmatmul.bf16.gmra.mxu0 %v312
    %v501 = vpop.f32.mrf.mxu0
    %v502 = vadd.f32 0.0, %v501
    %v503 = vpop.f32.mrf.mxu0
    %v504 = vadd.f32 0.0, %v503
    %505 = vmatmul.bf16.gmra.mxu0 %v313
    %v506 = vpop.f32.mrf.mxu0
    %v507 = vadd.f32 0.0, %v506
    %v508 = vpop.f32.mrf.mxu0
    %v509 = vadd.f32 0.0, %v508
    %510 = vmatmul.bf16.gmra.mxu0 %v314
    %v511 = vpop.f32.mrf.mxu0
    %v512 = vadd.f32 0.0, %v511
    %v513 = vpop.f32.mrf.mxu0
    %v514 = vadd.f32 0.0, %v513
    %515 = vmatmul.bf16.gmra.mxu0 %v315
    %v516 = vpop.f32.mrf.mxu0
    %v517 = vadd.f32 0.0, %v516
    %v518 = vpop.f32.mrf.mxu0
    %v519 = vadd.f32 0.0, %v518
    %520 = vmatmul.bf16.gmra.mxu0 %v316
    %v521 = vpop.f32.mrf.mxu0
    %v522 = vadd.f32 0.0, %v521
    %v523 = vpop.f32.mrf.mxu0
    %v524 = vadd.f32 0.0, %v523
    %525 = vmatmul.bf16.gmra.mxu0 %v317
    %v526 = vpop.f32.mrf.mxu0
    %v527 = vadd.f32 0.0, %v526
    %v528 = vpop.f32.mrf.mxu0
    %v529 = vadd.f32 0.0, %v528
    %530 = vmatmul.bf16.gmra.mxu0 %v318
    %v531 = vpop.f32.mrf.mxu0
    %v532 = vadd.f32 0.0, %v531
    %v533 = vpop.f32.mrf.mxu0
    %v534 = vadd.f32 0.0, %v533
    %535 = vdwg.mxu0
    %536 = vmatpush.bf16.msra.mxu0 %v421
    %537 = vmatpush.bf16.msra.mxu0 %v418
    %538 = vmatpush.bf16.msra.mxu0 %v415
    %539 = vmatpush.bf16.msra.mxu0 %v412
    %540 = vmatpush.bf16.msra.mxu0 %v409
    %541 = vmatpush.bf16.msra.mxu0 %v406
    %542 = vmatpush.bf16.msra.mxu0 %v403
    %543 = vmatpush.bf16.msra.mxu0 %v400
    %544 = vmatmul.bf16.gmra.mxu0 %v303
    %v545 = vpop.f32.mrf.mxu0
    %v546 = vadd.f32 0.0, %v545
    %v547 = vpop.f32.mrf.mxu0
    %v548 = vadd.f32 0.0, %v547
    %549 = vmatmul.bf16.gmra.mxu0 %v304
    %v550 = vpop.f32.mrf.mxu0
    %v551 = vadd.f32 0.0, %v550
    %v552 = vpop.f32.mrf.mxu0
    %v553 = vadd.f32 0.0, %v552
    %554 = vmatmul.bf16.gmra.mxu0 %v305
    %v555 = vpop.f32.mrf.mxu0
    %v556 = vadd.f32 0.0, %v555
    %v557 = vpop.f32.mrf.mxu0
    %v558 = vadd.f32 0.0, %v557
    %559 = vmatmul.bf16.gmra.mxu0 %v306
    %v560 = vpop.f32.mrf.mxu0
    %v561 = vadd.f32 0.0, %v560
    %v562 = vpop.f32.mrf.mxu0
    %v563 = vadd.f32 0.0, %v562
    %564 = vmatmul.bf16.gmra.mxu0 %v307
    %v565 = vpop.f32.mrf.mxu0
    %v566 = vadd.f32 0.0, %v565
    %v567 = vpop.f32.mrf.mxu0
    %v568 = vadd.f32 0.0, %v567
    %569 = vmatmul.bf16.gmra.mxu0 %v308
    %v570 = vpop.f32.mrf.mxu0
    %v571 = vadd.f32 0.0, %v570
    %v572 = vpop.f32.mrf.mxu0
    %v573 = vadd.f32 0.0, %v572
    %574 = vmatmul.bf16.gmra.mxu0 %v309
    %v575 = vpop.f32.mrf.mxu0
    %v576 = vadd.f32 0.0, %v575
    %v577 = vpop.f32.mrf.mxu0
    %v578 = vadd.f32 0.0, %v577
    %579 = vmatmul.bf16.gmra.mxu0 %v310
    %v580 = vpop.f32.mrf.mxu0
    %v581 = vadd.f32 0.0, %v580
    %v582 = vpop.f32.mrf.mxu0
    %v583 = vadd.f32 0.0, %v582
    %584 = vmatmul.bf16.gmra.mxu0 %v311
    %v585 = vpop.f32.mrf.mxu0
    %v586 = vadd.f32 0.0, %v585
    %v587 = vpop.f32.mrf.mxu0
    %v588 = vadd.f32 0.0, %v587
    %589 = vmatmul.bf16.gmra.mxu0 %v312
    %v590 = vpop.f32.mrf.mxu0
    %v591 = vadd.f32 0.0, %v590
    %v592 = vpop.f32.mrf.mxu0
    %v593 = vadd.f32 0.0, %v592
    %594 = vmatmul.bf16.gmra.mxu0 %v313
    %v595 = vpop.f32.mrf.mxu0
    %v596 = vadd.f32 0.0, %v595
    %v597 = vpop.f32.mrf.mxu0
    %v598 = vadd.f32 0.0, %v597
    %599 = vmatmul.bf16.gmra.mxu0 %v314
    %v600 = vpop.f32.mrf.mxu0
    %v601 = vadd.f32 0.0, %v600
    %v602 = vpop.f32.mrf.mxu0
    %v603 = vadd.f32 0.0, %v602
    %604 = vmatmul.bf16.gmra.mxu0 %v315
    %v605 = vpop.f32.mrf.mxu0
    %v606 = vadd.f32 0.0, %v605
    %v607 = vpop.f32.mrf.mxu0
    %v608 = vadd.f32 0.0, %v607
    %609 = vmatmul.bf16.gmra.mxu0 %v316
    %v610 = vpop.f32.mrf.mxu0
    %v611 = vadd.f32 0.0, %v610
    %v612 = vpop.f32.mrf.mxu0
    %v613 = vadd.f32 0.0, %v612
    %614 = vmatmul.bf16.gmra.mxu0 %v317
    %v615 = vpop.f32.mrf.mxu0
    %v616 = vadd.f32 0.0, %v615
    %v617 = vpop.f32.mrf.mxu0
    %v618 = vadd.f32 0.0, %v617
    %619 = vmatmul.bf16.gmra.mxu0 %v318
    %v620 = vpop.f32.mrf.mxu0
    %v621 = vadd.f32 0.0, %v620
    %v622 = vpop.f32.mrf.mxu0
    %v623 = vadd.f32 0.0, %v622
    %624 = vdwg.mxu0
    %625 = vmatpush.bf16.msra.mxu0 %v422
    %626 = vmatpush.bf16.msra.mxu0 %v419
    %627 = vmatpush.bf16.msra.mxu0 %v416
    %628 = vmatpush.bf16.msra.mxu0 %v413
    %629 = vmatpush.bf16.msra.mxu0 %v410
    %630 = vmatpush.bf16.msra.mxu0 %v407
    %631 = vmatpush.bf16.msra.mxu0 %v404
    %632 = vmatpush.bf16.msra.mxu0 %v401
    %633 = vmatmul.bf16.gmra.mxu0 %v303
    %v634 = vpop.f32.mrf.mxu0
    %v635 = vadd.f32 0.0, %v634
    %v636 = vpop.f32.mrf.mxu0
    %v637 = vadd.f32 0.0, %v636
    %638 = vmatmul.bf16.gmra.mxu0 %v304
    %v639 = vpop.f32.mrf.mxu0
    %v640 = vadd.f32 0.0, %v639
    %v641 = vpop.f32.mrf.mxu0
    %v642 = vadd.f32 0.0, %v641
    %643 = vmatmul.bf16.gmra.mxu0 %v305
    %v644 = vpop.f32.mrf.mxu0
    %v645 = vadd.f32 0.0, %v644
    %v646 = vpop.f32.mrf.mxu0
    %v647 = vadd.f32 0.0, %v646
    %648 = vmatmul.bf16.gmra.mxu0 %v306
    %v649 = vpop.f32.mrf.mxu0
    %v650 = vadd.f32 0.0, %v649
    %v651 = vpop.f32.mrf.mxu0
    %v652 = vadd.f32 0.0, %v651
    %653 = vmatmul.bf16.gmra.mxu0 %v307
    %v654 = vpop.f32.mrf.mxu0
    %v655 = vadd.f32 0.0, %v654
    %v656 = vpop.f32.mrf.mxu0
    %v657 = vadd.f32 0.0, %v656
    %658 = vmatmul.bf16.gmra.mxu0 %v308
    %v659 = vpop.f32.mrf.mxu0
    %v660 = vadd.f32 0.0, %v659
    %v661 = vpop.f32.mrf.mxu0
    %v662 = vadd.f32 0.0, %v661
    %663 = vmatmul.bf16.gmra.mxu0 %v309
    %v664 = vpop.f32.mrf.mxu0
    %v665 = vadd.f32 0.0, %v664
    %v666 = vpop.f32.mrf.mxu0
    %v667 = vadd.f32 0.0, %v666
    %668 = vmatmul.bf16.gmra.mxu0 %v310
    %v669 = vpop.f32.mrf.mxu0
    %v670 = vadd.f32 0.0, %v669
    %v671 = vpop.f32.mrf.mxu0
    %v672 = vadd.f32 0.0, %v671
    %673 = vmatmul.bf16.gmra.mxu0 %v311
    %v674 = vpop.f32.mrf.mxu0
    %v675 = vadd.f32 0.0, %v674
    %v676 = vpop.f32.mrf.mxu0
    %v677 = vadd.f32 0.0, %v676
    %678 = vmatmul.bf16.gmra.mxu0 %v312
    %v679 = vpop.f32.mrf.mxu0
    %v680 = vadd.f32 0.0, %v679
    %v681 = vpop.f32.mrf.mxu0
    %v682 = vadd.f32 0.0, %v681
    %683 = vmatmul.bf16.gmra.mxu0 %v313
    %v684 = vpop.f32.mrf.mxu0
    %v685 = vadd.f32 0.0, %v684
    %v686 = vpop.f32.mrf.mxu0
    %v687 = vadd.f32 0.0, %v686
    %688 = vmatmul.bf16.gmra.mxu0 %v314
    %v689 = vpop.f32.mrf.mxu0
    %v690 = vadd.f32 0.0, %v689
    %v691 = vpop.f32.mrf.mxu0
    %v692 = vadd.f32 0.0, %v691
    %693 = vmatmul.bf16.gmra.mxu0 %v315
    %v694 = vpop.f32.mrf.mxu0
    %v695 = vadd.f32 0.0, %v694
    %v696 = vpop.f32.mrf.mxu0
    %v697 = vadd.f32 0.0, %v696
    %698 = vmatmul.bf16.gmra.mxu0 %v316
    %v699 = vpop.f32.mrf.mxu0
    %v700 = vadd.f32 0.0, %v699
    %v701 = vpop.f32.mrf.mxu0
    %v702 = vadd.f32 0.0, %v701
    %703 = vmatmul.bf16.gmra.mxu0 %v317
    %v704 = vpop.f32.mrf.mxu0
    %v705 = vadd.f32 0.0, %v704
    %v706 = vpop.f32.mrf.mxu0
    %v707 = vadd.f32 0.0, %v706
    %708 = vmatmul.bf16.gmra.mxu0 %v318
    %v709 = vpop.f32.mrf.mxu0
    %v710 = vadd.f32 0.0, %v709
    %v711 = vpop.f32.mrf.mxu0
    %v712 = vadd.f32 0.0, %v711
    %713 = vdwg.mxu0
    %v714 = vpack.c.bf16 %v459, %v457
    %v715 = vpack.c.bf16 %v548, %v546
    %v716 = vpack.c.bf16 %v637, %v635
    %v717 = vpack.c.bf16 %v464, %v462
    %v718 = vpack.c.bf16 %v553, %v551
    %v719 = vpack.c.bf16 %v642, %v640
    %v720 = vpack.c.bf16 %v469, %v467
    %v721 = vpack.c.bf16 %v558, %v556
    %v722 = vpack.c.bf16 %v647, %v645
    %v723 = vpack.c.bf16 %v474, %v472
    %v724 = vpack.c.bf16 %v563, %v561
    %v725 = vpack.c.bf16 %v652, %v650
    %v726 = vpack.c.bf16 %v479, %v477
    %v727 = vpack.c.bf16 %v568, %v566
    %v728 = vpack.c.bf16 %v657, %v655
    %v729 = vpack.c.bf16 %v484, %v482
    %v730 = vpack.c.bf16 %v573, %v571
    %v731 = vpack.c.bf16 %v662, %v660
    %v732 = vpack.c.bf16 %v489, %v487
    %v733 = vpack.c.bf16 %v578, %v576
    %v734 = vpack.c.bf16 %v667, %v665
    %v735 = vpack.c.bf16 %v494, %v492
    %v736 = vpack.c.bf16 %v583, %v581
    %v737 = vpack.c.bf16 %v672, %v670
    %v738 = vpack.c.bf16 %v499, %v497
    %v739 = vpack.c.bf16 %v588, %v586
    %v740 = vpack.c.bf16 %v677, %v675
    %v741 = vpack.c.bf16 %v504, %v502
    %v742 = vpack.c.bf16 %v593, %v591
    %v743 = vpack.c.bf16 %v682, %v680
    %v744 = vpack.c.bf16 %v509, %v507
    %v745 = vpack.c.bf16 %v598, %v596
    %v746 = vpack.c.bf16 %v687, %v685
    %v747 = vpack.c.bf16 %v514, %v512
    %v748 = vpack.c.bf16 %v603, %v601
    %v749 = vpack.c.bf16 %v692, %v690
    %v750 = vpack.c.bf16 %v519, %v517
    %v751 = vpack.c.bf16 %v608, %v606
    %v752 = vpack.c.bf16 %v697, %v695
    %v753 = vpack.c.bf16 %v524, %v522
    %v754 = vpack.c.bf16 %v613, %v611
    %v755 = vpack.c.bf16 %v702, %v700
    %v756 = vpack.c.bf16 %v529, %v527
    %v757 = vpack.c.bf16 %v618, %v616
    %v758 = vpack.c.bf16 %v707, %v705
    %v759 = vpack.c.bf16 %v534, %v532
    %v760 = vpack.c.bf16 %v623, %v621
    %v761 = vpack.c.bf16 %v712, %v710
    %v763 = vperm.slane %v302, 0
    %v764 = vperm.slane %v302, 1
    %v765 = vperm.slane %v302, 2
    %v801 = vunpack.c.l.b16 %v197
    %v802 = vunpack.c.h.b16 %v197
    %v803 = vunpack.c.l.b16 %v198
    %v804 = vunpack.c.h.b16 %v198
    %v805 = vunpack.c.l.b16 %v199
    %v806 = vunpack.c.h.b16 %v199
    %v807 = vunpack.c.l.b16 %v200
    %v808 = vunpack.c.h.b16 %v200
    %v809 = vunpack.c.l.b16 %v201
    %v810 = vunpack.c.h.b16 %v201
    %v811 = vunpack.c.l.b16 %v202
    %v812 = vunpack.c.h.b16 %v202
    %v813 = vunpack.c.l.b16 %v203
    %v814 = vunpack.c.h.b16 %v203
    %v815 = vunpack.c.l.b16 %v204
    %v816 = vunpack.c.h.b16 %v204
    %v817 = vunpack.c.l.b16 %v205
    %v818 = vunpack.c.h.b16 %v205
    %v819 = vunpack.c.l.b16 %v206
    %v820 = vunpack.c.h.b16 %v206
    %v821 = vunpack.c.l.b16 %v207
    %v822 = vunpack.c.h.b16 %v207
    %v823 = vunpack.c.l.b16 %v208
    %v824 = vunpack.c.h.b16 %v208
    %v825 = vunpack.c.l.b16 %v209
    %v826 = vunpack.c.h.b16 %v209
    %v827 = vunpack.c.l.b16 %v210
    %v828 = vunpack.c.h.b16 %v210
    %v829 = vunpack.c.l.b16 %v211
    %v830 = vunpack.c.h.b16 %v211
    %v831 = vunpack.c.l.b16 %v212
    %v832 = vunpack.c.h.b16 %v212
    %v833 = vunpack.c.l.b16 %v213
    %v834 = vunpack.c.h.b16 %v213
    %v835 = vunpack.c.l.b16 %v214
    %v836 = vunpack.c.h.b16 %v214
    %v837 = vunpack.c.l.b16 %v215
    %v838 = vunpack.c.h.b16 %v215
    %v839 = vunpack.c.l.b16 %v216
    %v840 = vunpack.c.h.b16 %v216
    %v841 = vunpack.c.l.b16 %v217
    %v842 = vunpack.c.h.b16 %v217
    %v843 = vunpack.c.l.b16 %v218
    %v844 = vunpack.c.h.b16 %v218
    %v845 = vunpack.c.l.b16 %v219
    %v846 = vunpack.c.h.b16 %v219
    %v847 = vunpack.c.l.b16 %v220
    %v848 = vunpack.c.h.b16 %v220
    %v849 = vunpack.c.l.b16 %v221
    %v850 = vunpack.c.h.b16 %v221
    %v851 = vunpack.c.l.b16 %v222
    %v852 = vunpack.c.h.b16 %v222
    %v853 = vunpack.c.l.b16 %v223
    %v854 = vunpack.c.h.b16 %v223
    %v855 = vunpack.c.l.b16 %v224
    %v856 = vunpack.c.h.b16 %v224
    %v857 = vunpack.c.l.b16 %v225
    %v858 = vunpack.c.h.b16 %v225
    %v859 = vunpack.c.l.b16 %v226
    %v860 = vunpack.c.h.b16 %v226
    %v861 = vunpack.c.l.b16 %v227
    %v862 = vunpack.c.h.b16 %v227
    %v863 = vunpack.c.l.b16 %v228
    %v864 = vunpack.c.h.b16 %v228
    %v865 = vpack.c.b16 %v803, %v801
    %v866 = vpack.c.b16 %v804, %v802
    %v867 = vpack.c.b16 %v807, %v805
    %v868 = vpack.c.b16 %v808, %v806
    %v869 = vpack.c.b16 %v811, %v809
    %v870 = vpack.c.b16 %v812, %v810
    %v871 = vpack.c.b16 %v815, %v813
    %v872 = vpack.c.b16 %v816, %v814
    %v873 = vpack.c.b16 %v819, %v817
    %v874 = vpack.c.b16 %v820, %v818
    %v875 = vpack.c.b16 %v823, %v821
    %v876 = vpack.c.b16 %v824, %v822
    %v877 = vpack.c.b16 %v827, %v825
    %v878 = vpack.c.b16 %v828, %v826
    %v879 = vpack.c.b16 %v831, %v829
    %v880 = vpack.c.b16 %v832, %v830
    %v881 = vpack.c.b16 %v835, %v833
    %v882 = vpack.c.b16 %v836, %v834
    %v883 = vpack.c.b16 %v839, %v837
    %v884 = vpack.c.b16 %v840, %v838
    %v885 = vpack.c.b16 %v843, %v841
    %v886 = vpack.c.b16 %v844, %v842
    %v887 = vpack.c.b16 %v847, %v845
    %v888 = vpack.c.b16 %v848, %v846
    %v889 = vpack.c.b16 %v851, %v849
    %v890 = vpack.c.b16 %v852, %v850
    %v891 = vpack.c.b16 %v855, %v853
    %v892 = vpack.c.b16 %v856, %v854
    %v893 = vpack.c.b16 %v859, %v857
    %v894 = vpack.c.b16 %v860, %v858
    %v895 = vpack.c.b16 %v863, %v861
    %v896 = vpack.c.b16 %v864, %v862
    %929 = vmatpush.bf16.msra.mxu0 %v735
    %930 = vmatpush.bf16.msra.mxu0 %v732
    %931 = vmatpush.bf16.msra.mxu0 %v729
    %932 = vmatpush.bf16.msra.mxu0 %v726
    %933 = vmatpush.bf16.msra.mxu0 %v723
    %934 = vmatpush.bf16.msra.mxu0 %v720
    %935 = vmatpush.bf16.msra.mxu0 %v717
    %936 = vmatpush.bf16.msra.mxu0 %v714
    %937 = vmatmul.bf16.gmra.mxu0 %v865
    %v938 = vpop.f32.mrf.mxu0
    %v939 = vadd.f32 %v763, %v938
    %v940 = vpop.f32.mrf.mxu0
    %v941 = vadd.f32 %v763, %v940
    %942 = vmatmul.bf16.gmra.mxu0 %v867
    %v943 = vpop.f32.mrf.mxu0
    %v944 = vadd.f32 %v763, %v943
    %v945 = vpop.f32.mrf.mxu0
    %v946 = vadd.f32 %v763, %v945
    %947 = vmatmul.bf16.gmra.mxu0 %v869
    %v948 = vpop.f32.mrf.mxu0
    %v949 = vadd.f32 %v763, %v948
    %v950 = vpop.f32.mrf.mxu0
    %v951 = vadd.f32 %v763, %v950
    %952 = vmatmul.bf16.gmra.mxu0 %v871
    %v953 = vpop.f32.mrf.mxu0
    %v954 = vadd.f32 %v763, %v953
    %v955 = vpop.f32.mrf.mxu0
    %v956 = vadd.f32 %v763, %v955
    %957 = vmatmul.bf16.gmra.mxu0 %v873
    %v958 = vpop.f32.mrf.mxu0
    %v959 = vadd.f32 %v763, %v958
    %v960 = vpop.f32.mrf.mxu0
    %v961 = vadd.f32 %v763, %v960
    %962 = vmatmul.bf16.gmra.mxu0 %v875
    %v963 = vpop.f32.mrf.mxu0
    %v964 = vadd.f32 %v763, %v963
    %v965 = vpop.f32.mrf.mxu0
    %v966 = vadd.f32 %v763, %v965
    %967 = vmatmul.bf16.gmra.mxu0 %v877
    %v968 = vpop.f32.mrf.mxu0
    %v969 = vadd.f32 %v763, %v968
    %v970 = vpop.f32.mrf.mxu0
    %v971 = vadd.f32 %v763, %v970
    %972 = vmatmul.bf16.gmra.mxu0 %v879
    %v973 = vpop.f32.mrf.mxu0
    %v974 = vadd.f32 %v763, %v973
    %v975 = vpop.f32.mrf.mxu0
    %v976 = vadd.f32 %v763, %v975
    %977 = vmatmul.bf16.gmra.mxu0 %v881
    %v978 = vpop.f32.mrf.mxu0
    %v979 = vadd.f32 %v763, %v978
    %v980 = vpop.f32.mrf.mxu0
    %v981 = vadd.f32 %v763, %v980
    %982 = vmatmul.bf16.gmra.mxu0 %v883
    %v983 = vpop.f32.mrf.mxu0
    %v984 = vadd.f32 %v763, %v983
    %v985 = vpop.f32.mrf.mxu0
    %v986 = vadd.f32 %v763, %v985
    %987 = vmatmul.bf16.gmra.mxu0 %v885
    %v988 = vpop.f32.mrf.mxu0
    %v989 = vadd.f32 %v763, %v988
    %v990 = vpop.f32.mrf.mxu0
    %v991 = vadd.f32 %v763, %v990
    %992 = vmatmul.bf16.gmra.mxu0 %v887
    %v993 = vpop.f32.mrf.mxu0
    %v994 = vadd.f32 %v763, %v993
    %v995 = vpop.f32.mrf.mxu0
    %v996 = vadd.f32 %v763, %v995
    %997 = vmatmul.bf16.gmra.mxu0 %v889
    %v998 = vpop.f32.mrf.mxu0
    %v999 = vadd.f32 %v763, %v998
    %v1000 = vpop.f32.mrf.mxu0
    %v1001 = vadd.f32 %v763, %v1000
    %1002 = vmatmul.bf16.gmra.mxu0 %v891
    %v1003 = vpop.f32.mrf.mxu0
    %v1004 = vadd.f32 %v763, %v1003
    %v1005 = vpop.f32.mrf.mxu0
    %v1006 = vadd.f32 %v763, %v1005
    %1007 = vmatmul.bf16.gmra.mxu0 %v893
    %v1008 = vpop.f32.mrf.mxu0
    %v1009 = vadd.f32 %v763, %v1008
    %v1010 = vpop.f32.mrf.mxu0
    %v1011 = vadd.f32 %v763, %v1010
    %1012 = vmatmul.bf16.gmra.mxu0 %v895
    %v1013 = vpop.f32.mrf.mxu0
    %v1014 = vadd.f32 %v763, %v1013
    %v1015 = vpop.f32.mrf.mxu0
    %v1016 = vadd.f32 %v763, %v1015
    %1017 = vdwg.mxu0
    %1018 = vmatpush.bf16.msra.mxu0 %v759
    %1019 = vmatpush.bf16.msra.mxu0 %v756
    %1020 = vmatpush.bf16.msra.mxu0 %v753
    %1021 = vmatpush.bf16.msra.mxu0 %v750
    %1022 = vmatpush.bf16.msra.mxu0 %v747
    %1023 = vmatpush.bf16.msra.mxu0 %v744
    %1024 = vmatpush.bf16.msra.mxu0 %v741
    %1025 = vmatpush.bf16.msra.mxu0 %v738
    %1026 = vmatmul.bf16.gmra.mxu0 %v866
    %v1027 = vpop.f32.mrf.mxu0
    %v1028 = vadd.f32 %v939, %v1027
    %v1029 = vpop.f32.mrf.mxu0
    %v1030 = vadd.f32 %v941, %v1029
    %1031 = vmatmul.bf16.gmra.mxu0 %v868
    %v1032 = vpop.f32.mrf.mxu0
    %v1033 = vadd.f32 %v944, %v1032
    %v1034 = vpop.f32.mrf.mxu0
    %v1035 = vadd.f32 %v946, %v1034
    %1036 = vmatmul.bf16.gmra.mxu0 %v870
    %v1037 = vpop.f32.mrf.mxu0
    %v1038 = vadd.f32 %v949, %v1037
    %v1039 = vpop.f32.mrf.mxu0
    %v1040 = vadd.f32 %v951, %v1039
    %1041 = vmatmul.bf16.gmra.mxu0 %v872
    %v1042 = vpop.f32.mrf.mxu0
    %v1043 = vadd.f32 %v954, %v1042
    %v1044 = vpop.f32.mrf.mxu0
    %v1045 = vadd.f32 %v956, %v1044
    %1046 = vmatmul.bf16.gmra.mxu0 %v874
    %v1047 = vpop.f32.mrf.mxu0
    %v1048 = vadd.f32 %v959, %v1047
    %v1049 = vpop.f32.mrf.mxu0
    %v1050 = vadd.f32 %v961, %v1049
    %1051 = vmatmul.bf16.gmra.mxu0 %v876
    %v1052 = vpop.f32.mrf.mxu0
    %v1053 = vadd.f32 %v964, %v1052
    %v1054 = vpop.f32.mrf.mxu0
    %v1055 = vadd.f32 %v966, %v1054
    %1056 = vmatmul.bf16.gmra.mxu0 %v878
    %v1057 = vpop.f32.mrf.mxu0
    %v1058 = vadd.f32 %v969, %v1057
    %v1059 = vpop.f32.mrf.mxu0
    %v1060 = vadd.f32 %v971, %v1059
    %1061 = vmatmul.bf16.gmra.mxu0 %v880
    %v1062 = vpop.f32.mrf.mxu0
    %v1063 = vadd.f32 %v974, %v1062
    %v1064 = vpop.f32.mrf.mxu0
    %v1065 = vadd.f32 %v976, %v1064
    %1066 = vmatmul.bf16.gmra.mxu0 %v882
    %v1067 = vpop.f32.mrf.mxu0
    %v1068 = vadd.f32 %v979, %v1067
    %v1069 = vpop.f32.mrf.mxu0
    %v1070 = vadd.f32 %v981, %v1069
    %1071 = vmatmul.bf16.gmra.mxu0 %v884
    %v1072 = vpop.f32.mrf.mxu0
    %v1073 = vadd.f32 %v984, %v1072
    %v1074 = vpop.f32.mrf.mxu0
    %v1075 = vadd.f32 %v986, %v1074
    %1076 = vmatmul.bf16.gmra.mxu0 %v886
    %v1077 = vpop.f32.mrf.mxu0
    %v1078 = vadd.f32 %v989, %v1077
    %v1079 = vpop.f32.mrf.mxu0
    %v1080 = vadd.f32 %v991, %v1079
    %1081 = vmatmul.bf16.gmra.mxu0 %v888
    %v1082 = vpop.f32.mrf.mxu0
    %v1083 = vadd.f32 %v994, %v1082
    %v1084 = vpop.f32.mrf.mxu0
    %v1085 = vadd.f32 %v996, %v1084
    %1086 = vmatmul.bf16.gmra.mxu0 %v890
    %v1087 = vpop.f32.mrf.mxu0
    %v1088 = vadd.f32 %v999, %v1087
    %v1089 = vpop.f32.mrf.mxu0
    %v1090 = vadd.f32 %v1001, %v1089
    %1091 = vmatmul.bf16.gmra.mxu0 %v892
    %v1092 = vpop.f32.mrf.mxu0
    %v1093 = vadd.f32 %v1004, %v1092
    %v1094 = vpop.f32.mrf.mxu0
    %v1095 = vadd.f32 %v1006, %v1094
    %1096 = vmatmul.bf16.gmra.mxu0 %v894
    %v1097 = vpop.f32.mrf.mxu0
    %v1098 = vadd.f32 %v1009, %v1097
    %v1099 = vpop.f32.mrf.mxu0
    %v1100 = vadd.f32 %v1011, %v1099
    %1101 = vmatmul.bf16.gmra.mxu0 %v896
    %v1102 = vpop.f32.mrf.mxu0
    %v1103 = vadd.f32 %v1014, %v1102
    %v1104 = vpop.f32.mrf.mxu0
    %v1105 = vadd.f32 %v1016, %v1104
    %1106 = vdwg.mxu0
    %1107 = vmatpush.bf16.msra.mxu0 %v736
    %1108 = vmatpush.bf16.msra.mxu0 %v733
    %1109 = vmatpush.bf16.msra.mxu0 %v730
    %1110 = vmatpush.bf16.msra.mxu0 %v727
    %1111 = vmatpush.bf16.msra.mxu0 %v724
    %1112 = vmatpush.bf16.msra.mxu0 %v721
    %1113 = vmatpush.bf16.msra.mxu0 %v718
    %1114 = vmatpush.bf16.msra.mxu0 %v715
    %1115 = vmatmul.bf16.gmra.mxu0 %v865
    %v1116 = vpop.f32.mrf.mxu0
    %v1117 = vadd.f32 %v764, %v1116
    %v1118 = vpop.f32.mrf.mxu0
    %v1119 = vadd.f32 %v764, %v1118
    %1120 = vmatmul.bf16.gmra.mxu0 %v867
    %v1121 = vpop.f32.mrf.mxu0
    %v1122 = vadd.f32 %v764, %v1121
    %v1123 = vpop.f32.mrf.mxu0
    %v1124 = vadd.f32 %v764, %v1123
    %1125 = vmatmul.bf16.gmra.mxu0 %v869
    %v1126 = vpop.f32.mrf.mxu0
    %v1127 = vadd.f32 %v764, %v1126
    %v1128 = vpop.f32.mrf.mxu0
    %v1129 = vadd.f32 %v764, %v1128
    %1130 = vmatmul.bf16.gmra.mxu0 %v871
    %v1131 = vpop.f32.mrf.mxu0
    %v1132 = vadd.f32 %v764, %v1131
    %v1133 = vpop.f32.mrf.mxu0
    %v1134 = vadd.f32 %v764, %v1133
    %1135 = vmatmul.bf16.gmra.mxu0 %v873
    %v1136 = vpop.f32.mrf.mxu0
    %v1137 = vadd.f32 %v764, %v1136
    %v1138 = vpop.f32.mrf.mxu0
    %v1139 = vadd.f32 %v764, %v1138
    %1140 = vmatmul.bf16.gmra.mxu0 %v875
    %v1141 = vpop.f32.mrf.mxu0
    %v1142 = vadd.f32 %v764, %v1141
    %v1143 = vpop.f32.mrf.mxu0
    %v1144 = vadd.f32 %v764, %v1143
    %1145 = vmatmul.bf16.gmra.mxu0 %v877
    %v1146 = vpop.f32.mrf.mxu0
    %v1147 = vadd.f32 %v764, %v1146
    %v1148 = vpop.f32.mrf.mxu0
    %v1149 = vadd.f32 %v764, %v1148
    %1150 = vmatmul.bf16.gmra.mxu0 %v879
    %v1151 = vpop.f32.mrf.mxu0
    %v1152 = vadd.f32 %v764, %v1151
    %v1153 = vpop.f32.mrf.mxu0
    %v1154 = vadd.f32 %v764, %v1153
    %1155 = vmatmul.bf16.gmra.mxu0 %v881
    %v1156 = vpop.f32.mrf.mxu0
    %v1157 = vadd.f32 %v764, %v1156
    %v1158 = vpop.f32.mrf.mxu0
    %v1159 = vadd.f32 %v764, %v1158
    %1160 = vmatmul.bf16.gmra.mxu0 %v883
    %v1161 = vpop.f32.mrf.mxu0
    %v1162 = vadd.f32 %v764, %v1161
    %v1163 = vpop.f32.mrf.mxu0
    %v1164 = vadd.f32 %v764, %v1163
    %1165 = vmatmul.bf16.gmra.mxu0 %v885
    %v1166 = vpop.f32.mrf.mxu0
    %v1167 = vadd.f32 %v764, %v1166
    %v1168 = vpop.f32.mrf.mxu0
    %v1169 = vadd.f32 %v764, %v1168
    %1170 = vmatmul.bf16.gmra.mxu0 %v887
    %v1171 = vpop.f32.mrf.mxu0
    %v1172 = vadd.f32 %v764, %v1171
    %v1173 = vpop.f32.mrf.mxu0
    %v1174 = vadd.f32 %v764, %v1173
    %1175 = vmatmul.bf16.gmra.mxu0 %v889
    %v1176 = vpop.f32.mrf.mxu0
    %v1177 = vadd.f32 %v764, %v1176
    %v1178 = vpop.f32.mrf.mxu0
    %v1179 = vadd.f32 %v764, %v1178
    %1180 = vmatmul.bf16.gmra.mxu0 %v891
    %v1181 = vpop.f32.mrf.mxu0
    %v1182 = vadd.f32 %v764, %v1181
    %v1183 = vpop.f32.mrf.mxu0
    %v1184 = vadd.f32 %v764, %v1183
    %1185 = vmatmul.bf16.gmra.mxu0 %v893
    %v1186 = vpop.f32.mrf.mxu0
    %v1187 = vadd.f32 %v764, %v1186
    %v1188 = vpop.f32.mrf.mxu0
    %v1189 = vadd.f32 %v764, %v1188
    %1190 = vmatmul.bf16.gmra.mxu0 %v895
    %v1191 = vpop.f32.mrf.mxu0
    %v1192 = vadd.f32 %v764, %v1191
    %v1193 = vpop.f32.mrf.mxu0
    %v1194 = vadd.f32 %v764, %v1193
    %1195 = vdwg.mxu0
    %1196 = vmatpush.bf16.msra.mxu0 %v760
    %1197 = vmatpush.bf16.msra.mxu0 %v757
    %1198 = vmatpush.bf16.msra.mxu0 %v754
    %1199 = vmatpush.bf16.msra.mxu0 %v751
    %1200 = vmatpush.bf16.msra.mxu0 %v748
    %1201 = vmatpush.bf16.msra.mxu0 %v745
    %1202 = vmatpush.bf16.msra.mxu0 %v742
    %1203 = vmatpush.bf16.msra.mxu0 %v739
    %1204 = vmatmul.bf16.gmra.mxu0 %v866
    %v1205 = vpop.f32.mrf.mxu0
    %v1206 = vadd.f32 %v1117, %v1205
    %v1207 = vpop.f32.mrf.mxu0
    %v1208 = vadd.f32 %v1119, %v1207
    %1209 = vmatmul.bf16.gmra.mxu0 %v868
    %v1210 = vpop.f32.mrf.mxu0
    %v1211 = vadd.f32 %v1122, %v1210
    %v1212 = vpop.f32.mrf.mxu0
    %v1213 = vadd.f32 %v1124, %v1212
    %1214 = vmatmul.bf16.gmra.mxu0 %v870
    %v1215 = vpop.f32.mrf.mxu0
    %v1216 = vadd.f32 %v1127, %v1215
    %v1217 = vpop.f32.mrf.mxu0
    %v1218 = vadd.f32 %v1129, %v1217
    %1219 = vmatmul.bf16.gmra.mxu0 %v872
    %v1220 = vpop.f32.mrf.mxu0
    %v1221 = vadd.f32 %v1132, %v1220
    %v1222 = vpop.f32.mrf.mxu0
    %v1223 = vadd.f32 %v1134, %v1222
    %1224 = vmatmul.bf16.gmra.mxu0 %v874
    %v1225 = vpop.f32.mrf.mxu0
    %v1226 = vadd.f32 %v1137, %v1225
    %v1227 = vpop.f32.mrf.mxu0
    %v1228 = vadd.f32 %v1139, %v1227
    %1229 = vmatmul.bf16.gmra.mxu0 %v876
    %v1230 = vpop.f32.mrf.mxu0
    %v1231 = vadd.f32 %v1142, %v1230
    %v1232 = vpop.f32.mrf.mxu0
    %v1233 = vadd.f32 %v1144, %v1232
    %1234 = vmatmul.bf16.gmra.mxu0 %v878
    %v1235 = vpop.f32.mrf.mxu0
    %v1236 = vadd.f32 %v1147, %v1235
    %v1237 = vpop.f32.mrf.mxu0
    %v1238 = vadd.f32 %v1149, %v1237
    %1239 = vmatmul.bf16.gmra.mxu0 %v880
    %v1240 = vpop.f32.mrf.mxu0
    %v1241 = vadd.f32 %v1152, %v1240
    %v1242 = vpop.f32.mrf.mxu0
    %v1243 = vadd.f32 %v1154, %v1242
    %1244 = vmatmul.bf16.gmra.mxu0 %v882
    %v1245 = vpop.f32.mrf.mxu0
    %v1246 = vadd.f32 %v1157, %v1245
    %v1247 = vpop.f32.mrf.mxu0
    %v1248 = vadd.f32 %v1159, %v1247
    %1249 = vmatmul.bf16.gmra.mxu0 %v884
    %v1250 = vpop.f32.mrf.mxu0
    %v1251 = vadd.f32 %v1162, %v1250
    %v1252 = vpop.f32.mrf.mxu0
    %v1253 = vadd.f32 %v1164, %v1252
    %1254 = vmatmul.bf16.gmra.mxu0 %v886
    %v1255 = vpop.f32.mrf.mxu0
    %v1256 = vadd.f32 %v1167, %v1255
    %v1257 = vpop.f32.mrf.mxu0
    %v1258 = vadd.f32 %v1169, %v1257
    %1259 = vmatmul.bf16.gmra.mxu0 %v888
    %v1260 = vpop.f32.mrf.mxu0
    %v1261 = vadd.f32 %v1172, %v1260
    %v1262 = vpop.f32.mrf.mxu0
    %v1263 = vadd.f32 %v1174, %v1262
    %1264 = vmatmul.bf16.gmra.mxu0 %v890
    %v1265 = vpop.f32.mrf.mxu0
    %v1266 = vadd.f32 %v1177, %v1265
    %v1267 = vpop.f32.mrf.mxu0
    %v1268 = vadd.f32 %v1179, %v1267
    %1269 = vmatmul.bf16.gmra.mxu0 %v892
    %v1270 = vpop.f32.mrf.mxu0
    %v1271 = vadd.f32 %v1182, %v1270
    %v1272 = vpop.f32.mrf.mxu0
    %v1273 = vadd.f32 %v1184, %v1272
    %1274 = vmatmul.bf16.gmra.mxu0 %v894
    %v1275 = vpop.f32.mrf.mxu0
    %v1276 = vadd.f32 %v1187, %v1275
    %v1277 = vpop.f32.mrf.mxu0
    %v1278 = vadd.f32 %v1189, %v1277
    %1279 = vmatmul.bf16.gmra.mxu0 %v896
    %v1280 = vpop.f32.mrf.mxu0
    %v1281 = vadd.f32 %v1192, %v1280
    %v1282 = vpop.f32.mrf.mxu0
    %v1283 = vadd.f32 %v1194, %v1282
    %1284 = vdwg.mxu0
    %1285 = vmatpush.bf16.msra.mxu0 %v737
    %1286 = vmatpush.bf16.msra.mxu0 %v734
    %1287 = vmatpush.bf16.msra.mxu0 %v731
    %1288 = vmatpush.bf16.msra.mxu0 %v728
    %1289 = vmatpush.bf16.msra.mxu0 %v725
    %1290 = vmatpush.bf16.msra.mxu0 %v722
    %1291 = vmatpush.bf16.msra.mxu0 %v719
    %1292 = vmatpush.bf16.msra.mxu0 %v716
    %1293 = vmatmul.bf16.gmra.mxu0 %v865
    %v1294 = vpop.f32.mrf.mxu0
    %v1295 = vadd.f32 %v765, %v1294
    %v1296 = vpop.f32.mrf.mxu0
    %v1297 = vadd.f32 %v765, %v1296
    %1298 = vmatmul.bf16.gmra.mxu0 %v867
    %v1299 = vpop.f32.mrf.mxu0
    %v1300 = vadd.f32 %v765, %v1299
    %v1301 = vpop.f32.mrf.mxu0
    %v1302 = vadd.f32 %v765, %v1301
    %1303 = vmatmul.bf16.gmra.mxu0 %v869
    %v1304 = vpop.f32.mrf.mxu0
    %v1305 = vadd.f32 %v765, %v1304
    %v1306 = vpop.f32.mrf.mxu0
    %v1307 = vadd.f32 %v765, %v1306
    %1308 = vmatmul.bf16.gmra.mxu0 %v871
    %v1309 = vpop.f32.mrf.mxu0
    %v1310 = vadd.f32 %v765, %v1309
    %v1311 = vpop.f32.mrf.mxu0
    %v1312 = vadd.f32 %v765, %v1311
    %1313 = vmatmul.bf16.gmra.mxu0 %v873
    %v1314 = vpop.f32.mrf.mxu0
    %v1315 = vadd.f32 %v765, %v1314
    %v1316 = vpop.f32.mrf.mxu0
    %v1317 = vadd.f32 %v765, %v1316
    %1318 = vmatmul.bf16.gmra.mxu0 %v875
    %v1319 = vpop.f32.mrf.mxu0
    %v1320 = vadd.f32 %v765, %v1319
    %v1321 = vpop.f32.mrf.mxu0
    %v1322 = vadd.f32 %v765, %v1321
    %1323 = vmatmul.bf16.gmra.mxu0 %v877
    %v1324 = vpop.f32.mrf.mxu0
    %v1325 = vadd.f32 %v765, %v1324
    %v1326 = vpop.f32.mrf.mxu0
    %v1327 = vadd.f32 %v765, %v1326
    %1328 = vmatmul.bf16.gmra.mxu0 %v879
    %v1329 = vpop.f32.mrf.mxu0
    %v1330 = vadd.f32 %v765, %v1329
    %v1331 = vpop.f32.mrf.mxu0
    %v1332 = vadd.f32 %v765, %v1331
    %1333 = vmatmul.bf16.gmra.mxu0 %v881
    %v1334 = vpop.f32.mrf.mxu0
    %v1335 = vadd.f32 %v765, %v1334
    %v1336 = vpop.f32.mrf.mxu0
    %v1337 = vadd.f32 %v765, %v1336
    %1338 = vmatmul.bf16.gmra.mxu0 %v883
    %v1339 = vpop.f32.mrf.mxu0
    %v1340 = vadd.f32 %v765, %v1339
    %v1341 = vpop.f32.mrf.mxu0
    %v1342 = vadd.f32 %v765, %v1341
    %1343 = vmatmul.bf16.gmra.mxu0 %v885
    %v1344 = vpop.f32.mrf.mxu0
    %v1345 = vadd.f32 %v765, %v1344
    %v1346 = vpop.f32.mrf.mxu0
    %v1347 = vadd.f32 %v765, %v1346
    %1348 = vmatmul.bf16.gmra.mxu0 %v887
    %v1349 = vpop.f32.mrf.mxu0
    %v1350 = vadd.f32 %v765, %v1349
    %v1351 = vpop.f32.mrf.mxu0
    %v1352 = vadd.f32 %v765, %v1351
    %1353 = vmatmul.bf16.gmra.mxu0 %v889
    %v1354 = vpop.f32.mrf.mxu0
    %v1355 = vadd.f32 %v765, %v1354
    %v1356 = vpop.f32.mrf.mxu0
    %v1357 = vadd.f32 %v765, %v1356
    %1358 = vmatmul.bf16.gmra.mxu0 %v891
    %v1359 = vpop.f32.mrf.mxu0
    %v1360 = vadd.f32 %v765, %v1359
    %v1361 = vpop.f32.mrf.mxu0
    %v1362 = vadd.f32 %v765, %v1361
    %1363 = vmatmul.bf16.gmra.mxu0 %v893
    %v1364 = vpop.f32.mrf.mxu0
    %v1365 = vadd.f32 %v765, %v1364
    %v1366 = vpop.f32.mrf.mxu0
    %v1367 = vadd.f32 %v765, %v1366
    %1368 = vmatmul.bf16.gmra.mxu0 %v895
    %v1369 = vpop.f32.mrf.mxu0
    %v1370 = vadd.f32 %v765, %v1369
    %v1371 = vpop.f32.mrf.mxu0
    %v1372 = vadd.f32 %v765, %v1371
    %1373 = vdwg.mxu0
    %1374 = vmatpush.bf16.msra.mxu0 %v761
    %1375 = vmatpush.bf16.msra.mxu0 %v758
    %1376 = vmatpush.bf16.msra.mxu0 %v755
    %1377 = vmatpush.bf16.msra.mxu0 %v752
    %1378 = vmatpush.bf16.msra.mxu0 %v749
    %1379 = vmatpush.bf16.msra.mxu0 %v746
    %1380 = vmatpush.bf16.msra.mxu0 %v743
    %1381 = vmatpush.bf16.msra.mxu0 %v740
    %1382 = vmatmul.bf16.gmra.mxu0 %v866
    %v1383 = vpop.f32.mrf.mxu0
    %v1384 = vadd.f32 %v1295, %v1383
    %v1385 = vpop.f32.mrf.mxu0
    %v1386 = vadd.f32 %v1297, %v1385
    %1387 = vmatmul.bf16.gmra.mxu0 %v868
    %v1388 = vpop.f32.mrf.mxu0
    %v1389 = vadd.f32 %v1300, %v1388
    %v1390 = vpop.f32.mrf.mxu0
    %v1391 = vadd.f32 %v1302, %v1390
    %1392 = vmatmul.bf16.gmra.mxu0 %v870
    %v1393 = vpop.f32.mrf.mxu0
    %v1394 = vadd.f32 %v1305, %v1393
    %v1395 = vpop.f32.mrf.mxu0
    %v1396 = vadd.f32 %v1307, %v1395
    %1397 = vmatmul.bf16.gmra.mxu0 %v872
    %v1398 = vpop.f32.mrf.mxu0
    %v1399 = vadd.f32 %v1310, %v1398
    %v1400 = vpop.f32.mrf.mxu0
    %v1401 = vadd.f32 %v1312, %v1400
    %1402 = vmatmul.bf16.gmra.mxu0 %v874
    %v1403 = vpop.f32.mrf.mxu0
    %v1404 = vadd.f32 %v1315, %v1403
    %v1405 = vpop.f32.mrf.mxu0
    %v1406 = vadd.f32 %v1317, %v1405
    %1407 = vmatmul.bf16.gmra.mxu0 %v876
    %v1408 = vpop.f32.mrf.mxu0
    %v1409 = vadd.f32 %v1320, %v1408
    %v1410 = vpop.f32.mrf.mxu0
    %v1411 = vadd.f32 %v1322, %v1410
    %1412 = vmatmul.bf16.gmra.mxu0 %v878
    %v1413 = vpop.f32.mrf.mxu0
    %v1414 = vadd.f32 %v1325, %v1413
    %v1415 = vpop.f32.mrf.mxu0
    %v1416 = vadd.f32 %v1327, %v1415
    %1417 = vmatmul.bf16.gmra.mxu0 %v880
    %v1418 = vpop.f32.mrf.mxu0
    %v1419 = vadd.f32 %v1330, %v1418
    %v1420 = vpop.f32.mrf.mxu0
    %v1421 = vadd.f32 %v1332, %v1420
    %1422 = vmatmul.bf16.gmra.mxu0 %v882
    %v1423 = vpop.f32.mrf.mxu0
    %v1424 = vadd.f32 %v1335, %v1423
    %v1425 = vpop.f32.mrf.mxu0
    %v1426 = vadd.f32 %v1337, %v1425
    %1427 = vmatmul.bf16.gmra.mxu0 %v884
    %v1428 = vpop.f32.mrf.mxu0
    %v1429 = vadd.f32 %v1340, %v1428
    %v1430 = vpop.f32.mrf.mxu0
    %v1431 = vadd.f32 %v1342, %v1430
    %1432 = vmatmul.bf16.gmra.mxu0 %v886
    %v1433 = vpop.f32.mrf.mxu0
    %v1434 = vadd.f32 %v1345, %v1433
    %v1435 = vpop.f32.mrf.mxu0
    %v1436 = vadd.f32 %v1347, %v1435
    %1437 = vmatmul.bf16.gmra.mxu0 %v888
    %v1438 = vpop.f32.mrf.mxu0
    %v1439 = vadd.f32 %v1350, %v1438
    %v1440 = vpop.f32.mrf.mxu0
    %v1441 = vadd.f32 %v1352, %v1440
    %1442 = vmatmul.bf16.gmra.mxu0 %v890
    %v1443 = vpop.f32.mrf.mxu0
    %v1444 = vadd.f32 %v1355, %v1443
    %v1445 = vpop.f32.mrf.mxu0
    %v1446 = vadd.f32 %v1357, %v1445
    %1447 = vmatmul.bf16.gmra.mxu0 %v892
    %v1448 = vpop.f32.mrf.mxu0
    %v1449 = vadd.f32 %v1360, %v1448
    %v1450 = vpop.f32.mrf.mxu0
    %v1451 = vadd.f32 %v1362, %v1450
    %1452 = vmatmul.bf16.gmra.mxu0 %v894
    %v1453 = vpop.f32.mrf.mxu0
    %v1454 = vadd.f32 %v1365, %v1453
    %v1455 = vpop.f32.mrf.mxu0
    %v1456 = vadd.f32 %v1367, %v1455
    %1457 = vmatmul.bf16.gmra.mxu0 %v896
    %v1458 = vpop.f32.mrf.mxu0
    %v1459 = vadd.f32 %v1370, %v1458
    %v1460 = vpop.f32.mrf.mxu0
    %v1461 = vadd.f32 %v1372, %v1460
    %1462 = vdwg.mxu0
    %v1463 = vpack.c.bf16 %v1030, %v1028
    %v1464 = vpack.c.bf16 %v1035, %v1033
    %v1465 = vpack.c.bf16 %v1040, %v1038
    %v1466 = vpack.c.bf16 %v1045, %v1043
    %v1467 = vpack.c.bf16 %v1050, %v1048
    %v1468 = vpack.c.bf16 %v1055, %v1053
    %v1469 = vpack.c.bf16 %v1060, %v1058
    %v1470 = vpack.c.bf16 %v1065, %v1063
    %v1471 = vpack.c.bf16 %v1070, %v1068
    %v1472 = vpack.c.bf16 %v1075, %v1073
    %v1473 = vpack.c.bf16 %v1080, %v1078
    %v1474 = vpack.c.bf16 %v1085, %v1083
    %v1475 = vpack.c.bf16 %v1090, %v1088
    %v1476 = vpack.c.bf16 %v1095, %v1093
    %v1477 = vpack.c.bf16 %v1100, %v1098
    %v1478 = vpack.c.bf16 %v1105, %v1103
    %v1479 = vpack.c.bf16 %v1208, %v1206
    %v1480 = vpack.c.bf16 %v1213, %v1211
    %v1481 = vpack.c.bf16 %v1218, %v1216
    %v1482 = vpack.c.bf16 %v1223, %v1221
    %v1483 = vpack.c.bf16 %v1228, %v1226
    %v1484 = vpack.c.bf16 %v1233, %v1231
    %v1485 = vpack.c.bf16 %v1238, %v1236
    %v1486 = vpack.c.bf16 %v1243, %v1241
    %v1487 = vpack.c.bf16 %v1248, %v1246
    %v1488 = vpack.c.bf16 %v1253, %v1251
    %v1489 = vpack.c.bf16 %v1258, %v1256
    %v1490 = vpack.c.bf16 %v1263, %v1261
    %v1491 = vpack.c.bf16 %v1268, %v1266
    %v1492 = vpack.c.bf16 %v1273, %v1271
    %v1493 = vpack.c.bf16 %v1278, %v1276
    %v1494 = vpack.c.bf16 %v1283, %v1281
    %1495 = vmatpush.bf16.xpose.msra.mxu0 %v1486
    %1496 = vmatpush.bf16.xpose.msra.mxu0 %v1485
    %1497 = vmatpush.bf16.xpose.msra.mxu0 %v1484
    %1498 = vmatpush.bf16.xpose.msra.mxu0 %v1483
    %1499 = vmatpush.bf16.xpose.msra.mxu0 %v1482
    %1500 = vmatpush.bf16.xpose.msra.mxu0 %v1481
    %1501 = vmatpush.bf16.xpose.msra.mxu0 %v1480
    %1502 = vmatpush.bf16.xpose.msra.mxu0 %v1479
    %1503 = vmatmul.bf16.gmra.mxu0 %v1463
    %v1504 = vpop.f32.mrf.mxu0
    %v1505 = vadd.f32 0.0, %v1504
    %v1506 = vpop.f32.mrf.mxu0
    %v1507 = vadd.f32 0.0, %v1506
    %1508 = vmatmul.bf16.gmra.mxu0 %v1464
    %v1509 = vpop.f32.mrf.mxu0
    %v1510 = vadd.f32 0.0, %v1509
    %v1511 = vpop.f32.mrf.mxu0
    %v1512 = vadd.f32 0.0, %v1511
    %1513 = vmatmul.bf16.gmra.mxu0 %v1465
    %v1514 = vpop.f32.mrf.mxu0
    %v1515 = vadd.f32 0.0, %v1514
    %v1516 = vpop.f32.mrf.mxu0
    %v1517 = vadd.f32 0.0, %v1516
    %1518 = vmatmul.bf16.gmra.mxu0 %v1466
    %v1519 = vpop.f32.mrf.mxu0
    %v1520 = vadd.f32 0.0, %v1519
    %v1521 = vpop.f32.mrf.mxu0
    %v1522 = vadd.f32 0.0, %v1521
    %1523 = vmatmul.bf16.gmra.mxu0 %v1467
    %v1524 = vpop.f32.mrf.mxu0
    %v1525 = vadd.f32 0.0, %v1524
    %v1526 = vpop.f32.mrf.mxu0
    %v1527 = vadd.f32 0.0, %v1526
    %1528 = vmatmul.bf16.gmra.mxu0 %v1468
    %v1529 = vpop.f32.mrf.mxu0
    %v1530 = vadd.f32 0.0, %v1529
    %v1531 = vpop.f32.mrf.mxu0
    %v1532 = vadd.f32 0.0, %v1531
    %1533 = vmatmul.bf16.gmra.mxu0 %v1469
    %v1534 = vpop.f32.mrf.mxu0
    %v1535 = vadd.f32 0.0, %v1534
    %v1536 = vpop.f32.mrf.mxu0
    %v1537 = vadd.f32 0.0, %v1536
    %1538 = vmatmul.bf16.gmra.mxu0 %v1470
    %v1539 = vpop.f32.mrf.mxu0
    %v1540 = vadd.f32 0.0, %v1539
    %v1541 = vpop.f32.mrf.mxu0
    %v1542 = vadd.f32 0.0, %v1541
    %1543 = vmatmul.bf16.gmra.mxu0 %v1471
    %v1544 = vpop.f32.mrf.mxu0
    %v1545 = vadd.f32 0.0, %v1544
    %v1546 = vpop.f32.mrf.mxu0
    %v1547 = vadd.f32 0.0, %v1546
    %1548 = vmatmul.bf16.gmra.mxu0 %v1472
    %v1549 = vpop.f32.mrf.mxu0
    %v1550 = vadd.f32 0.0, %v1549
    %v1551 = vpop.f32.mrf.mxu0
    %v1552 = vadd.f32 0.0, %v1551
    %1553 = vmatmul.bf16.gmra.mxu0 %v1473
    %v1554 = vpop.f32.mrf.mxu0
    %v1555 = vadd.f32 0.0, %v1554
    %v1556 = vpop.f32.mrf.mxu0
    %v1557 = vadd.f32 0.0, %v1556
    %1558 = vmatmul.bf16.gmra.mxu0 %v1474
    %v1559 = vpop.f32.mrf.mxu0
    %v1560 = vadd.f32 0.0, %v1559
    %v1561 = vpop.f32.mrf.mxu0
    %v1562 = vadd.f32 0.0, %v1561
    %1563 = vmatmul.bf16.gmra.mxu0 %v1475
    %v1564 = vpop.f32.mrf.mxu0
    %v1565 = vadd.f32 0.0, %v1564
    %v1566 = vpop.f32.mrf.mxu0
    %v1567 = vadd.f32 0.0, %v1566
    %1568 = vmatmul.bf16.gmra.mxu0 %v1476
    %v1569 = vpop.f32.mrf.mxu0
    %v1570 = vadd.f32 0.0, %v1569
    %v1571 = vpop.f32.mrf.mxu0
    %v1572 = vadd.f32 0.0, %v1571
    %1573 = vmatmul.bf16.gmra.mxu0 %v1477
    %v1574 = vpop.f32.mrf.mxu0
    %v1575 = vadd.f32 0.0, %v1574
    %v1576 = vpop.f32.mrf.mxu0
    %v1577 = vadd.f32 0.0, %v1576
    %1578 = vmatmul.bf16.gmra.mxu0 %v1478
    %v1579 = vpop.f32.mrf.mxu0
    %v1580 = vadd.f32 0.0, %v1579
    %v1581 = vpop.f32.mrf.mxu0
    %v1582 = vadd.f32 0.0, %v1581
    %1583 = vdwg.mxu0
    %1584 = vmatpush.bf16.xpose.msra.mxu0 %v1494
    %1585 = vmatpush.bf16.xpose.msra.mxu0 %v1493
    %1586 = vmatpush.bf16.xpose.msra.mxu0 %v1492
    %1587 = vmatpush.bf16.xpose.msra.mxu0 %v1491
    %1588 = vmatpush.bf16.xpose.msra.mxu0 %v1490
    %1589 = vmatpush.bf16.xpose.msra.mxu0 %v1489
    %1590 = vmatpush.bf16.xpose.msra.mxu0 %v1488
    %1591 = vmatpush.bf16.xpose.msra.mxu0 %v1487
    %1592 = vmatmul.bf16.gmra.mxu0 %v1463
    %v1593 = vpop.f32.mrf.mxu0
    %v1594 = vadd.f32 0.0, %v1593
    %v1595 = vpop.f32.mrf.mxu0
    %v1596 = vadd.f32 0.0, %v1595
    %1597 = vmatmul.bf16.gmra.mxu0 %v1464
    %v1598 = vpop.f32.mrf.mxu0
    %v1599 = vadd.f32 0.0, %v1598
    %v1600 = vpop.f32.mrf.mxu0
    %v1601 = vadd.f32 0.0, %v1600
    %1602 = vmatmul.bf16.gmra.mxu0 %v1465
    %v1603 = vpop.f32.mrf.mxu0
    %v1604 = vadd.f32 0.0, %v1603
    %v1605 = vpop.f32.mrf.mxu0
    %v1606 = vadd.f32 0.0, %v1605
    %1607 = vmatmul.bf16.gmra.mxu0 %v1466
    %v1608 = vpop.f32.mrf.mxu0
    %v1609 = vadd.f32 0.0, %v1608
    %v1610 = vpop.f32.mrf.mxu0
    %v1611 = vadd.f32 0.0, %v1610
    %1612 = vmatmul.bf16.gmra.mxu0 %v1467
    %v1613 = vpop.f32.mrf.mxu0
    %v1614 = vadd.f32 0.0, %v1613
    %v1615 = vpop.f32.mrf.mxu0
    %v1616 = vadd.f32 0.0, %v1615
    %1617 = vmatmul.bf16.gmra.mxu0 %v1468
    %v1618 = vpop.f32.mrf.mxu0
    %v1619 = vadd.f32 0.0, %v1618
    %v1620 = vpop.f32.mrf.mxu0
    %v1621 = vadd.f32 0.0, %v1620
    %1622 = vmatmul.bf16.gmra.mxu0 %v1469
    %v1623 = vpop.f32.mrf.mxu0
    %v1624 = vadd.f32 0.0, %v1623
    %v1625 = vpop.f32.mrf.mxu0
    %v1626 = vadd.f32 0.0, %v1625
    %1627 = vmatmul.bf16.gmra.mxu0 %v1470
    %v1628 = vpop.f32.mrf.mxu0
    %v1629 = vadd.f32 0.0, %v1628
    %v1630 = vpop.f32.mrf.mxu0
    %v1631 = vadd.f32 0.0, %v1630
    %1632 = vmatmul.bf16.gmra.mxu0 %v1471
    %v1633 = vpop.f32.mrf.mxu0
    %v1634 = vadd.f32 0.0, %v1633
    %v1635 = vpop.f32.mrf.mxu0
    %v1636 = vadd.f32 0.0, %v1635
    %1637 = vmatmul.bf16.gmra.mxu0 %v1472
    %v1638 = vpop.f32.mrf.mxu0
    %v1639 = vadd.f32 0.0, %v1638
    %v1640 = vpop.f32.mrf.mxu0
    %v1641 = vadd.f32 0.0, %v1640
    %1642 = vmatmul.bf16.gmra.mxu0 %v1473
    %v1643 = vpop.f32.mrf.mxu0
    %v1644 = vadd.f32 0.0, %v1643
    %v1645 = vpop.f32.mrf.mxu0
    %v1646 = vadd.f32 0.0, %v1645
    %1647 = vmatmul.bf16.gmra.mxu0 %v1474
    %v1648 = vpop.f32.mrf.mxu0
    %v1649 = vadd.f32 0.0, %v1648
    %v1650 = vpop.f32.mrf.mxu0
    %v1651 = vadd.f32 0.0, %v1650
    %1652 = vmatmul.bf16.gmra.mxu0 %v1475
    %v1653 = vpop.f32.mrf.mxu0
    %v1654 = vadd.f32 0.0, %v1653
    %v1655 = vpop.f32.mrf.mxu0
    %v1656 = vadd.f32 0.0, %v1655
    %1657 = vmatmul.bf16.gmra.mxu0 %v1476
    %v1658 = vpop.f32.mrf.mxu0
    %v1659 = vadd.f32 0.0, %v1658
    %v1660 = vpop.f32.mrf.mxu0
    %v1661 = vadd.f32 0.0, %v1660
    %1662 = vmatmul.bf16.gmra.mxu0 %v1477
    %v1663 = vpop.f32.mrf.mxu0
    %v1664 = vadd.f32 0.0, %v1663
    %v1665 = vpop.f32.mrf.mxu0
    %v1666 = vadd.f32 0.0, %v1665
    %1667 = vmatmul.bf16.gmra.mxu0 %v1478
    %v1668 = vpop.f32.mrf.mxu0
    %v1669 = vadd.f32 0.0, %v1668
    %v1670 = vpop.f32.mrf.mxu0
    %v1671 = vadd.f32 0.0, %v1670
    %1672 = vdwg.mxu0
    %v1673 = vmul.f32 %v1505, 0.17677669
    %v1674 = vmul.f32 %v1594, 0.17677669
    %v1675 = vmul.f32 %v1507, 0.17677669
    %v1676 = vmul.f32 %v1596, 0.17677669
    %v1677 = vmul.f32 %v1510, 0.17677669
    %v1678 = vmul.f32 %v1599, 0.17677669
    %v1679 = vmul.f32 %v1512, 0.17677669
    %v1680 = vmul.f32 %v1601, 0.17677669
    %v1681 = vmul.f32 %v1515, 0.17677669
    %v1682 = vmul.f32 %v1604, 0.17677669
    %v1683 = vmul.f32 %v1517, 0.17677669
    %v1684 = vmul.f32 %v1606, 0.17677669
    %v1685 = vmul.f32 %v1520, 0.17677669
    %v1686 = vmul.f32 %v1609, 0.17677669
    %v1687 = vmul.f32 %v1522, 0.17677669
    %v1688 = vmul.f32 %v1611, 0.17677669
    %v1689 = vmul.f32 %v1525, 0.17677669
    %v1690 = vmul.f32 %v1614, 0.17677669
    %v1691 = vmul.f32 %v1527, 0.17677669
    %v1692 = vmul.f32 %v1616, 0.17677669
    %v1693 = vmul.f32 %v1530, 0.17677669
    %v1694 = vmul.f32 %v1619, 0.17677669
    %v1695 = vmul.f32 %v1532, 0.17677669
    %v1696 = vmul.f32 %v1621, 0.17677669
    %v1697 = vmul.f32 %v1535, 0.17677669
    %v1698 = vmul.f32 %v1624, 0.17677669
    %v1699 = vmul.f32 %v1537, 0.17677669
    %v1700 = vmul.f32 %v1626, 0.17677669
    %v1701 = vmul.f32 %v1540, 0.17677669
    %v1702 = vmul.f32 %v1629, 0.17677669
    %v1703 = vmul.f32 %v1542, 0.17677669
    %v1704 = vmul.f32 %v1631, 0.17677669
    %v1705 = vmul.f32 %v1545, 0.17677669
    %v1706 = vmul.f32 %v1634, 0.17677669
    %v1707 = vmul.f32 %v1547, 0.17677669
    %v1708 = vmul.f32 %v1636, 0.17677669
    %v1709 = vmul.f32 %v1550, 0.17677669
    %v1710 = vmul.f32 %v1639, 0.17677669
    %v1711 = vmul.f32 %v1552, 0.17677669
    %v1712 = vmul.f32 %v1641, 0.17677669
    %v1713 = vmul.f32 %v1555, 0.17677669
    %v1714 = vmul.f32 %v1644, 0.17677669
    %v1715 = vmul.f32 %v1557, 0.17677669
    %v1716 = vmul.f32 %v1646, 0.17677669
    %v1717 = vmul.f32 %v1560, 0.17677669
    %v1718 = vmul.f32 %v1649, 0.17677669
    %v1719 = vmul.f32 %v1562, 0.17677669
    %v1720 = vmul.f32 %v1651, 0.17677669
    %v1721 = vmul.f32 %v1565, 0.17677669
    %v1722 = vmul.f32 %v1654, 0.17677669
    %v1723 = vmul.f32 %v1567, 0.17677669
    %v1724 = vmul.f32 %v1656, 0.17677669
    %v1725 = vmul.f32 %v1570, 0.17677669
    %v1726 = vmul.f32 %v1659, 0.17677669
    %v1727 = vmul.f32 %v1572, 0.17677669
    %v1728 = vmul.f32 %v1661, 0.17677669
    %v1729 = vmul.f32 %v1575, 0.17677669
    %v1730 = vmul.f32 %v1664, 0.17677669
    %v1731 = vmul.f32 %v1577, 0.17677669
    %v1732 = vmul.f32 %v1666, 0.17677669
    %v1733 = vmul.f32 %v1580, 0.17677669
    %v1734 = vmul.f32 %v1669, 0.17677669
    %v1735 = vmul.f32 %v1582, 0.17677669
    %v1736 = vmul.f32 %v1671, 0.17677669
    %v1737 = vadd.f32 %v1673, 0.0
    %v1738 = vadd.f32 %v1674, 0.0
    %v1739 = vadd.f32 %v1675, 0.0
    %v1740 = vadd.f32 %v1676, 0.0
    %v1741 = vadd.f32 %v1677, 0.0
    %v1742 = vadd.f32 %v1678, 0.0
    %v1743 = vadd.f32 %v1679, 0.0
    %v1744 = vadd.f32 %v1680, 0.0
    %v1745 = vadd.f32 %v1681, 0.0
    %v1746 = vadd.f32 %v1682, 0.0
    %v1747 = vadd.f32 %v1683, 0.0
    %v1748 = vadd.f32 %v1684, 0.0
    %v1749 = vadd.f32 %v1685, 0.0
    %v1750 = vadd.f32 %v1686, 0.0
    %v1751 = vadd.f32 %v1687, 0.0
    %v1752 = vadd.f32 %v1688, 0.0
    %v1753 = vadd.f32 %v1689, 0.0
    %v1754 = vadd.f32 %v1690, 0.0
    %v1755 = vadd.f32 %v1691, 0.0
    %v1756 = vadd.f32 %v1692, 0.0
    %v1757 = vadd.f32 %v1693, 0.0
    %v1758 = vadd.f32 %v1694, 0.0
    %v1759 = vadd.f32 %v1695, 0.0
    %v1760 = vadd.f32 %v1696, 0.0
    %v1761 = vadd.f32 %v1697, 0.0
    %v1762 = vadd.f32 %v1698, 0.0
    %v1763 = vadd.f32 %v1699, 0.0
    %v1764 = vadd.f32 %v1700, 0.0
    %v1765 = vadd.f32 %v1701, 0.0
    %v1766 = vadd.f32 %v1702, 0.0
    %v1767 = vadd.f32 %v1703, 0.0
    %v1768 = vadd.f32 %v1704, 0.0
    %v1769 = vadd.f32 %v1705, 0.0
    %v1770 = vadd.f32 %v1706, 0.0
    %v1771 = vadd.f32 %v1707, 0.0
    %v1772 = vadd.f32 %v1708, 0.0
    %v1773 = vadd.f32 %v1709, 0.0
    %v1774 = vadd.f32 %v1710, 0.0
    %v1775 = vadd.f32 %v1711, 0.0
    %v1776 = vadd.f32 %v1712, 0.0
    %v1777 = vadd.f32 %v1713, 0.0
    %v1778 = vadd.f32 %v1714, 0.0
    %v1779 = vadd.f32 %v1715, 0.0
    %v1780 = vadd.f32 %v1716, 0.0
    %v1781 = vadd.f32 %v1717, 0.0
    %v1782 = vadd.f32 %v1718, 0.0
    %v1783 = vadd.f32 %v1719, 0.0
    %v1784 = vadd.f32 %v1720, 0.0
    %v1785 = vadd.f32 %v1721, 0.0
    %v1786 = vadd.f32 %v1722, 0.0
    %v1787 = vadd.f32 %v1723, 0.0
    %v1788 = vadd.f32 %v1724, 0.0
    %v1789 = vadd.f32 %v1725, 0.0
    %v1790 = vadd.f32 %v1726, 0.0
    %v1791 = vadd.f32 %v1727, 0.0
    %v1792 = vadd.f32 %v1728, 0.0
    %v1793 = vadd.f32 %v1729, 0.0
    %v1794 = vadd.f32 %v1730, 0.0
    %v1795 = vadd.f32 %v1731, 0.0
    %v1796 = vadd.f32 %v1732, 0.0
    %v1797 = vadd.f32 %v1733, 0.0
    %v1798 = vadd.f32 %v1734, 0.0
    %v1799 = vadd.f32 %v1735, 0.0
    %v1800 = vadd.f32 %v1736, 0.0
    %v1801 = vadd.f32 %v1737, %v266
    %v1802 = vadd.f32 %v1738, %v267
    %v1803 = vadd.f32 %v1739, %v266
    %v1804 = vadd.f32 %v1740, %v267
    %v1805 = vadd.f32 %v1741, %v266
    %v1806 = vadd.f32 %v1742, %v267
    %v1807 = vadd.f32 %v1743, %v266
    %v1808 = vadd.f32 %v1744, %v267
    %v1809 = vadd.f32 %v1745, %v266
    %v1810 = vadd.f32 %v1746, %v267
    %v1811 = vadd.f32 %v1747, %v266
    %v1812 = vadd.f32 %v1748, %v267
    %v1813 = vadd.f32 %v1749, %v266
    %v1814 = vadd.f32 %v1750, %v267
    %v1815 = vadd.f32 %v1751, %v266
    %v1816 = vadd.f32 %v1752, %v267
    %v1817 = vadd.f32 %v1753, %v266
    %v1818 = vadd.f32 %v1754, %v267
    %v1819 = vadd.f32 %v1755, %v266
    %v1820 = vadd.f32 %v1756, %v267
    %v1821 = vadd.f32 %v1757, %v266
    %v1822 = vadd.f32 %v1758, %v267
    %v1823 = vadd.f32 %v1759, %v266
    %v1824 = vadd.f32 %v1760, %v267
    %v1825 = vadd.f32 %v1761, %v266
    %v1826 = vadd.f32 %v1762, %v267
    %v1827 = vadd.f32 %v1763, %v266
    %v1828 = vadd.f32 %v1764, %v267
    %v1829 = vadd.f32 %v1765, %v266
    %v1830 = vadd.f32 %v1766, %v267
    %v1831 = vadd.f32 %v1767, %v266
    %v1832 = vadd.f32 %v1768, %v267
    %v1833 = vadd.f32 %v1769, %v266
    %v1834 = vadd.f32 %v1770, %v267
    %v1835 = vadd.f32 %v1771, %v266
    %v1836 = vadd.f32 %v1772, %v267
    %v1837 = vadd.f32 %v1773, %v266
    %v1838 = vadd.f32 %v1774, %v267
    %v1839 = vadd.f32 %v1775, %v266
    %v1840 = vadd.f32 %v1776, %v267
    %v1841 = vadd.f32 %v1777, %v266
    %v1842 = vadd.f32 %v1778, %v267
    %v1843 = vadd.f32 %v1779, %v266
    %v1844 = vadd.f32 %v1780, %v267
    %v1845 = vadd.f32 %v1781, %v266
    %v1846 = vadd.f32 %v1782, %v267
    %v1847 = vadd.f32 %v1783, %v266
    %v1848 = vadd.f32 %v1784, %v267
    %v1849 = vadd.f32 %v1785, %v266
    %v1850 = vadd.f32 %v1786, %v267
    %v1851 = vadd.f32 %v1787, %v266
    %v1852 = vadd.f32 %v1788, %v267
    %v1853 = vadd.f32 %v1789, %v266
    %v1854 = vadd.f32 %v1790, %v267
    %v1855 = vadd.f32 %v1791, %v266
    %v1856 = vadd.f32 %v1792, %v267
    %v1857 = vadd.f32 %v1793, %v266
    %v1858 = vadd.f32 %v1794, %v267
    %v1859 = vadd.f32 %v1795, %v266
    %v1860 = vadd.f32 %v1796, %v267
    %v1861 = vadd.f32 %v1797, %v266
    %v1862 = vadd.f32 %v1798, %v267
    %v1863 = vadd.f32 %v1799, %v266
    %v1864 = vadd.f32 %v1800, %v267
    %v1865 = vmax.f32 %v1801, %v1802
    %1866 = vmax.xlane.f32.xlu0 %v1865
    %v1867 = vpop.xlane.xlu0 %1866
    %v1868 = vmax.f32 %v1803, %v1804
    %1869 = vmax.xlane.f32.xlu0 %v1868
    %v1870 = vpop.xlane.xlu0 %1869
    %v1871 = vmax.f32 %v1805, %v1806
    %1872 = vmax.xlane.f32.xlu0 %v1871
    %v1873 = vpop.xlane.xlu0 %1872
    %v1874 = vmax.f32 %v1807, %v1808
    %1875 = vmax.xlane.f32.xlu0 %v1874
    %v1876 = vpop.xlane.xlu0 %1875
    %v1877 = vmax.f32 %v1809, %v1810
    %1878 = vmax.xlane.f32.xlu0 %v1877
    %v1879 = vpop.xlane.xlu0 %1878
    %v1880 = vmax.f32 %v1811, %v1812
    %1881 = vmax.xlane.f32.xlu0 %v1880
    %v1882 = vpop.xlane.xlu0 %1881
    %v1883 = vmax.f32 %v1813, %v1814
    %1884 = vmax.xlane.f32.xlu0 %v1883
    %v1885 = vpop.xlane.xlu0 %1884
    %v1886 = vmax.f32 %v1815, %v1816
    %1887 = vmax.xlane.f32.xlu0 %v1886
    %v1888 = vpop.xlane.xlu0 %1887
    %v1889 = vmax.f32 %v1817, %v1818
    %1890 = vmax.xlane.f32.xlu0 %v1889
    %v1891 = vpop.xlane.xlu0 %1890
    %v1892 = vmax.f32 %v1819, %v1820
    %1893 = vmax.xlane.f32.xlu0 %v1892
    %v1894 = vpop.xlane.xlu0 %1893
    %v1895 = vmax.f32 %v1821, %v1822
    %1896 = vmax.xlane.f32.xlu0 %v1895
    %v1897 = vpop.xlane.xlu0 %1896
    %v1898 = vmax.f32 %v1823, %v1824
    %1899 = vmax.xlane.f32.xlu0 %v1898
    %v1900 = vpop.xlane.xlu0 %1899
    %v1901 = vmax.f32 %v1825, %v1826
    %1902 = vmax.xlane.f32.xlu0 %v1901
    %v1903 = vpop.xlane.xlu0 %1902
    %v1904 = vmax.f32 %v1827, %v1828
    %1905 = vmax.xlane.f32.xlu0 %v1904
    %v1906 = vpop.xlane.xlu0 %1905
    %v1907 = vmax.f32 %v1829, %v1830
    %1908 = vmax.xlane.f32.xlu0 %v1907
    %v1909 = vpop.xlane.xlu0 %1908
    %v1910 = vmax.f32 %v1831, %v1832
    %1911 = vmax.xlane.f32.xlu0 %v1910
    %v1912 = vpop.xlane.xlu0 %1911
    %v1913 = vmax.f32 %v1833, %v1834
    %1914 = vmax.xlane.f32.xlu0 %v1913
    %v1915 = vpop.xlane.xlu0 %1914
    %v1916 = vmax.f32 %v1835, %v1836
    %1917 = vmax.xlane.f32.xlu0 %v1916
    %v1918 = vpop.xlane.xlu0 %1917
    %v1919 = vmax.f32 %v1837, %v1838
    %1920 = vmax.xlane.f32.xlu0 %v1919
    %v1921 = vpop.xlane.xlu0 %1920
    %v1922 = vmax.f32 %v1839, %v1840
    %1923 = vmax.xlane.f32.xlu0 %v1922
    %v1924 = vpop.xlane.xlu0 %1923
    %v1925 = vmax.f32 %v1841, %v1842
    %1926 = vmax.xlane.f32.xlu0 %v1925
    %v1927 = vpop.xlane.xlu0 %1926
    %v1928 = vmax.f32 %v1843, %v1844
    %1929 = vmax.xlane.f32.xlu0 %v1928
    %v1930 = vpop.xlane.xlu0 %1929
    %v1931 = vmax.f32 %v1845, %v1846
    %1932 = vmax.xlane.f32.xlu0 %v1931
    %v1933 = vpop.xlane.xlu0 %1932
    %v1934 = vmax.f32 %v1847, %v1848
    %1935 = vmax.xlane.f32.xlu0 %v1934
    %v1936 = vpop.xlane.xlu0 %1935
    %v1937 = vmax.f32 %v1849, %v1850
    %1938 = vmax.xlane.f32.xlu0 %v1937
    %v1939 = vpop.xlane.xlu0 %1938
    %v1940 = vmax.f32 %v1851, %v1852
    %1941 = vmax.xlane.f32.xlu0 %v1940
    %v1942 = vpop.xlane.xlu0 %1941
    %v1943 = vmax.f32 %v1853, %v1854
    %1944 = vmax.xlane.f32.xlu0 %v1943
    %v1945 = vpop.xlane.xlu0 %1944
    %v1946 = vmax.f32 %v1855, %v1856
    %1947 = vmax.xlane.f32.xlu0 %v1946
    %v1948 = vpop.xlane.xlu0 %1947
    %v1949 = vmax.f32 %v1857, %v1858
    %1950 = vmax.xlane.f32.xlu0 %v1949
    %v1951 = vpop.xlane.xlu0 %1950
    %v1952 = vmax.f32 %v1859, %v1860
    %1953 = vmax.xlane.f32.xlu0 %v1952
    %v1954 = vpop.xlane.xlu0 %1953
    %v1955 = vmax.f32 %v1861, %v1862
    %1956 = vmax.xlane.f32.xlu0 %v1955
    %v1957 = vpop.xlane.xlu0 %1956
    %v1958 = vmax.f32 %v1863, %v1864
    %1959 = vmax.xlane.f32.xlu0 %v1958
    %v1960 = vpop.xlane.xlu0 %1959
    %v1961 = vsub.f32 %v1801, %v1867
    %v1962 = vsub.f32 %v1802, %v1867
    %v1963 = vsub.f32 %v1803, %v1870
    %v1964 = vsub.f32 %v1804, %v1870
    %v1965 = vsub.f32 %v1805, %v1873
    %v1966 = vsub.f32 %v1806, %v1873
    %v1967 = vsub.f32 %v1807, %v1876
    %v1968 = vsub.f32 %v1808, %v1876
    %v1969 = vsub.f32 %v1809, %v1879
    %v1970 = vsub.f32 %v1810, %v1879
    %v1971 = vsub.f32 %v1811, %v1882
    %v1972 = vsub.f32 %v1812, %v1882
    %v1973 = vsub.f32 %v1813, %v1885
    %v1974 = vsub.f32 %v1814, %v1885
    %v1975 = vsub.f32 %v1815, %v1888
    %v1976 = vsub.f32 %v1816, %v1888
    %v1977 = vsub.f32 %v1817, %v1891
    %v1978 = vsub.f32 %v1818, %v1891
    %v1979 = vsub.f32 %v1819, %v1894
    %v1980 = vsub.f32 %v1820, %v1894
    %v1981 = vsub.f32 %v1821, %v1897
    %v1982 = vsub.f32 %v1822, %v1897
    %v1983 = vsub.f32 %v1823, %v1900
    %v1984 = vsub.f32 %v1824, %v1900
    %v1985 = vsub.f32 %v1825, %v1903
    %v1986 = vsub.f32 %v1826, %v1903
    %v1987 = vsub.f32 %v1827, %v1906
    %v1988 = vsub.f32 %v1828, %v1906
    %v1989 = vsub.f32 %v1829, %v1909
    %v1990 = vsub.f32 %v1830, %v1909
    %v1991 = vsub.f32 %v1831, %v1912
    %v1992 = vsub.f32 %v1832, %v1912
    %v1993 = vsub.f32 %v1833, %v1915
    %v1994 = vsub.f32 %v1834, %v1915
    %v1995 = vsub.f32 %v1835, %v1918
    %v1996 = vsub.f32 %v1836, %v1918
    %v1997 = vsub.f32 %v1837, %v1921
    %v1998 = vsub.f32 %v1838, %v1921
    %v1999 = vsub.f32 %v1839, %v1924
    %v2000 = vsub.f32 %v1840, %v1924
    %v2001 = vsub.f32 %v1841, %v1927
    %v2002 = vsub.f32 %v1842, %v1927
    %v2003 = vsub.f32 %v1843, %v1930
    %v2004 = vsub.f32 %v1844, %v1930
    %v2005 = vsub.f32 %v1845, %v1933
    %v2006 = vsub.f32 %v1846, %v1933
    %v2007 = vsub.f32 %v1847, %v1936
    %v2008 = vsub.f32 %v1848, %v1936
    %v2009 = vsub.f32 %v1849, %v1939
    %v2010 = vsub.f32 %v1850, %v1939
    %v2011 = vsub.f32 %v1851, %v1942
    %v2012 = vsub.f32 %v1852, %v1942
    %v2013 = vsub.f32 %v1853, %v1945
    %v2014 = vsub.f32 %v1854, %v1945
    %v2015 = vsub.f32 %v1855, %v1948
    %v2016 = vsub.f32 %v1856, %v1948
    %v2017 = vsub.f32 %v1857, %v1951
    %v2018 = vsub.f32 %v1858, %v1951
    %v2019 = vsub.f32 %v1859, %v1954
    %v2020 = vsub.f32 %v1860, %v1954
    %v2021 = vsub.f32 %v1861, %v1957
    %v2022 = vsub.f32 %v1862, %v1957
    %v2023 = vsub.f32 %v1863, %v1960
    %v2024 = vsub.f32 %v1864, %v1960
    %v2025 = vmul.f32 %v1961, 1.442695
    %v2026 = vpow.pop %v2025
    %v2027 = vmul.f32 %v1962, 1.442695
    %v2028 = vpow.pop %v2027
    %v2029 = vmul.f32 %v1963, 1.442695
    %v2030 = vpow.pop %v2029
    %v2031 = vmul.f32 %v1964, 1.442695
    %v2032 = vpow.pop %v2031
    %v2033 = vmul.f32 %v1965, 1.442695
    %v2034 = vpow.pop %v2033
    %v2035 = vmul.f32 %v1966, 1.442695
    %v2036 = vpow.pop %v2035
    %v2037 = vmul.f32 %v1967, 1.442695
    %v2038 = vpow.pop %v2037
    %v2039 = vmul.f32 %v1968, 1.442695
    %v2040 = vpow.pop %v2039
    %v2041 = vmul.f32 %v1969, 1.442695
    %v2042 = vpow.pop %v2041
    %v2043 = vmul.f32 %v1970, 1.442695
    %v2044 = vpow.pop %v2043
    %v2045 = vmul.f32 %v1971, 1.442695
    %v2046 = vpow.pop %v2045
    %v2047 = vmul.f32 %v1972, 1.442695
    %v2048 = vpow.pop %v2047
    %v2049 = vmul.f32 %v1973, 1.442695
    %v2050 = vpow.pop %v2049
    %v2051 = vmul.f32 %v1974, 1.442695
    %v2052 = vpow.pop %v2051
    %v2053 = vmul.f32 %v1975, 1.442695
    %v2054 = vpow.pop %v2053
    %v2055 = vmul.f32 %v1976, 1.442695
    %v2056 = vpow.pop %v2055
    %v2057 = vmul.f32 %v1977, 1.442695
    %v2058 = vpow.pop %v2057
    %v2059 = vmul.f32 %v1978, 1.442695
    %v2060 = vpow.pop %v2059
    %v2061 = vmul.f32 %v1979, 1.442695
    %v2062 = vpow.pop %v2061
    %v2063 = vmul.f32 %v1980, 1.442695
    %v2064 = vpow.pop %v2063
    %v2065 = vmul.f32 %v1981, 1.442695
    %v2066 = vpow.pop %v2065
    %v2067 = vmul.f32 %v1982, 1.442695
    %v2068 = vpow.pop %v2067
    %v2069 = vmul.f32 %v1983, 1.442695
    %v2070 = vpow.pop %v2069
    %v2071 = vmul.f32 %v1984, 1.442695
    %v2072 = vpow.pop %v2071
    %v2073 = vmul.f32 %v1985, 1.442695
    %v2074 = vpow.pop %v2073
    %v2075 = vmul.f32 %v1986, 1.442695
    %v2076 = vpow.pop %v2075
    %v2077 = vmul.f32 %v1987, 1.442695
    %v2078 = vpow.pop %v2077
    %v2079 = vmul.f32 %v1988, 1.442695
    %v2080 = vpow.pop %v2079
    %v2081 = vmul.f32 %v1989, 1.442695
    %v2082 = vpow.pop %v2081
    %v2083 = vmul.f32 %v1990, 1.442695
    %v2084 = vpow.pop %v2083
    %v2085 = vmul.f32 %v1991, 1.442695
    %v2086 = vpow.pop %v2085
    %v2087 = vmul.f32 %v1992, 1.442695
    %v2088 = vpow.pop %v2087
    %v2089 = vmul.f32 %v1993, 1.442695
    %v2090 = vpow.pop %v2089
    %v2091 = vmul.f32 %v1994, 1.442695
    %v2092 = vpow.pop %v2091
    %v2093 = vmul.f32 %v1995, 1.442695
    %v2094 = vpow.pop %v2093
    %v2095 = vmul.f32 %v1996, 1.442695
    %v2096 = vpow.pop %v2095
    %v2097 = vmul.f32 %v1997, 1.442695
    %v2098 = vpow.pop %v2097
    %v2099 = vmul.f32 %v1998, 1.442695
    %v2100 = vpow.pop %v2099
    %v2101 = vmul.f32 %v1999, 1.442695
    %v2102 = vpow.pop %v2101
    %v2103 = vmul.f32 %v2000, 1.442695
    %v2104 = vpow.pop %v2103
    %v2105 = vmul.f32 %v2001, 1.442695
    %v2106 = vpow.pop %v2105
    %v2107 = vmul.f32 %v2002, 1.442695
    %v2108 = vpow.pop %v2107
    %v2109 = vmul.f32 %v2003, 1.442695
    %v2110 = vpow.pop %v2109
    %v2111 = vmul.f32 %v2004, 1.442695
    %v2112 = vpow.pop %v2111
    %v2113 = vmul.f32 %v2005, 1.442695
    %v2114 = vpow.pop %v2113
    %v2115 = vmul.f32 %v2006, 1.442695
    %v2116 = vpow.pop %v2115
    %v2117 = vmul.f32 %v2007, 1.442695
    %v2118 = vpow.pop %v2117
    %v2119 = vmul.f32 %v2008, 1.442695
    %v2120 = vpow.pop %v2119
    %v2121 = vmul.f32 %v2009, 1.442695
    %v2122 = vpow.pop %v2121
    %v2123 = vmul.f32 %v2010, 1.442695
    %v2124 = vpow.pop %v2123
    %v2125 = vmul.f32 %v2011, 1.442695
    %v2126 = vpow.pop %v2125
    %v2127 = vmul.f32 %v2012, 1.442695
    %v2128 = vpow.pop %v2127
    %v2129 = vmul.f32 %v2013, 1.442695
    %v2130 = vpow.pop %v2129
    %v2131 = vmul.f32 %v2014, 1.442695
    %v2132 = vpow.pop %v2131
    %v2133 = vmul.f32 %v2015, 1.442695
    %v2134 = vpow.pop %v2133
    %v2135 = vmul.f32 %v2016, 1.442695
    %v2136 = vpow.pop %v2135
    %v2137 = vmul.f32 %v2017, 1.442695
    %v2138 = vpow.pop %v2137
    %v2139 = vmul.f32 %v2018, 1.442695
    %v2140 = vpow.pop %v2139
    %v2141 = vmul.f32 %v2019, 1.442695
    %v2142 = vpow.pop %v2141
    %v2143 = vmul.f32 %v2020, 1.442695
    %v2144 = vpow.pop %v2143
    %v2145 = vmul.f32 %v2021, 1.442695
    %v2146 = vpow.pop %v2145
    %v2147 = vmul.f32 %v2022, 1.442695
    %v2148 = vpow.pop %v2147
    %v2149 = vmul.f32 %v2023, 1.442695
    %v2150 = vpow.pop %v2149
    %v2151 = vmul.f32 %v2024, 1.442695
    %v2152 = vpow.pop %v2151
    %v2153 = vadd.f32 %v2026, %v2028
    %2154 = vadd.xlane.f32.xlu0 %v2153
    %v2155 = vpop.xlane.xlu0 %2154
    %v2156 = vadd.f32 %v2030, %v2032
    %2157 = vadd.xlane.f32.xlu0 %v2156
    %v2158 = vpop.xlane.xlu0 %2157
    %v2159 = vadd.f32 %v2034, %v2036
    %2160 = vadd.xlane.f32.xlu0 %v2159
    %v2161 = vpop.xlane.xlu0 %2160
    %v2162 = vadd.f32 %v2038, %v2040
    %2163 = vadd.xlane.f32.xlu0 %v2162
    %v2164 = vpop.xlane.xlu0 %2163
    %v2165 = vadd.f32 %v2042, %v2044
    %2166 = vadd.xlane.f32.xlu0 %v2165
    %v2167 = vpop.xlane.xlu0 %2166
    %v2168 = vadd.f32 %v2046, %v2048
    %2169 = vadd.xlane.f32.xlu0 %v2168
    %v2170 = vpop.xlane.xlu0 %2169
    %v2171 = vadd.f32 %v2050, %v2052
    %2172 = vadd.xlane.f32.xlu0 %v2171
    %v2173 = vpop.xlane.xlu0 %2172
    %v2174 = vadd.f32 %v2054, %v2056
    %2175 = vadd.xlane.f32.xlu0 %v2174
    %v2176 = vpop.xlane.xlu0 %2175
    %v2177 = vadd.f32 %v2058, %v2060
    %2178 = vadd.xlane.f32.xlu0 %v2177
    %v2179 = vpop.xlane.xlu0 %2178
    %v2180 = vadd.f32 %v2062, %v2064
    %2181 = vadd.xlane.f32.xlu0 %v2180
    %v2182 = vpop.xlane.xlu0 %2181
    %v2183 = vadd.f32 %v2066, %v2068
    %2184 = vadd.xlane.f32.xlu0 %v2183
    %v2185 = vpop.xlane.xlu0 %2184
    %v2186 = vadd.f32 %v2070, %v2072
    %2187 = vadd.xlane.f32.xlu0 %v2186
    %v2188 = vpop.xlane.xlu0 %2187
    %v2189 = vadd.f32 %v2074, %v2076
    %2190 = vadd.xlane.f32.xlu0 %v2189
    %v2191 = vpop.xlane.xlu0 %2190
    %v2192 = vadd.f32 %v2078, %v2080
    %2193 = vadd.xlane.f32.xlu0 %v2192
    %v2194 = vpop.xlane.xlu0 %2193
    %v2195 = vadd.f32 %v2082, %v2084
    %2196 = vadd.xlane.f32.xlu0 %v2195
    %v2197 = vpop.xlane.xlu0 %2196
    %v2198 = vadd.f32 %v2086, %v2088
    %2199 = vadd.xlane.f32.xlu0 %v2198
    %v2200 = vpop.xlane.xlu0 %2199
    %v2201 = vadd.f32 %v2090, %v2092
    %2202 = vadd.xlane.f32.xlu0 %v2201
    %v2203 = vpop.xlane.xlu0 %2202
    %v2204 = vadd.f32 %v2094, %v2096
    %2205 = vadd.xlane.f32.xlu0 %v2204
    %v2206 = vpop.xlane.xlu0 %2205
    %v2207 = vadd.f32 %v2098, %v2100
    %2208 = vadd.xlane.f32.xlu0 %v2207
    %v2209 = vpop.xlane.xlu0 %2208
    %v2210 = vadd.f32 %v2102, %v2104
    %2211 = vadd.xlane.f32.xlu0 %v2210
    %v2212 = vpop.xlane.xlu0 %2211
    %v2213 = vadd.f32 %v2106, %v2108
    %2214 = vadd.xlane.f32.xlu0 %v2213
    %v2215 = vpop.xlane.xlu0 %2214
    %v2216 = vadd.f32 %v2110, %v2112
    %2217 = vadd.xlane.f32.xlu0 %v2216
    %v2218 = vpop.xlane.xlu0 %2217
    %v2219 = vadd.f32 %v2114, %v2116
    %2220 = vadd.xlane.f32.xlu0 %v2219
    %v2221 = vpop.xlane.xlu0 %2220
    %v2222 = vadd.f32 %v2118, %v2120
    %2223 = vadd.xlane.f32.xlu0 %v2222
    %v2224 = vpop.xlane.xlu0 %2223
    %v2225 = vadd.f32 %v2122, %v2124
    %2226 = vadd.xlane.f32.xlu0 %v2225
    %v2227 = vpop.xlane.xlu0 %2226
    %v2228 = vadd.f32 %v2126, %v2128
    %2229 = vadd.xlane.f32.xlu0 %v2228
    %v2230 = vpop.xlane.xlu0 %2229
    %v2231 = vadd.f32 %v2130, %v2132
    %2232 = vadd.xlane.f32.xlu0 %v2231
    %v2233 = vpop.xlane.xlu0 %2232
    %v2234 = vadd.f32 %v2134, %v2136
    %2235 = vadd.xlane.f32.xlu0 %v2234
    %v2236 = vpop.xlane.xlu0 %2235
    %v2237 = vadd.f32 %v2138, %v2140
    %2238 = vadd.xlane.f32.xlu0 %v2237
    %v2239 = vpop.xlane.xlu0 %2238
    %v2240 = vadd.f32 %v2142, %v2144
    %2241 = vadd.xlane.f32.xlu0 %v2240
    %v2242 = vpop.xlane.xlu0 %2241
    %v2243 = vadd.f32 %v2146, %v2148
    %2244 = vadd.xlane.f32.xlu0 %v2243
    %v2245 = vpop.xlane.xlu0 %2244
    %v2246 = vadd.f32 %v2150, %v2152
    %2247 = vadd.xlane.f32.xlu0 %v2246
    %v2248 = vpop.xlane.xlu0 %2247
    %v2249 = vrcp.pop %v2155
    %v2250 = vrcp.pop %v2158
    %v2251 = vrcp.pop %v2161
    %v2252 = vrcp.pop %v2164
    %v2253 = vrcp.pop %v2167
    %v2254 = vrcp.pop %v2170
    %v2255 = vrcp.pop %v2173
    %v2256 = vrcp.pop %v2176
    %v2257 = vrcp.pop %v2179
    %v2258 = vrcp.pop %v2182
    %v2259 = vrcp.pop %v2185
    %v2260 = vrcp.pop %v2188
    %v2261 = vrcp.pop %v2191
    %v2262 = vrcp.pop %v2194
    %v2263 = vrcp.pop %v2197
    %v2264 = vrcp.pop %v2200
    %v2265 = vrcp.pop %v2203
    %v2266 = vrcp.pop %v2206
    %v2267 = vrcp.pop %v2209
    %v2268 = vrcp.pop %v2212
    %v2269 = vrcp.pop %v2215
    %v2270 = vrcp.pop %v2218
    %v2271 = vrcp.pop %v2221
    %v2272 = vrcp.pop %v2224
    %v2273 = vrcp.pop %v2227
    %v2274 = vrcp.pop %v2230
    %v2275 = vrcp.pop %v2233
    %v2276 = vrcp.pop %v2236
    %v2277 = vrcp.pop %v2239
    %v2278 = vrcp.pop %v2242
    %v2279 = vrcp.pop %v2245
    %v2280 = vrcp.pop %v2248
    %v2281 = vmul.f32 %v2026, %v2249
    %v2282 = vmul.f32 %v2028, %v2249
    %v2283 = vmul.f32 %v2030, %v2250
    %v2284 = vmul.f32 %v2032, %v2250
    %v2285 = vmul.f32 %v2034, %v2251
    %v2286 = vmul.f32 %v2036, %v2251
    %v2287 = vmul.f32 %v2038, %v2252
    %v2288 = vmul.f32 %v2040, %v2252
    %v2289 = vmul.f32 %v2042, %v2253
    %v2290 = vmul.f32 %v2044, %v2253
    %v2291 = vmul.f32 %v2046, %v2254
    %v2292 = vmul.f32 %v2048, %v2254
    %v2293 = vmul.f32 %v2050, %v2255
    %v2294 = vmul.f32 %v2052, %v2255
    %v2295 = vmul.f32 %v2054, %v2256
    %v2296 = vmul.f32 %v2056, %v2256
    %v2297 = vmul.f32 %v2058, %v2257
    %v2298 = vmul.f32 %v2060, %v2257
    %v2299 = vmul.f32 %v2062, %v2258
    %v2300 = vmul.f32 %v2064, %v2258
    %v2301 = vmul.f32 %v2066, %v2259
    %v2302 = vmul.f32 %v2068, %v2259
    %v2303 = vmul.f32 %v2070, %v2260
    %v2304 = vmul.f32 %v2072, %v2260
    %v2305 = vmul.f32 %v2074, %v2261
    %v2306 = vmul.f32 %v2076, %v2261
    %v2307 = vmul.f32 %v2078, %v2262
    %v2308 = vmul.f32 %v2080, %v2262
    %v2309 = vmul.f32 %v2082, %v2263
    %v2310 = vmul.f32 %v2084, %v2263
    %v2311 = vmul.f32 %v2086, %v2264
    %v2312 = vmul.f32 %v2088, %v2264
    %v2313 = vmul.f32 %v2090, %v2265
    %v2314 = vmul.f32 %v2092, %v2265
    %v2315 = vmul.f32 %v2094, %v2266
    %v2316 = vmul.f32 %v2096, %v2266
    %v2317 = vmul.f32 %v2098, %v2267
    %v2318 = vmul.f32 %v2100, %v2267
    %v2319 = vmul.f32 %v2102, %v2268
    %v2320 = vmul.f32 %v2104, %v2268
    %v2321 = vmul.f32 %v2106, %v2269
    %v2322 = vmul.f32 %v2108, %v2269
    %v2323 = vmul.f32 %v2110, %v2270
    %v2324 = vmul.f32 %v2112, %v2270
    %v2325 = vmul.f32 %v2114, %v2271
    %v2326 = vmul.f32 %v2116, %v2271
    %v2327 = vmul.f32 %v2118, %v2272
    %v2328 = vmul.f32 %v2120, %v2272
    %v2329 = vmul.f32 %v2122, %v2273
    %v2330 = vmul.f32 %v2124, %v2273
    %v2331 = vmul.f32 %v2126, %v2274
    %v2332 = vmul.f32 %v2128, %v2274
    %v2333 = vmul.f32 %v2130, %v2275
    %v2334 = vmul.f32 %v2132, %v2275
    %v2335 = vmul.f32 %v2134, %v2276
    %v2336 = vmul.f32 %v2136, %v2276
    %v2337 = vmul.f32 %v2138, %v2277
    %v2338 = vmul.f32 %v2140, %v2277
    %v2339 = vmul.f32 %v2142, %v2278
    %v2340 = vmul.f32 %v2144, %v2278
    %v2341 = vmul.f32 %v2146, %v2279
    %v2342 = vmul.f32 %v2148, %v2279
    %v2343 = vmul.f32 %v2150, %v2280
    %v2344 = vmul.f32 %v2152, %v2280
    %v2345 = vpack.c.bf16 %v2282, %v2281
    %v2346 = vpack.c.bf16 %v2284, %v2283
    %v2347 = vpack.c.bf16 %v2286, %v2285
    %v2348 = vpack.c.bf16 %v2288, %v2287
    %v2349 = vpack.c.bf16 %v2290, %v2289
    %v2350 = vpack.c.bf16 %v2292, %v2291
    %v2351 = vpack.c.bf16 %v2294, %v2293
    %v2352 = vpack.c.bf16 %v2296, %v2295
    %v2353 = vpack.c.bf16 %v2298, %v2297
    %v2354 = vpack.c.bf16 %v2300, %v2299
    %v2355 = vpack.c.bf16 %v2302, %v2301
    %v2356 = vpack.c.bf16 %v2304, %v2303
    %v2357 = vpack.c.bf16 %v2306, %v2305
    %v2358 = vpack.c.bf16 %v2308, %v2307
    %v2359 = vpack.c.bf16 %v2310, %v2309
    %v2360 = vpack.c.bf16 %v2312, %v2311
    %v2361 = vpack.c.bf16 %v2314, %v2313
    %v2362 = vpack.c.bf16 %v2316, %v2315
    %v2363 = vpack.c.bf16 %v2318, %v2317
    %v2364 = vpack.c.bf16 %v2320, %v2319
    %v2365 = vpack.c.bf16 %v2322, %v2321
    %v2366 = vpack.c.bf16 %v2324, %v2323
    %v2367 = vpack.c.bf16 %v2326, %v2325
    %v2368 = vpack.c.bf16 %v2328, %v2327
    %v2369 = vpack.c.bf16 %v2330, %v2329
    %v2370 = vpack.c.bf16 %v2332, %v2331
    %v2371 = vpack.c.bf16 %v2334, %v2333
    %v2372 = vpack.c.bf16 %v2336, %v2335
    %v2373 = vpack.c.bf16 %v2338, %v2337
    %v2374 = vpack.c.bf16 %v2340, %v2339
    %v2375 = vpack.c.bf16 %v2342, %v2341
    %v2376 = vpack.c.bf16 %v2344, %v2343
    %v2377 = vpack.c.bf16 %v1386, %v1384
    %v2378 = vpack.c.bf16 %v1391, %v1389
    %v2379 = vpack.c.bf16 %v1396, %v1394
    %v2380 = vpack.c.bf16 %v1401, %v1399
    %v2381 = vpack.c.bf16 %v1406, %v1404
    %v2382 = vpack.c.bf16 %v1411, %v1409
    %v2383 = vpack.c.bf16 %v1416, %v1414
    %v2384 = vpack.c.bf16 %v1421, %v1419
    %v2385 = vpack.c.bf16 %v1426, %v1424
    %v2386 = vpack.c.bf16 %v1431, %v1429
    %v2387 = vpack.c.bf16 %v1436, %v1434
    %v2388 = vpack.c.bf16 %v1441, %v1439
    %v2389 = vpack.c.bf16 %v1446, %v1444
    %v2390 = vpack.c.bf16 %v1451, %v1449
    %v2391 = vpack.c.bf16 %v1456, %v1454
    %v2392 = vpack.c.bf16 %v1461, %v1459
    %v2425 = vunpack.c.l.b16 %v2345
    %v2426 = vunpack.c.h.b16 %v2345
    %v2427 = vunpack.c.l.b16 %v2346
    %v2428 = vunpack.c.h.b16 %v2346
    %v2429 = vunpack.c.l.b16 %v2347
    %v2430 = vunpack.c.h.b16 %v2347
    %v2431 = vunpack.c.l.b16 %v2348
    %v2432 = vunpack.c.h.b16 %v2348
    %v2433 = vunpack.c.l.b16 %v2349
    %v2434 = vunpack.c.h.b16 %v2349
    %v2435 = vunpack.c.l.b16 %v2350
    %v2436 = vunpack.c.h.b16 %v2350
    %v2437 = vunpack.c.l.b16 %v2351
    %v2438 = vunpack.c.h.b16 %v2351
    %v2439 = vunpack.c.l.b16 %v2352
    %v2440 = vunpack.c.h.b16 %v2352
    %v2441 = vunpack.c.l.b16 %v2353
    %v2442 = vunpack.c.h.b16 %v2353
    %v2443 = vunpack.c.l.b16 %v2354
    %v2444 = vunpack.c.h.b16 %v2354
    %v2445 = vunpack.c.l.b16 %v2355
    %v2446 = vunpack.c.h.b16 %v2355
    %v2447 = vunpack.c.l.b16 %v2356
    %v2448 = vunpack.c.h.b16 %v2356
    %v2449 = vunpack.c.l.b16 %v2357
    %v2450 = vunpack.c.h.b16 %v2357
    %v2451 = vunpack.c.l.b16 %v2358
    %v2452 = vunpack.c.h.b16 %v2358
    %v2453 = vunpack.c.l.b16 %v2359
    %v2454 = vunpack.c.h.b16 %v2359
    %v2455 = vunpack.c.l.b16 %v2360
    %v2456 = vunpack.c.h.b16 %v2360
    %v2457 = vunpack.c.l.b16 %v2361
    %v2458 = vunpack.c.h.b16 %v2361
    %v2459 = vunpack.c.l.b16 %v2362
    %v2460 = vunpack.c.h.b16 %v2362
    %v2461 = vunpack.c.l.b16 %v2363
    %v2462 = vunpack.c.h.b16 %v2363
    %v2463 = vunpack.c.l.b16 %v2364
    %v2464 = vunpack.c.h.b16 %v2364
    %v2465 = vunpack.c.l.b16 %v2365
    %v2466 = vunpack.c.h.b16 %v2365
    %v2467 = vunpack.c.l.b16 %v2366
    %v2468 = vunpack.c.h.b16 %v2366
    %v2469 = vunpack.c.l.b16 %v2367
    %v2470 = vunpack.c.h.b16 %v2367
    %v2471 = vunpack.c.l.b16 %v2368
    %v2472 = vunpack.c.h.b16 %v2368
    %v2473 = vunpack.c.l.b16 %v2369
    %v2474 = vunpack.c.h.b16 %v2369
    %v2475 = vunpack.c.l.b16 %v2370
    %v2476 = vunpack.c.h.b16 %v2370
    %v2477 = vunpack.c.l.b16 %v2371
    %v2478 = vunpack.c.h.b16 %v2371
    %v2479 = vunpack.c.l.b16 %v2372
    %v2480 = vunpack.c.h.b16 %v2372
    %v2481 = vunpack.c.l.b16 %v2373
    %v2482 = vunpack.c.h.b16 %v2373
    %v2483 = vunpack.c.l.b16 %v2374
    %v2484 = vunpack.c.h.b16 %v2374
    %v2485 = vunpack.c.l.b16 %v2375
    %v2486 = vunpack.c.h.b16 %v2375
    %v2487 = vunpack.c.l.b16 %v2376
    %v2488 = vunpack.c.h.b16 %v2376
    %v2489 = vpack.c.b16 %v2427, %v2425
    %v2490 = vpack.c.b16 %v2428, %v2426
    %v2491 = vpack.c.b16 %v2431, %v2429
    %v2492 = vpack.c.b16 %v2432, %v2430
    %v2493 = vpack.c.b16 %v2435, %v2433
    %v2494 = vpack.c.b16 %v2436, %v2434
    %v2495 = vpack.c.b16 %v2439, %v2437
    %v2496 = vpack.c.b16 %v2440, %v2438
    %v2497 = vpack.c.b16 %v2443, %v2441
    %v2498 = vpack.c.b16 %v2444, %v2442
    %v2499 = vpack.c.b16 %v2447, %v2445
    %v2500 = vpack.c.b16 %v2448, %v2446
    %v2501 = vpack.c.b16 %v2451, %v2449
    %v2502 = vpack.c.b16 %v2452, %v2450
    %v2503 = vpack.c.b16 %v2455, %v2453
    %v2504 = vpack.c.b16 %v2456, %v2454
    %v2505 = vpack.c.b16 %v2459, %v2457
    %v2506 = vpack.c.b16 %v2460, %v2458
    %v2507 = vpack.c.b16 %v2463, %v2461
    %v2508 = vpack.c.b16 %v2464, %v2462
    %v2509 = vpack.c.b16 %v2467, %v2465
    %v2510 = vpack.c.b16 %v2468, %v2466
    %v2511 = vpack.c.b16 %v2471, %v2469
    %v2512 = vpack.c.b16 %v2472, %v2470
    %v2513 = vpack.c.b16 %v2475, %v2473
    %v2514 = vpack.c.b16 %v2476, %v2474
    %v2515 = vpack.c.b16 %v2479, %v2477
    %v2516 = vpack.c.b16 %v2480, %v2478
    %v2517 = vpack.c.b16 %v2483, %v2481
    %v2518 = vpack.c.b16 %v2484, %v2482
    %v2519 = vpack.c.b16 %v2487, %v2485
    %v2520 = vpack.c.b16 %v2488, %v2486
    %2553 = vmatpush.bf16.msra.mxu0 %v2384
    %2554 = vmatpush.bf16.msra.mxu0 %v2383
    %2555 = vmatpush.bf16.msra.mxu0 %v2382
    %2556 = vmatpush.bf16.msra.mxu0 %v2381
    %2557 = vmatpush.bf16.msra.mxu0 %v2380
    %2558 = vmatpush.bf16.msra.mxu0 %v2379
    %2559 = vmatpush.bf16.msra.mxu0 %v2378
    %2560 = vmatpush.bf16.msra.mxu0 %v2377
    %2561 = vmatmul.bf16.gmra.mxu0 %v2489
    %v2562 = vpop.f32.mrf.mxu0
    %v2563 = vadd.f32 0.0, %v2562
    %v2564 = vpop.f32.mrf.mxu0
    %v2565 = vadd.f32 0.0, %v2564
    %2566 = vmatmul.bf16.gmra.mxu0 %v2491
    %v2567 = vpop.f32.mrf.mxu0
    %v2568 = vadd.f32 0.0, %v2567
    %v2569 = vpop.f32.mrf.mxu0
    %v2570 = vadd.f32 0.0, %v2569
    %2571 = vmatmul.bf16.gmra.mxu0 %v2493
    %v2572 = vpop.f32.mrf.mxu0
    %v2573 = vadd.f32 0.0, %v2572
    %v2574 = vpop.f32.mrf.mxu0
    %v2575 = vadd.f32 0.0, %v2574
    %2576 = vmatmul.bf16.gmra.mxu0 %v2495
    %v2577 = vpop.f32.mrf.mxu0
    %v2578 = vadd.f32 0.0, %v2577
    %v2579 = vpop.f32.mrf.mxu0
    %v2580 = vadd.f32 0.0, %v2579
    %2581 = vmatmul.bf16.gmra.mxu0 %v2497
    %v2582 = vpop.f32.mrf.mxu0
    %v2583 = vadd.f32 0.0, %v2582
    %v2584 = vpop.f32.mrf.mxu0
    %v2585 = vadd.f32 0.0, %v2584
    %2586 = vmatmul.bf16.gmra.mxu0 %v2499
    %v2587 = vpop.f32.mrf.mxu0
    %v2588 = vadd.f32 0.0, %v2587
    %v2589 = vpop.f32.mrf.mxu0
    %v2590 = vadd.f32 0.0, %v2589
    %2591 = vmatmul.bf16.gmra.mxu0 %v2501
    %v2592 = vpop.f32.mrf.mxu0
    %v2593 = vadd.f32 0.0, %v2592
    %v2594 = vpop.f32.mrf.mxu0
    %v2595 = vadd.f32 0.0, %v2594
    %2596 = vmatmul.bf16.gmra.mxu0 %v2503
    %v2597 = vpop.f32.mrf.mxu0
    %v2598 = vadd.f32 0.0, %v2597
    %v2599 = vpop.f32.mrf.mxu0
    %v2600 = vadd.f32 0.0, %v2599
    %2601 = vmatmul.bf16.gmra.mxu0 %v2505
    %v2602 = vpop.f32.mrf.mxu0
    %v2603 = vadd.f32 0.0, %v2602
    %v2604 = vpop.f32.mrf.mxu0
    %v2605 = vadd.f32 0.0, %v2604
    %2606 = vmatmul.bf16.gmra.mxu0 %v2507
    %v2607 = vpop.f32.mrf.mxu0
    %v2608 = vadd.f32 0.0, %v2607
    %v2609 = vpop.f32.mrf.mxu0
    %v2610 = vadd.f32 0.0, %v2609
    %2611 = vmatmul.bf16.gmra.mxu0 %v2509
    %v2612 = vpop.f32.mrf.mxu0
    %v2613 = vadd.f32 0.0, %v2612
    %v2614 = vpop.f32.mrf.mxu0
    %v2615 = vadd.f32 0.0, %v2614
    %2616 = vmatmul.bf16.gmra.mxu0 %v2511
    %v2617 = vpop.f32.mrf.mxu0
    %v2618 = vadd.f32 0.0, %v2617
    %v2619 = vpop.f32.mrf.mxu0
    %v2620 = vadd.f32 0.0, %v2619
    %2621 = vmatmul.bf16.gmra.mxu0 %v2513
    %v2622 = vpop.f32.mrf.mxu0
    %v2623 = vadd.f32 0.0, %v2622
    %v2624 = vpop.f32.mrf.mxu0
    %v2625 = vadd.f32 0.0, %v2624
    %2626 = vmatmul.bf16.gmra.mxu0 %v2515
    %v2627 = vpop.f32.mrf.mxu0
    %v2628 = vadd.f32 0.0, %v2627
    %v2629 = vpop.f32.mrf.mxu0
    %v2630 = vadd.f32 0.0, %v2629
    %2631 = vmatmul.bf16.gmra.mxu0 %v2517
    %v2632 = vpop.f32.mrf.mxu0
    %v2633 = vadd.f32 0.0, %v2632
    %v2634 = vpop.f32.mrf.mxu0
    %v2635 = vadd.f32 0.0, %v2634
    %2636 = vmatmul.bf16.gmra.mxu0 %v2519
    %v2637 = vpop.f32.mrf.mxu0
    %v2638 = vadd.f32 0.0, %v2637
    %v2639 = vpop.f32.mrf.mxu0
    %v2640 = vadd.f32 0.0, %v2639
    %2641 = vdwg.mxu0
    %2642 = vmatpush.bf16.msra.mxu0 %v2392
    %2643 = vmatpush.bf16.msra.mxu0 %v2391
    %2644 = vmatpush.bf16.msra.mxu0 %v2390
    %2645 = vmatpush.bf16.msra.mxu0 %v2389
    %2646 = vmatpush.bf16.msra.mxu0 %v2388
    %2647 = vmatpush.bf16.msra.mxu0 %v2387
    %2648 = vmatpush.bf16.msra.mxu0 %v2386
    %2649 = vmatpush.bf16.msra.mxu0 %v2385
    %2650 = vmatmul.bf16.gmra.mxu0 %v2490
    %v2651 = vpop.f32.mrf.mxu0
    %v2652 = vadd.f32 %v2563, %v2651
    %v2653 = vpop.f32.mrf.mxu0
    %v2654 = vadd.f32 %v2565, %v2653
    %2655 = vmatmul.bf16.gmra.mxu0 %v2492
    %v2656 = vpop.f32.mrf.mxu0
    %v2657 = vadd.f32 %v2568, %v2656
    %v2658 = vpop.f32.mrf.mxu0
    %v2659 = vadd.f32 %v2570, %v2658
    %2660 = vmatmul.bf16.gmra.mxu0 %v2494
    %v2661 = vpop.f32.mrf.mxu0
    %v2662 = vadd.f32 %v2573, %v2661
    %v2663 = vpop.f32.mrf.mxu0
    %v2664 = vadd.f32 %v2575, %v2663
    %2665 = vmatmul.bf16.gmra.mxu0 %v2496
    %v2666 = vpop.f32.mrf.mxu0
    %v2667 = vadd.f32 %v2578, %v2666
    %v2668 = vpop.f32.mrf.mxu0
    %v2669 = vadd.f32 %v2580, %v2668
    %2670 = vmatmul.bf16.gmra.mxu0 %v2498
    %v2671 = vpop.f32.mrf.mxu0
    %v2672 = vadd.f32 %v2583, %v2671
    %v2673 = vpop.f32.mrf.mxu0
    %v2674 = vadd.f32 %v2585, %v2673
    %2675 = vmatmul.bf16.gmra.mxu0 %v2500
    %v2676 = vpop.f32.mrf.mxu0
    %v2677 = vadd.f32 %v2588, %v2676
    %v2678 = vpop.f32.mrf.mxu0
    %v2679 = vadd.f32 %v2590, %v2678
    %2680 = vmatmul.bf16.gmra.mxu0 %v2502
    %v2681 = vpop.f32.mrf.mxu0
    %v2682 = vadd.f32 %v2593, %v2681
    %v2683 = vpop.f32.mrf.mxu0
    %v2684 = vadd.f32 %v2595, %v2683
    %2685 = vmatmul.bf16.gmra.mxu0 %v2504
    %v2686 = vpop.f32.mrf.mxu0
    %v2687 = vadd.f32 %v2598, %v2686
    %v2688 = vpop.f32.mrf.mxu0
    %v2689 = vadd.f32 %v2600, %v2688
    %2690 = vmatmul.bf16.gmra.mxu0 %v2506
    %v2691 = vpop.f32.mrf.mxu0
    %v2692 = vadd.f32 %v2603, %v2691
    %v2693 = vpop.f32.mrf.mxu0
    %v2694 = vadd.f32 %v2605, %v2693
    %2695 = vmatmul.bf16.gmra.mxu0 %v2508
    %v2696 = vpop.f32.mrf.mxu0
    %v2697 = vadd.f32 %v2608, %v2696
    %v2698 = vpop.f32.mrf.mxu0
    %v2699 = vadd.f32 %v2610, %v2698
    %2700 = vmatmul.bf16.gmra.mxu0 %v2510
    %v2701 = vpop.f32.mrf.mxu0
    %v2702 = vadd.f32 %v2613, %v2701
    %v2703 = vpop.f32.mrf.mxu0
    %v2704 = vadd.f32 %v2615, %v2703
    %2705 = vmatmul.bf16.gmra.mxu0 %v2512
    %v2706 = vpop.f32.mrf.mxu0
    %v2707 = vadd.f32 %v2618, %v2706
    %v2708 = vpop.f32.mrf.mxu0
    %v2709 = vadd.f32 %v2620, %v2708
    %2710 = vmatmul.bf16.gmra.mxu0 %v2514
    %v2711 = vpop.f32.mrf.mxu0
    %v2712 = vadd.f32 %v2623, %v2711
    %v2713 = vpop.f32.mrf.mxu0
    %v2714 = vadd.f32 %v2625, %v2713
    %2715 = vmatmul.bf16.gmra.mxu0 %v2516
    %v2716 = vpop.f32.mrf.mxu0
    %v2717 = vadd.f32 %v2628, %v2716
    %v2718 = vpop.f32.mrf.mxu0
    %v2719 = vadd.f32 %v2630, %v2718
    %2720 = vmatmul.bf16.gmra.mxu0 %v2518
    %v2721 = vpop.f32.mrf.mxu0
    %v2722 = vadd.f32 %v2633, %v2721
    %v2723 = vpop.f32.mrf.mxu0
    %v2724 = vadd.f32 %v2635, %v2723
    %2725 = vmatmul.bf16.gmra.mxu0 %v2520
    %v2726 = vpop.f32.mrf.mxu0
    %v2727 = vadd.f32 %v2638, %v2726
    %v2728 = vpop.f32.mrf.mxu0
    %v2729 = vadd.f32 %v2640, %v2728
    %2730 = vdwg.mxu0
    %v2731 = vld [vmem:[#allocation10] sm:$0xf]
    %v2732 = vld [vmem:[#allocation10 + $0x4] sm:$0xf]
    %v2733 = vld [vmem:[#allocation10 + $0x8] sm:$0xf]
    %v2734 = vld [vmem:[#allocation10 + $0xc] sm:$0xf]
    %v2735 = vld [vmem:[#allocation10 + $0x10] sm:$0xf]
    %v2736 = vld [vmem:[#allocation10 + $0x14] sm:$0xf]
    %v2737 = vld [vmem:[#allocation10 + $0x18] sm:$0xf]
    %v2738 = vld [vmem:[#allocation10 + $0x1c] sm:$0xf]
    %v2739 = vld [vmem:[#allocation10 + $0x20] sm:$0xf]
    %v2740 = vld [vmem:[#allocation10 + $0x24] sm:$0xf]
    %v2741 = vld [vmem:[#allocation10 + $0x28] sm:$0xf]
    %v2742 = vld [vmem:[#allocation10 + $0x2c] sm:$0xf]
    %v2743 = vld [vmem:[#allocation10 + $0x30] sm:$0xf]
    %v2744 = vld [vmem:[#allocation10 + $0x34] sm:$0xf]
    %v2745 = vld [vmem:[#allocation10 + $0x38] sm:$0xf]
    %v2746 = vld [vmem:[#allocation10 + $0x3c] sm:$0xf]
    %v2747 = vld [vmem:[%s5] sm:$0x1]
    %v2748 = vpack.c.bf16 %v2654, %v2652
    %v2749 = vpack.c.bf16 %v2659, %v2657
    %v2750 = vpack.c.bf16 %v2664, %v2662
    %v2751 = vpack.c.bf16 %v2669, %v2667
    %v2752 = vpack.c.bf16 %v2674, %v2672
    %v2753 = vpack.c.bf16 %v2679, %v2677
    %v2754 = vpack.c.bf16 %v2684, %v2682
    %v2755 = vpack.c.bf16 %v2689, %v2687
    %v2756 = vpack.c.bf16 %v2694, %v2692
    %v2757 = vpack.c.bf16 %v2699, %v2697
    %v2758 = vpack.c.bf16 %v2704, %v2702
    %v2759 = vpack.c.bf16 %v2709, %v2707
    %v2760 = vpack.c.bf16 %v2714, %v2712
    %v2761 = vpack.c.bf16 %v2719, %v2717
    %v2762 = vpack.c.bf16 %v2724, %v2722
    %v2763 = vpack.c.bf16 %v2729, %v2727
    %v2780 = vunpack.c.l.b16 %v2731
    %v2781 = vunpack.c.l.b16 %v2732
    %v2782 = vunpack.c.l.b16 %v2733
    %v2783 = vunpack.c.l.b16 %v2734
    %v2784 = vunpack.c.l.b16 %v2735
    %v2785 = vunpack.c.l.b16 %v2736
    %v2786 = vunpack.c.l.b16 %v2737
    %v2787 = vunpack.c.l.b16 %v2738
    %v2788 = vunpack.c.l.b16 %v2739
    %v2789 = vunpack.c.l.b16 %v2740
    %v2790 = vunpack.c.l.b16 %v2741
    %v2791 = vunpack.c.l.b16 %v2742
    %v2792 = vunpack.c.l.b16 %v2743
    %v2793 = vunpack.c.l.b16 %v2744
    %v2794 = vunpack.c.l.b16 %v2745
    %v2795 = vunpack.c.l.b16 %v2746
    %v2796 = vpack.c.b16 %v2781, %v2780
    %v2797 = vpack.c.b16 %v2783, %v2782
    %v2798 = vpack.c.b16 %v2785, %v2784
    %v2799 = vpack.c.b16 %v2787, %v2786
    %v2800 = vpack.c.b16 %v2789, %v2788
    %v2801 = vpack.c.b16 %v2791, %v2790
    %v2802 = vpack.c.b16 %v2793, %v2792
    %v2803 = vpack.c.b16 %v2795, %v2794
    %2812 = vmatpush.bf16.msra.mxu0 %v2803
    %2813 = vmatpush.bf16.msra.mxu0 %v2802
    %2814 = vmatpush.bf16.msra.mxu0 %v2801
    %2815 = vmatpush.bf16.msra.mxu0 %v2800
    %2816 = vmatpush.bf16.msra.mxu0 %v2799
    %2817 = vmatpush.bf16.msra.mxu0 %v2798
    %2818 = vmatpush.bf16.msra.mxu0 %v2797
    %2819 = vmatpush.bf16.msra.mxu0 %v2796
    %2820 = vmatmul.bf16.gmra.mxu0 %v2748
    %v2821 = vpop.f32.mrf.mxu0
    %v2822 = vadd.f32 0.0, %v2821
    %v2823 = vpop.f32.mrf.mxu0
    %v2824 = vadd.f32 0.0, %v2823
    %2825 = vmatmul.bf16.gmra.mxu0 %v2749
    %v2826 = vpop.f32.mrf.mxu0
    %v2827 = vadd.f32 0.0, %v2826
    %v2828 = vpop.f32.mrf.mxu0
    %v2829 = vadd.f32 0.0, %v2828
    %2830 = vmatmul.bf16.gmra.mxu0 %v2750
    %v2831 = vpop.f32.mrf.mxu0
    %v2832 = vadd.f32 0.0, %v2831
    %v2833 = vpop.f32.mrf.mxu0
    %v2834 = vadd.f32 0.0, %v2833
    %2835 = vmatmul.bf16.gmra.mxu0 %v2751
    %v2836 = vpop.f32.mrf.mxu0
    %v2837 = vadd.f32 0.0, %v2836
    %v2838 = vpop.f32.mrf.mxu0
    %v2839 = vadd.f32 0.0, %v2838
    %2840 = vmatmul.bf16.gmra.mxu0 %v2752
    %v2841 = vpop.f32.mrf.mxu0
    %v2842 = vadd.f32 0.0, %v2841
    %v2843 = vpop.f32.mrf.mxu0
    %v2844 = vadd.f32 0.0, %v2843
    %2845 = vmatmul.bf16.gmra.mxu0 %v2753
    %v2846 = vpop.f32.mrf.mxu0
    %v2847 = vadd.f32 0.0, %v2846
    %v2848 = vpop.f32.mrf.mxu0
    %v2849 = vadd.f32 0.0, %v2848
    %2850 = vmatmul.bf16.gmra.mxu0 %v2754
    %v2851 = vpop.f32.mrf.mxu0
    %v2852 = vadd.f32 0.0, %v2851
    %v2853 = vpop.f32.mrf.mxu0
    %v2854 = vadd.f32 0.0, %v2853
    %2855 = vmatmul.bf16.gmra.mxu0 %v2755
    %v2856 = vpop.f32.mrf.mxu0
    %v2857 = vadd.f32 0.0, %v2856
    %v2858 = vpop.f32.mrf.mxu0
    %v2859 = vadd.f32 0.0, %v2858
    %2860 = vmatmul.bf16.gmra.mxu0 %v2756
    %v2861 = vpop.f32.mrf.mxu0
    %v2862 = vadd.f32 0.0, %v2861
    %v2863 = vpop.f32.mrf.mxu0
    %v2864 = vadd.f32 0.0, %v2863
    %2865 = vmatmul.bf16.gmra.mxu0 %v2757
    %v2866 = vpop.f32.mrf.mxu0
    %v2867 = vadd.f32 0.0, %v2866
    %v2868 = vpop.f32.mrf.mxu0
    %v2869 = vadd.f32 0.0, %v2868
    %2870 = vmatmul.bf16.gmra.mxu0 %v2758
    %v2871 = vpop.f32.mrf.mxu0
    %v2872 = vadd.f32 0.0, %v2871
    %v2873 = vpop.f32.mrf.mxu0
    %v2874 = vadd.f32 0.0, %v2873
    %2875 = vmatmul.bf16.gmra.mxu0 %v2759
    %v2876 = vpop.f32.mrf.mxu0
    %v2877 = vadd.f32 0.0, %v2876
    %v2878 = vpop.f32.mrf.mxu0
    %v2879 = vadd.f32 0.0, %v2878
    %2880 = vmatmul.bf16.gmra.mxu0 %v2760
    %v2881 = vpop.f32.mrf.mxu0
    %v2882 = vadd.f32 0.0, %v2881
    %v2883 = vpop.f32.mrf.mxu0
    %v2884 = vadd.f32 0.0, %v2883
    %2885 = vmatmul.bf16.gmra.mxu0 %v2761
    %v2886 = vpop.f32.mrf.mxu0
    %v2887 = vadd.f32 0.0, %v2886
    %v2888 = vpop.f32.mrf.mxu0
    %v2889 = vadd.f32 0.0, %v2888
    %2890 = vmatmul.bf16.gmra.mxu0 %v2762
    %v2891 = vpop.f32.mrf.mxu0
    %v2892 = vadd.f32 0.0, %v2891
    %v2893 = vpop.f32.mrf.mxu0
    %v2894 = vadd.f32 0.0, %v2893
    %2895 = vmatmul.bf16.gmra.mxu0 %v2763
    %v2896 = vpop.f32.mrf.mxu0
    %v2897 = vadd.f32 0.0, %v2896
    %v2898 = vpop.f32.mrf.mxu0
    %v2899 = vadd.f32 0.0, %v2898
    %2900 = vdwg.mxu0
    %v2901 = vpack.c.bf16 %v2824, %v2822
    %v2902 = vpack.c.bf16 %v2829, %v2827
    %v2903 = vpack.c.bf16 %v2834, %v2832
    %v2904 = vpack.c.bf16 %v2839, %v2837
    %v2905 = vpack.c.bf16 %v2844, %v2842
    %v2906 = vpack.c.bf16 %v2849, %v2847
    %v2907 = vpack.c.bf16 %v2854, %v2852
    %v2908 = vpack.c.bf16 %v2859, %v2857
    %v2909 = vpack.c.bf16 %v2864, %v2862
    %v2910 = vpack.c.bf16 %v2869, %v2867
    %v2911 = vpack.c.bf16 %v2874, %v2872
    %v2912 = vpack.c.bf16 %v2879, %v2877
    %v2913 = vpack.c.bf16 %v2884, %v2882
    %v2914 = vpack.c.bf16 %v2889, %v2887
    %v2915 = vpack.c.bf16 %v2894, %v2892
    %v2916 = vpack.c.bf16 %v2899, %v2897
    %v2918 = vperm.slane %v2747, 0
    %2920 = vmatpush.bf16.msra.mxu0 %v2908
    %2921 = vmatpush.bf16.msra.mxu0 %v2907
    %2922 = vmatpush.bf16.msra.mxu0 %v2906
    %2923 = vmatpush.bf16.msra.mxu0 %v2905
    %2924 = vmatpush.bf16.msra.mxu0 %v2904
    %2925 = vmatpush.bf16.msra.mxu0 %v2903
    %2926 = vmatpush.bf16.msra.mxu0 %v2902
    %2927 = vmatpush.bf16.msra.mxu0 %v2901
    %2928 = vmatmul.bf16.gmra.mxu0 %v865
    %v2929 = vpop.f32.mrf.mxu0
    %v2930 = vadd.f32 %v2918, %v2929
    %v2931 = vpop.f32.mrf.mxu0
    %v2932 = vadd.f32 %v2918, %v2931
    %2933 = vmatmul.bf16.gmra.mxu0 %v867
    %v2934 = vpop.f32.mrf.mxu0
    %v2935 = vadd.f32 %v2918, %v2934
    %v2936 = vpop.f32.mrf.mxu0
    %v2937 = vadd.f32 %v2918, %v2936
    %2938 = vmatmul.bf16.gmra.mxu0 %v869
    %v2939 = vpop.f32.mrf.mxu0
    %v2940 = vadd.f32 %v2918, %v2939
    %v2941 = vpop.f32.mrf.mxu0
    %v2942 = vadd.f32 %v2918, %v2941
    %2943 = vmatmul.bf16.gmra.mxu0 %v871
    %v2944 = vpop.f32.mrf.mxu0
    %v2945 = vadd.f32 %v2918, %v2944
    %v2946 = vpop.f32.mrf.mxu0
    %v2947 = vadd.f32 %v2918, %v2946
    %2948 = vmatmul.bf16.gmra.mxu0 %v873
    %v2949 = vpop.f32.mrf.mxu0
    %v2950 = vadd.f32 %v2918, %v2949
    %v2951 = vpop.f32.mrf.mxu0
    %v2952 = vadd.f32 %v2918, %v2951
    %2953 = vmatmul.bf16.gmra.mxu0 %v875
    %v2954 = vpop.f32.mrf.mxu0
    %v2955 = vadd.f32 %v2918, %v2954
    %v2956 = vpop.f32.mrf.mxu0
    %v2957 = vadd.f32 %v2918, %v2956
    %2958 = vmatmul.bf16.gmra.mxu0 %v877
    %v2959 = vpop.f32.mrf.mxu0
    %v2960 = vadd.f32 %v2918, %v2959
    %v2961 = vpop.f32.mrf.mxu0
    %v2962 = vadd.f32 %v2918, %v2961
    %2963 = vmatmul.bf16.gmra.mxu0 %v879
    %v2964 = vpop.f32.mrf.mxu0
    %v2965 = vadd.f32 %v2918, %v2964
    %v2966 = vpop.f32.mrf.mxu0
    %v2967 = vadd.f32 %v2918, %v2966
    %2968 = vmatmul.bf16.gmra.mxu0 %v881
    %v2969 = vpop.f32.mrf.mxu0
    %v2970 = vadd.f32 %v2918, %v2969
    %v2971 = vpop.f32.mrf.mxu0
    %v2972 = vadd.f32 %v2918, %v2971
    %2973 = vmatmul.bf16.gmra.mxu0 %v883
    %v2974 = vpop.f32.mrf.mxu0
    %v2975 = vadd.f32 %v2918, %v2974
    %v2976 = vpop.f32.mrf.mxu0
    %v2977 = vadd.f32 %v2918, %v2976
    %2978 = vmatmul.bf16.gmra.mxu0 %v885
    %v2979 = vpop.f32.mrf.mxu0
    %v2980 = vadd.f32 %v2918, %v2979
    %v2981 = vpop.f32.mrf.mxu0
    %v2982 = vadd.f32 %v2918, %v2981
    %2983 = vmatmul.bf16.gmra.mxu0 %v887
    %v2984 = vpop.f32.mrf.mxu0
    %v2985 = vadd.f32 %v2918, %v2984
    %v2986 = vpop.f32.mrf.mxu0
    %v2987 = vadd.f32 %v2918, %v2986
    %2988 = vmatmul.bf16.gmra.mxu0 %v889
    %v2989 = vpop.f32.mrf.mxu0
    %v2990 = vadd.f32 %v2918, %v2989
    %v2991 = vpop.f32.mrf.mxu0
    %v2992 = vadd.f32 %v2918, %v2991
    %2993 = vmatmul.bf16.gmra.mxu0 %v891
    %v2994 = vpop.f32.mrf.mxu0
    %v2995 = vadd.f32 %v2918, %v2994
    %v2996 = vpop.f32.mrf.mxu0
    %v2997 = vadd.f32 %v2918, %v2996
    %2998 = vmatmul.bf16.gmra.mxu0 %v893
    %v2999 = vpop.f32.mrf.mxu0
    %v3000 = vadd.f32 %v2918, %v2999
    %v3001 = vpop.f32.mrf.mxu0
    %v3002 = vadd.f32 %v2918, %v3001
    %3003 = vmatmul.bf16.gmra.mxu0 %v895
    %v3004 = vpop.f32.mrf.mxu0
    %v3005 = vadd.f32 %v2918, %v3004
    %v3006 = vpop.f32.mrf.mxu0
    %v3007 = vadd.f32 %v2918, %v3006
    %3008 = vdwg.mxu0
    %3009 = vmatpush.bf16.msra.mxu0 %v2916
    %3010 = vmatpush.bf16.msra.mxu0 %v2915
    %3011 = vmatpush.bf16.msra.mxu0 %v2914
    %3012 = vmatpush.bf16.msra.mxu0 %v2913
    %3013 = vmatpush.bf16.msra.mxu0 %v2912
    %3014 = vmatpush.bf16.msra.mxu0 %v2911
    %3015 = vmatpush.bf16.msra.mxu0 %v2910
    %3016 = vmatpush.bf16.msra.mxu0 %v2909
    %3017 = vmatmul.bf16.gmra.mxu0 %v866
    %v3018 = vpop.f32.mrf.mxu0
    %v3019 = vadd.f32 %v2930, %v3018
    %v3020 = vpop.f32.mrf.mxu0
    %v3021 = vadd.f32 %v2932, %v3020
    %3022 = vmatmul.bf16.gmra.mxu0 %v868
    %v3023 = vpop.f32.mrf.mxu0
    %v3024 = vadd.f32 %v2935, %v3023
    %v3025 = vpop.f32.mrf.mxu0
    %v3026 = vadd.f32 %v2937, %v3025
    %3027 = vmatmul.bf16.gmra.mxu0 %v870
    %v3028 = vpop.f32.mrf.mxu0
    %v3029 = vadd.f32 %v2940, %v3028
    %v3030 = vpop.f32.mrf.mxu0
    %v3031 = vadd.f32 %v2942, %v3030
    %3032 = vmatmul.bf16.gmra.mxu0 %v872
    %v3033 = vpop.f32.mrf.mxu0
    %v3034 = vadd.f32 %v2945, %v3033
    %v3035 = vpop.f32.mrf.mxu0
    %v3036 = vadd.f32 %v2947, %v3035
    %3037 = vmatmul.bf16.gmra.mxu0 %v874
    %v3038 = vpop.f32.mrf.mxu0
    %v3039 = vadd.f32 %v2950, %v3038
    %v3040 = vpop.f32.mrf.mxu0
    %v3041 = vadd.f32 %v2952, %v3040
    %3042 = vmatmul.bf16.gmra.mxu0 %v876
    %v3043 = vpop.f32.mrf.mxu0
    %v3044 = vadd.f32 %v2955, %v3043
    %v3045 = vpop.f32.mrf.mxu0
    %v3046 = vadd.f32 %v2957, %v3045
    %3047 = vmatmul.bf16.gmra.mxu0 %v878
    %v3048 = vpop.f32.mrf.mxu0
    %v3049 = vadd.f32 %v2960, %v3048
    %v3050 = vpop.f32.mrf.mxu0
    %v3051 = vadd.f32 %v2962, %v3050
    %3052 = vmatmul.bf16.gmra.mxu0 %v880
    %v3053 = vpop.f32.mrf.mxu0
    %v3054 = vadd.f32 %v2965, %v3053
    %v3055 = vpop.f32.mrf.mxu0
    %v3056 = vadd.f32 %v2967, %v3055
    %3057 = vmatmul.bf16.gmra.mxu0 %v882
    %v3058 = vpop.f32.mrf.mxu0
    %v3059 = vadd.f32 %v2970, %v3058
    %v3060 = vpop.f32.mrf.mxu0
    %v3061 = vadd.f32 %v2972, %v3060
    %3062 = vmatmul.bf16.gmra.mxu0 %v884
    %v3063 = vpop.f32.mrf.mxu0
    %v3064 = vadd.f32 %v2975, %v3063
    %v3065 = vpop.f32.mrf.mxu0
    %v3066 = vadd.f32 %v2977, %v3065
    %3067 = vmatmul.bf16.gmra.mxu0 %v886
    %v3068 = vpop.f32.mrf.mxu0
    %v3069 = vadd.f32 %v2980, %v3068
    %v3070 = vpop.f32.mrf.mxu0
    %v3071 = vadd.f32 %v2982, %v3070
    %3072 = vmatmul.bf16.gmra.mxu0 %v888
    %v3073 = vpop.f32.mrf.mxu0
    %v3074 = vadd.f32 %v2985, %v3073
    %v3075 = vpop.f32.mrf.mxu0
    %v3076 = vadd.f32 %v2987, %v3075
    %3077 = vmatmul.bf16.gmra.mxu0 %v890
    %v3078 = vpop.f32.mrf.mxu0
    %v3079 = vadd.f32 %v2990, %v3078
    %v3080 = vpop.f32.mrf.mxu0
    %v3081 = vadd.f32 %v2992, %v3080
    %3082 = vmatmul.bf16.gmra.mxu0 %v892
    %v3083 = vpop.f32.mrf.mxu0
    %v3084 = vadd.f32 %v2995, %v3083
    %v3085 = vpop.f32.mrf.mxu0
    %v3086 = vadd.f32 %v2997, %v3085
    %3087 = vmatmul.bf16.gmra.mxu0 %v894
    %v3088 = vpop.f32.mrf.mxu0
    %v3089 = vadd.f32 %v3000, %v3088
    %v3090 = vpop.f32.mrf.mxu0
    %v3091 = vadd.f32 %v3002, %v3090
    %3092 = vmatmul.bf16.gmra.mxu0 %v896
    %v3093 = vpop.f32.mrf.mxu0
    %v3094 = vadd.f32 %v3005, %v3093
    %v3095 = vpop.f32.mrf.mxu0
    %v3096 = vadd.f32 %v3007, %v3095
    %3097 = vdwg.mxu0
    %3098 = vadd.xlane.f32.xlu0 %v3019
    %v3099 = vpop.xlane.xlu0 %3098
    %3100 = vadd.xlane.f32.xlu0 %v3021
    %v3101 = vpop.xlane.xlu0 %3100
    %3102 = vadd.xlane.f32.xlu0 %v3024
    %v3103 = vpop.xlane.xlu0 %3102
    %3104 = vadd.xlane.f32.xlu0 %v3026
    %v3105 = vpop.xlane.xlu0 %3104
    %3106 = vadd.xlane.f32.xlu0 %v3029
    %v3107 = vpop.xlane.xlu0 %3106
    %3108 = vadd.xlane.f32.xlu0 %v3031
    %v3109 = vpop.xlane.xlu0 %3108
    %3110 = vadd.xlane.f32.xlu0 %v3034
    %v3111 = vpop.xlane.xlu0 %3110
    %3112 = vadd.xlane.f32.xlu0 %v3036
    %v3113 = vpop.xlane.xlu0 %3112
    %3114 = vadd.xlane.f32.xlu0 %v3039
    %v3115 = vpop.xlane.xlu0 %3114
    %3116 = vadd.xlane.f32.xlu0 %v3041
    %v3117 = vpop.xlane.xlu0 %3116
    %3118 = vadd.xlane.f32.xlu0 %v3044
    %v3119 = vpop.xlane.xlu0 %3118
    %3120 = vadd.xlane.f32.xlu0 %v3046
    %v3121 = vpop.xlane.xlu0 %3120
    %3122 = vadd.xlane.f32.xlu0 %v3049
    %v3123 = vpop.xlane.xlu0 %3122
    %3124 = vadd.xlane.f32.xlu0 %v3051
    %v3125 = vpop.xlane.xlu0 %3124
    %3126 = vadd.xlane.f32.xlu0 %v3054
    %v3127 = vpop.xlane.xlu0 %3126
    %3128 = vadd.xlane.f32.xlu0 %v3056
    %v3129 = vpop.xlane.xlu0 %3128
    %3130 = vadd.xlane.f32.xlu0 %v3059
    %v3131 = vpop.xlane.xlu0 %3130
    %3132 = vadd.xlane.f32.xlu0 %v3061
    %v3133 = vpop.xlane.xlu0 %3132
    %3134 = vadd.xlane.f32.xlu0 %v3064
    %v3135 = vpop.xlane.xlu0 %3134
    %3136 = vadd.xlane.f32.xlu0 %v3066
    %v3137 = vpop.xlane.xlu0 %3136
    %3138 = vadd.xlane.f32.xlu0 %v3069
    %v3139 = vpop.xlane.xlu0 %3138
    %3140 = vadd.xlane.f32.xlu0 %v3071
    %v3141 = vpop.xlane.xlu0 %3140
    %3142 = vadd.xlane.f32.xlu0 %v3074
    %v3143 = vpop.xlane.xlu0 %3142
    %3144 = vadd.xlane.f32.xlu0 %v3076
    %v3145 = vpop.xlane.xlu0 %3144
    %3146 = vadd.xlane.f32.xlu0 %v3079
    %v3147 = vpop.xlane.xlu0 %3146
    %3148 = vadd.xlane.f32.xlu0 %v3081
    %v3149 = vpop.xlane.xlu0 %3148
    %3150 = vadd.xlane.f32.xlu0 %v3084
    %v3151 = vpop.xlane.xlu0 %3150
    %3152 = vadd.xlane.f32.xlu0 %v3086
    %v3153 = vpop.xlane.xlu0 %3152
    %3154 = vadd.xlane.f32.xlu0 %v3089
    %v3155 = vpop.xlane.xlu0 %3154
    %3156 = vadd.xlane.f32.xlu0 %v3091
    %v3157 = vpop.xlane.xlu0 %3156
    %3158 = vadd.xlane.f32.xlu0 %v3094
    %v3159 = vpop.xlane.xlu0 %3158
    %3160 = vadd.xlane.f32.xlu0 %v3096
    %v3161 = vpop.xlane.xlu0 %3160
    %v3162 = vmul.f32 %v3099, 0.03125
    %v3163 = vmul.f32 %v3101, 0.03125
    %v3164 = vmul.f32 %v3103, 0.03125
    %v3165 = vmul.f32 %v3105, 0.03125
    %v3166 = vmul.f32 %v3107, 0.03125
    %v3167 = vmul.f32 %v3109, 0.03125
    %v3168 = vmul.f32 %v3111, 0.03125
    %v3169 = vmul.f32 %v3113, 0.03125
    %v3170 = vmul.f32 %v3115, 0.03125
    %v3171 = vmul.f32 %v3117, 0.03125
    %v3172 = vmul.f32 %v3119, 0.03125
    %v3173 = vmul.f32 %v3121, 0.03125
    %v3174 = vmul.f32 %v3123, 0.03125
    %v3175 = vmul.f32 %v3125, 0.03125
    %v3176 = vmul.f32 %v3127, 0.03125
    %v3177 = vmul.f32 %v3129, 0.03125
    %v3178 = vmul.f32 %v3131, 0.03125
    %v3179 = vmul.f32 %v3133, 0.03125
    %v3180 = vmul.f32 %v3135, 0.03125
    %v3181 = vmul.f32 %v3137, 0.03125
    %v3182 = vmul.f32 %v3139, 0.03125
    %v3183 = vmul.f32 %v3141, 0.03125
    %v3184 = vmul.f32 %v3143, 0.03125
    %v3185 = vmul.f32 %v3145, 0.03125
    %v3186 = vmul.f32 %v3147, 0.03125
    %v3187 = vmul.f32 %v3149, 0.03125
    %v3188 = vmul.f32 %v3151, 0.03125
    %v3189 = vmul.f32 %v3153, 0.03125
    %v3190 = vmul.f32 %v3155, 0.03125
    %v3191 = vmul.f32 %v3157, 0.03125
    %v3192 = vmul.f32 %v3159, 0.03125
    %v3193 = vmul.f32 %v3161, 0.03125
    %v3194 = vmul.f32 %v3019, %v3019
    %v3195 = vmul.f32 %v3021, %v3021
    %v3196 = vmul.f32 %v3024, %v3024
    %v3197 = vmul.f32 %v3026, %v3026
    %v3198 = vmul.f32 %v3029, %v3029
    %v3199 = vmul.f32 %v3031, %v3031
    %v3200 = vmul.f32 %v3034, %v3034
    %v3201 = vmul.f32 %v3036, %v3036
    %v3202 = vmul.f32 %v3039, %v3039
    %v3203 = vmul.f32 %v3041, %v3041
    %v3204 = vmul.f32 %v3044, %v3044
    %v3205 = vmul.f32 %v3046, %v3046
    %v3206 = vmul.f32 %v3049, %v3049
    %v3207 = vmul.f32 %v3051, %v3051
    %v3208 = vmul.f32 %v3054, %v3054
    %v3209 = vmul.f32 %v3056, %v3056
    %v3210 = vmul.f32 %v3059, %v3059
    %v3211 = vmul.f32 %v3061, %v3061
    %v3212 = vmul.f32 %v3064, %v3064
    %v3213 = vmul.f32 %v3066, %v3066
    %v3214 = vmul.f32 %v3069, %v3069
    %v3215 = vmul.f32 %v3071, %v3071
    %v3216 = vmul.f32 %v3074, %v3074
    %v3217 = vmul.f32 %v3076, %v3076
    %v3218 = vmul.f32 %v3079, %v3079
    %v3219 = vmul.f32 %v3081, %v3081
    %v3220 = vmul.f32 %v3084, %v3084
    %v3221 = vmul.f32 %v3086, %v3086
    %v3222 = vmul.f32 %v3089, %v3089
    %v3223 = vmul.f32 %v3091, %v3091
    %v3224 = vmul.f32 %v3094, %v3094
    %v3225 = vmul.f32 %v3096, %v3096
    %3226 = vadd.xlane.f32.xlu0 %v3194
    %v3227 = vpop.xlane.xlu0 %3226
    %3228 = vadd.xlane.f32.xlu0 %v3195
    %v3229 = vpop.xlane.xlu0 %3228
    %3230 = vadd.xlane.f32.xlu0 %v3196
    %v3231 = vpop.xlane.xlu0 %3230
    %3232 = vadd.xlane.f32.xlu0 %v3197
    %v3233 = vpop.xlane.xlu0 %3232
    %3234 = vadd.xlane.f32.xlu0 %v3198
    %v3235 = vpop.xlane.xlu0 %3234
    %3236 = vadd.xlane.f32.xlu0 %v3199
    %v3237 = vpop.xlane.xlu0 %3236
    %3238 = vadd.xlane.f32.xlu0 %v3200
    %v3239 = vpop.xlane.xlu0 %3238
    %3240 = vadd.xlane.f32.xlu0 %v3201
    %v3241 = vpop.xlane.xlu0 %3240
    %3242 = vadd.xlane.f32.xlu0 %v3202
    %v3243 = vpop.xlane.xlu0 %3242
    %3244 = vadd.xlane.f32.xlu0 %v3203
    %v3245 = vpop.xlane.xlu0 %3244
    %3246 = vadd.xlane.f32.xlu0 %v3204
    %v3247 = vpop.xlane.xlu0 %3246
    %3248 = vadd.xlane.f32.xlu0 %v3205
    %v3249 = vpop.xlane.xlu0 %3248
    %3250 = vadd.xlane.f32.xlu0 %v3206
    %v3251 = vpop.xlane.xlu0 %3250
    %3252 = vadd.xlane.f32.xlu0 %v3207
    %v3253 = vpop.xlane.xlu0 %3252
    %3254 = vadd.xlane.f32.xlu0 %v3208
    %v3255 = vpop.xlane.xlu0 %3254
    %3256 = vadd.xlane.f32.xlu0 %v3209
    %v3257 = vpop.xlane.xlu0 %3256
    %3258 = vadd.xlane.f32.xlu0 %v3210
    %v3259 = vpop.xlane.xlu0 %3258
    %3260 = vadd.xlane.f32.xlu0 %v3211
    %v3261 = vpop.xlane.xlu0 %3260
    %3262 = vadd.xlane.f32.xlu0 %v3212
    %v3263 = vpop.xlane.xlu0 %3262
    %3264 = vadd.xlane.f32.xlu0 %v3213
    %v3265 = vpop.xlane.xlu0 %3264
    %3266 = vadd.xlane.f32.xlu0 %v3214
    %v3267 = vpop.xlane.xlu0 %3266
    %3268 = vadd.xlane.f32.xlu0 %v3215
    %v3269 = vpop.xlane.xlu0 %3268
    %3270 = vadd.xlane.f32.xlu0 %v3216
    %v3271 = vpop.xlane.xlu0 %3270
    %3272 = vadd.xlane.f32.xlu0 %v3217
    %v3273 = vpop.xlane.xlu0 %3272
    %3274 = vadd.xlane.f32.xlu0 %v3218
    %v3275 = vpop.xlane.xlu0 %3274
    %3276 = vadd.xlane.f32.xlu0 %v3219
    %v3277 = vpop.xlane.xlu0 %3276
    %3278 = vadd.xlane.f32.xlu0 %v3220
    %v3279 = vpop.xlane.xlu0 %3278
    %3280 = vadd.xlane.f32.xlu0 %v3221
    %v3281 = vpop.xlane.xlu0 %3280
    %3282 = vadd.xlane.f32.xlu0 %v3222
    %v3283 = vpop.xlane.xlu0 %3282
    %3284 = vadd.xlane.f32.xlu0 %v3223
    %v3285 = vpop.xlane.xlu0 %3284
    %3286 = vadd.xlane.f32.xlu0 %v3224
    %v3287 = vpop.xlane.xlu0 %3286
    %3288 = vadd.xlane.f32.xlu0 %v3225
    %v3289 = vpop.xlane.xlu0 %3288
    %v3290 = vmul.f32 %v3227, 0.03125
    %v3291 = vmul.f32 %v3229, 0.03125
    %v3292 = vmul.f32 %v3231, 0.03125
    %v3293 = vmul.f32 %v3233, 0.03125
    %v3294 = vmul.f32 %v3235, 0.03125
    %v3295 = vmul.f32 %v3237, 0.03125
    %v3296 = vmul.f32 %v3239, 0.03125
    %v3297 = vmul.f32 %v3241, 0.03125
    %v3298 = vmul.f32 %v3243, 0.03125
    %v3299 = vmul.f32 %v3245, 0.03125
    %v3300 = vmul.f32 %v3247, 0.03125
    %v3301 = vmul.f32 %v3249, 0.03125
    %v3302 = vmul.f32 %v3251, 0.03125
    %v3303 = vmul.f32 %v3253, 0.03125
    %v3304 = vmul.f32 %v3255, 0.03125
    %v3305 = vmul.f32 %v3257, 0.03125
    %v3306 = vmul.f32 %v3259, 0.03125
    %v3307 = vmul.f32 %v3261, 0.03125
    %v3308 = vmul.f32 %v3263, 0.03125
    %v3309 = vmul.f32 %v3265, 0.03125
    %v3310 = vmul.f32 %v3267, 0.03125
    %v3311 = vmul.f32 %v3269, 0.03125
    %v3312 = vmul.f32 %v3271, 0.03125
    %v3313 = vmul.f32 %v3273, 0.03125
    %v3314 = vmul.f32 %v3275, 0.03125
    %v3315 = vmul.f32 %v3277, 0.03125
    %v3316 = vmul.f32 %v3279, 0.03125
    %v3317 = vmul.f32 %v3281, 0.03125
    %v3318 = vmul.f32 %v3283, 0.03125
    %v3319 = vmul.f32 %v3285, 0.03125
    %v3320 = vmul.f32 %v3287, 0.03125
    %v3321 = vmul.f32 %v3289, 0.03125
    %v3322 = vsub.f32 %v3019, %v3162
    %v3323 = vsub.f32 %v3021, %v3163
    %v3324 = vsub.f32 %v3024, %v3164
    %v3325 = vsub.f32 %v3026, %v3165
    %v3326 = vsub.f32 %v3029, %v3166
    %v3327 = vsub.f32 %v3031, %v3167
    %v3328 = vsub.f32 %v3034, %v3168
    %v3329 = vsub.f32 %v3036, %v3169
    %v3330 = vsub.f32 %v3039, %v3170
    %v3331 = vsub.f32 %v3041, %v3171
    %v3332 = vsub.f32 %v3044, %v3172
    %v3333 = vsub.f32 %v3046, %v3173
    %v3334 = vsub.f32 %v3049, %v3174
    %v3335 = vsub.f32 %v3051, %v3175
    %v3336 = vsub.f32 %v3054, %v3176
    %v3337 = vsub.f32 %v3056, %v3177
    %v3338 = vsub.f32 %v3059, %v3178
    %v3339 = vsub.f32 %v3061, %v3179
    %v3340 = vsub.f32 %v3064, %v3180
    %v3341 = vsub.f32 %v3066, %v3181
    %v3342 = vsub.f32 %v3069, %v3182
    %v3343 = vsub.f32 %v3071, %v3183
    %v3344 = vsub.f32 %v3074, %v3184
    %v3345 = vsub.f32 %v3076, %v3185
    %v3346 = vsub.f32 %v3079, %v3186
    %v3347 = vsub.f32 %v3081, %v3187
    %v3348 = vsub.f32 %v3084, %v3188
    %v3349 = vsub.f32 %v3086, %v3189
    %v3350 = vsub.f32 %v3089, %v3190
    %v3351 = vsub.f32 %v3091, %v3191
    %v3352 = vsub.f32 %v3094, %v3192
    %v3353 = vsub.f32 %v3096, %v3193
    %v3354 = vmul.f32 %v3162, %v3162
    %v3355 = vmul.f32 %v3163, %v3163
    %v3356 = vmul.f32 %v3164, %v3164
    %v3357 = vmul.f32 %v3165, %v3165
    %v3358 = vmul.f32 %v3166, %v3166
    %v3359 = vmul.f32 %v3167, %v3167
    %v3360 = vmul.f32 %v3168, %v3168
    %v3361 = vmul.f32 %v3169, %v3169
    %v3362 = vmul.f32 %v3170, %v3170
    %v3363 = vmul.f32 %v3171, %v3171
    %v3364 = vmul.f32 %v3172, %v3172
    %v3365 = vmul.f32 %v3173, %v3173
    %v3366 = vmul.f32 %v3174, %v3174
    %v3367 = vmul.f32 %v3175, %v3175
    %v3368 = vmul.f32 %v3176, %v3176
    %v3369 = vmul.f32 %v3177, %v3177
    %v3370 = vmul.f32 %v3178, %v3178
    %v3371 = vmul.f32 %v3179, %v3179
    %v3372 = vmul.f32 %v3180, %v3180
    %v3373 = vmul.f32 %v3181, %v3181
    %v3374 = vmul.f32 %v3182, %v3182
    %v3375 = vmul.f32 %v3183, %v3183
    %v3376 = vmul.f32 %v3184, %v3184
    %v3377 = vmul.f32 %v3185, %v3185
    %v3378 = vmul.f32 %v3186, %v3186
    %v3379 = vmul.f32 %v3187, %v3187
    %v3380 = vmul.f32 %v3188, %v3188
    %v3381 = vmul.f32 %v3189, %v3189
    %v3382 = vmul.f32 %v3190, %v3190
    %v3383 = vmul.f32 %v3191, %v3191
    %v3384 = vmul.f32 %v3192, %v3192
    %v3385 = vmul.f32 %v3193, %v3193
    %v3386 = vsub.f32 %v3290, %v3354
    %v3387 = vsub.f32 %v3291, %v3355
    %v3388 = vsub.f32 %v3292, %v3356
    %v3389 = vsub.f32 %v3293, %v3357
    %v3390 = vsub.f32 %v3294, %v3358
    %v3391 = vsub.f32 %v3295, %v3359
    %v3392 = vsub.f32 %v3296, %v3360
    %v3393 = vsub.f32 %v3297, %v3361
    %v3394 = vsub.f32 %v3298, %v3362
    %v3395 = vsub.f32 %v3299, %v3363
    %v3396 = vsub.f32 %v3300, %v3364
    %v3397 = vsub.f32 %v3301, %v3365
    %v3398 = vsub.f32 %v3302, %v3366
    %v3399 = vsub.f32 %v3303, %v3367
    %v3400 = vsub.f32 %v3304, %v3368
    %v3401 = vsub.f32 %v3305, %v3369
    %v3402 = vsub.f32 %v3306, %v3370
    %v3403 = vsub.f32 %v3307, %v3371
    %v3404 = vsub.f32 %v3308, %v3372
    %v3405 = vsub.f32 %v3309, %v3373
    %v3406 = vsub.f32 %v3310, %v3374
    %v3407 = vsub.f32 %v3311, %v3375
    %v3408 = vsub.f32 %v3312, %v3376
    %v3409 = vsub.f32 %v3313, %v3377
    %v3410 = vsub.f32 %v3314, %v3378
    %v3411 = vsub.f32 %v3315, %v3379
    %v3412 = vsub.f32 %v3316, %v3380
    %v3413 = vsub.f32 %v3317, %v3381
    %v3414 = vsub.f32 %v3318, %v3382
    %v3415 = vsub.f32 %v3319, %v3383
    %v3416 = vsub.f32 %v3320, %v3384
    %v3417 = vsub.f32 %v3321, %v3385
    %v3418 = vadd.f32 %v3386, 1e-05
    %v3419 = vadd.f32 %v3387, 1e-05
    %v3420 = vadd.f32 %v3388, 1e-05
    %v3421 = vadd.f32 %v3389, 1e-05
    %v3422 = vadd.f32 %v3390, 1e-05
    %v3423 = vadd.f32 %v3391, 1e-05
    %v3424 = vadd.f32 %v3392, 1e-05
    %v3425 = vadd.f32 %v3393, 1e-05
    %v3426 = vadd.f32 %v3394, 1e-05
    %v3427 = vadd.f32 %v3395, 1e-05
    %v3428 = vadd.f32 %v3396, 1e-05
    %v3429 = vadd.f32 %v3397, 1e-05
    %v3430 = vadd.f32 %v3398, 1e-05
    %v3431 = vadd.f32 %v3399, 1e-05
    %v3432 = vadd.f32 %v3400, 1e-05
    %v3433 = vadd.f32 %v3401, 1e-05
    %v3434 = vadd.f32 %v3402, 1e-05
    %v3435 = vadd.f32 %v3403, 1e-05
    %v3436 = vadd.f32 %v3404, 1e-05
    %v3437 = vadd.f32 %v3405, 1e-05
    %v3438 = vadd.f32 %v3406, 1e-05
    %v3439 = vadd.f32 %v3407, 1e-05
    %v3440 = vadd.f32 %v3408, 1e-05
    %v3441 = vadd.f32 %v3409, 1e-05
    %v3442 = vadd.f32 %v3410, 1e-05
    %v3443 = vadd.f32 %v3411, 1e-05
    %v3444 = vadd.f32 %v3412, 1e-05
    %v3445 = vadd.f32 %v3413, 1e-05
    %v3446 = vadd.f32 %v3414, 1e-05
    %v3447 = vadd.f32 %v3415, 1e-05
    %v3448 = vadd.f32 %v3416, 1e-05
    %v3449 = vadd.f32 %v3417, 1e-05
    %v3450 = vrsqrt.pop %v3418
    %v3451 = vmul.f32 %v3450, %v3418
    %v3452 = vmul.f32 %v3451, %v3450
    %v3453 = vmul.f32 0.5, %v3452
    %v3454 = vsub.f32 1.5, %v3453
    %v3455 = vmul.f32 %v3450, %v3454
    %vm3456 = vweird.f32 %v3418
    %vm3457 = vweird.f32 %v3450
    %vm3458 = vmor %vm3456, %vm3457
    %v3459 = vsel %vm3458, %v3450, %v3455
    %v3460 = vrsqrt.pop %v3419
    %v3461 = vmul.f32 %v3460, %v3419
    %v3462 = vmul.f32 %v3461, %v3460
    %v3463 = vmul.f32 0.5, %v3462
    %v3464 = vsub.f32 1.5, %v3463
    %v3465 = vmul.f32 %v3460, %v3464
    %vm3466 = vweird.f32 %v3419
    %vm3467 = vweird.f32 %v3460
    %vm3468 = vmor %vm3466, %vm3467
    %v3469 = vsel %vm3468, %v3460, %v3465
    %v3470 = vrsqrt.pop %v3420
    %v3471 = vmul.f32 %v3470, %v3420
    %v3472 = vmul.f32 %v3471, %v3470
    %v3473 = vmul.f32 0.5, %v3472
    %v3474 = vsub.f32 1.5, %v3473
    %v3475 = vmul.f32 %v3470, %v3474
    %vm3476 = vweird.f32 %v3420
    %vm3477 = vweird.f32 %v3470
    %vm3478 = vmor %vm3476, %vm3477
    %v3479 = vsel %vm3478, %v3470, %v3475
    %v3480 = vrsqrt.pop %v3421
    %v3481 = vmul.f32 %v3480, %v3421
    %v3482 = vmul.f32 %v3481, %v3480
    %v3483 = vmul.f32 0.5, %v3482
    %v3484 = vsub.f32 1.5, %v3483
    %v3485 = vmul.f32 %v3480, %v3484
    %vm3486 = vweird.f32 %v3421
    %vm3487 = vweird.f32 %v3480
    %vm3488 = vmor %vm3486, %vm3487
    %v3489 = vsel %vm3488, %v3480, %v3485
    %v3490 = vrsqrt.pop %v3422
    %v3491 = vmul.f32 %v3490, %v3422
    %v3492 = vmul.f32 %v3491, %v3490
    %v3493 = vmul.f32 0.5, %v3492
    %v3494 = vsub.f32 1.5, %v3493
    %v3495 = vmul.f32 %v3490, %v3494
    %vm3496 = vweird.f32 %v3422
    %vm3497 = vweird.f32 %v3490
    %vm3498 = vmor %vm3496, %vm3497
    %v3499 = vsel %vm3498, %v3490, %v3495
    %v3500 = vrsqrt.pop %v3423
    %v3501 = vmul.f32 %v3500, %v3423
    %v3502 = vmul.f32 %v3501, %v3500
    %v3503 = vmul.f32 0.5, %v3502
    %v3504 = vsub.f32 1.5, %v3503
    %v3505 = vmul.f32 %v3500, %v3504
    %vm3506 = vweird.f32 %v3423
    %vm3507 = vweird.f32 %v3500
    %vm3508 = vmor %vm3506, %vm3507
    %v3509 = vsel %vm3508, %v3500, %v3505
    %v3510 = vrsqrt.pop %v3424
    %v3511 = vmul.f32 %v3510, %v3424
    %v3512 = vmul.f32 %v3511, %v3510
    %v3513 = vmul.f32 0.5, %v3512
    %v3514 = vsub.f32 1.5, %v3513
    %v3515 = vmul.f32 %v3510, %v3514
    %vm3516 = vweird.f32 %v3424
    %vm3517 = vweird.f32 %v3510
    %vm3518 = vmor %vm3516, %vm3517
    %v3519 = vsel %vm3518, %v3510, %v3515
    %v3520 = vrsqrt.pop %v3425
    %v3521 = vmul.f32 %v3520, %v3425
    %v3522 = vmul.f32 %v3521, %v3520
    %v3523 = vmul.f32 0.5, %v3522
    %v3524 = vsub.f32 1.5, %v3523
    %v3525 = vmul.f32 %v3520, %v3524
    %vm3526 = vweird.f32 %v3425
    %vm3527 = vweird.f32 %v3520
    %vm3528 = vmor %vm3526, %vm3527
    %v3529 = vsel %vm3528, %v3520, %v3525
    %v3530 = vrsqrt.pop %v3426
    %v3531 = vmul.f32 %v3530, %v3426
    %v3532 = vmul.f32 %v3531, %v3530
    %v3533 = vmul.f32 0.5, %v3532
    %v3534 = vsub.f32 1.5, %v3533
    %v3535 = vmul.f32 %v3530, %v3534
    %vm3536 = vweird.f32 %v3426
    %vm3537 = vweird.f32 %v3530
    %vm3538 = vmor %vm3536, %vm3537
    %v3539 = vsel %vm3538, %v3530, %v3535
    %v3540 = vrsqrt.pop %v3427
    %v3541 = vmul.f32 %v3540, %v3427
    %v3542 = vmul.f32 %v3541, %v3540
    %v3543 = vmul.f32 0.5, %v3542
    %v3544 = vsub.f32 1.5, %v3543
    %v3545 = vmul.f32 %v3540, %v3544
    %vm3546 = vweird.f32 %v3427
    %vm3547 = vweird.f32 %v3540
    %vm3548 = vmor %vm3546, %vm3547
    %v3549 = vsel %vm3548, %v3540, %v3545
    %v3550 = vrsqrt.pop %v3428
    %v3551 = vmul.f32 %v3550, %v3428
    %v3552 = vmul.f32 %v3551, %v3550
    %v3553 = vmul.f32 0.5, %v3552
    %v3554 = vsub.f32 1.5, %v3553
    %v3555 = vmul.f32 %v3550, %v3554
    %vm3556 = vweird.f32 %v3428
    %vm3557 = vweird.f32 %v3550
    %vm3558 = vmor %vm3556, %vm3557
    %v3559 = vsel %vm3558, %v3550, %v3555
    %v3560 = vrsqrt.pop %v3429
    %v3561 = vmul.f32 %v3560, %v3429
    %v3562 = vmul.f32 %v3561, %v3560
    %v3563 = vmul.f32 0.5, %v3562
    %v3564 = vsub.f32 1.5, %v3563
    %v3565 = vmul.f32 %v3560, %v3564
    %vm3566 = vweird.f32 %v3429
    %vm3567 = vweird.f32 %v3560
    %vm3568 = vmor %vm3566, %vm3567
    %v3569 = vsel %vm3568, %v3560, %v3565
    %v3570 = vrsqrt.pop %v3430
    %v3571 = vmul.f32 %v3570, %v3430
    %v3572 = vmul.f32 %v3571, %v3570
    %v3573 = vmul.f32 0.5, %v3572
    %v3574 = vsub.f32 1.5, %v3573
    %v3575 = vmul.f32 %v3570, %v3574
    %vm3576 = vweird.f32 %v3430
    %vm3577 = vweird.f32 %v3570
    %vm3578 = vmor %vm3576, %vm3577
    %v3579 = vsel %vm3578, %v3570, %v3575
    %v3580 = vrsqrt.pop %v3431
    %v3581 = vmul.f32 %v3580, %v3431
    %v3582 = vmul.f32 %v3581, %v3580
    %v3583 = vmul.f32 0.5, %v3582
    %v3584 = vsub.f32 1.5, %v3583
    %v3585 = vmul.f32 %v3580, %v3584
    %vm3586 = vweird.f32 %v3431
    %vm3587 = vweird.f32 %v3580
    %vm3588 = vmor %vm3586, %vm3587
    %v3589 = vsel %vm3588, %v3580, %v3585
    %v3590 = vrsqrt.pop %v3432
    %v3591 = vmul.f32 %v3590, %v3432
    %v3592 = vmul.f32 %v3591, %v3590
    %v3593 = vmul.f32 0.5, %v3592
    %v3594 = vsub.f32 1.5, %v3593
    %v3595 = vmul.f32 %v3590, %v3594
    %vm3596 = vweird.f32 %v3432
    %vm3597 = vweird.f32 %v3590
    %vm3598 = vmor %vm3596, %vm3597
    %v3599 = vsel %vm3598, %v3590, %v3595
    %v3600 = vrsqrt.pop %v3433
    %v3601 = vmul.f32 %v3600, %v3433
    %v3602 = vmul.f32 %v3601, %v3600
    %v3603 = vmul.f32 0.5, %v3602
    %v3604 = vsub.f32 1.5, %v3603
    %v3605 = vmul.f32 %v3600, %v3604
    %vm3606 = vweird.f32 %v3433
    %vm3607 = vweird.f32 %v3600
    %vm3608 = vmor %vm3606, %vm3607
    %v3609 = vsel %vm3608, %v3600, %v3605
    %v3610 = vrsqrt.pop %v3434
    %v3611 = vmul.f32 %v3610, %v3434
    %v3612 = vmul.f32 %v3611, %v3610
    %v3613 = vmul.f32 0.5, %v3612
    %v3614 = vsub.f32 1.5, %v3613
    %v3615 = vmul.f32 %v3610, %v3614
    %vm3616 = vweird.f32 %v3434
    %vm3617 = vweird.f32 %v3610
    %vm3618 = vmor %vm3616, %vm3617
    %v3619 = vsel %vm3618, %v3610, %v3615
    %v3620 = vrsqrt.pop %v3435
    %v3621 = vmul.f32 %v3620, %v3435
    %v3622 = vmul.f32 %v3621, %v3620
    %v3623 = vmul.f32 0.5, %v3622
    %v3624 = vsub.f32 1.5, %v3623
    %v3625 = vmul.f32 %v3620, %v3624
    %vm3626 = vweird.f32 %v3435
    %vm3627 = vweird.f32 %v3620
    %vm3628 = vmor %vm3626, %vm3627
    %v3629 = vsel %vm3628, %v3620, %v3625
    %v3630 = vrsqrt.pop %v3436
    %v3631 = vmul.f32 %v3630, %v3436
    %v3632 = vmul.f32 %v3631, %v3630
    %v3633 = vmul.f32 0.5, %v3632
    %v3634 = vsub.f32 1.5, %v3633
    %v3635 = vmul.f32 %v3630, %v3634
    %vm3636 = vweird.f32 %v3436
    %vm3637 = vweird.f32 %v3630
    %vm3638 = vmor %vm3636, %vm3637
    %v3639 = vsel %vm3638, %v3630, %v3635
    %v3640 = vrsqrt.pop %v3437
    %v3641 = vmul.f32 %v3640, %v3437
    %v3642 = vmul.f32 %v3641, %v3640
    %v3643 = vmul.f32 0.5, %v3642
    %v3644 = vsub.f32 1.5, %v3643
    %v3645 = vmul.f32 %v3640, %v3644
    %vm3646 = vweird.f32 %v3437
    %vm3647 = vweird.f32 %v3640
    %vm3648 = vmor %vm3646, %vm3647
    %v3649 = vsel %vm3648, %v3640, %v3645
    %v3650 = vrsqrt.pop %v3438
    %v3651 = vmul.f32 %v3650, %v3438
    %v3652 = vmul.f32 %v3651, %v3650
    %v3653 = vmul.f32 0.5, %v3652
    %v3654 = vsub.f32 1.5, %v3653
    %v3655 = vmul.f32 %v3650, %v3654
    %vm3656 = vweird.f32 %v3438
    %vm3657 = vweird.f32 %v3650
    %vm3658 = vmor %vm3656, %vm3657
    %v3659 = vsel %vm3658, %v3650, %v3655
    %v3660 = vrsqrt.pop %v3439
    %v3661 = vmul.f32 %v3660, %v3439
    %v3662 = vmul.f32 %v3661, %v3660
    %v3663 = vmul.f32 0.5, %v3662
    %v3664 = vsub.f32 1.5, %v3663
    %v3665 = vmul.f32 %v3660, %v3664
    %vm3666 = vweird.f32 %v3439
    %vm3667 = vweird.f32 %v3660
    %vm3668 = vmor %vm3666, %vm3667
    %v3669 = vsel %vm3668, %v3660, %v3665
    %v3670 = vrsqrt.pop %v3440
    %v3671 = vmul.f32 %v3670, %v3440
    %v3672 = vmul.f32 %v3671, %v3670
    %v3673 = vmul.f32 0.5, %v3672
    %v3674 = vsub.f32 1.5, %v3673
    %v3675 = vmul.f32 %v3670, %v3674
    %vm3676 = vweird.f32 %v3440
    %vm3677 = vweird.f32 %v3670
    %vm3678 = vmor %vm3676, %vm3677
    %v3679 = vsel %vm3678, %v3670, %v3675
    %v3680 = vrsqrt.pop %v3441
    %v3681 = vmul.f32 %v3680, %v3441
    %v3682 = vmul.f32 %v3681, %v3680
    %v3683 = vmul.f32 0.5, %v3682
    %v3684 = vsub.f32 1.5, %v3683
    %v3685 = vmul.f32 %v3680, %v3684
    %vm3686 = vweird.f32 %v3441
    %vm3687 = vweird.f32 %v3680
    %vm3688 = vmor %vm3686, %vm3687
    %v3689 = vsel %vm3688, %v3680, %v3685
    %v3690 = vrsqrt.pop %v3442
    %v3691 = vmul.f32 %v3690, %v3442
    %v3692 = vmul.f32 %v3691, %v3690
    %v3693 = vmul.f32 0.5, %v3692
    %v3694 = vsub.f32 1.5, %v3693
    %v3695 = vmul.f32 %v3690, %v3694
    %vm3696 = vweird.f32 %v3442
    %vm3697 = vweird.f32 %v3690
    %vm3698 = vmor %vm3696, %vm3697
    %v3699 = vsel %vm3698, %v3690, %v3695
    %v3700 = vrsqrt.pop %v3443
    %v3701 = vmul.f32 %v3700, %v3443
    %v3702 = vmul.f32 %v3701, %v3700
    %v3703 = vmul.f32 0.5, %v3702
    %v3704 = vsub.f32 1.5, %v3703
    %v3705 = vmul.f32 %v3700, %v3704
    %vm3706 = vweird.f32 %v3443
    %vm3707 = vweird.f32 %v3700
    %vm3708 = vmor %vm3706, %vm3707
    %v3709 = vsel %vm3708, %v3700, %v3705
    %v3710 = vrsqrt.pop %v3444
    %v3711 = vmul.f32 %v3710, %v3444
    %v3712 = vmul.f32 %v3711, %v3710
    %v3713 = vmul.f32 0.5, %v3712
    %v3714 = vsub.f32 1.5, %v3713
    %v3715 = vmul.f32 %v3710, %v3714
    %vm3716 = vweird.f32 %v3444
    %vm3717 = vweird.f32 %v3710
    %vm3718 = vmor %vm3716, %vm3717
    %v3719 = vsel %vm3718, %v3710, %v3715
    %v3720 = vrsqrt.pop %v3445
    %v3721 = vmul.f32 %v3720, %v3445
    %v3722 = vmul.f32 %v3721, %v3720
    %v3723 = vmul.f32 0.5, %v3722
    %v3724 = vsub.f32 1.5, %v3723
    %v3725 = vmul.f32 %v3720, %v3724
    %vm3726 = vweird.f32 %v3445
    %vm3727 = vweird.f32 %v3720
    %vm3728 = vmor %vm3726, %vm3727
    %v3729 = vsel %vm3728, %v3720, %v3725
    %v3730 = vrsqrt.pop %v3446
    %v3731 = vmul.f32 %v3730, %v3446
    %v3732 = vmul.f32 %v3731, %v3730
    %v3733 = vmul.f32 0.5, %v3732
    %v3734 = vsub.f32 1.5, %v3733
    %v3735 = vmul.f32 %v3730, %v3734
    %vm3736 = vweird.f32 %v3446
    %vm3737 = vweird.f32 %v3730
    %vm3738 = vmor %vm3736, %vm3737
    %v3739 = vsel %vm3738, %v3730, %v3735
    %v3740 = vrsqrt.pop %v3447
    %v3741 = vmul.f32 %v3740, %v3447
    %v3742 = vmul.f32 %v3741, %v3740
    %v3743 = vmul.f32 0.5, %v3742
    %v3744 = vsub.f32 1.5, %v3743
    %v3745 = vmul.f32 %v3740, %v3744
    %vm3746 = vweird.f32 %v3447
    %vm3747 = vweird.f32 %v3740
    %vm3748 = vmor %vm3746, %vm3747
    %v3749 = vsel %vm3748, %v3740, %v3745
    %v3750 = vrsqrt.pop %v3448
    %v3751 = vmul.f32 %v3750, %v3448
    %v3752 = vmul.f32 %v3751, %v3750
    %v3753 = vmul.f32 0.5, %v3752
    %v3754 = vsub.f32 1.5, %v3753
    %v3755 = vmul.f32 %v3750, %v3754
    %vm3756 = vweird.f32 %v3448
    %vm3757 = vweird.f32 %v3750
    %vm3758 = vmor %vm3756, %vm3757
    %v3759 = vsel %vm3758, %v3750, %v3755
    %v3760 = vrsqrt.pop %v3449
    %v3761 = vmul.f32 %v3760, %v3449
    %v3762 = vmul.f32 %v3761, %v3760
    %v3763 = vmul.f32 0.5, %v3762
    %v3764 = vsub.f32 1.5, %v3763
    %v3765 = vmul.f32 %v3760, %v3764
    %vm3766 = vweird.f32 %v3449
    %vm3767 = vweird.f32 %v3760
    %vm3768 = vmor %vm3766, %vm3767
    %v3769 = vsel %vm3768, %v3760, %v3765
    %v3770 = vmul.f32 %v3322, %v3459
    %v3771 = vmul.f32 %v3323, %v3469
    %v3772 = vmul.f32 %v3324, %v3479
    %v3773 = vmul.f32 %v3325, %v3489
    %v3774 = vmul.f32 %v3326, %v3499
    %v3775 = vmul.f32 %v3327, %v3509
    %v3776 = vmul.f32 %v3328, %v3519
    %v3777 = vmul.f32 %v3329, %v3529
    %v3778 = vmul.f32 %v3330, %v3539
    %v3779 = vmul.f32 %v3331, %v3549
    %v3780 = vmul.f32 %v3332, %v3559
    %v3781 = vmul.f32 %v3333, %v3569
    %v3782 = vmul.f32 %v3334, %v3579
    %v3783 = vmul.f32 %v3335, %v3589
    %v3784 = vmul.f32 %v3336, %v3599
    %v3785 = vmul.f32 %v3337, %v3609
    %v3786 = vmul.f32 %v3338, %v3619
    %v3787 = vmul.f32 %v3339, %v3629
    %v3788 = vmul.f32 %v3340, %v3639
    %v3789 = vmul.f32 %v3341, %v3649
    %v3790 = vmul.f32 %v3342, %v3659
    %v3791 = vmul.f32 %v3343, %v3669
    %v3792 = vmul.f32 %v3344, %v3679
    %v3793 = vmul.f32 %v3345, %v3689
    %v3794 = vmul.f32 %v3346, %v3699
    %v3795 = vmul.f32 %v3347, %v3709
    %v3796 = vmul.f32 %v3348, %v3719
    %v3797 = vmul.f32 %v3349, %v3729
    %v3798 = vmul.f32 %v3350, %v3739
    %v3799 = vmul.f32 %v3351, %v3749
    %v3800 = vmul.f32 %v3352, %v3759
    %v3801 = vmul.f32 %v3353, %v3769
    %v3803 = vperm.slane %v268, 0
    %v3805 = vmul.f32 %v3770, %v3803
    %v3806 = vmul.f32 %v3771, %v3803
    %v3807 = vmul.f32 %v3772, %v3803
    %v3808 = vmul.f32 %v3773, %v3803
    %v3809 = vmul.f32 %v3774, %v3803
    %v3810 = vmul.f32 %v3775, %v3803
    %v3811 = vmul.f32 %v3776, %v3803
    %v3812 = vmul.f32 %v3777, %v3803
    %v3813 = vmul.f32 %v3778, %v3803
    %v3814 = vmul.f32 %v3779, %v3803
    %v3815 = vmul.f32 %v3780, %v3803
    %v3816 = vmul.f32 %v3781, %v3803
    %v3817 = vmul.f32 %v3782, %v3803
    %v3818 = vmul.f32 %v3783, %v3803
    %v3819 = vmul.f32 %v3784, %v3803
    %v3820 = vmul.f32 %v3785, %v3803
    %v3821 = vmul.f32 %v3786, %v3803
    %v3822 = vmul.f32 %v3787, %v3803
    %v3823 = vmul.f32 %v3788, %v3803
    %v3824 = vmul.f32 %v3789, %v3803
    %v3825 = vmul.f32 %v3790, %v3803
    %v3826 = vmul.f32 %v3791, %v3803
    %v3827 = vmul.f32 %v3792, %v3803
    %v3828 = vmul.f32 %v3793, %v3803
    %v3829 = vmul.f32 %v3794, %v3803
    %v3830 = vmul.f32 %v3795, %v3803
    %v3831 = vmul.f32 %v3796, %v3803
    %v3832 = vmul.f32 %v3797, %v3803
    %v3833 = vmul.f32 %v3798, %v3803
    %v3834 = vmul.f32 %v3799, %v3803
    %v3835 = vmul.f32 %v3800, %v3803
    %v3836 = vmul.f32 %v3801, %v3803
    %v3838 = vperm.slane %v269, 0
    %v3840 = vadd.f32 %v3805, %v3838
    %v3841 = vadd.f32 %v3806, %v3838
    %v3842 = vadd.f32 %v3807, %v3838
    %v3843 = vadd.f32 %v3808, %v3838
    %v3844 = vadd.f32 %v3809, %v3838
    %v3845 = vadd.f32 %v3810, %v3838
    %v3846 = vadd.f32 %v3811, %v3838
    %v3847 = vadd.f32 %v3812, %v3838
    %v3848 = vadd.f32 %v3813, %v3838
    %v3849 = vadd.f32 %v3814, %v3838
    %v3850 = vadd.f32 %v3815, %v3838
    %v3851 = vadd.f32 %v3816, %v3838
    %v3852 = vadd.f32 %v3817, %v3838
    %v3853 = vadd.f32 %v3818, %v3838
    %v3854 = vadd.f32 %v3819, %v3838
    %v3855 = vadd.f32 %v3820, %v3838
    %v3856 = vadd.f32 %v3821, %v3838
    %v3857 = vadd.f32 %v3822, %v3838
    %v3858 = vadd.f32 %v3823, %v3838
    %v3859 = vadd.f32 %v3824, %v3838
    %v3860 = vadd.f32 %v3825, %v3838
    %v3861 = vadd.f32 %v3826, %v3838
    %v3862 = vadd.f32 %v3827, %v3838
    %v3863 = vadd.f32 %v3828, %v3838
    %v3864 = vadd.f32 %v3829, %v3838
    %v3865 = vadd.f32 %v3830, %v3838
    %v3866 = vadd.f32 %v3831, %v3838
    %v3867 = vadd.f32 %v3832, %v3838
    %v3868 = vadd.f32 %v3833, %v3838
    %v3869 = vadd.f32 %v3834, %v3838
    %v3870 = vadd.f32 %v3835, %v3838
    %v3871 = vadd.f32 %v3836, %v3838
    %v3872 = vadd.f32 %v3840, %v229
    %v3873 = vadd.f32 %v3841, %v230
    %v3874 = vadd.f32 %v3842, %v231
    %v3875 = vadd.f32 %v3843, %v232
    %v3876 = vadd.f32 %v3844, %v233
    %v3877 = vadd.f32 %v3845, %v234
    %v3878 = vadd.f32 %v3846, %v235
    %v3879 = vadd.f32 %v3847, %v236
    %v3880 = vadd.f32 %v3848, %v237
    %v3881 = vadd.f32 %v3849, %v238
    %v3882 = vadd.f32 %v3850, %v239
    %v3883 = vadd.f32 %v3851, %v240
    %v3884 = vadd.f32 %v3852, %v241
    %v3885 = vadd.f32 %v3853, %v242
    %v3886 = vadd.f32 %v3854, %v243
    %v3887 = vadd.f32 %v3855, %v244
    %v3888 = vadd.f32 %v3856, %v245
    %v3889 = vadd.f32 %v3857, %v246
    %v3890 = vadd.f32 %v3858, %v247
    %v3891 = vadd.f32 %v3859, %v248
    %v3892 = vadd.f32 %v3860, %v249
    %v3893 = vadd.f32 %v3861, %v250
    %v3894 = vadd.f32 %v3862, %v251
    %v3895 = vadd.f32 %v3863, %v252
    %v3896 = vadd.f32 %v3864, %v253
    %v3897 = vadd.f32 %v3865, %v254
    %v3898 = vadd.f32 %v3866, %v255
    %v3899 = vadd.f32 %v3867, %v256
    %v3900 = vadd.f32 %v3868, %v257
    %v3901 = vadd.f32 %v3869, %v258
    %v3902 = vadd.f32 %v3870, %v259
    %v3903 = vadd.f32 %v3871, %v260
    %v3904 = vld [vmem:[#allocation11] sm:$0xf]
    %v3905 = vld [vmem:[#allocation11 + $0x4] sm:$0xf]
    %v3906 = vld [vmem:[#allocation11 + $0x8] sm:$0xf]
    %v3907 = vld [vmem:[#allocation11 + $0xc] sm:$0xf]
    %v3908 = vld [vmem:[#allocation11 + $0x10] sm:$0xf]
    %v3909 = vld [vmem:[#allocation11 + $0x14] sm:$0xf]
    %v3910 = vld [vmem:[#allocation11 + $0x18] sm:$0xf]
    %v3911 = vld [vmem:[#allocation11 + $0x1c] sm:$0xf]
    %v3912 = vld [vmem:[#allocation11 + $0x20] sm:$0xf]
    %v3913 = vld [vmem:[#allocation11 + $0x24] sm:$0xf]
    %v3914 = vld [vmem:[#allocation11 + $0x28] sm:$0xf]
    %v3915 = vld [vmem:[#allocation11 + $0x2c] sm:$0xf]
    %v3916 = vld [vmem:[#allocation11 + $0x30] sm:$0xf]
    %v3917 = vld [vmem:[#allocation11 + $0x34] sm:$0xf]
    %v3918 = vld [vmem:[#allocation11 + $0x38] sm:$0xf]
    %v3919 = vld [vmem:[#allocation11 + $0x3c] sm:$0xf]
    %v3920 = vld [vmem:[%s9] sm:$0x1]
    %v3921 = vpack.c.bf16 %v3873, %v3872
    %v3922 = vpack.c.bf16 %v3875, %v3874
    %v3923 = vpack.c.bf16 %v3877, %v3876
    %v3924 = vpack.c.bf16 %v3879, %v3878
    %v3925 = vpack.c.bf16 %v3881, %v3880
    %v3926 = vpack.c.bf16 %v3883, %v3882
    %v3927 = vpack.c.bf16 %v3885, %v3884
    %v3928 = vpack.c.bf16 %v3887, %v3886
    %v3929 = vpack.c.bf16 %v3889, %v3888
    %v3930 = vpack.c.bf16 %v3891, %v3890
    %v3931 = vpack.c.bf16 %v3893, %v3892
    %v3932 = vpack.c.bf16 %v3895, %v3894
    %v3933 = vpack.c.bf16 %v3897, %v3896
    %v3934 = vpack.c.bf16 %v3899, %v3898
    %v3935 = vpack.c.bf16 %v3901, %v3900
    %v3936 = vpack.c.bf16 %v3903, %v3902
    %v3953 = vunpack.c.l.b16 %v3904
    %v3954 = vunpack.c.l.b16 %v3905
    %v3955 = vunpack.c.l.b16 %v3906
    %v3956 = vunpack.c.l.b16 %v3907
    %v3957 = vunpack.c.l.b16 %v3908
    %v3958 = vunpack.c.l.b16 %v3909
    %v3959 = vunpack.c.l.b16 %v3910
    %v3960 = vunpack.c.l.b16 %v3911
    %v3961 = vunpack.c.l.b16 %v3912
    %v3962 = vunpack.c.l.b16 %v3913
    %v3963 = vunpack.c.l.b16 %v3914
    %v3964 = vunpack.c.l.b16 %v3915
    %v3965 = vunpack.c.l.b16 %v3916
    %v3966 = vunpack.c.l.b16 %v3917
    %v3967 = vunpack.c.l.b16 %v3918
    %v3968 = vunpack.c.l.b16 %v3919
    %v3969 = vpack.c.b16 %v3954, %v3953
    %v3970 = vpack.c.b16 %v3956, %v3955
    %v3971 = vpack.c.b16 %v3958, %v3957
    %v3972 = vpack.c.b16 %v3960, %v3959
    %v3973 = vpack.c.b16 %v3962, %v3961
    %v3974 = vpack.c.b16 %v3964, %v3963
    %v3975 = vpack.c.b16 %v3966, %v3965
    %v3976 = vpack.c.b16 %v3968, %v3967
    %3985 = vmatpush.bf16.msra.mxu0 %v3976
    %3986 = vmatpush.bf16.msra.mxu0 %v3975
    %3987 = vmatpush.bf16.msra.mxu0 %v3974
    %3988 = vmatpush.bf16.msra.mxu0 %v3973
    %3989 = vmatpush.bf16.msra.mxu0 %v3972
    %3990 = vmatpush.bf16.msra.mxu0 %v3971
    %3991 = vmatpush.bf16.msra.mxu0 %v3970
    %3992 = vmatpush.bf16.msra.mxu0 %v3969
    %3993 = vmatmul.bf16.gmra.mxu0 %v3921
    %v3994 = vpop.f32.mrf.mxu0
    %v3995 = vadd.f32 0.0, %v3994
    %v3996 = vpop.f32.mrf.mxu0
    %v3997 = vadd.f32 0.0, %v3996
    %3998 = vmatmul.bf16.gmra.mxu0 %v3922
    %v3999 = vpop.f32.mrf.mxu0
    %v4000 = vadd.f32 0.0, %v3999
    %v4001 = vpop.f32.mrf.mxu0
    %v4002 = vadd.f32 0.0, %v4001
    %4003 = vmatmul.bf16.gmra.mxu0 %v3923
    %v4004 = vpop.f32.mrf.mxu0
    %v4005 = vadd.f32 0.0, %v4004
    %v4006 = vpop.f32.mrf.mxu0
    %v4007 = vadd.f32 0.0, %v4006
    %4008 = vmatmul.bf16.gmra.mxu0 %v3924
    %v4009 = vpop.f32.mrf.mxu0
    %v4010 = vadd.f32 0.0, %v4009
    %v4011 = vpop.f32.mrf.mxu0
    %v4012 = vadd.f32 0.0, %v4011
    %4013 = vmatmul.bf16.gmra.mxu0 %v3925
    %v4014 = vpop.f32.mrf.mxu0
    %v4015 = vadd.f32 0.0, %v4014
    %v4016 = vpop.f32.mrf.mxu0
    %v4017 = vadd.f32 0.0, %v4016
    %4018 = vmatmul.bf16.gmra.mxu0 %v3926
    %v4019 = vpop.f32.mrf.mxu0
    %v4020 = vadd.f32 0.0, %v4019
    %v4021 = vpop.f32.mrf.mxu0
    %v4022 = vadd.f32 0.0, %v4021
    %4023 = vmatmul.bf16.gmra.mxu0 %v3927
    %v4024 = vpop.f32.mrf.mxu0
    %v4025 = vadd.f32 0.0, %v4024
    %v4026 = vpop.f32.mrf.mxu0
    %v4027 = vadd.f32 0.0, %v4026
    %4028 = vmatmul.bf16.gmra.mxu0 %v3928
    %v4029 = vpop.f32.mrf.mxu0
    %v4030 = vadd.f32 0.0, %v4029
    %v4031 = vpop.f32.mrf.mxu0
    %v4032 = vadd.f32 0.0, %v4031
    %4033 = vmatmul.bf16.gmra.mxu0 %v3929
    %v4034 = vpop.f32.mrf.mxu0
    %v4035 = vadd.f32 0.0, %v4034
    %v4036 = vpop.f32.mrf.mxu0
    %v4037 = vadd.f32 0.0, %v4036
    %4038 = vmatmul.bf16.gmra.mxu0 %v3930
    %v4039 = vpop.f32.mrf.mxu0
    %v4040 = vadd.f32 0.0, %v4039
    %v4041 = vpop.f32.mrf.mxu0
    %v4042 = vadd.f32 0.0, %v4041
    %4043 = vmatmul.bf16.gmra.mxu0 %v3931
    %v4044 = vpop.f32.mrf.mxu0
    %v4045 = vadd.f32 0.0, %v4044
    %v4046 = vpop.f32.mrf.mxu0
    %v4047 = vadd.f32 0.0, %v4046
    %4048 = vmatmul.bf16.gmra.mxu0 %v3932
    %v4049 = vpop.f32.mrf.mxu0
    %v4050 = vadd.f32 0.0, %v4049
    %v4051 = vpop.f32.mrf.mxu0
    %v4052 = vadd.f32 0.0, %v4051
    %4053 = vmatmul.bf16.gmra.mxu0 %v3933
    %v4054 = vpop.f32.mrf.mxu0
    %v4055 = vadd.f32 0.0, %v4054
    %v4056 = vpop.f32.mrf.mxu0
    %v4057 = vadd.f32 0.0, %v4056
    %4058 = vmatmul.bf16.gmra.mxu0 %v3934
    %v4059 = vpop.f32.mrf.mxu0
    %v4060 = vadd.f32 0.0, %v4059
    %v4061 = vpop.f32.mrf.mxu0
    %v4062 = vadd.f32 0.0, %v4061
    %4063 = vmatmul.bf16.gmra.mxu0 %v3935
    %v4064 = vpop.f32.mrf.mxu0
    %v4065 = vadd.f32 0.0, %v4064
    %v4066 = vpop.f32.mrf.mxu0
    %v4067 = vadd.f32 0.0, %v4066
    %4068 = vmatmul.bf16.gmra.mxu0 %v3936
    %v4069 = vpop.f32.mrf.mxu0
    %v4070 = vadd.f32 0.0, %v4069
    %v4071 = vpop.f32.mrf.mxu0
    %v4072 = vadd.f32 0.0, %v4071
    %4073 = vdwg.mxu0
    %v4074 = vpack.c.bf16 %v3997, %v3995
    %v4075 = vpack.c.bf16 %v4002, %v4000
    %v4076 = vpack.c.bf16 %v4007, %v4005
    %v4077 = vpack.c.bf16 %v4012, %v4010
    %v4078 = vpack.c.bf16 %v4017, %v4015
    %v4079 = vpack.c.bf16 %v4022, %v4020
    %v4080 = vpack.c.bf16 %v4027, %v4025
    %v4081 = vpack.c.bf16 %v4032, %v4030
    %v4082 = vpack.c.bf16 %v4037, %v4035
    %v4083 = vpack.c.bf16 %v4042, %v4040
    %v4084 = vpack.c.bf16 %v4047, %v4045
    %v4085 = vpack.c.bf16 %v4052, %v4050
    %v4086 = vpack.c.bf16 %v4057, %v4055
    %v4087 = vpack.c.bf16 %v4062, %v4060
    %v4088 = vpack.c.bf16 %v4067, %v4065
    %v4089 = vpack.c.bf16 %v4072, %v4070
    %v4091 = vperm.slane %v3920, 0
    %4093 = vmatpush.bf16.msra.mxu0 %v4081
    %4094 = vmatpush.bf16.msra.mxu0 %v4080
    %4095 = vmatpush.bf16.msra.mxu0 %v4079
    %4096 = vmatpush.bf16.msra.mxu0 %v4078
    %4097 = vmatpush.bf16.msra.mxu0 %v4077
    %4098 = vmatpush.bf16.msra.mxu0 %v4076
    %4099 = vmatpush.bf16.msra.mxu0 %v4075
    %4100 = vmatpush.bf16.msra.mxu0 %v4074
    %4101 = vmatmul.bf16.gmra.mxu0 %v865
    %v4102 = vpop.f32.mrf.mxu0
    %v4103 = vadd.f32 %v4091, %v4102
    %v4104 = vpop.f32.mrf.mxu0
    %v4105 = vadd.f32 %v4091, %v4104
    %4106 = vmatmul.bf16.gmra.mxu0 %v867
    %v4107 = vpop.f32.mrf.mxu0
    %v4108 = vadd.f32 %v4091, %v4107
    %v4109 = vpop.f32.mrf.mxu0
    %v4110 = vadd.f32 %v4091, %v4109
    %4111 = vmatmul.bf16.gmra.mxu0 %v869
    %v4112 = vpop.f32.mrf.mxu0
    %v4113 = vadd.f32 %v4091, %v4112
    %v4114 = vpop.f32.mrf.mxu0
    %v4115 = vadd.f32 %v4091, %v4114
    %4116 = vmatmul.bf16.gmra.mxu0 %v871
    %v4117 = vpop.f32.mrf.mxu0
    %v4118 = vadd.f32 %v4091, %v4117
    %v4119 = vpop.f32.mrf.mxu0
    %v4120 = vadd.f32 %v4091, %v4119
    %4121 = vmatmul.bf16.gmra.mxu0 %v873
    %v4122 = vpop.f32.mrf.mxu0
    %v4123 = vadd.f32 %v4091, %v4122
    %v4124 = vpop.f32.mrf.mxu0
    %v4125 = vadd.f32 %v4091, %v4124
    %4126 = vmatmul.bf16.gmra.mxu0 %v875
    %v4127 = vpop.f32.mrf.mxu0
    %v4128 = vadd.f32 %v4091, %v4127
    %v4129 = vpop.f32.mrf.mxu0
    %v4130 = vadd.f32 %v4091, %v4129
    %4131 = vmatmul.bf16.gmra.mxu0 %v877
    %v4132 = vpop.f32.mrf.mxu0
    %v4133 = vadd.f32 %v4091, %v4132
    %v4134 = vpop.f32.mrf.mxu0
    %v4135 = vadd.f32 %v4091, %v4134
    %4136 = vmatmul.bf16.gmra.mxu0 %v879
    %v4137 = vpop.f32.mrf.mxu0
    %v4138 = vadd.f32 %v4091, %v4137
    %v4139 = vpop.f32.mrf.mxu0
    %v4140 = vadd.f32 %v4091, %v4139
    %4141 = vmatmul.bf16.gmra.mxu0 %v881
    %v4142 = vpop.f32.mrf.mxu0
    %v4143 = vadd.f32 %v4091, %v4142
    %v4144 = vpop.f32.mrf.mxu0
    %v4145 = vadd.f32 %v4091, %v4144
    %4146 = vmatmul.bf16.gmra.mxu0 %v883
    %v4147 = vpop.f32.mrf.mxu0
    %v4148 = vadd.f32 %v4091, %v4147
    %v4149 = vpop.f32.mrf.mxu0
    %v4150 = vadd.f32 %v4091, %v4149
    %4151 = vmatmul.bf16.gmra.mxu0 %v885
    %v4152 = vpop.f32.mrf.mxu0
    %v4153 = vadd.f32 %v4091, %v4152
    %v4154 = vpop.f32.mrf.mxu0
    %v4155 = vadd.f32 %v4091, %v4154
    %4156 = vmatmul.bf16.gmra.mxu0 %v887
    %v4157 = vpop.f32.mrf.mxu0
    %v4158 = vadd.f32 %v4091, %v4157
    %v4159 = vpop.f32.mrf.mxu0
    %v4160 = vadd.f32 %v4091, %v4159
    %4161 = vmatmul.bf16.gmra.mxu0 %v889
    %v4162 = vpop.f32.mrf.mxu0
    %v4163 = vadd.f32 %v4091, %v4162
    %v4164 = vpop.f32.mrf.mxu0
    %v4165 = vadd.f32 %v4091, %v4164
    %4166 = vmatmul.bf16.gmra.mxu0 %v891
    %v4167 = vpop.f32.mrf.mxu0
    %v4168 = vadd.f32 %v4091, %v4167
    %v4169 = vpop.f32.mrf.mxu0
    %v4170 = vadd.f32 %v4091, %v4169
    %4171 = vmatmul.bf16.gmra.mxu0 %v893
    %v4172 = vpop.f32.mrf.mxu0
    %v4173 = vadd.f32 %v4091, %v4172
    %v4174 = vpop.f32.mrf.mxu0
    %v4175 = vadd.f32 %v4091, %v4174
    %4176 = vmatmul.bf16.gmra.mxu0 %v895
    %v4177 = vpop.f32.mrf.mxu0
    %v4178 = vadd.f32 %v4091, %v4177
    %v4179 = vpop.f32.mrf.mxu0
    %v4180 = vadd.f32 %v4091, %v4179
    %4181 = vdwg.mxu0
    %4182 = vmatpush.bf16.msra.mxu0 %v4089
    %4183 = vmatpush.bf16.msra.mxu0 %v4088
    %4184 = vmatpush.bf16.msra.mxu0 %v4087
    %4185 = vmatpush.bf16.msra.mxu0 %v4086
    %4186 = vmatpush.bf16.msra.mxu0 %v4085
    %4187 = vmatpush.bf16.msra.mxu0 %v4084
    %4188 = vmatpush.bf16.msra.mxu0 %v4083
    %4189 = vmatpush.bf16.msra.mxu0 %v4082
    %4190 = vmatmul.bf16.gmra.mxu0 %v866
    %v4191 = vpop.f32.mrf.mxu0
    %v4192 = vadd.f32 %v4103, %v4191
    %v4193 = vpop.f32.mrf.mxu0
    %v4194 = vadd.f32 %v4105, %v4193
    %4195 = vmatmul.bf16.gmra.mxu0 %v868
    %v4196 = vpop.f32.mrf.mxu0
    %v4197 = vadd.f32 %v4108, %v4196
    %v4198 = vpop.f32.mrf.mxu0
    %v4199 = vadd.f32 %v4110, %v4198
    %4200 = vmatmul.bf16.gmra.mxu0 %v870
    %v4201 = vpop.f32.mrf.mxu0
    %v4202 = vadd.f32 %v4113, %v4201
    %v4203 = vpop.f32.mrf.mxu0
    %v4204 = vadd.f32 %v4115, %v4203
    %4205 = vmatmul.bf16.gmra.mxu0 %v872
    %v4206 = vpop.f32.mrf.mxu0
    %v4207 = vadd.f32 %v4118, %v4206
    %v4208 = vpop.f32.mrf.mxu0
    %v4209 = vadd.f32 %v4120, %v4208
    %4210 = vmatmul.bf16.gmra.mxu0 %v874
    %v4211 = vpop.f32.mrf.mxu0
    %v4212 = vadd.f32 %v4123, %v4211
    %v4213 = vpop.f32.mrf.mxu0
    %v4214 = vadd.f32 %v4125, %v4213
    %4215 = vmatmul.bf16.gmra.mxu0 %v876
    %v4216 = vpop.f32.mrf.mxu0
    %v4217 = vadd.f32 %v4128, %v4216
    %v4218 = vpop.f32.mrf.mxu0
    %v4219 = vadd.f32 %v4130, %v4218
    %4220 = vmatmul.bf16.gmra.mxu0 %v878
    %v4221 = vpop.f32.mrf.mxu0
    %v4222 = vadd.f32 %v4133, %v4221
    %v4223 = vpop.f32.mrf.mxu0
    %v4224 = vadd.f32 %v4135, %v4223
    %4225 = vmatmul.bf16.gmra.mxu0 %v880
    %v4226 = vpop.f32.mrf.mxu0
    %v4227 = vadd.f32 %v4138, %v4226
    %v4228 = vpop.f32.mrf.mxu0
    %v4229 = vadd.f32 %v4140, %v4228
    %4230 = vmatmul.bf16.gmra.mxu0 %v882
    %v4231 = vpop.f32.mrf.mxu0
    %v4232 = vadd.f32 %v4143, %v4231
    %v4233 = vpop.f32.mrf.mxu0
    %v4234 = vadd.f32 %v4145, %v4233
    %4235 = vmatmul.bf16.gmra.mxu0 %v884
    %v4236 = vpop.f32.mrf.mxu0
    %v4237 = vadd.f32 %v4148, %v4236
    %v4238 = vpop.f32.mrf.mxu0
    %v4239 = vadd.f32 %v4150, %v4238
    %4240 = vmatmul.bf16.gmra.mxu0 %v886
    %v4241 = vpop.f32.mrf.mxu0
    %v4242 = vadd.f32 %v4153, %v4241
    %v4243 = vpop.f32.mrf.mxu0
    %v4244 = vadd.f32 %v4155, %v4243
    %4245 = vmatmul.bf16.gmra.mxu0 %v888
    %v4246 = vpop.f32.mrf.mxu0
    %v4247 = vadd.f32 %v4158, %v4246
    %v4248 = vpop.f32.mrf.mxu0
    %v4249 = vadd.f32 %v4160, %v4248
    %4250 = vmatmul.bf16.gmra.mxu0 %v890
    %v4251 = vpop.f32.mrf.mxu0
    %v4252 = vadd.f32 %v4163, %v4251
    %v4253 = vpop.f32.mrf.mxu0
    %v4254 = vadd.f32 %v4165, %v4253
    %4255 = vmatmul.bf16.gmra.mxu0 %v892
    %v4256 = vpop.f32.mrf.mxu0
    %v4257 = vadd.f32 %v4168, %v4256
    %v4258 = vpop.f32.mrf.mxu0
    %v4259 = vadd.f32 %v4170, %v4258
    %4260 = vmatmul.bf16.gmra.mxu0 %v894
    %v4261 = vpop.f32.mrf.mxu0
    %v4262 = vadd.f32 %v4173, %v4261
    %v4263 = vpop.f32.mrf.mxu0
    %v4264 = vadd.f32 %v4175, %v4263
    %4265 = vmatmul.bf16.gmra.mxu0 %v896
    %v4266 = vpop.f32.mrf.mxu0
    %v4267 = vadd.f32 %v4178, %v4266
    %v4268 = vpop.f32.mrf.mxu0
    %v4269 = vadd.f32 %v4180, %v4268
    %4270 = vdwg.mxu0
    %v4271 = vmax.f32 %v4192, 0.0
    %v4272 = vmax.f32 %v4194, 0.0
    %v4273 = vmax.f32 %v4197, 0.0
    %v4274 = vmax.f32 %v4199, 0.0
    %v4275 = vmax.f32 %v4202, 0.0
    %v4276 = vmax.f32 %v4204, 0.0
    %v4277 = vmax.f32 %v4207, 0.0
    %v4278 = vmax.f32 %v4209, 0.0
    %v4279 = vmax.f32 %v4212, 0.0
    %v4280 = vmax.f32 %v4214, 0.0
    %v4281 = vmax.f32 %v4217, 0.0
    %v4282 = vmax.f32 %v4219, 0.0
    %v4283 = vmax.f32 %v4222, 0.0
    %v4284 = vmax.f32 %v4224, 0.0
    %v4285 = vmax.f32 %v4227, 0.0
    %v4286 = vmax.f32 %v4229, 0.0
    %v4287 = vmax.f32 %v4232, 0.0
    %v4288 = vmax.f32 %v4234, 0.0
    %v4289 = vmax.f32 %v4237, 0.0
    %v4290 = vmax.f32 %v4239, 0.0
    %v4291 = vmax.f32 %v4242, 0.0
    %v4292 = vmax.f32 %v4244, 0.0
    %v4293 = vmax.f32 %v4247, 0.0
    %v4294 = vmax.f32 %v4249, 0.0
    %v4295 = vmax.f32 %v4252, 0.0
    %v4296 = vmax.f32 %v4254, 0.0
    %v4297 = vmax.f32 %v4257, 0.0
    %v4298 = vmax.f32 %v4259, 0.0
    %v4299 = vmax.f32 %v4262, 0.0
    %v4300 = vmax.f32 %v4264, 0.0
    %v4301 = vmax.f32 %v4267, 0.0
    %v4302 = vmax.f32 %v4269, 0.0
    %v4303 = vld [vmem:[#allocation13] sm:$0xf]
    %v4304 = vld [vmem:[#allocation13 + $0x4] sm:$0xf]
    %v4305 = vld [vmem:[#allocation13 + $0x8] sm:$0xf]
    %v4306 = vld [vmem:[#allocation13 + $0xc] sm:$0xf]
    %v4307 = vld [vmem:[#allocation13 + $0x10] sm:$0xf]
    %v4308 = vld [vmem:[#allocation13 + $0x14] sm:$0xf]
    %v4309 = vld [vmem:[#allocation13 + $0x18] sm:$0xf]
    %v4310 = vld [vmem:[#allocation13 + $0x1c] sm:$0xf]
    %v4311 = vld [vmem:[#allocation13 + $0x20] sm:$0xf]
    %v4312 = vld [vmem:[#allocation13 + $0x24] sm:$0xf]
    %v4313 = vld [vmem:[#allocation13 + $0x28] sm:$0xf]
    %v4314 = vld [vmem:[#allocation13 + $0x2c] sm:$0xf]
    %v4315 = vld [vmem:[#allocation13 + $0x30] sm:$0xf]
    %v4316 = vld [vmem:[#allocation13 + $0x34] sm:$0xf]
    %v4317 = vld [vmem:[#allocation13 + $0x38] sm:$0xf]
    %v4318 = vld [vmem:[#allocation13 + $0x3c] sm:$0xf]
    %v4319 = vld [vmem:[%s11] sm:$0x1]
    %v4320 = vpack.c.bf16 %v4272, %v4271
    %v4321 = vpack.c.bf16 %v4274, %v4273
    %v4322 = vpack.c.bf16 %v4276, %v4275
    %v4323 = vpack.c.bf16 %v4278, %v4277
    %v4324 = vpack.c.bf16 %v4280, %v4279
    %v4325 = vpack.c.bf16 %v4282, %v4281
    %v4326 = vpack.c.bf16 %v4284, %v4283
    %v4327 = vpack.c.bf16 %v4286, %v4285
    %v4328 = vpack.c.bf16 %v4288, %v4287
    %v4329 = vpack.c.bf16 %v4290, %v4289
    %v4330 = vpack.c.bf16 %v4292, %v4291
    %v4331 = vpack.c.bf16 %v4294, %v4293
    %v4332 = vpack.c.bf16 %v4296, %v4295
    %v4333 = vpack.c.bf16 %v4298, %v4297
    %v4334 = vpack.c.bf16 %v4300, %v4299
    %v4335 = vpack.c.bf16 %v4302, %v4301
    %v4352 = vunpack.c.l.b16 %v4303
    %v4353 = vunpack.c.l.b16 %v4304
    %v4354 = vunpack.c.l.b16 %v4305
    %v4355 = vunpack.c.l.b16 %v4306
    %v4356 = vunpack.c.l.b16 %v4307
    %v4357 = vunpack.c.l.b16 %v4308
    %v4358 = vunpack.c.l.b16 %v4309
    %v4359 = vunpack.c.l.b16 %v4310
    %v4360 = vunpack.c.l.b16 %v4311
    %v4361 = vunpack.c.l.b16 %v4312
    %v4362 = vunpack.c.l.b16 %v4313
    %v4363 = vunpack.c.l.b16 %v4314
    %v4364 = vunpack.c.l.b16 %v4315
    %v4365 = vunpack.c.l.b16 %v4316
    %v4366 = vunpack.c.l.b16 %v4317
    %v4367 = vunpack.c.l.b16 %v4318
    %v4368 = vpack.c.b16 %v4353, %v4352
    %v4369 = vpack.c.b16 %v4355, %v4354
    %v4370 = vpack.c.b16 %v4357, %v4356
    %v4371 = vpack.c.b16 %v4359, %v4358
    %v4372 = vpack.c.b16 %v4361, %v4360
    %v4373 = vpack.c.b16 %v4363, %v4362
    %v4374 = vpack.c.b16 %v4365, %v4364
    %v4375 = vpack.c.b16 %v4367, %v4366
    %4384 = vmatpush.bf16.msra.mxu0 %v4375
    %4385 = vmatpush.bf16.msra.mxu0 %v4374
    %4386 = vmatpush.bf16.msra.mxu0 %v4373
    %4387 = vmatpush.bf16.msra.mxu0 %v4372
    %4388 = vmatpush.bf16.msra.mxu0 %v4371
    %4389 = vmatpush.bf16.msra.mxu0 %v4370
    %4390 = vmatpush.bf16.msra.mxu0 %v4369
    %4391 = vmatpush.bf16.msra.mxu0 %v4368
    %4392 = vmatmul.bf16.gmra.mxu0 %v4320
    %v4393 = vpop.f32.mrf.mxu0
    %v4394 = vadd.f32 0.0, %v4393
    %v4395 = vpop.f32.mrf.mxu0
    %v4396 = vadd.f32 0.0, %v4395
    %4397 = vmatmul.bf16.gmra.mxu0 %v4321
    %v4398 = vpop.f32.mrf.mxu0
    %v4399 = vadd.f32 0.0, %v4398
    %v4400 = vpop.f32.mrf.mxu0
    %v4401 = vadd.f32 0.0, %v4400
    %4402 = vmatmul.bf16.gmra.mxu0 %v4322
    %v4403 = vpop.f32.mrf.mxu0
    %v4404 = vadd.f32 0.0, %v4403
    %v4405 = vpop.f32.mrf.mxu0
    %v4406 = vadd.f32 0.0, %v4405
    %4407 = vmatmul.bf16.gmra.mxu0 %v4323
    %v4408 = vpop.f32.mrf.mxu0
    %v4409 = vadd.f32 0.0, %v4408
    %v4410 = vpop.f32.mrf.mxu0
    %v4411 = vadd.f32 0.0, %v4410
    %4412 = vmatmul.bf16.gmra.mxu0 %v4324
    %v4413 = vpop.f32.mrf.mxu0
    %v4414 = vadd.f32 0.0, %v4413
    %v4415 = vpop.f32.mrf.mxu0
    %v4416 = vadd.f32 0.0, %v4415
    %4417 = vmatmul.bf16.gmra.mxu0 %v4325
    %v4418 = vpop.f32.mrf.mxu0
    %v4419 = vadd.f32 0.0, %v4418
    %v4420 = vpop.f32.mrf.mxu0
    %v4421 = vadd.f32 0.0, %v4420
    %4422 = vmatmul.bf16.gmra.mxu0 %v4326
    %v4423 = vpop.f32.mrf.mxu0
    %v4424 = vadd.f32 0.0, %v4423
    %v4425 = vpop.f32.mrf.mxu0
    %v4426 = vadd.f32 0.0, %v4425
    %4427 = vmatmul.bf16.gmra.mxu0 %v4327
    %v4428 = vpop.f32.mrf.mxu0
    %v4429 = vadd.f32 0.0, %v4428
    %v4430 = vpop.f32.mrf.mxu0
    %v4431 = vadd.f32 0.0, %v4430
    %4432 = vmatmul.bf16.gmra.mxu0 %v4328
    %v4433 = vpop.f32.mrf.mxu0
    %v4434 = vadd.f32 0.0, %v4433
    %v4435 = vpop.f32.mrf.mxu0
    %v4436 = vadd.f32 0.0, %v4435
    %4437 = vmatmul.bf16.gmra.mxu0 %v4329
    %v4438 = vpop.f32.mrf.mxu0
    %v4439 = vadd.f32 0.0, %v4438
    %v4440 = vpop.f32.mrf.mxu0
    %v4441 = vadd.f32 0.0, %v4440
    %4442 = vmatmul.bf16.gmra.mxu0 %v4330
    %v4443 = vpop.f32.mrf.mxu0
    %v4444 = vadd.f32 0.0, %v4443
    %v4445 = vpop.f32.mrf.mxu0
    %v4446 = vadd.f32 0.0, %v4445
    %4447 = vmatmul.bf16.gmra.mxu0 %v4331
    %v4448 = vpop.f32.mrf.mxu0
    %v4449 = vadd.f32 0.0, %v4448
    %v4450 = vpop.f32.mrf.mxu0
    %v4451 = vadd.f32 0.0, %v4450
    %4452 = vmatmul.bf16.gmra.mxu0 %v4332
    %v4453 = vpop.f32.mrf.mxu0
    %v4454 = vadd.f32 0.0, %v4453
    %v4455 = vpop.f32.mrf.mxu0
    %v4456 = vadd.f32 0.0, %v4455
    %4457 = vmatmul.bf16.gmra.mxu0 %v4333
    %v4458 = vpop.f32.mrf.mxu0
    %v4459 = vadd.f32 0.0, %v4458
    %v4460 = vpop.f32.mrf.mxu0
    %v4461 = vadd.f32 0.0, %v4460
    %4462 = vmatmul.bf16.gmra.mxu0 %v4334
    %v4463 = vpop.f32.mrf.mxu0
    %v4464 = vadd.f32 0.0, %v4463
    %v4465 = vpop.f32.mrf.mxu0
    %v4466 = vadd.f32 0.0, %v4465
    %4467 = vmatmul.bf16.gmra.mxu0 %v4335
    %v4468 = vpop.f32.mrf.mxu0
    %v4469 = vadd.f32 0.0, %v4468
    %v4470 = vpop.f32.mrf.mxu0
    %v4471 = vadd.f32 0.0, %v4470
    %4472 = vdwg.mxu0
    %v4473 = vpack.c.bf16 %v4396, %v4394
    %v4474 = vpack.c.bf16 %v4401, %v4399
    %v4475 = vpack.c.bf16 %v4406, %v4404
    %v4476 = vpack.c.bf16 %v4411, %v4409
    %v4477 = vpack.c.bf16 %v4416, %v4414
    %v4478 = vpack.c.bf16 %v4421, %v4419
    %v4479 = vpack.c.bf16 %v4426, %v4424
    %v4480 = vpack.c.bf16 %v4431, %v4429
    %v4481 = vpack.c.bf16 %v4436, %v4434
    %v4482 = vpack.c.bf16 %v4441, %v4439
    %v4483 = vpack.c.bf16 %v4446, %v4444
    %v4484 = vpack.c.bf16 %v4451, %v4449
    %v4485 = vpack.c.bf16 %v4456, %v4454
    %v4486 = vpack.c.bf16 %v4461, %v4459
    %v4487 = vpack.c.bf16 %v4466, %v4464
    %v4488 = vpack.c.bf16 %v4471, %v4469
    %v4490 = vperm.slane %v4319, 0
    %4492 = vmatpush.bf16.msra.mxu0 %v4480
    %4493 = vmatpush.bf16.msra.mxu0 %v4479
    %4494 = vmatpush.bf16.msra.mxu0 %v4478
    %4495 = vmatpush.bf16.msra.mxu0 %v4477
    %4496 = vmatpush.bf16.msra.mxu0 %v4476
    %4497 = vmatpush.bf16.msra.mxu0 %v4475
    %4498 = vmatpush.bf16.msra.mxu0 %v4474
    %4499 = vmatpush.bf16.msra.mxu0 %v4473
    %4500 = vmatmul.bf16.gmra.mxu0 %v865
    %v4501 = vpop.f32.mrf.mxu0
    %v4502 = vadd.f32 %v4490, %v4501
    %v4503 = vpop.f32.mrf.mxu0
    %v4504 = vadd.f32 %v4490, %v4503
    %4505 = vmatmul.bf16.gmra.mxu0 %v867
    %v4506 = vpop.f32.mrf.mxu0
    %v4507 = vadd.f32 %v4490, %v4506
    %v4508 = vpop.f32.mrf.mxu0
    %v4509 = vadd.f32 %v4490, %v4508
    %4510 = vmatmul.bf16.gmra.mxu0 %v869
    %v4511 = vpop.f32.mrf.mxu0
    %v4512 = vadd.f32 %v4490, %v4511
    %v4513 = vpop.f32.mrf.mxu0
    %v4514 = vadd.f32 %v4490, %v4513
    %4515 = vmatmul.bf16.gmra.mxu0 %v871
    %v4516 = vpop.f32.mrf.mxu0
    %v4517 = vadd.f32 %v4490, %v4516
    %v4518 = vpop.f32.mrf.mxu0
    %v4519 = vadd.f32 %v4490, %v4518
    %4520 = vmatmul.bf16.gmra.mxu0 %v873
    %v4521 = vpop.f32.mrf.mxu0
    %v4522 = vadd.f32 %v4490, %v4521
    %v4523 = vpop.f32.mrf.mxu0
    %v4524 = vadd.f32 %v4490, %v4523
    %4525 = vmatmul.bf16.gmra.mxu0 %v875
    %v4526 = vpop.f32.mrf.mxu0
    %v4527 = vadd.f32 %v4490, %v4526
    %v4528 = vpop.f32.mrf.mxu0
    %v4529 = vadd.f32 %v4490, %v4528
    %4530 = vmatmul.bf16.gmra.mxu0 %v877
    %v4531 = vpop.f32.mrf.mxu0
    %v4532 = vadd.f32 %v4490, %v4531
    %v4533 = vpop.f32.mrf.mxu0
    %v4534 = vadd.f32 %v4490, %v4533
    %4535 = vmatmul.bf16.gmra.mxu0 %v879
    %v4536 = vpop.f32.mrf.mxu0
    %v4537 = vadd.f32 %v4490, %v4536
    %v4538 = vpop.f32.mrf.mxu0
    %v4539 = vadd.f32 %v4490, %v4538
    %4540 = vmatmul.bf16.gmra.mxu0 %v881
    %v4541 = vpop.f32.mrf.mxu0
    %v4542 = vadd.f32 %v4490, %v4541
    %v4543 = vpop.f32.mrf.mxu0
    %v4544 = vadd.f32 %v4490, %v4543
    %4545 = vmatmul.bf16.gmra.mxu0 %v883
    %v4546 = vpop.f32.mrf.mxu0
    %v4547 = vadd.f32 %v4490, %v4546
    %v4548 = vpop.f32.mrf.mxu0
    %v4549 = vadd.f32 %v4490, %v4548
    %4550 = vmatmul.bf16.gmra.mxu0 %v885
    %v4551 = vpop.f32.mrf.mxu0
    %v4552 = vadd.f32 %v4490, %v4551
    %v4553 = vpop.f32.mrf.mxu0
    %v4554 = vadd.f32 %v4490, %v4553
    %4555 = vmatmul.bf16.gmra.mxu0 %v887
    %v4556 = vpop.f32.mrf.mxu0
    %v4557 = vadd.f32 %v4490, %v4556
    %v4558 = vpop.f32.mrf.mxu0
    %v4559 = vadd.f32 %v4490, %v4558
    %4560 = vmatmul.bf16.gmra.mxu0 %v889
    %v4561 = vpop.f32.mrf.mxu0
    %v4562 = vadd.f32 %v4490, %v4561
    %v4563 = vpop.f32.mrf.mxu0
    %v4564 = vadd.f32 %v4490, %v4563
    %4565 = vmatmul.bf16.gmra.mxu0 %v891
    %v4566 = vpop.f32.mrf.mxu0
    %v4567 = vadd.f32 %v4490, %v4566
    %v4568 = vpop.f32.mrf.mxu0
    %v4569 = vadd.f32 %v4490, %v4568
    %4570 = vmatmul.bf16.gmra.mxu0 %v893
    %v4571 = vpop.f32.mrf.mxu0
    %v4572 = vadd.f32 %v4490, %v4571
    %v4573 = vpop.f32.mrf.mxu0
    %v4574 = vadd.f32 %v4490, %v4573
    %4575 = vmatmul.bf16.gmra.mxu0 %v895
    %v4576 = vpop.f32.mrf.mxu0
    %v4577 = vadd.f32 %v4490, %v4576
    %v4578 = vpop.f32.mrf.mxu0
    %v4579 = vadd.f32 %v4490, %v4578
    %4580 = vdwg.mxu0
    %4581 = vmatpush.bf16.msra.mxu0 %v4488
    %4582 = vmatpush.bf16.msra.mxu0 %v4487
    %4583 = vmatpush.bf16.msra.mxu0 %v4486
    %4584 = vmatpush.bf16.msra.mxu0 %v4485
    %4585 = vmatpush.bf16.msra.mxu0 %v4484
    %4586 = vmatpush.bf16.msra.mxu0 %v4483
    %4587 = vmatpush.bf16.msra.mxu0 %v4482
    %4588 = vmatpush.bf16.msra.mxu0 %v4481
    %4589 = vmatmul.bf16.gmra.mxu0 %v866
    %v4590 = vpop.f32.mrf.mxu0
    %v4591 = vadd.f32 %v4502, %v4590
    %v4592 = vpop.f32.mrf.mxu0
    %v4593 = vadd.f32 %v4504, %v4592
    %4594 = vmatmul.bf16.gmra.mxu0 %v868
    %v4595 = vpop.f32.mrf.mxu0
    %v4596 = vadd.f32 %v4507, %v4595
    %v4597 = vpop.f32.mrf.mxu0
    %v4598 = vadd.f32 %v4509, %v4597
    %4599 = vmatmul.bf16.gmra.mxu0 %v870
    %v4600 = vpop.f32.mrf.mxu0
    %v4601 = vadd.f32 %v4512, %v4600
    %v4602 = vpop.f32.mrf.mxu0
    %v4603 = vadd.f32 %v4514, %v4602
    %4604 = vmatmul.bf16.gmra.mxu0 %v872
    %v4605 = vpop.f32.mrf.mxu0
    %v4606 = vadd.f32 %v4517, %v4605
    %v4607 = vpop.f32.mrf.mxu0
    %v4608 = vadd.f32 %v4519, %v4607
    %4609 = vmatmul.bf16.gmra.mxu0 %v874
    %v4610 = vpop.f32.mrf.mxu0
    %v4611 = vadd.f32 %v4522, %v4610
    %v4612 = vpop.f32.mrf.mxu0
    %v4613 = vadd.f32 %v4524, %v4612
    %4614 = vmatmul.bf16.gmra.mxu0 %v876
    %v4615 = vpop.f32.mrf.mxu0
    %v4616 = vadd.f32 %v4527, %v4615
    %v4617 = vpop.f32.mrf.mxu0
    %v4618 = vadd.f32 %v4529, %v4617
    %4619 = vmatmul.bf16.gmra.mxu0 %v878
    %v4620 = vpop.f32.mrf.mxu0
    %v4621 = vadd.f32 %v4532, %v4620
    %v4622 = vpop.f32.mrf.mxu0
    %v4623 = vadd.f32 %v4534, %v4622
    %4624 = vmatmul.bf16.gmra.mxu0 %v880
    %v4625 = vpop.f32.mrf.mxu0
    %v4626 = vadd.f32 %v4537, %v4625
    %v4627 = vpop.f32.mrf.mxu0
    %v4628 = vadd.f32 %v4539, %v4627
    %4629 = vmatmul.bf16.gmra.mxu0 %v882
    %v4630 = vpop.f32.mrf.mxu0
    %v4631 = vadd.f32 %v4542, %v4630
    %v4632 = vpop.f32.mrf.mxu0
    %v4633 = vadd.f32 %v4544, %v4632
    %4634 = vmatmul.bf16.gmra.mxu0 %v884
    %v4635 = vpop.f32.mrf.mxu0
    %v4636 = vadd.f32 %v4547, %v4635
    %v4637 = vpop.f32.mrf.mxu0
    %v4638 = vadd.f32 %v4549, %v4637
    %4639 = vmatmul.bf16.gmra.mxu0 %v886
    %v4640 = vpop.f32.mrf.mxu0
    %v4641 = vadd.f32 %v4552, %v4640
    %v4642 = vpop.f32.mrf.mxu0
    %v4643 = vadd.f32 %v4554, %v4642
    %4644 = vmatmul.bf16.gmra.mxu0 %v888
    %v4645 = vpop.f32.mrf.mxu0
    %v4646 = vadd.f32 %v4557, %v4645
    %v4647 = vpop.f32.mrf.mxu0
    %v4648 = vadd.f32 %v4559, %v4647
    %4649 = vmatmul.bf16.gmra.mxu0 %v890
    %v4650 = vpop.f32.mrf.mxu0
    %v4651 = vadd.f32 %v4562, %v4650
    %v4652 = vpop.f32.mrf.mxu0
    %v4653 = vadd.f32 %v4564, %v4652
    %4654 = vmatmul.bf16.gmra.mxu0 %v892
    %v4655 = vpop.f32.mrf.mxu0
    %v4656 = vadd.f32 %v4567, %v4655
    %v4657 = vpop.f32.mrf.mxu0
    %v4658 = vadd.f32 %v4569, %v4657
    %4659 = vmatmul.bf16.gmra.mxu0 %v894
    %v4660 = vpop.f32.mrf.mxu0
    %v4661 = vadd.f32 %v4572, %v4660
    %v4662 = vpop.f32.mrf.mxu0
    %v4663 = vadd.f32 %v4574, %v4662
    %4664 = vmatmul.bf16.gmra.mxu0 %v896
    %v4665 = vpop.f32.mrf.mxu0
    %v4666 = vadd.f32 %v4577, %v4665
    %v4667 = vpop.f32.mrf.mxu0
    %v4668 = vadd.f32 %v4579, %v4667
    %4669 = vdwg.mxu0
    %4670 = vadd.xlane.f32.xlu0 %v4591
    %v4671 = vpop.xlane.xlu0 %4670
    %4672 = vadd.xlane.f32.xlu0 %v4593
    %v4673 = vpop.xlane.xlu0 %4672
    %4674 = vadd.xlane.f32.xlu0 %v4596
    %v4675 = vpop.xlane.xlu0 %4674
    %4676 = vadd.xlane.f32.xlu0 %v4598
    %v4677 = vpop.xlane.xlu0 %4676
    %4678 = vadd.xlane.f32.xlu0 %v4601
    %v4679 = vpop.xlane.xlu0 %4678
    %4680 = vadd.xlane.f32.xlu0 %v4603
    %v4681 = vpop.xlane.xlu0 %4680
    %4682 = vadd.xlane.f32.xlu0 %v4606
    %v4683 = vpop.xlane.xlu0 %4682
    %4684 = vadd.xlane.f32.xlu0 %v4608
    %v4685 = vpop.xlane.xlu0 %4684
    %4686 = vadd.xlane.f32.xlu0 %v4611
    %v4687 = vpop.xlane.xlu0 %4686
    %4688 = vadd.xlane.f32.xlu0 %v4613
    %v4689 = vpop.xlane.xlu0 %4688
    %4690 = vadd.xlane.f32.xlu0 %v4616
    %v4691 = vpop.xlane.xlu0 %4690
    %4692 = vadd.xlane.f32.xlu0 %v4618
    %v4693 = vpop.xlane.xlu0 %4692
    %4694 = vadd.xlane.f32.xlu0 %v4621
    %v4695 = vpop.xlane.xlu0 %4694
    %4696 = vadd.xlane.f32.xlu0 %v4623
    %v4697 = vpop.xlane.xlu0 %4696
    %4698 = vadd.xlane.f32.xlu0 %v4626
    %v4699 = vpop.xlane.xlu0 %4698
    %4700 = vadd.xlane.f32.xlu0 %v4628
    %v4701 = vpop.xlane.xlu0 %4700
    %4702 = vadd.xlane.f32.xlu0 %v4631
    %v4703 = vpop.xlane.xlu0 %4702
    %4704 = vadd.xlane.f32.xlu0 %v4633
    %v4705 = vpop.xlane.xlu0 %4704
    %4706 = vadd.xlane.f32.xlu0 %v4636
    %v4707 = vpop.xlane.xlu0 %4706
    %4708 = vadd.xlane.f32.xlu0 %v4638
    %v4709 = vpop.xlane.xlu0 %4708
    %4710 = vadd.xlane.f32.xlu0 %v4641
    %v4711 = vpop.xlane.xlu0 %4710
    %4712 = vadd.xlane.f32.xlu0 %v4643
    %v4713 = vpop.xlane.xlu0 %4712
    %4714 = vadd.xlane.f32.xlu0 %v4646
    %v4715 = vpop.xlane.xlu0 %4714
    %4716 = vadd.xlane.f32.xlu0 %v4648
    %v4717 = vpop.xlane.xlu0 %4716
    %4718 = vadd.xlane.f32.xlu0 %v4651
    %v4719 = vpop.xlane.xlu0 %4718
    %4720 = vadd.xlane.f32.xlu0 %v4653
    %v4721 = vpop.xlane.xlu0 %4720
    %4722 = vadd.xlane.f32.xlu0 %v4656
    %v4723 = vpop.xlane.xlu0 %4722
    %4724 = vadd.xlane.f32.xlu0 %v4658
    %v4725 = vpop.xlane.xlu0 %4724
    %4726 = vadd.xlane.f32.xlu0 %v4661
    %v4727 = vpop.xlane.xlu0 %4726
    %4728 = vadd.xlane.f32.xlu0 %v4663
    %v4729 = vpop.xlane.xlu0 %4728
    %4730 = vadd.xlane.f32.xlu0 %v4666
    %v4731 = vpop.xlane.xlu0 %4730
    %4732 = vadd.xlane.f32.xlu0 %v4668
    %v4733 = vpop.xlane.xlu0 %4732
    %v4734 = vmul.f32 %v4671, 0.03125
    %v4735 = vmul.f32 %v4673, 0.03125
    %v4736 = vmul.f32 %v4675, 0.03125
    %v4737 = vmul.f32 %v4677, 0.03125
    %v4738 = vmul.f32 %v4679, 0.03125
    %v4739 = vmul.f32 %v4681, 0.03125
    %v4740 = vmul.f32 %v4683, 0.03125
    %v4741 = vmul.f32 %v4685, 0.03125
    %v4742 = vmul.f32 %v4687, 0.03125
    %v4743 = vmul.f32 %v4689, 0.03125
    %v4744 = vmul.f32 %v4691, 0.03125
    %v4745 = vmul.f32 %v4693, 0.03125
    %v4746 = vmul.f32 %v4695, 0.03125
    %v4747 = vmul.f32 %v4697, 0.03125
    %v4748 = vmul.f32 %v4699, 0.03125
    %v4749 = vmul.f32 %v4701, 0.03125
    %v4750 = vmul.f32 %v4703, 0.03125
    %v4751 = vmul.f32 %v4705, 0.03125
    %v4752 = vmul.f32 %v4707, 0.03125
    %v4753 = vmul.f32 %v4709, 0.03125
    %v4754 = vmul.f32 %v4711, 0.03125
    %v4755 = vmul.f32 %v4713, 0.03125
    %v4756 = vmul.f32 %v4715, 0.03125
    %v4757 = vmul.f32 %v4717, 0.03125
    %v4758 = vmul.f32 %v4719, 0.03125
    %v4759 = vmul.f32 %v4721, 0.03125
    %v4760 = vmul.f32 %v4723, 0.03125
    %v4761 = vmul.f32 %v4725, 0.03125
    %v4762 = vmul.f32 %v4727, 0.03125
    %v4763 = vmul.f32 %v4729, 0.03125
    %v4764 = vmul.f32 %v4731, 0.03125
    %v4765 = vmul.f32 %v4733, 0.03125
    %v4766 = vmul.f32 %v4591, %v4591
    %v4767 = vmul.f32 %v4593, %v4593
    %v4768 = vmul.f32 %v4596, %v4596
    %v4769 = vmul.f32 %v4598, %v4598
    %v4770 = vmul.f32 %v4601, %v4601
    %v4771 = vmul.f32 %v4603, %v4603
    %v4772 = vmul.f32 %v4606, %v4606
    %v4773 = vmul.f32 %v4608, %v4608
    %v4774 = vmul.f32 %v4611, %v4611
    %v4775 = vmul.f32 %v4613, %v4613
    %v4776 = vmul.f32 %v4616, %v4616
    %v4777 = vmul.f32 %v4618, %v4618
    %v4778 = vmul.f32 %v4621, %v4621
    %v4779 = vmul.f32 %v4623, %v4623
    %v4780 = vmul.f32 %v4626, %v4626
    %v4781 = vmul.f32 %v4628, %v4628
    %v4782 = vmul.f32 %v4631, %v4631
    %v4783 = vmul.f32 %v4633, %v4633
    %v4784 = vmul.f32 %v4636, %v4636
    %v4785 = vmul.f32 %v4638, %v4638
    %v4786 = vmul.f32 %v4641, %v4641
    %v4787 = vmul.f32 %v4643, %v4643
    %v4788 = vmul.f32 %v4646, %v4646
    %v4789 = vmul.f32 %v4648, %v4648
    %v4790 = vmul.f32 %v4651, %v4651
    %v4791 = vmul.f32 %v4653, %v4653
    %v4792 = vmul.f32 %v4656, %v4656
    %v4793 = vmul.f32 %v4658, %v4658
    %v4794 = vmul.f32 %v4661, %v4661
    %v4795 = vmul.f32 %v4663, %v4663
    %v4796 = vmul.f32 %v4666, %v4666
    %v4797 = vmul.f32 %v4668, %v4668
    %4798 = vadd.xlane.f32.xlu0 %v4766
    %v4799 = vpop.xlane.xlu0 %4798
    %4800 = vadd.xlane.f32.xlu0 %v4767
    %v4801 = vpop.xlane.xlu0 %4800
    %4802 = vadd.xlane.f32.xlu0 %v4768
    %v4803 = vpop.xlane.xlu0 %4802
    %4804 = vadd.xlane.f32.xlu0 %v4769
    %v4805 = vpop.xlane.xlu0 %4804
    %4806 = vadd.xlane.f32.xlu0 %v4770
    %v4807 = vpop.xlane.xlu0 %4806
    %4808 = vadd.xlane.f32.xlu0 %v4771
    %v4809 = vpop.xlane.xlu0 %4808
    %4810 = vadd.xlane.f32.xlu0 %v4772
    %v4811 = vpop.xlane.xlu0 %4810
    %4812 = vadd.xlane.f32.xlu0 %v4773
    %v4813 = vpop.xlane.xlu0 %4812
    %4814 = vadd.xlane.f32.xlu0 %v4774
    %v4815 = vpop.xlane.xlu0 %4814
    %4816 = vadd.xlane.f32.xlu0 %v4775
    %v4817 = vpop.xlane.xlu0 %4816
    %4818 = vadd.xlane.f32.xlu0 %v4776
    %v4819 = vpop.xlane.xlu0 %4818
    %4820 = vadd.xlane.f32.xlu0 %v4777
    %v4821 = vpop.xlane.xlu0 %4820
    %4822 = vadd.xlane.f32.xlu0 %v4778
    %v4823 = vpop.xlane.xlu0 %4822
    %4824 = vadd.xlane.f32.xlu0 %v4779
    %v4825 = vpop.xlane.xlu0 %4824
    %4826 = vadd.xlane.f32.xlu0 %v4780
    %v4827 = vpop.xlane.xlu0 %4826
    %4828 = vadd.xlane.f32.xlu0 %v4781
    %v4829 = vpop.xlane.xlu0 %4828
    %4830 = vadd.xlane.f32.xlu0 %v4782
    %v4831 = vpop.xlane.xlu0 %4830
    %4832 = vadd.xlane.f32.xlu0 %v4783
    %v4833 = vpop.xlane.xlu0 %4832
    %4834 = vadd.xlane.f32.xlu0 %v4784
    %v4835 = vpop.xlane.xlu0 %4834
    %4836 = vadd.xlane.f32.xlu0 %v4785
    %v4837 = vpop.xlane.xlu0 %4836
    %4838 = vadd.xlane.f32.xlu0 %v4786
    %v4839 = vpop.xlane.xlu0 %4838
    %4840 = vadd.xlane.f32.xlu0 %v4787
    %v4841 = vpop.xlane.xlu0 %4840
    %4842 = vadd.xlane.f32.xlu0 %v4788
    %v4843 = vpop.xlane.xlu0 %4842
    %4844 = vadd.xlane.f32.xlu0 %v4789
    %v4845 = vpop.xlane.xlu0 %4844
    %4846 = vadd.xlane.f32.xlu0 %v4790
    %v4847 = vpop.xlane.xlu0 %4846
    %4848 = vadd.xlane.f32.xlu0 %v4791
    %v4849 = vpop.xlane.xlu0 %4848
    %4850 = vadd.xlane.f32.xlu0 %v4792
    %v4851 = vpop.xlane.xlu0 %4850
    %4852 = vadd.xlane.f32.xlu0 %v4793
    %v4853 = vpop.xlane.xlu0 %4852
    %4854 = vadd.xlane.f32.xlu0 %v4794
    %v4855 = vpop.xlane.xlu0 %4854
    %4856 = vadd.xlane.f32.xlu0 %v4795
    %v4857 = vpop.xlane.xlu0 %4856
    %4858 = vadd.xlane.f32.xlu0 %v4796
    %v4859 = vpop.xlane.xlu0 %4858
    %4860 = vadd.xlane.f32.xlu0 %v4797
    %v4861 = vpop.xlane.xlu0 %4860
    %v4862 = vmul.f32 %v4799, 0.03125
    %v4863 = vmul.f32 %v4801, 0.03125
    %v4864 = vmul.f32 %v4803, 0.03125
    %v4865 = vmul.f32 %v4805, 0.03125
    %v4866 = vmul.f32 %v4807, 0.03125
    %v4867 = vmul.f32 %v4809, 0.03125
    %v4868 = vmul.f32 %v4811, 0.03125
    %v4869 = vmul.f32 %v4813, 0.03125
    %v4870 = vmul.f32 %v4815, 0.03125
    %v4871 = vmul.f32 %v4817, 0.03125
    %v4872 = vmul.f32 %v4819, 0.03125
    %v4873 = vmul.f32 %v4821, 0.03125
    %v4874 = vmul.f32 %v4823, 0.03125
    %v4875 = vmul.f32 %v4825, 0.03125
    %v4876 = vmul.f32 %v4827, 0.03125
    %v4877 = vmul.f32 %v4829, 0.03125
    %v4878 = vmul.f32 %v4831, 0.03125
    %v4879 = vmul.f32 %v4833, 0.03125
    %v4880 = vmul.f32 %v4835, 0.03125
    %v4881 = vmul.f32 %v4837, 0.03125
    %v4882 = vmul.f32 %v4839, 0.03125
    %v4883 = vmul.f32 %v4841, 0.03125
    %v4884 = vmul.f32 %v4843, 0.03125
    %v4885 = vmul.f32 %v4845, 0.03125
    %v4886 = vmul.f32 %v4847, 0.03125
    %v4887 = vmul.f32 %v4849, 0.03125
    %v4888 = vmul.f32 %v4851, 0.03125
    %v4889 = vmul.f32 %v4853, 0.03125
    %v4890 = vmul.f32 %v4855, 0.03125
    %v4891 = vmul.f32 %v4857, 0.03125
    %v4892 = vmul.f32 %v4859, 0.03125
    %v4893 = vmul.f32 %v4861, 0.03125
    %v4894 = vsub.f32 %v4591, %v4734
    %v4895 = vsub.f32 %v4593, %v4735
    %v4896 = vsub.f32 %v4596, %v4736
    %v4897 = vsub.f32 %v4598, %v4737
    %v4898 = vsub.f32 %v4601, %v4738
    %v4899 = vsub.f32 %v4603, %v4739
    %v4900 = vsub.f32 %v4606, %v4740
    %v4901 = vsub.f32 %v4608, %v4741
    %v4902 = vsub.f32 %v4611, %v4742
    %v4903 = vsub.f32 %v4613, %v4743
    %v4904 = vsub.f32 %v4616, %v4744
    %v4905 = vsub.f32 %v4618, %v4745
    %v4906 = vsub.f32 %v4621, %v4746
    %v4907 = vsub.f32 %v4623, %v4747
    %v4908 = vsub.f32 %v4626, %v4748
    %v4909 = vsub.f32 %v4628, %v4749
    %v4910 = vsub.f32 %v4631, %v4750
    %v4911 = vsub.f32 %v4633, %v4751
    %v4912 = vsub.f32 %v4636, %v4752
    %v4913 = vsub.f32 %v4638, %v4753
    %v4914 = vsub.f32 %v4641, %v4754
    %v4915 = vsub.f32 %v4643, %v4755
    %v4916 = vsub.f32 %v4646, %v4756
    %v4917 = vsub.f32 %v4648, %v4757
    %v4918 = vsub.f32 %v4651, %v4758
    %v4919 = vsub.f32 %v4653, %v4759
    %v4920 = vsub.f32 %v4656, %v4760
    %v4921 = vsub.f32 %v4658, %v4761
    %v4922 = vsub.f32 %v4661, %v4762
    %v4923 = vsub.f32 %v4663, %v4763
    %v4924 = vsub.f32 %v4666, %v4764
    %v4925 = vsub.f32 %v4668, %v4765
    %v4926 = vmul.f32 %v4734, %v4734
    %v4927 = vmul.f32 %v4735, %v4735
    %v4928 = vmul.f32 %v4736, %v4736
    %v4929 = vmul.f32 %v4737, %v4737
    %v4930 = vmul.f32 %v4738, %v4738
    %v4931 = vmul.f32 %v4739, %v4739
    %v4932 = vmul.f32 %v4740, %v4740
    %v4933 = vmul.f32 %v4741, %v4741
    %v4934 = vmul.f32 %v4742, %v4742
    %v4935 = vmul.f32 %v4743, %v4743
    %v4936 = vmul.f32 %v4744, %v4744
    %v4937 = vmul.f32 %v4745, %v4745
    %v4938 = vmul.f32 %v4746, %v4746
    %v4939 = vmul.f32 %v4747, %v4747
    %v4940 = vmul.f32 %v4748, %v4748
    %v4941 = vmul.f32 %v4749, %v4749
    %v4942 = vmul.f32 %v4750, %v4750
    %v4943 = vmul.f32 %v4751, %v4751
    %v4944 = vmul.f32 %v4752, %v4752
    %v4945 = vmul.f32 %v4753, %v4753
    %v4946 = vmul.f32 %v4754, %v4754
    %v4947 = vmul.f32 %v4755, %v4755
    %v4948 = vmul.f32 %v4756, %v4756
    %v4949 = vmul.f32 %v4757, %v4757
    %v4950 = vmul.f32 %v4758, %v4758
    %v4951 = vmul.f32 %v4759, %v4759
    %v4952 = vmul.f32 %v4760, %v4760
    %v4953 = vmul.f32 %v4761, %v4761
    %v4954 = vmul.f32 %v4762, %v4762
    %v4955 = vmul.f32 %v4763, %v4763
    %v4956 = vmul.f32 %v4764, %v4764
    %v4957 = vmul.f32 %v4765, %v4765
    %v4958 = vsub.f32 %v4862, %v4926
    %v4959 = vsub.f32 %v4863, %v4927
    %v4960 = vsub.f32 %v4864, %v4928
    %v4961 = vsub.f32 %v4865, %v4929
    %v4962 = vsub.f32 %v4866, %v4930
    %v4963 = vsub.f32 %v4867, %v4931
    %v4964 = vsub.f32 %v4868, %v4932
    %v4965 = vsub.f32 %v4869, %v4933
    %v4966 = vsub.f32 %v4870, %v4934
    %v4967 = vsub.f32 %v4871, %v4935
    %v4968 = vsub.f32 %v4872, %v4936
    %v4969 = vsub.f32 %v4873, %v4937
    %v4970 = vsub.f32 %v4874, %v4938
    %v4971 = vsub.f32 %v4875, %v4939
    %v4972 = vsub.f32 %v4876, %v4940
    %v4973 = vsub.f32 %v4877, %v4941
    %v4974 = vsub.f32 %v4878, %v4942
    %v4975 = vsub.f32 %v4879, %v4943
    %v4976 = vsub.f32 %v4880, %v4944
    %v4977 = vsub.f32 %v4881, %v4945
    %v4978 = vsub.f32 %v4882, %v4946
    %v4979 = vsub.f32 %v4883, %v4947
    %v4980 = vsub.f32 %v4884, %v4948
    %v4981 = vsub.f32 %v4885, %v4949
    %v4982 = vsub.f32 %v4886, %v4950
    %v4983 = vsub.f32 %v4887, %v4951
    %v4984 = vsub.f32 %v4888, %v4952
    %v4985 = vsub.f32 %v4889, %v4953
    %v4986 = vsub.f32 %v4890, %v4954
    %v4987 = vsub.f32 %v4891, %v4955
    %v4988 = vsub.f32 %v4892, %v4956
    %v4989 = vsub.f32 %v4893, %v4957
    %v4990 = vadd.f32 %v4958, 1e-05
    %v4991 = vadd.f32 %v4959, 1e-05
    %v4992 = vadd.f32 %v4960, 1e-05
    %v4993 = vadd.f32 %v4961, 1e-05
    %v4994 = vadd.f32 %v4962, 1e-05
    %v4995 = vadd.f32 %v4963, 1e-05
    %v4996 = vadd.f32 %v4964, 1e-05
    %v4997 = vadd.f32 %v4965, 1e-05
    %v4998 = vadd.f32 %v4966, 1e-05
    %v4999 = vadd.f32 %v4967, 1e-05
    %v5000 = vadd.f32 %v4968, 1e-05
    %v5001 = vadd.f32 %v4969, 1e-05
    %v5002 = vadd.f32 %v4970, 1e-05
    %v5003 = vadd.f32 %v4971, 1e-05
    %v5004 = vadd.f32 %v4972, 1e-05
    %v5005 = vadd.f32 %v4973, 1e-05
    %v5006 = vadd.f32 %v4974, 1e-05
    %v5007 = vadd.f32 %v4975, 1e-05
    %v5008 = vadd.f32 %v4976, 1e-05
    %v5009 = vadd.f32 %v4977, 1e-05
    %v5010 = vadd.f32 %v4978, 1e-05
    %v5011 = vadd.f32 %v4979, 1e-05
    %v5012 = vadd.f32 %v4980, 1e-05
    %v5013 = vadd.f32 %v4981, 1e-05
    %v5014 = vadd.f32 %v4982, 1e-05
    %v5015 = vadd.f32 %v4983, 1e-05
    %v5016 = vadd.f32 %v4984, 1e-05
    %v5017 = vadd.f32 %v4985, 1e-05
    %v5018 = vadd.f32 %v4986, 1e-05
    %v5019 = vadd.f32 %v4987, 1e-05
    %v5020 = vadd.f32 %v4988, 1e-05
    %v5021 = vadd.f32 %v4989, 1e-05
    %v5022 = vrsqrt.pop %v4990
    %v5023 = vmul.f32 %v5022, %v4990
    %v5024 = vmul.f32 %v5023, %v5022
    %v5025 = vmul.f32 0.5, %v5024
    %v5026 = vsub.f32 1.5, %v5025
    %v5027 = vmul.f32 %v5022, %v5026
    %vm5028 = vweird.f32 %v4990
    %vm5029 = vweird.f32 %v5022
    %vm5030 = vmor %vm5028, %vm5029
    %v5031 = vsel %vm5030, %v5022, %v5027
    %v5032 = vrsqrt.pop %v4991
    %v5033 = vmul.f32 %v5032, %v4991
    %v5034 = vmul.f32 %v5033, %v5032
    %v5035 = vmul.f32 0.5, %v5034
    %v5036 = vsub.f32 1.5, %v5035
    %v5037 = vmul.f32 %v5032, %v5036
    %vm5038 = vweird.f32 %v4991
    %vm5039 = vweird.f32 %v5032
    %vm5040 = vmor %vm5038, %vm5039
    %v5041 = vsel %vm5040, %v5032, %v5037
    %v5042 = vrsqrt.pop %v4992
    %v5043 = vmul.f32 %v5042, %v4992
    %v5044 = vmul.f32 %v5043, %v5042
    %v5045 = vmul.f32 0.5, %v5044
    %v5046 = vsub.f32 1.5, %v5045
    %v5047 = vmul.f32 %v5042, %v5046
    %vm5048 = vweird.f32 %v4992
    %vm5049 = vweird.f32 %v5042
    %vm5050 = vmor %vm5048, %vm5049
    %v5051 = vsel %vm5050, %v5042, %v5047
    %v5052 = vrsqrt.pop %v4993
    %v5053 = vmul.f32 %v5052, %v4993
    %v5054 = vmul.f32 %v5053, %v5052
    %v5055 = vmul.f32 0.5, %v5054
    %v5056 = vsub.f32 1.5, %v5055
    %v5057 = vmul.f32 %v5052, %v5056
    %vm5058 = vweird.f32 %v4993
    %vm5059 = vweird.f32 %v5052
    %vm5060 = vmor %vm5058, %vm5059
    %v5061 = vsel %vm5060, %v5052, %v5057
    %v5062 = vrsqrt.pop %v4994
    %v5063 = vmul.f32 %v5062, %v4994
    %v5064 = vmul.f32 %v5063, %v5062
    %v5065 = vmul.f32 0.5, %v5064
    %v5066 = vsub.f32 1.5, %v5065
    %v5067 = vmul.f32 %v5062, %v5066
    %vm5068 = vweird.f32 %v4994
    %vm5069 = vweird.f32 %v5062
    %vm5070 = vmor %vm5068, %vm5069
    %v5071 = vsel %vm5070, %v5062, %v5067
    %v5072 = vrsqrt.pop %v4995
    %v5073 = vmul.f32 %v5072, %v4995
    %v5074 = vmul.f32 %v5073, %v5072
    %v5075 = vmul.f32 0.5, %v5074
    %v5076 = vsub.f32 1.5, %v5075
    %v5077 = vmul.f32 %v5072, %v5076
    %vm5078 = vweird.f32 %v4995
    %vm5079 = vweird.f32 %v5072
    %vm5080 = vmor %vm5078, %vm5079
    %v5081 = vsel %vm5080, %v5072, %v5077
    %v5082 = vrsqrt.pop %v4996
    %v5083 = vmul.f32 %v5082, %v4996
    %v5084 = vmul.f32 %v5083, %v5082
    %v5085 = vmul.f32 0.5, %v5084
    %v5086 = vsub.f32 1.5, %v5085
    %v5087 = vmul.f32 %v5082, %v5086
    %vm5088 = vweird.f32 %v4996
    %vm5089 = vweird.f32 %v5082
    %vm5090 = vmor %vm5088, %vm5089
    %v5091 = vsel %vm5090, %v5082, %v5087
    %v5092 = vrsqrt.pop %v4997
    %v5093 = vmul.f32 %v5092, %v4997
    %v5094 = vmul.f32 %v5093, %v5092
    %v5095 = vmul.f32 0.5, %v5094
    %v5096 = vsub.f32 1.5, %v5095
    %v5097 = vmul.f32 %v5092, %v5096
    %vm5098 = vweird.f32 %v4997
    %vm5099 = vweird.f32 %v5092
    %vm5100 = vmor %vm5098, %vm5099
    %v5101 = vsel %vm5100, %v5092, %v5097
    %v5102 = vrsqrt.pop %v4998
    %v5103 = vmul.f32 %v5102, %v4998
    %v5104 = vmul.f32 %v5103, %v5102
    %v5105 = vmul.f32 0.5, %v5104
    %v5106 = vsub.f32 1.5, %v5105
    %v5107 = vmul.f32 %v5102, %v5106
    %vm5108 = vweird.f32 %v4998
    %vm5109 = vweird.f32 %v5102
    %vm5110 = vmor %vm5108, %vm5109
    %v5111 = vsel %vm5110, %v5102, %v5107
    %v5112 = vrsqrt.pop %v4999
    %v5113 = vmul.f32 %v5112, %v4999
    %v5114 = vmul.f32 %v5113, %v5112
    %v5115 = vmul.f32 0.5, %v5114
    %v5116 = vsub.f32 1.5, %v5115
    %v5117 = vmul.f32 %v5112, %v5116
    %vm5118 = vweird.f32 %v4999
    %vm5119 = vweird.f32 %v5112
    %vm5120 = vmor %vm5118, %vm5119
    %v5121 = vsel %vm5120, %v5112, %v5117
    %v5122 = vrsqrt.pop %v5000
    %v5123 = vmul.f32 %v5122, %v5000
    %v5124 = vmul.f32 %v5123, %v5122
    %v5125 = vmul.f32 0.5, %v5124
    %v5126 = vsub.f32 1.5, %v5125
    %v5127 = vmul.f32 %v5122, %v5126
    %vm5128 = vweird.f32 %v5000
    %vm5129 = vweird.f32 %v5122
    %vm5130 = vmor %vm5128, %vm5129
    %v5131 = vsel %vm5130, %v5122, %v5127
    %v5132 = vrsqrt.pop %v5001
    %v5133 = vmul.f32 %v5132, %v5001
    %v5134 = vmul.f32 %v5133, %v5132
    %v5135 = vmul.f32 0.5, %v5134
    %v5136 = vsub.f32 1.5, %v5135
    %v5137 = vmul.f32 %v5132, %v5136
    %vm5138 = vweird.f32 %v5001
    %vm5139 = vweird.f32 %v5132
    %vm5140 = vmor %vm5138, %vm5139
    %v5141 = vsel %vm5140, %v5132, %v5137
    %v5142 = vrsqrt.pop %v5002
    %v5143 = vmul.f32 %v5142, %v5002
    %v5144 = vmul.f32 %v5143, %v5142
    %v5145 = vmul.f32 0.5, %v5144
    %v5146 = vsub.f32 1.5, %v5145
    %v5147 = vmul.f32 %v5142, %v5146
    %vm5148 = vweird.f32 %v5002
    %vm5149 = vweird.f32 %v5142
    %vm5150 = vmor %vm5148, %vm5149
    %v5151 = vsel %vm5150, %v5142, %v5147
    %v5152 = vrsqrt.pop %v5003
    %v5153 = vmul.f32 %v5152, %v5003
    %v5154 = vmul.f32 %v5153, %v5152
    %v5155 = vmul.f32 0.5, %v5154
    %v5156 = vsub.f32 1.5, %v5155
    %v5157 = vmul.f32 %v5152, %v5156
    %vm5158 = vweird.f32 %v5003
    %vm5159 = vweird.f32 %v5152
    %vm5160 = vmor %vm5158, %vm5159
    %v5161 = vsel %vm5160, %v5152, %v5157
    %v5162 = vrsqrt.pop %v5004
    %v5163 = vmul.f32 %v5162, %v5004
    %v5164 = vmul.f32 %v5163, %v5162
    %v5165 = vmul.f32 0.5, %v5164
    %v5166 = vsub.f32 1.5, %v5165
    %v5167 = vmul.f32 %v5162, %v5166
    %vm5168 = vweird.f32 %v5004
    %vm5169 = vweird.f32 %v5162
    %vm5170 = vmor %vm5168, %vm5169
    %v5171 = vsel %vm5170, %v5162, %v5167
    %v5172 = vrsqrt.pop %v5005
    %v5173 = vmul.f32 %v5172, %v5005
    %v5174 = vmul.f32 %v5173, %v5172
    %v5175 = vmul.f32 0.5, %v5174
    %v5176 = vsub.f32 1.5, %v5175
    %v5177 = vmul.f32 %v5172, %v5176
    %vm5178 = vweird.f32 %v5005
    %vm5179 = vweird.f32 %v5172
    %vm5180 = vmor %vm5178, %vm5179
    %v5181 = vsel %vm5180, %v5172, %v5177
    %v5182 = vrsqrt.pop %v5006
    %v5183 = vmul.f32 %v5182, %v5006
    %v5184 = vmul.f32 %v5183, %v5182
    %v5185 = vmul.f32 0.5, %v5184
    %v5186 = vsub.f32 1.5, %v5185
    %v5187 = vmul.f32 %v5182, %v5186
    %vm5188 = vweird.f32 %v5006
    %vm5189 = vweird.f32 %v5182
    %vm5190 = vmor %vm5188, %vm5189
    %v5191 = vsel %vm5190, %v5182, %v5187
    %v5192 = vrsqrt.pop %v5007
    %v5193 = vmul.f32 %v5192, %v5007
    %v5194 = vmul.f32 %v5193, %v5192
    %v5195 = vmul.f32 0.5, %v5194
    %v5196 = vsub.f32 1.5, %v5195
    %v5197 = vmul.f32 %v5192, %v5196
    %vm5198 = vweird.f32 %v5007
    %vm5199 = vweird.f32 %v5192
    %vm5200 = vmor %vm5198, %vm5199
    %v5201 = vsel %vm5200, %v5192, %v5197
    %v5202 = vrsqrt.pop %v5008
    %v5203 = vmul.f32 %v5202, %v5008
    %v5204 = vmul.f32 %v5203, %v5202
    %v5205 = vmul.f32 0.5, %v5204
    %v5206 = vsub.f32 1.5, %v5205
    %v5207 = vmul.f32 %v5202, %v5206
    %vm5208 = vweird.f32 %v5008
    %vm5209 = vweird.f32 %v5202
    %vm5210 = vmor %vm5208, %vm5209
    %v5211 = vsel %vm5210, %v5202, %v5207
    %v5212 = vrsqrt.pop %v5009
    %v5213 = vmul.f32 %v5212, %v5009
    %v5214 = vmul.f32 %v5213, %v5212
    %v5215 = vmul.f32 0.5, %v5214
    %v5216 = vsub.f32 1.5, %v5215
    %v5217 = vmul.f32 %v5212, %v5216
    %vm5218 = vweird.f32 %v5009
    %vm5219 = vweird.f32 %v5212
    %vm5220 = vmor %vm5218, %vm5219
    %v5221 = vsel %vm5220, %v5212, %v5217
    %v5222 = vrsqrt.pop %v5010
    %v5223 = vmul.f32 %v5222, %v5010
    %v5224 = vmul.f32 %v5223, %v5222
    %v5225 = vmul.f32 0.5, %v5224
    %v5226 = vsub.f32 1.5, %v5225
    %v5227 = vmul.f32 %v5222, %v5226
    %vm5228 = vweird.f32 %v5010
    %vm5229 = vweird.f32 %v5222
    %vm5230 = vmor %vm5228, %vm5229
    %v5231 = vsel %vm5230, %v5222, %v5227
    %v5232 = vrsqrt.pop %v5011
    %v5233 = vmul.f32 %v5232, %v5011
    %v5234 = vmul.f32 %v5233, %v5232
    %v5235 = vmul.f32 0.5, %v5234
    %v5236 = vsub.f32 1.5, %v5235
    %v5237 = vmul.f32 %v5232, %v5236
    %vm5238 = vweird.f32 %v5011
    %vm5239 = vweird.f32 %v5232
    %vm5240 = vmor %vm5238, %vm5239
    %v5241 = vsel %vm5240, %v5232, %v5237
    %v5242 = vrsqrt.pop %v5012
    %v5243 = vmul.f32 %v5242, %v5012
    %v5244 = vmul.f32 %v5243, %v5242
    %v5245 = vmul.f32 0.5, %v5244
    %v5246 = vsub.f32 1.5, %v5245
    %v5247 = vmul.f32 %v5242, %v5246
    %vm5248 = vweird.f32 %v5012
    %vm5249 = vweird.f32 %v5242
    %vm5250 = vmor %vm5248, %vm5249
    %v5251 = vsel %vm5250, %v5242, %v5247
    %v5252 = vrsqrt.pop %v5013
    %v5253 = vmul.f32 %v5252, %v5013
    %v5254 = vmul.f32 %v5253, %v5252
    %v5255 = vmul.f32 0.5, %v5254
    %v5256 = vsub.f32 1.5, %v5255
    %v5257 = vmul.f32 %v5252, %v5256
    %vm5258 = vweird.f32 %v5013
    %vm5259 = vweird.f32 %v5252
    %vm5260 = vmor %vm5258, %vm5259
    %v5261 = vsel %vm5260, %v5252, %v5257
    %v5262 = vrsqrt.pop %v5014
    %v5263 = vmul.f32 %v5262, %v5014
    %v5264 = vmul.f32 %v5263, %v5262
    %v5265 = vmul.f32 0.5, %v5264
    %v5266 = vsub.f32 1.5, %v5265
    %v5267 = vmul.f32 %v5262, %v5266
    %vm5268 = vweird.f32 %v5014
    %vm5269 = vweird.f32 %v5262
    %vm5270 = vmor %vm5268, %vm5269
    %v5271 = vsel %vm5270, %v5262, %v5267
    %v5272 = vrsqrt.pop %v5015
    %v5273 = vmul.f32 %v5272, %v5015
    %v5274 = vmul.f32 %v5273, %v5272
    %v5275 = vmul.f32 0.5, %v5274
    %v5276 = vsub.f32 1.5, %v5275
    %v5277 = vmul.f32 %v5272, %v5276
    %vm5278 = vweird.f32 %v5015
    %vm5279 = vweird.f32 %v5272
    %vm5280 = vmor %vm5278, %vm5279
    %v5281 = vsel %vm5280, %v5272, %v5277
    %v5282 = vrsqrt.pop %v5016
    %v5283 = vmul.f32 %v5282, %v5016
    %v5284 = vmul.f32 %v5283, %v5282
    %v5285 = vmul.f32 0.5, %v5284
    %v5286 = vsub.f32 1.5, %v5285
    %v5287 = vmul.f32 %v5282, %v5286
    %vm5288 = vweird.f32 %v5016
    %vm5289 = vweird.f32 %v5282
    %vm5290 = vmor %vm5288, %vm5289
    %v5291 = vsel %vm5290, %v5282, %v5287
    %v5292 = vrsqrt.pop %v5017
    %v5293 = vmul.f32 %v5292, %v5017
    %v5294 = vmul.f32 %v5293, %v5292
    %v5295 = vmul.f32 0.5, %v5294
    %v5296 = vsub.f32 1.5, %v5295
    %v5297 = vmul.f32 %v5292, %v5296
    %vm5298 = vweird.f32 %v5017
    %vm5299 = vweird.f32 %v5292
    %vm5300 = vmor %vm5298, %vm5299
    %v5301 = vsel %vm5300, %v5292, %v5297
    %v5302 = vrsqrt.pop %v5018
    %v5303 = vmul.f32 %v5302, %v5018
    %v5304 = vmul.f32 %v5303, %v5302
    %v5305 = vmul.f32 0.5, %v5304
    %v5306 = vsub.f32 1.5, %v5305
    %v5307 = vmul.f32 %v5302, %v5306
    %vm5308 = vweird.f32 %v5018
    %vm5309 = vweird.f32 %v5302
    %vm5310 = vmor %vm5308, %vm5309
    %v5311 = vsel %vm5310, %v5302, %v5307
    %v5312 = vrsqrt.pop %v5019
    %v5313 = vmul.f32 %v5312, %v5019
    %v5314 = vmul.f32 %v5313, %v5312
    %v5315 = vmul.f32 0.5, %v5314
    %v5316 = vsub.f32 1.5, %v5315
    %v5317 = vmul.f32 %v5312, %v5316
    %vm5318 = vweird.f32 %v5019
    %vm5319 = vweird.f32 %v5312
    %vm5320 = vmor %vm5318, %vm5319
    %v5321 = vsel %vm5320, %v5312, %v5317
    %v5322 = vrsqrt.pop %v5020
    %v5323 = vmul.f32 %v5322, %v5020
    %v5324 = vmul.f32 %v5323, %v5322
    %v5325 = vmul.f32 0.5, %v5324
    %v5326 = vsub.f32 1.5, %v5325
    %v5327 = vmul.f32 %v5322, %v5326
    %vm5328 = vweird.f32 %v5020
    %vm5329 = vweird.f32 %v5322
    %vm5330 = vmor %vm5328, %vm5329
    %v5331 = vsel %vm5330, %v5322, %v5327
    %v5332 = vrsqrt.pop %v5021
    %v5333 = vmul.f32 %v5332, %v5021
    %v5334 = vmul.f32 %v5333, %v5332
    %v5335 = vmul.f32 0.5, %v5334
    %v5336 = vsub.f32 1.5, %v5335
    %v5337 = vmul.f32 %v5332, %v5336
    %vm5338 = vweird.f32 %v5021
    %vm5339 = vweird.f32 %v5332
    %vm5340 = vmor %vm5338, %vm5339
    %v5341 = vsel %vm5340, %v5332, %v5337
    %v5342 = vmul.f32 %v4894, %v5031
    %v5343 = vmul.f32 %v4895, %v5041
    %v5344 = vmul.f32 %v4896, %v5051
    %v5345 = vmul.f32 %v4897, %v5061
    %v5346 = vmul.f32 %v4898, %v5071
    %v5347 = vmul.f32 %v4899, %v5081
    %v5348 = vmul.f32 %v4900, %v5091
    %v5349 = vmul.f32 %v4901, %v5101
    %v5350 = vmul.f32 %v4902, %v5111
    %v5351 = vmul.f32 %v4903, %v5121
    %v5352 = vmul.f32 %v4904, %v5131
    %v5353 = vmul.f32 %v4905, %v5141
    %v5354 = vmul.f32 %v4906, %v5151
    %v5355 = vmul.f32 %v4907, %v5161
    %v5356 = vmul.f32 %v4908, %v5171
    %v5357 = vmul.f32 %v4909, %v5181
    %v5358 = vmul.f32 %v4910, %v5191
    %v5359 = vmul.f32 %v4911, %v5201
    %v5360 = vmul.f32 %v4912, %v5211
    %v5361 = vmul.f32 %v4913, %v5221
    %v5362 = vmul.f32 %v4914, %v5231
    %v5363 = vmul.f32 %v4915, %v5241
    %v5364 = vmul.f32 %v4916, %v5251
    %v5365 = vmul.f32 %v4917, %v5261
    %v5366 = vmul.f32 %v4918, %v5271
    %v5367 = vmul.f32 %v4919, %v5281
    %v5368 = vmul.f32 %v4920, %v5291
    %v5369 = vmul.f32 %v4921, %v5301
    %v5370 = vmul.f32 %v4922, %v5311
    %v5371 = vmul.f32 %v4923, %v5321
    %v5372 = vmul.f32 %v4924, %v5331
    %v5373 = vmul.f32 %v4925, %v5341
    %v5374 = vmul.f32 %v5342, %v3803
    %v5375 = vmul.f32 %v5343, %v3803
    %v5376 = vmul.f32 %v5344, %v3803
    %v5377 = vmul.f32 %v5345, %v3803
    %v5378 = vmul.f32 %v5346, %v3803
    %v5379 = vmul.f32 %v5347, %v3803
    %v5380 = vmul.f32 %v5348, %v3803
    %v5381 = vmul.f32 %v5349, %v3803
    %v5382 = vmul.f32 %v5350, %v3803
    %v5383 = vmul.f32 %v5351, %v3803
    %v5384 = vmul.f32 %v5352, %v3803
    %v5385 = vmul.f32 %v5353, %v3803
    %v5386 = vmul.f32 %v5354, %v3803
    %v5387 = vmul.f32 %v5355, %v3803
    %v5388 = vmul.f32 %v5356, %v3803
    %v5389 = vmul.f32 %v5357, %v3803
    %v5390 = vmul.f32 %v5358, %v3803
    %v5391 = vmul.f32 %v5359, %v3803
    %v5392 = vmul.f32 %v5360, %v3803
    %v5393 = vmul.f32 %v5361, %v3803
    %v5394 = vmul.f32 %v5362, %v3803
    %v5395 = vmul.f32 %v5363, %v3803
    %v5396 = vmul.f32 %v5364, %v3803
    %v5397 = vmul.f32 %v5365, %v3803
    %v5398 = vmul.f32 %v5366, %v3803
    %v5399 = vmul.f32 %v5367, %v3803
    %v5400 = vmul.f32 %v5368, %v3803
    %v5401 = vmul.f32 %v5369, %v3803
    %v5402 = vmul.f32 %v5370, %v3803
    %v5403 = vmul.f32 %v5371, %v3803
    %v5404 = vmul.f32 %v5372, %v3803
    %v5405 = vmul.f32 %v5373, %v3803
    %v5406 = vadd.f32 %v5374, %v3838
    %v5407 = vadd.f32 %v5375, %v3838
    %v5408 = vadd.f32 %v5376, %v3838
    %v5409 = vadd.f32 %v5377, %v3838
    %v5410 = vadd.f32 %v5378, %v3838
    %v5411 = vadd.f32 %v5379, %v3838
    %v5412 = vadd.f32 %v5380, %v3838
    %v5413 = vadd.f32 %v5381, %v3838
    %v5414 = vadd.f32 %v5382, %v3838
    %v5415 = vadd.f32 %v5383, %v3838
    %v5416 = vadd.f32 %v5384, %v3838
    %v5417 = vadd.f32 %v5385, %v3838
    %v5418 = vadd.f32 %v5386, %v3838
    %v5419 = vadd.f32 %v5387, %v3838
    %v5420 = vadd.f32 %v5388, %v3838
    %v5421 = vadd.f32 %v5389, %v3838
    %v5422 = vadd.f32 %v5390, %v3838
    %v5423 = vadd.f32 %v5391, %v3838
    %v5424 = vadd.f32 %v5392, %v3838
    %v5425 = vadd.f32 %v5393, %v3838
    %v5426 = vadd.f32 %v5394, %v3838
    %v5427 = vadd.f32 %v5395, %v3838
    %v5428 = vadd.f32 %v5396, %v3838
    %v5429 = vadd.f32 %v5397, %v3838
    %v5430 = vadd.f32 %v5398, %v3838
    %v5431 = vadd.f32 %v5399, %v3838
    %v5432 = vadd.f32 %v5400, %v3838
    %v5433 = vadd.f32 %v5401, %v3838
    %v5434 = vadd.f32 %v5402, %v3838
    %v5435 = vadd.f32 %v5403, %v3838
    %v5436 = vadd.f32 %v5404, %v3838
    %v5437 = vadd.f32 %v5405, %v3838
    %s5438 = scalar_lea.vmem %s6, 1
    %v5439 = vld [vmem:[%s5438] sm:$0x1]
    %s5440 = scalar_lea.vmem %s7, 1
    %v5441 = vld [vmem:[%s5440] sm:$0x1]
    %s5442 = scalar_lea.vmem [#allocation7], 192
    %v5443 = vld [vmem:[%s5442] sm:$0xff]
    %v5444 = vld [vmem:[%s5442 + $0x8] sm:$0xf]
    %v5445 = vld [vmem:[%s5442 + $0xc] sm:$0xff]
    %v5446 = vld [vmem:[%s5442 + $0x14] sm:$0xf]
    %v5447 = vld [vmem:[%s5442 + $0x18] sm:$0xff]
    %v5448 = vld [vmem:[%s5442 + $0x20] sm:$0xf]
    %v5449 = vld [vmem:[%s5442 + $0x24] sm:$0xff]
    %v5450 = vld [vmem:[%s5442 + $0x2c] sm:$0xf]
    %v5451 = vld [vmem:[%s5442 + $0x30] sm:$0xff]
    %v5452 = vld [vmem:[%s5442 + $0x38] sm:$0xf]
    %v5453 = vld [vmem:[%s5442 + $0x3c] sm:$0xff]
    %v5454 = vld [vmem:[%s5442 + $0x44] sm:$0xf]
    %v5455 = vld [vmem:[%s5442 + $0x48] sm:$0xff]
    %v5456 = vld [vmem:[%s5442 + $0x50] sm:$0xf]
    %v5457 = vld [vmem:[%s5442 + $0x54] sm:$0xff]
    %v5458 = vld [vmem:[%s5442 + $0x5c] sm:$0xf]
    %v5459 = vld [vmem:[%s5442 + $0x60] sm:$0xff]
    %v5460 = vld [vmem:[%s5442 + $0x68] sm:$0xf]
    %v5461 = vld [vmem:[%s5442 + $0x6c] sm:$0xff]
    %v5462 = vld [vmem:[%s5442 + $0x74] sm:$0xf]
    %v5463 = vld [vmem:[%s5442 + $0x78] sm:$0xff]
    %v5464 = vld [vmem:[%s5442 + $0x80] sm:$0xf]
    %v5465 = vld [vmem:[%s5442 + $0x84] sm:$0xff]
    %v5466 = vld [vmem:[%s5442 + $0x8c] sm:$0xf]
    %v5467 = vld [vmem:[%s5442 + $0x90] sm:$0xff]
    %v5468 = vld [vmem:[%s5442 + $0x98] sm:$0xf]
    %v5469 = vld [vmem:[%s5442 + $0x9c] sm:$0xff]
    %v5470 = vld [vmem:[%s5442 + $0xa4] sm:$0xf]
    %v5471 = vld [vmem:[%s5442 + $0xa8] sm:$0xff]
    %v5472 = vld [vmem:[%s5442 + $0xb0] sm:$0xf]
    %v5473 = vld [vmem:[%s5442 + $0xb4] sm:$0xff]
    %v5474 = vld [vmem:[%s5442 + $0xbc] sm:$0xf]
    %s5475 = scalar_lea.vmem [#allocation8], 3
    %v5476 = vld [vmem:[%s5475] sm:$0x7]
    %v5477 = vpack.c.bf16 %v5407, %v5406
    %v5478 = vpack.c.bf16 %v5409, %v5408
    %v5479 = vpack.c.bf16 %v5411, %v5410
    %v5480 = vpack.c.bf16 %v5413, %v5412
    %v5481 = vpack.c.bf16 %v5415, %v5414
    %v5482 = vpack.c.bf16 %v5417, %v5416
    %v5483 = vpack.c.bf16 %v5419, %v5418
    %v5484 = vpack.c.bf16 %v5421, %v5420
    %v5485 = vpack.c.bf16 %v5423, %v5422
    %v5486 = vpack.c.bf16 %v5425, %v5424
    %v5487 = vpack.c.bf16 %v5427, %v5426
    %v5488 = vpack.c.bf16 %v5429, %v5428
    %v5489 = vpack.c.bf16 %v5431, %v5430
    %v5490 = vpack.c.bf16 %v5433, %v5432
    %v5491 = vpack.c.bf16 %v5435, %v5434
    %v5492 = vpack.c.bf16 %v5437, %v5436
    %v5525 = vunpack.c.l.b16 %v5443
    %v5526 = vunpack.c.h.b16 %v5443
    %v5527 = vunpack.c.l.b16 %v5444
    %v5528 = vunpack.c.l.b16 %v5445
    %v5529 = vunpack.c.h.b16 %v5445
    %v5530 = vunpack.c.l.b16 %v5446
    %v5531 = vunpack.c.l.b16 %v5447
    %v5532 = vunpack.c.h.b16 %v5447
    %v5533 = vunpack.c.l.b16 %v5448
    %v5534 = vunpack.c.l.b16 %v5449
    %v5535 = vunpack.c.h.b16 %v5449
    %v5536 = vunpack.c.l.b16 %v5450
    %v5537 = vunpack.c.l.b16 %v5451
    %v5538 = vunpack.c.h.b16 %v5451
    %v5539 = vunpack.c.l.b16 %v5452
    %v5540 = vunpack.c.l.b16 %v5453
    %v5541 = vunpack.c.h.b16 %v5453
    %v5542 = vunpack.c.l.b16 %v5454
    %v5543 = vunpack.c.l.b16 %v5455
    %v5544 = vunpack.c.h.b16 %v5455
    %v5545 = vunpack.c.l.b16 %v5456
    %v5546 = vunpack.c.l.b16 %v5457
    %v5547 = vunpack.c.h.b16 %v5457
    %v5548 = vunpack.c.l.b16 %v5458
    %v5549 = vunpack.c.l.b16 %v5459
    %v5550 = vunpack.c.h.b16 %v5459
    %v5551 = vunpack.c.l.b16 %v5460
    %v5552 = vunpack.c.l.b16 %v5461
    %v5553 = vunpack.c.h.b16 %v5461
    %v5554 = vunpack.c.l.b16 %v5462
    %v5555 = vunpack.c.l.b16 %v5463
    %v5556 = vunpack.c.h.b16 %v5463
    %v5557 = vunpack.c.l.b16 %v5464
    %v5558 = vunpack.c.l.b16 %v5465
    %v5559 = vunpack.c.h.b16 %v5465
    %v5560 = vunpack.c.l.b16 %v5466
    %v5561 = vunpack.c.l.b16 %v5467
    %v5562 = vunpack.c.h.b16 %v5467
    %v5563 = vunpack.c.l.b16 %v5468
    %v5564 = vunpack.c.l.b16 %v5469
    %v5565 = vunpack.c.h.b16 %v5469
    %v5566 = vunpack.c.l.b16 %v5470
    %v5567 = vunpack.c.l.b16 %v5471
    %v5568 = vunpack.c.h.b16 %v5471
    %v5569 = vunpack.c.l.b16 %v5472
    %v5570 = vunpack.c.l.b16 %v5473
    %v5571 = vunpack.c.h.b16 %v5473
    %v5572 = vunpack.c.l.b16 %v5474
    %v5573 = vpack.c.b16 %v5528, %v5525
    %v5574 = vpack.c.b16 %v5529, %v5526
    %v5575 = vpack.c.b16 %v5530, %v5527
    %v5576 = vpack.c.b16 %v5534, %v5531
    %v5577 = vpack.c.b16 %v5535, %v5532
    %v5578 = vpack.c.b16 %v5536, %v5533
    %v5579 = vpack.c.b16 %v5540, %v5537
    %v5580 = vpack.c.b16 %v5541, %v5538
    %v5581 = vpack.c.b16 %v5542, %v5539
    %v5582 = vpack.c.b16 %v5546, %v5543
    %v5583 = vpack.c.b16 %v5547, %v5544
    %v5584 = vpack.c.b16 %v5548, %v5545
    %v5585 = vpack.c.b16 %v5552, %v5549
    %v5586 = vpack.c.b16 %v5553, %v5550
    %v5587 = vpack.c.b16 %v5554, %v5551
    %v5588 = vpack.c.b16 %v5558, %v5555
    %v5589 = vpack.c.b16 %v5559, %v5556
    %v5590 = vpack.c.b16 %v5560, %v5557
    %v5591 = vpack.c.b16 %v5564, %v5561
    %v5592 = vpack.c.b16 %v5565, %v5562
    %v5593 = vpack.c.b16 %v5566, %v5563
    %v5594 = vpack.c.b16 %v5570, %v5567
    %v5595 = vpack.c.b16 %v5571, %v5568
    %v5596 = vpack.c.b16 %v5572, %v5569
    %5621 = vmatpush.bf16.msra.mxu0 %v5594
    %5622 = vmatpush.bf16.msra.mxu0 %v5591
    %5623 = vmatpush.bf16.msra.mxu0 %v5588
    %5624 = vmatpush.bf16.msra.mxu0 %v5585
    %5625 = vmatpush.bf16.msra.mxu0 %v5582
    %5626 = vmatpush.bf16.msra.mxu0 %v5579
    %5627 = vmatpush.bf16.msra.mxu0 %v5576
    %5628 = vmatpush.bf16.msra.mxu0 %v5573
    %5629 = vmatmul.bf16.gmra.mxu0 %v5477
    %v5630 = vpop.f32.mrf.mxu0
    %v5631 = vadd.f32 0.0, %v5630
    %v5632 = vpop.f32.mrf.mxu0
    %v5633 = vadd.f32 0.0, %v5632
    %5634 = vmatmul.bf16.gmra.mxu0 %v5478
    %v5635 = vpop.f32.mrf.mxu0
    %v5636 = vadd.f32 0.0, %v5635
    %v5637 = vpop.f32.mrf.mxu0
    %v5638 = vadd.f32 0.0, %v5637
    %5639 = vmatmul.bf16.gmra.mxu0 %v5479
    %v5640 = vpop.f32.mrf.mxu0
    %v5641 = vadd.f32 0.0, %v5640
    %v5642 = vpop.f32.mrf.mxu0
    %v5643 = vadd.f32 0.0, %v5642
    %5644 = vmatmul.bf16.gmra.mxu0 %v5480
    %v5645 = vpop.f32.mrf.mxu0
    %v5646 = vadd.f32 0.0, %v5645
    %v5647 = vpop.f32.mrf.mxu0
    %v5648 = vadd.f32 0.0, %v5647
    %5649 = vmatmul.bf16.gmra.mxu0 %v5481
    %v5650 = vpop.f32.mrf.mxu0
    %v5651 = vadd.f32 0.0, %v5650
    %v5652 = vpop.f32.mrf.mxu0
    %v5653 = vadd.f32 0.0, %v5652
    %5654 = vmatmul.bf16.gmra.mxu0 %v5482
    %v5655 = vpop.f32.mrf.mxu0
    %v5656 = vadd.f32 0.0, %v5655
    %v5657 = vpop.f32.mrf.mxu0
    %v5658 = vadd.f32 0.0, %v5657
    %5659 = vmatmul.bf16.gmra.mxu0 %v5483
    %v5660 = vpop.f32.mrf.mxu0
    %v5661 = vadd.f32 0.0, %v5660
    %v5662 = vpop.f32.mrf.mxu0
    %v5663 = vadd.f32 0.0, %v5662
    %5664 = vmatmul.bf16.gmra.mxu0 %v5484
    %v5665 = vpop.f32.mrf.mxu0
    %v5666 = vadd.f32 0.0, %v5665
    %v5667 = vpop.f32.mrf.mxu0
    %v5668 = vadd.f32 0.0, %v5667
    %5669 = vmatmul.bf16.gmra.mxu0 %v5485
    %v5670 = vpop.f32.mrf.mxu0
    %v5671 = vadd.f32 0.0, %v5670
    %v5672 = vpop.f32.mrf.mxu0
    %v5673 = vadd.f32 0.0, %v5672
    %5674 = vmatmul.bf16.gmra.mxu0 %v5486
    %v5675 = vpop.f32.mrf.mxu0
    %v5676 = vadd.f32 0.0, %v5675
    %v5677 = vpop.f32.mrf.mxu0
    %v5678 = vadd.f32 0.0, %v5677
    %5679 = vmatmul.bf16.gmra.mxu0 %v5487
    %v5680 = vpop.f32.mrf.mxu0
    %v5681 = vadd.f32 0.0, %v5680
    %v5682 = vpop.f32.mrf.mxu0
    %v5683 = vadd.f32 0.0, %v5682
    %5684 = vmatmul.bf16.gmra.mxu0 %v5488
    %v5685 = vpop.f32.mrf.mxu0
    %v5686 = vadd.f32 0.0, %v5685
    %v5687 = vpop.f32.mrf.mxu0
    %v5688 = vadd.f32 0.0, %v5687
    %5689 = vmatmul.bf16.gmra.mxu0 %v5489
    %v5690 = vpop.f32.mrf.mxu0
    %v5691 = vadd.f32 0.0, %v5690
    %v5692 = vpop.f32.mrf.mxu0
    %v5693 = vadd.f32 0.0, %v5692
    %5694 = vmatmul.bf16.gmra.mxu0 %v5490
    %v5695 = vpop.f32.mrf.mxu0
    %v5696 = vadd.f32 0.0, %v5695
    %v5697 = vpop.f32.mrf.mxu0
    %v5698 = vadd.f32 0.0, %v5697
    %5699 = vmatmul.bf16.gmra.mxu0 %v5491
    %v5700 = vpop.f32.mrf.mxu0
    %v5701 = vadd.f32 0.0, %v5700
    %v5702 = vpop.f32.mrf.mxu0
    %v5703 = vadd.f32 0.0, %v5702
    %5704 = vmatmul.bf16.gmra.mxu0 %v5492
    %v5705 = vpop.f32.mrf.mxu0
    %v5706 = vadd.f32 0.0, %v5705
    %v5707 = vpop.f32.mrf.mxu0
    %v5708 = vadd.f32 0.0, %v5707
    %5709 = vdwg.mxu0
    %5710 = vmatpush.bf16.msra.mxu0 %v5595
    %5711 = vmatpush.bf16.msra.mxu0 %v5592
    %5712 = vmatpush.bf16.msra.mxu0 %v5589
    %5713 = vmatpush.bf16.msra.mxu0 %v5586
    %5714 = vmatpush.bf16.msra.mxu0 %v5583
    %5715 = vmatpush.bf16.msra.mxu0 %v5580
    %5716 = vmatpush.bf16.msra.mxu0 %v5577
    %5717 = vmatpush.bf16.msra.mxu0 %v5574
    %5718 = vmatmul.bf16.gmra.mxu0 %v5477
    %v5719 = vpop.f32.mrf.mxu0
    %v5720 = vadd.f32 0.0, %v5719
    %v5721 = vpop.f32.mrf.mxu0
    %v5722 = vadd.f32 0.0, %v5721
    %5723 = vmatmul.bf16.gmra.mxu0 %v5478
    %v5724 = vpop.f32.mrf.mxu0
    %v5725 = vadd.f32 0.0, %v5724
    %v5726 = vpop.f32.mrf.mxu0
    %v5727 = vadd.f32 0.0, %v5726
    %5728 = vmatmul.bf16.gmra.mxu0 %v5479
    %v5729 = vpop.f32.mrf.mxu0
    %v5730 = vadd.f32 0.0, %v5729
    %v5731 = vpop.f32.mrf.mxu0
    %v5732 = vadd.f32 0.0, %v5731
    %5733 = vmatmul.bf16.gmra.mxu0 %v5480
    %v5734 = vpop.f32.mrf.mxu0
    %v5735 = vadd.f32 0.0, %v5734
    %v5736 = vpop.f32.mrf.mxu0
    %v5737 = vadd.f32 0.0, %v5736
    %5738 = vmatmul.bf16.gmra.mxu0 %v5481
    %v5739 = vpop.f32.mrf.mxu0
    %v5740 = vadd.f32 0.0, %v5739
    %v5741 = vpop.f32.mrf.mxu0
    %v5742 = vadd.f32 0.0, %v5741
    %5743 = vmatmul.bf16.gmra.mxu0 %v5482
    %v5744 = vpop.f32.mrf.mxu0
    %v5745 = vadd.f32 0.0, %v5744
    %v5746 = vpop.f32.mrf.mxu0
    %v5747 = vadd.f32 0.0, %v5746
    %5748 = vmatmul.bf16.gmra.mxu0 %v5483
    %v5749 = vpop.f32.mrf.mxu0
    %v5750 = vadd.f32 0.0, %v5749
    %v5751 = vpop.f32.mrf.mxu0
    %v5752 = vadd.f32 0.0, %v5751
    %5753 = vmatmul.bf16.gmra.mxu0 %v5484
    %v5754 = vpop.f32.mrf.mxu0
    %v5755 = vadd.f32 0.0, %v5754
    %v5756 = vpop.f32.mrf.mxu0
    %v5757 = vadd.f32 0.0, %v5756
    %5758 = vmatmul.bf16.gmra.mxu0 %v5485
    %v5759 = vpop.f32.mrf.mxu0
    %v5760 = vadd.f32 0.0, %v5759
    %v5761 = vpop.f32.mrf.mxu0
    %v5762 = vadd.f32 0.0, %v5761
    %5763 = vmatmul.bf16.gmra.mxu0 %v5486
    %v5764 = vpop.f32.mrf.mxu0
    %v5765 = vadd.f32 0.0, %v5764
    %v5766 = vpop.f32.mrf.mxu0
    %v5767 = vadd.f32 0.0, %v5766
    %5768 = vmatmul.bf16.gmra.mxu0 %v5487
    %v5769 = vpop.f32.mrf.mxu0
    %v5770 = vadd.f32 0.0, %v5769
    %v5771 = vpop.f32.mrf.mxu0
    %v5772 = vadd.f32 0.0, %v5771
    %5773 = vmatmul.bf16.gmra.mxu0 %v5488
    %v5774 = vpop.f32.mrf.mxu0
    %v5775 = vadd.f32 0.0, %v5774
    %v5776 = vpop.f32.mrf.mxu0
    %v5777 = vadd.f32 0.0, %v5776
    %5778 = vmatmul.bf16.gmra.mxu0 %v5489
    %v5779 = vpop.f32.mrf.mxu0
    %v5780 = vadd.f32 0.0, %v5779
    %v5781 = vpop.f32.mrf.mxu0
    %v5782 = vadd.f32 0.0, %v5781
    %5783 = vmatmul.bf16.gmra.mxu0 %v5490
    %v5784 = vpop.f32.mrf.mxu0
    %v5785 = vadd.f32 0.0, %v5784
    %v5786 = vpop.f32.mrf.mxu0
    %v5787 = vadd.f32 0.0, %v5786
    %5788 = vmatmul.bf16.gmra.mxu0 %v5491
    %v5789 = vpop.f32.mrf.mxu0
    %v5790 = vadd.f32 0.0, %v5789
    %v5791 = vpop.f32.mrf.mxu0
    %v5792 = vadd.f32 0.0, %v5791
    %5793 = vmatmul.bf16.gmra.mxu0 %v5492
    %v5794 = vpop.f32.mrf.mxu0
    %v5795 = vadd.f32 0.0, %v5794
    %v5796 = vpop.f32.mrf.mxu0
    %v5797 = vadd.f32 0.0, %v5796
    %5798 = vdwg.mxu0
    %5799 = vmatpush.bf16.msra.mxu0 %v5596
    %5800 = vmatpush.bf16.msra.mxu0 %v5593
    %5801 = vmatpush.bf16.msra.mxu0 %v5590
    %5802 = vmatpush.bf16.msra.mxu0 %v5587
    %5803 = vmatpush.bf16.msra.mxu0 %v5584
    %5804 = vmatpush.bf16.msra.mxu0 %v5581
    %5805 = vmatpush.bf16.msra.mxu0 %v5578
    %5806 = vmatpush.bf16.msra.mxu0 %v5575
    %5807 = vmatmul.bf16.gmra.mxu0 %v5477
    %v5808 = vpop.f32.mrf.mxu0
    %v5809 = vadd.f32 0.0, %v5808
    %v5810 = vpop.f32.mrf.mxu0
    %v5811 = vadd.f32 0.0, %v5810
    %5812 = vmatmul.bf16.gmra.mxu0 %v5478
    %v5813 = vpop.f32.mrf.mxu0
    %v5814 = vadd.f32 0.0, %v5813
    %v5815 = vpop.f32.mrf.mxu0
    %v5816 = vadd.f32 0.0, %v5815
    %5817 = vmatmul.bf16.gmra.mxu0 %v5479
    %v5818 = vpop.f32.mrf.mxu0
    %v5819 = vadd.f32 0.0, %v5818
    %v5820 = vpop.f32.mrf.mxu0
    %v5821 = vadd.f32 0.0, %v5820
    %5822 = vmatmul.bf16.gmra.mxu0 %v5480
    %v5823 = vpop.f32.mrf.mxu0
    %v5824 = vadd.f32 0.0, %v5823
    %v5825 = vpop.f32.mrf.mxu0
    %v5826 = vadd.f32 0.0, %v5825
    %5827 = vmatmul.bf16.gmra.mxu0 %v5481
    %v5828 = vpop.f32.mrf.mxu0
    %v5829 = vadd.f32 0.0, %v5828
    %v5830 = vpop.f32.mrf.mxu0
    %v5831 = vadd.f32 0.0, %v5830
    %5832 = vmatmul.bf16.gmra.mxu0 %v5482
    %v5833 = vpop.f32.mrf.mxu0
    %v5834 = vadd.f32 0.0, %v5833
    %v5835 = vpop.f32.mrf.mxu0
    %v5836 = vadd.f32 0.0, %v5835
    %5837 = vmatmul.bf16.gmra.mxu0 %v5483
    %v5838 = vpop.f32.mrf.mxu0
    %v5839 = vadd.f32 0.0, %v5838
    %v5840 = vpop.f32.mrf.mxu0
    %v5841 = vadd.f32 0.0, %v5840
    %5842 = vmatmul.bf16.gmra.mxu0 %v5484
    %v5843 = vpop.f32.mrf.mxu0
    %v5844 = vadd.f32 0.0, %v5843
    %v5845 = vpop.f32.mrf.mxu0
    %v5846 = vadd.f32 0.0, %v5845
    %5847 = vmatmul.bf16.gmra.mxu0 %v5485
    %v5848 = vpop.f32.mrf.mxu0
    %v5849 = vadd.f32 0.0, %v5848
    %v5850 = vpop.f32.mrf.mxu0
    %v5851 = vadd.f32 0.0, %v5850
    %5852 = vmatmul.bf16.gmra.mxu0 %v5486
    %v5853 = vpop.f32.mrf.mxu0
    %v5854 = vadd.f32 0.0, %v5853
    %v5855 = vpop.f32.mrf.mxu0
    %v5856 = vadd.f32 0.0, %v5855
    %5857 = vmatmul.bf16.gmra.mxu0 %v5487
    %v5858 = vpop.f32.mrf.mxu0
    %v5859 = vadd.f32 0.0, %v5858
    %v5860 = vpop.f32.mrf.mxu0
    %v5861 = vadd.f32 0.0, %v5860
    %5862 = vmatmul.bf16.gmra.mxu0 %v5488
    %v5863 = vpop.f32.mrf.mxu0
    %v5864 = vadd.f32 0.0, %v5863
    %v5865 = vpop.f32.mrf.mxu0
    %v5866 = vadd.f32 0.0, %v5865
    %5867 = vmatmul.bf16.gmra.mxu0 %v5489
    %v5868 = vpop.f32.mrf.mxu0
    %v5869 = vadd.f32 0.0, %v5868
    %v5870 = vpop.f32.mrf.mxu0
    %v5871 = vadd.f32 0.0, %v5870
    %5872 = vmatmul.bf16.gmra.mxu0 %v5490
    %v5873 = vpop.f32.mrf.mxu0
    %v5874 = vadd.f32 0.0, %v5873
    %v5875 = vpop.f32.mrf.mxu0
    %v5876 = vadd.f32 0.0, %v5875
    %5877 = vmatmul.bf16.gmra.mxu0 %v5491
    %v5878 = vpop.f32.mrf.mxu0
    %v5879 = vadd.f32 0.0, %v5878
    %v5880 = vpop.f32.mrf.mxu0
    %v5881 = vadd.f32 0.0, %v5880
    %5882 = vmatmul.bf16.gmra.mxu0 %v5492
    %v5883 = vpop.f32.mrf.mxu0
    %v5884 = vadd.f32 0.0, %v5883
    %v5885 = vpop.f32.mrf.mxu0
    %v5886 = vadd.f32 0.0, %v5885
    %5887 = vdwg.mxu0
    %v5888 = vpack.c.bf16 %v5633, %v5631
    %v5889 = vpack.c.bf16 %v5722, %v5720
    %v5890 = vpack.c.bf16 %v5811, %v5809
    %v5891 = vpack.c.bf16 %v5638, %v5636
    %v5892 = vpack.c.bf16 %v5727, %v5725
    %v5893 = vpack.c.bf16 %v5816, %v5814
    %v5894 = vpack.c.bf16 %v5643, %v5641
    %v5895 = vpack.c.bf16 %v5732, %v5730
    %v5896 = vpack.c.bf16 %v5821, %v5819
    %v5897 = vpack.c.bf16 %v5648, %v5646
    %v5898 = vpack.c.bf16 %v5737, %v5735
    %v5899 = vpack.c.bf16 %v5826, %v5824
    %v5900 = vpack.c.bf16 %v5653, %v5651
    %v5901 = vpack.c.bf16 %v5742, %v5740
    %v5902 = vpack.c.bf16 %v5831, %v5829
    %v5903 = vpack.c.bf16 %v5658, %v5656
    %v5904 = vpack.c.bf16 %v5747, %v5745
    %v5905 = vpack.c.bf16 %v5836, %v5834
    %v5906 = vpack.c.bf16 %v5663, %v5661
    %v5907 = vpack.c.bf16 %v5752, %v5750
    %v5908 = vpack.c.bf16 %v5841, %v5839
    %v5909 = vpack.c.bf16 %v5668, %v5666
    %v5910 = vpack.c.bf16 %v5757, %v5755
    %v5911 = vpack.c.bf16 %v5846, %v5844
    %v5912 = vpack.c.bf16 %v5673, %v5671
    %v5913 = vpack.c.bf16 %v5762, %v5760
    %v5914 = vpack.c.bf16 %v5851, %v5849
    %v5915 = vpack.c.bf16 %v5678, %v5676
    %v5916 = vpack.c.bf16 %v5767, %v5765
    %v5917 = vpack.c.bf16 %v5856, %v5854
    %v5918 = vpack.c.bf16 %v5683, %v5681
    %v5919 = vpack.c.bf16 %v5772, %v5770
    %v5920 = vpack.c.bf16 %v5861, %v5859
    %v5921 = vpack.c.bf16 %v5688, %v5686
    %v5922 = vpack.c.bf16 %v5777, %v5775
    %v5923 = vpack.c.bf16 %v5866, %v5864
    %v5924 = vpack.c.bf16 %v5693, %v5691
    %v5925 = vpack.c.bf16 %v5782, %v5780
    %v5926 = vpack.c.bf16 %v5871, %v5869
    %v5927 = vpack.c.bf16 %v5698, %v5696
    %v5928 = vpack.c.bf16 %v5787, %v5785
    %v5929 = vpack.c.bf16 %v5876, %v5874
    %v5930 = vpack.c.bf16 %v5703, %v5701
    %v5931 = vpack.c.bf16 %v5792, %v5790
    %v5932 = vpack.c.bf16 %v5881, %v5879
    %v5933 = vpack.c.bf16 %v5708, %v5706
    %v5934 = vpack.c.bf16 %v5797, %v5795
    %v5935 = vpack.c.bf16 %v5886, %v5884
    %v5937 = vperm.slane %v5476, 0
    %v5938 = vperm.slane %v5476, 1
    %v5939 = vperm.slane %v5476, 2
    %5943 = vmatpush.bf16.msra.mxu0 %v5909
    %5944 = vmatpush.bf16.msra.mxu0 %v5906
    %5945 = vmatpush.bf16.msra.mxu0 %v5903
    %5946 = vmatpush.bf16.msra.mxu0 %v5900
    %5947 = vmatpush.bf16.msra.mxu0 %v5897
    %5948 = vmatpush.bf16.msra.mxu0 %v5894
    %5949 = vmatpush.bf16.msra.mxu0 %v5891
    %5950 = vmatpush.bf16.msra.mxu0 %v5888
    %5951 = vmatmul.bf16.gmra.mxu0 %v865
    %v5952 = vpop.f32.mrf.mxu0
    %v5953 = vadd.f32 %v5937, %v5952
    %v5954 = vpop.f32.mrf.mxu0
    %v5955 = vadd.f32 %v5937, %v5954
    %5956 = vmatmul.bf16.gmra.mxu0 %v867
    %v5957 = vpop.f32.mrf.mxu0
    %v5958 = vadd.f32 %v5937, %v5957
    %v5959 = vpop.f32.mrf.mxu0
    %v5960 = vadd.f32 %v5937, %v5959
    %5961 = vmatmul.bf16.gmra.mxu0 %v869
    %v5962 = vpop.f32.mrf.mxu0
    %v5963 = vadd.f32 %v5937, %v5962
    %v5964 = vpop.f32.mrf.mxu0
    %v5965 = vadd.f32 %v5937, %v5964
    %5966 = vmatmul.bf16.gmra.mxu0 %v871
    %v5967 = vpop.f32.mrf.mxu0
    %v5968 = vadd.f32 %v5937, %v5967
    %v5969 = vpop.f32.mrf.mxu0
    %v5970 = vadd.f32 %v5937, %v5969
    %5971 = vmatmul.bf16.gmra.mxu0 %v873
    %v5972 = vpop.f32.mrf.mxu0
    %v5973 = vadd.f32 %v5937, %v5972
    %v5974 = vpop.f32.mrf.mxu0
    %v5975 = vadd.f32 %v5937, %v5974
    %5976 = vmatmul.bf16.gmra.mxu0 %v875
    %v5977 = vpop.f32.mrf.mxu0
    %v5978 = vadd.f32 %v5937, %v5977
    %v5979 = vpop.f32.mrf.mxu0
    %v5980 = vadd.f32 %v5937, %v5979
    %5981 = vmatmul.bf16.gmra.mxu0 %v877
    %v5982 = vpop.f32.mrf.mxu0
    %v5983 = vadd.f32 %v5937, %v5982
    %v5984 = vpop.f32.mrf.mxu0
    %v5985 = vadd.f32 %v5937, %v5984
    %5986 = vmatmul.bf16.gmra.mxu0 %v879
    %v5987 = vpop.f32.mrf.mxu0
    %v5988 = vadd.f32 %v5937, %v5987
    %v5989 = vpop.f32.mrf.mxu0
    %v5990 = vadd.f32 %v5937, %v5989
    %5991 = vmatmul.bf16.gmra.mxu0 %v881
    %v5992 = vpop.f32.mrf.mxu0
    %v5993 = vadd.f32 %v5937, %v5992
    %v5994 = vpop.f32.mrf.mxu0
    %v5995 = vadd.f32 %v5937, %v5994
    %5996 = vmatmul.bf16.gmra.mxu0 %v883
    %v5997 = vpop.f32.mrf.mxu0
    %v5998 = vadd.f32 %v5937, %v5997
    %v5999 = vpop.f32.mrf.mxu0
    %v6000 = vadd.f32 %v5937, %v5999
    %6001 = vmatmul.bf16.gmra.mxu0 %v885
    %v6002 = vpop.f32.mrf.mxu0
    %v6003 = vadd.f32 %v5937, %v6002
    %v6004 = vpop.f32.mrf.mxu0
    %v6005 = vadd.f32 %v5937, %v6004
    %6006 = vmatmul.bf16.gmra.mxu0 %v887
    %v6007 = vpop.f32.mrf.mxu0
    %v6008 = vadd.f32 %v5937, %v6007
    %v6009 = vpop.f32.mrf.mxu0
    %v6010 = vadd.f32 %v5937, %v6009
    %6011 = vmatmul.bf16.gmra.mxu0 %v889
    %v6012 = vpop.f32.mrf.mxu0
    %v6013 = vadd.f32 %v5937, %v6012
    %v6014 = vpop.f32.mrf.mxu0
    %v6015 = vadd.f32 %v5937, %v6014
    %6016 = vmatmul.bf16.gmra.mxu0 %v891
    %v6017 = vpop.f32.mrf.mxu0
    %v6018 = vadd.f32 %v5937, %v6017
    %v6019 = vpop.f32.mrf.mxu0
    %v6020 = vadd.f32 %v5937, %v6019
    %6021 = vmatmul.bf16.gmra.mxu0 %v893
    %v6022 = vpop.f32.mrf.mxu0
    %v6023 = vadd.f32 %v5937, %v6022
    %v6024 = vpop.f32.mrf.mxu0
    %v6025 = vadd.f32 %v5937, %v6024
    %6026 = vmatmul.bf16.gmra.mxu0 %v895
    %v6027 = vpop.f32.mrf.mxu0
    %v6028 = vadd.f32 %v5937, %v6027
    %v6029 = vpop.f32.mrf.mxu0
    %v6030 = vadd.f32 %v5937, %v6029
    %6031 = vdwg.mxu0
    %6032 = vmatpush.bf16.msra.mxu0 %v5933
    %6033 = vmatpush.bf16.msra.mxu0 %v5930
    %6034 = vmatpush.bf16.msra.mxu0 %v5927
    %6035 = vmatpush.bf16.msra.mxu0 %v5924
    %6036 = vmatpush.bf16.msra.mxu0 %v5921
    %6037 = vmatpush.bf16.msra.mxu0 %v5918
    %6038 = vmatpush.bf16.msra.mxu0 %v5915
    %6039 = vmatpush.bf16.msra.mxu0 %v5912
    %6040 = vmatmul.bf16.gmra.mxu0 %v866
    %v6041 = vpop.f32.mrf.mxu0
    %v6042 = vadd.f32 %v5953, %v6041
    %v6043 = vpop.f32.mrf.mxu0
    %v6044 = vadd.f32 %v5955, %v6043
    %6045 = vmatmul.bf16.gmra.mxu0 %v868
    %v6046 = vpop.f32.mrf.mxu0
    %v6047 = vadd.f32 %v5958, %v6046
    %v6048 = vpop.f32.mrf.mxu0
    %v6049 = vadd.f32 %v5960, %v6048
    %6050 = vmatmul.bf16.gmra.mxu0 %v870
    %v6051 = vpop.f32.mrf.mxu0
    %v6052 = vadd.f32 %v5963, %v6051
    %v6053 = vpop.f32.mrf.mxu0
    %v6054 = vadd.f32 %v5965, %v6053
    %6055 = vmatmul.bf16.gmra.mxu0 %v872
    %v6056 = vpop.f32.mrf.mxu0
    %v6057 = vadd.f32 %v5968, %v6056
    %v6058 = vpop.f32.mrf.mxu0
    %v6059 = vadd.f32 %v5970, %v6058
    %6060 = vmatmul.bf16.gmra.mxu0 %v874
    %v6061 = vpop.f32.mrf.mxu0
    %v6062 = vadd.f32 %v5973, %v6061
    %v6063 = vpop.f32.mrf.mxu0
    %v6064 = vadd.f32 %v5975, %v6063
    %6065 = vmatmul.bf16.gmra.mxu0 %v876
    %v6066 = vpop.f32.mrf.mxu0
    %v6067 = vadd.f32 %v5978, %v6066
    %v6068 = vpop.f32.mrf.mxu0
    %v6069 = vadd.f32 %v5980, %v6068
    %6070 = vmatmul.bf16.gmra.mxu0 %v878
    %v6071 = vpop.f32.mrf.mxu0
    %v6072 = vadd.f32 %v5983, %v6071
    %v6073 = vpop.f32.mrf.mxu0
    %v6074 = vadd.f32 %v5985, %v6073
    %6075 = vmatmul.bf16.gmra.mxu0 %v880
    %v6076 = vpop.f32.mrf.mxu0
    %v6077 = vadd.f32 %v5988, %v6076
    %v6078 = vpop.f32.mrf.mxu0
    %v6079 = vadd.f32 %v5990, %v6078
    %6080 = vmatmul.bf16.gmra.mxu0 %v882
    %v6081 = vpop.f32.mrf.mxu0
    %v6082 = vadd.f32 %v5993, %v6081
    %v6083 = vpop.f32.mrf.mxu0
    %v6084 = vadd.f32 %v5995, %v6083
    %6085 = vmatmul.bf16.gmra.mxu0 %v884
    %v6086 = vpop.f32.mrf.mxu0
    %v6087 = vadd.f32 %v5998, %v6086
    %v6088 = vpop.f32.mrf.mxu0
    %v6089 = vadd.f32 %v6000, %v6088
    %6090 = vmatmul.bf16.gmra.mxu0 %v886
    %v6091 = vpop.f32.mrf.mxu0
    %v6092 = vadd.f32 %v6003, %v6091
    %v6093 = vpop.f32.mrf.mxu0
    %v6094 = vadd.f32 %v6005, %v6093
    %6095 = vmatmul.bf16.gmra.mxu0 %v888
    %v6096 = vpop.f32.mrf.mxu0
    %v6097 = vadd.f32 %v6008, %v6096
    %v6098 = vpop.f32.mrf.mxu0
    %v6099 = vadd.f32 %v6010, %v6098
    %6100 = vmatmul.bf16.gmra.mxu0 %v890
    %v6101 = vpop.f32.mrf.mxu0
    %v6102 = vadd.f32 %v6013, %v6101
    %v6103 = vpop.f32.mrf.mxu0
    %v6104 = vadd.f32 %v6015, %v6103
    %6105 = vmatmul.bf16.gmra.mxu0 %v892
    %v6106 = vpop.f32.mrf.mxu0
    %v6107 = vadd.f32 %v6018, %v6106
    %v6108 = vpop.f32.mrf.mxu0
    %v6109 = vadd.f32 %v6020, %v6108
    %6110 = vmatmul.bf16.gmra.mxu0 %v894
    %v6111 = vpop.f32.mrf.mxu0
    %v6112 = vadd.f32 %v6023, %v6111
    %v6113 = vpop.f32.mrf.mxu0
    %v6114 = vadd.f32 %v6025, %v6113
    %6115 = vmatmul.bf16.gmra.mxu0 %v896
    %v6116 = vpop.f32.mrf.mxu0
    %v6117 = vadd.f32 %v6028, %v6116
    %v6118 = vpop.f32.mrf.mxu0
    %v6119 = vadd.f32 %v6030, %v6118
    %6120 = vdwg.mxu0
    %6121 = vmatpush.bf16.msra.mxu0 %v5910
    %6122 = vmatpush.bf16.msra.mxu0 %v5907
    %6123 = vmatpush.bf16.msra.mxu0 %v5904
    %6124 = vmatpush.bf16.msra.mxu0 %v5901
    %6125 = vmatpush.bf16.msra.mxu0 %v5898
    %6126 = vmatpush.bf16.msra.mxu0 %v5895
    %6127 = vmatpush.bf16.msra.mxu0 %v5892
    %6128 = vmatpush.bf16.msra.mxu0 %v5889
    %6129 = vmatmul.bf16.gmra.mxu0 %v865
    %v6130 = vpop.f32.mrf.mxu0
    %v6131 = vadd.f32 %v5938, %v6130
    %v6132 = vpop.f32.mrf.mxu0
    %v6133 = vadd.f32 %v5938, %v6132
    %6134 = vmatmul.bf16.gmra.mxu0 %v867
    %v6135 = vpop.f32.mrf.mxu0
    %v6136 = vadd.f32 %v5938, %v6135
    %v6137 = vpop.f32.mrf.mxu0
    %v6138 = vadd.f32 %v5938, %v6137
    %6139 = vmatmul.bf16.gmra.mxu0 %v869
    %v6140 = vpop.f32.mrf.mxu0
    %v6141 = vadd.f32 %v5938, %v6140
    %v6142 = vpop.f32.mrf.mxu0
    %v6143 = vadd.f32 %v5938, %v6142
    %6144 = vmatmul.bf16.gmra.mxu0 %v871
    %v6145 = vpop.f32.mrf.mxu0
    %v6146 = vadd.f32 %v5938, %v6145
    %v6147 = vpop.f32.mrf.mxu0
    %v6148 = vadd.f32 %v5938, %v6147
    %6149 = vmatmul.bf16.gmra.mxu0 %v873
    %v6150 = vpop.f32.mrf.mxu0
    %v6151 = vadd.f32 %v5938, %v6150
    %v6152 = vpop.f32.mrf.mxu0
    %v6153 = vadd.f32 %v5938, %v6152
    %6154 = vmatmul.bf16.gmra.mxu0 %v875
    %v6155 = vpop.f32.mrf.mxu0
    %v6156 = vadd.f32 %v5938, %v6155
    %v6157 = vpop.f32.mrf.mxu0
    %v6158 = vadd.f32 %v5938, %v6157
    %6159 = vmatmul.bf16.gmra.mxu0 %v877
    %v6160 = vpop.f32.mrf.mxu0
    %v6161 = vadd.f32 %v5938, %v6160
    %v6162 = vpop.f32.mrf.mxu0
    %v6163 = vadd.f32 %v5938, %v6162
    %6164 = vmatmul.bf16.gmra.mxu0 %v879
    %v6165 = vpop.f32.mrf.mxu0
    %v6166 = vadd.f32 %v5938, %v6165
    %v6167 = vpop.f32.mrf.mxu0
    %v6168 = vadd.f32 %v5938, %v6167
    %6169 = vmatmul.bf16.gmra.mxu0 %v881
    %v6170 = vpop.f32.mrf.mxu0
    %v6171 = vadd.f32 %v5938, %v6170
    %v6172 = vpop.f32.mrf.mxu0
    %v6173 = vadd.f32 %v5938, %v6172
    %6174 = vmatmul.bf16.gmra.mxu0 %v883
    %v6175 = vpop.f32.mrf.mxu0
    %v6176 = vadd.f32 %v5938, %v6175
    %v6177 = vpop.f32.mrf.mxu0
    %v6178 = vadd.f32 %v5938, %v6177
    %6179 = vmatmul.bf16.gmra.mxu0 %v885
    %v6180 = vpop.f32.mrf.mxu0
    %v6181 = vadd.f32 %v5938, %v6180
    %v6182 = vpop.f32.mrf.mxu0
    %v6183 = vadd.f32 %v5938, %v6182
    %6184 = vmatmul.bf16.gmra.mxu0 %v887
    %v6185 = vpop.f32.mrf.mxu0
    %v6186 = vadd.f32 %v5938, %v6185
    %v6187 = vpop.f32.mrf.mxu0
    %v6188 = vadd.f32 %v5938, %v6187
    %6189 = vmatmul.bf16.gmra.mxu0 %v889
    %v6190 = vpop.f32.mrf.mxu0
    %v6191 = vadd.f32 %v5938, %v6190
    %v6192 = vpop.f32.mrf.mxu0
    %v6193 = vadd.f32 %v5938, %v6192
    %6194 = vmatmul.bf16.gmra.mxu0 %v891
    %v6195 = vpop.f32.mrf.mxu0
    %v6196 = vadd.f32 %v5938, %v6195
    %v6197 = vpop.f32.mrf.mxu0
    %v6198 = vadd.f32 %v5938, %v6197
    %6199 = vmatmul.bf16.gmra.mxu0 %v893
    %v6200 = vpop.f32.mrf.mxu0
    %v6201 = vadd.f32 %v5938, %v6200
    %v6202 = vpop.f32.mrf.mxu0
    %v6203 = vadd.f32 %v5938, %v6202
    %6204 = vmatmul.bf16.gmra.mxu0 %v895
    %v6205 = vpop.f32.mrf.mxu0
    %v6206 = vadd.f32 %v5938, %v6205
    %v6207 = vpop.f32.mrf.mxu0
    %v6208 = vadd.f32 %v5938, %v6207
    %6209 = vdwg.mxu0
    %6210 = vmatpush.bf16.msra.mxu0 %v5934
    %6211 = vmatpush.bf16.msra.mxu0 %v5931
    %6212 = vmatpush.bf16.msra.mxu0 %v5928
    %6213 = vmatpush.bf16.msra.mxu0 %v5925
    %6214 = vmatpush.bf16.msra.mxu0 %v5922
    %6215 = vmatpush.bf16.msra.mxu0 %v5919
    %6216 = vmatpush.bf16.msra.mxu0 %v5916
    %6217 = vmatpush.bf16.msra.mxu0 %v5913
    %6218 = vmatmul.bf16.gmra.mxu0 %v866
    %v6219 = vpop.f32.mrf.mxu0
    %v6220 = vadd.f32 %v6131, %v6219
    %v6221 = vpop.f32.mrf.mxu0
    %v6222 = vadd.f32 %v6133, %v6221
    %6223 = vmatmul.bf16.gmra.mxu0 %v868
    %v6224 = vpop.f32.mrf.mxu0
    %v6225 = vadd.f32 %v6136, %v6224
    %v6226 = vpop.f32.mrf.mxu0
    %v6227 = vadd.f32 %v6138, %v6226
    %6228 = vmatmul.bf16.gmra.mxu0 %v870
    %v6229 = vpop.f32.mrf.mxu0
    %v6230 = vadd.f32 %v6141, %v6229
    %v6231 = vpop.f32.mrf.mxu0
    %v6232 = vadd.f32 %v6143, %v6231
    %6233 = vmatmul.bf16.gmra.mxu0 %v872
    %v6234 = vpop.f32.mrf.mxu0
    %v6235 = vadd.f32 %v6146, %v6234
    %v6236 = vpop.f32.mrf.mxu0
    %v6237 = vadd.f32 %v6148, %v6236
    %6238 = vmatmul.bf16.gmra.mxu0 %v874
    %v6239 = vpop.f32.mrf.mxu0
    %v6240 = vadd.f32 %v6151, %v6239
    %v6241 = vpop.f32.mrf.mxu0
    %v6242 = vadd.f32 %v6153, %v6241
    %6243 = vmatmul.bf16.gmra.mxu0 %v876
    %v6244 = vpop.f32.mrf.mxu0
    %v6245 = vadd.f32 %v6156, %v6244
    %v6246 = vpop.f32.mrf.mxu0
    %v6247 = vadd.f32 %v6158, %v6246
    %6248 = vmatmul.bf16.gmra.mxu0 %v878
    %v6249 = vpop.f32.mrf.mxu0
    %v6250 = vadd.f32 %v6161, %v6249
    %v6251 = vpop.f32.mrf.mxu0
    %v6252 = vadd.f32 %v6163, %v6251
    %6253 = vmatmul.bf16.gmra.mxu0 %v880
    %v6254 = vpop.f32.mrf.mxu0
    %v6255 = vadd.f32 %v6166, %v6254
    %v6256 = vpop.f32.mrf.mxu0
    %v6257 = vadd.f32 %v6168, %v6256
    %6258 = vmatmul.bf16.gmra.mxu0 %v882
    %v6259 = vpop.f32.mrf.mxu0
    %v6260 = vadd.f32 %v6171, %v6259
    %v6261 = vpop.f32.mrf.mxu0
    %v6262 = vadd.f32 %v6173, %v6261
    %6263 = vmatmul.bf16.gmra.mxu0 %v884
    %v6264 = vpop.f32.mrf.mxu0
    %v6265 = vadd.f32 %v6176, %v6264
    %v6266 = vpop.f32.mrf.mxu0
    %v6267 = vadd.f32 %v6178, %v6266
    %6268 = vmatmul.bf16.gmra.mxu0 %v886
    %v6269 = vpop.f32.mrf.mxu0
    %v6270 = vadd.f32 %v6181, %v6269
    %v6271 = vpop.f32.mrf.mxu0
    %v6272 = vadd.f32 %v6183, %v6271
    %6273 = vmatmul.bf16.gmra.mxu0 %v888
    %v6274 = vpop.f32.mrf.mxu0
    %v6275 = vadd.f32 %v6186, %v6274
    %v6276 = vpop.f32.mrf.mxu0
    %v6277 = vadd.f32 %v6188, %v6276
    %6278 = vmatmul.bf16.gmra.mxu0 %v890
    %v6279 = vpop.f32.mrf.mxu0
    %v6280 = vadd.f32 %v6191, %v6279
    %v6281 = vpop.f32.mrf.mxu0
    %v6282 = vadd.f32 %v6193, %v6281
    %6283 = vmatmul.bf16.gmra.mxu0 %v892
    %v6284 = vpop.f32.mrf.mxu0
    %v6285 = vadd.f32 %v6196, %v6284
    %v6286 = vpop.f32.mrf.mxu0
    %v6287 = vadd.f32 %v6198, %v6286
    %6288 = vmatmul.bf16.gmra.mxu0 %v894
    %v6289 = vpop.f32.mrf.mxu0
    %v6290 = vadd.f32 %v6201, %v6289
    %v6291 = vpop.f32.mrf.mxu0
    %v6292 = vadd.f32 %v6203, %v6291
    %6293 = vmatmul.bf16.gmra.mxu0 %v896
    %v6294 = vpop.f32.mrf.mxu0
    %v6295 = vadd.f32 %v6206, %v6294
    %v6296 = vpop.f32.mrf.mxu0
    %v6297 = vadd.f32 %v6208, %v6296
    %6298 = vdwg.mxu0
    %6299 = vmatpush.bf16.msra.mxu0 %v5911
    %6300 = vmatpush.bf16.msra.mxu0 %v5908
    %6301 = vmatpush.bf16.msra.mxu0 %v5905
    %6302 = vmatpush.bf16.msra.mxu0 %v5902
    %6303 = vmatpush.bf16.msra.mxu0 %v5899
    %6304 = vmatpush.bf16.msra.mxu0 %v5896
    %6305 = vmatpush.bf16.msra.mxu0 %v5893
    %6306 = vmatpush.bf16.msra.mxu0 %v5890
    %6307 = vmatmul.bf16.gmra.mxu0 %v865
    %v6308 = vpop.f32.mrf.mxu0
    %v6309 = vadd.f32 %v5939, %v6308
    %v6310 = vpop.f32.mrf.mxu0
    %v6311 = vadd.f32 %v5939, %v6310
    %6312 = vmatmul.bf16.gmra.mxu0 %v867
    %v6313 = vpop.f32.mrf.mxu0
    %v6314 = vadd.f32 %v5939, %v6313
    %v6315 = vpop.f32.mrf.mxu0
    %v6316 = vadd.f32 %v5939, %v6315
    %6317 = vmatmul.bf16.gmra.mxu0 %v869
    %v6318 = vpop.f32.mrf.mxu0
    %v6319 = vadd.f32 %v5939, %v6318
    %v6320 = vpop.f32.mrf.mxu0
    %v6321 = vadd.f32 %v5939, %v6320
    %6322 = vmatmul.bf16.gmra.mxu0 %v871
    %v6323 = vpop.f32.mrf.mxu0
    %v6324 = vadd.f32 %v5939, %v6323
    %v6325 = vpop.f32.mrf.mxu0
    %v6326 = vadd.f32 %v5939, %v6325
    %6327 = vmatmul.bf16.gmra.mxu0 %v873
    %v6328 = vpop.f32.mrf.mxu0
    %v6329 = vadd.f32 %v5939, %v6328
    %v6330 = vpop.f32.mrf.mxu0
    %v6331 = vadd.f32 %v5939, %v6330
    %6332 = vmatmul.bf16.gmra.mxu0 %v875
    %v6333 = vpop.f32.mrf.mxu0
    %v6334 = vadd.f32 %v5939, %v6333
    %v6335 = vpop.f32.mrf.mxu0
    %v6336 = vadd.f32 %v5939, %v6335
    %6337 = vmatmul.bf16.gmra.mxu0 %v877
    %v6338 = vpop.f32.mrf.mxu0
    %v6339 = vadd.f32 %v5939, %v6338
    %v6340 = vpop.f32.mrf.mxu0
    %v6341 = vadd.f32 %v5939, %v6340
    %6342 = vmatmul.bf16.gmra.mxu0 %v879
    %v6343 = vpop.f32.mrf.mxu0
    %v6344 = vadd.f32 %v5939, %v6343
    %v6345 = vpop.f32.mrf.mxu0
    %v6346 = vadd.f32 %v5939, %v6345
    %6347 = vmatmul.bf16.gmra.mxu0 %v881
    %v6348 = vpop.f32.mrf.mxu0
    %v6349 = vadd.f32 %v5939, %v6348
    %v6350 = vpop.f32.mrf.mxu0
    %v6351 = vadd.f32 %v5939, %v6350
    %6352 = vmatmul.bf16.gmra.mxu0 %v883
    %v6353 = vpop.f32.mrf.mxu0
    %v6354 = vadd.f32 %v5939, %v6353
    %v6355 = vpop.f32.mrf.mxu0
    %v6356 = vadd.f32 %v5939, %v6355
    %6357 = vmatmul.bf16.gmra.mxu0 %v885
    %v6358 = vpop.f32.mrf.mxu0
    %v6359 = vadd.f32 %v5939, %v6358
    %v6360 = vpop.f32.mrf.mxu0
    %v6361 = vadd.f32 %v5939, %v6360
    %6362 = vmatmul.bf16.gmra.mxu0 %v887
    %v6363 = vpop.f32.mrf.mxu0
    %v6364 = vadd.f32 %v5939, %v6363
    %v6365 = vpop.f32.mrf.mxu0
    %v6366 = vadd.f32 %v5939, %v6365
    %6367 = vmatmul.bf16.gmra.mxu0 %v889
    %v6368 = vpop.f32.mrf.mxu0
    %v6369 = vadd.f32 %v5939, %v6368
    %v6370 = vpop.f32.mrf.mxu0
    %v6371 = vadd.f32 %v5939, %v6370
    %6372 = vmatmul.bf16.gmra.mxu0 %v891
    %v6373 = vpop.f32.mrf.mxu0
    %v6374 = vadd.f32 %v5939, %v6373
    %v6375 = vpop.f32.mrf.mxu0
    %v6376 = vadd.f32 %v5939, %v6375
    %6377 = vmatmul.bf16.gmra.mxu0 %v893
    %v6378 = vpop.f32.mrf.mxu0
    %v6379 = vadd.f32 %v5939, %v6378
    %v6380 = vpop.f32.mrf.mxu0
    %v6381 = vadd.f32 %v5939, %v6380
    %6382 = vmatmul.bf16.gmra.mxu0 %v895
    %v6383 = vpop.f32.mrf.mxu0
    %v6384 = vadd.f32 %v5939, %v6383
    %v6385 = vpop.f32.mrf.mxu0
    %v6386 = vadd.f32 %v5939, %v6385
    %6387 = vdwg.mxu0
    %6388 = vmatpush.bf16.msra.mxu0 %v5935
    %6389 = vmatpush.bf16.msra.mxu0 %v5932
    %6390 = vmatpush.bf16.msra.mxu0 %v5929
    %6391 = vmatpush.bf16.msra.mxu0 %v5926
    %6392 = vmatpush.bf16.msra.mxu0 %v5923
    %6393 = vmatpush.bf16.msra.mxu0 %v5920
    %6394 = vmatpush.bf16.msra.mxu0 %v5917
    %6395 = vmatpush.bf16.msra.mxu0 %v5914
    %6396 = vmatmul.bf16.gmra.mxu0 %v866
    %v6397 = vpop.f32.mrf.mxu0
    %v6398 = vadd.f32 %v6309, %v6397
    %v6399 = vpop.f32.mrf.mxu0
    %v6400 = vadd.f32 %v6311, %v6399
    %6401 = vmatmul.bf16.gmra.mxu0 %v868
    %v6402 = vpop.f32.mrf.mxu0
    %v6403 = vadd.f32 %v6314, %v6402
    %v6404 = vpop.f32.mrf.mxu0
    %v6405 = vadd.f32 %v6316, %v6404
    %6406 = vmatmul.bf16.gmra.mxu0 %v870
    %v6407 = vpop.f32.mrf.mxu0
    %v6408 = vadd.f32 %v6319, %v6407
    %v6409 = vpop.f32.mrf.mxu0
    %v6410 = vadd.f32 %v6321, %v6409
    %6411 = vmatmul.bf16.gmra.mxu0 %v872
    %v6412 = vpop.f32.mrf.mxu0
    %v6413 = vadd.f32 %v6324, %v6412
    %v6414 = vpop.f32.mrf.mxu0
    %v6415 = vadd.f32 %v6326, %v6414
    %6416 = vmatmul.bf16.gmra.mxu0 %v874
    %v6417 = vpop.f32.mrf.mxu0
    %v6418 = vadd.f32 %v6329, %v6417
    %v6419 = vpop.f32.mrf.mxu0
    %v6420 = vadd.f32 %v6331, %v6419
    %6421 = vmatmul.bf16.gmra.mxu0 %v876
    %v6422 = vpop.f32.mrf.mxu0
    %v6423 = vadd.f32 %v6334, %v6422
    %v6424 = vpop.f32.mrf.mxu0
    %v6425 = vadd.f32 %v6336, %v6424
    %6426 = vmatmul.bf16.gmra.mxu0 %v878
    %v6427 = vpop.f32.mrf.mxu0
    %v6428 = vadd.f32 %v6339, %v6427
    %v6429 = vpop.f32.mrf.mxu0
    %v6430 = vadd.f32 %v6341, %v6429
    %6431 = vmatmul.bf16.gmra.mxu0 %v880
    %v6432 = vpop.f32.mrf.mxu0
    %v6433 = vadd.f32 %v6344, %v6432
    %v6434 = vpop.f32.mrf.mxu0
    %v6435 = vadd.f32 %v6346, %v6434
    %6436 = vmatmul.bf16.gmra.mxu0 %v882
    %v6437 = vpop.f32.mrf.mxu0
    %v6438 = vadd.f32 %v6349, %v6437
    %v6439 = vpop.f32.mrf.mxu0
    %v6440 = vadd.f32 %v6351, %v6439
    %6441 = vmatmul.bf16.gmra.mxu0 %v884
    %v6442 = vpop.f32.mrf.mxu0
    %v6443 = vadd.f32 %v6354, %v6442
    %v6444 = vpop.f32.mrf.mxu0
    %v6445 = vadd.f32 %v6356, %v6444
    %6446 = vmatmul.bf16.gmra.mxu0 %v886
    %v6447 = vpop.f32.mrf.mxu0
    %v6448 = vadd.f32 %v6359, %v6447
    %v6449 = vpop.f32.mrf.mxu0
    %v6450 = vadd.f32 %v6361, %v6449
    %6451 = vmatmul.bf16.gmra.mxu0 %v888
    %v6452 = vpop.f32.mrf.mxu0
    %v6453 = vadd.f32 %v6364, %v6452
    %v6454 = vpop.f32.mrf.mxu0
    %v6455 = vadd.f32 %v6366, %v6454
    %6456 = vmatmul.bf16.gmra.mxu0 %v890
    %v6457 = vpop.f32.mrf.mxu0
    %v6458 = vadd.f32 %v6369, %v6457
    %v6459 = vpop.f32.mrf.mxu0
    %v6460 = vadd.f32 %v6371, %v6459
    %6461 = vmatmul.bf16.gmra.mxu0 %v892
    %v6462 = vpop.f32.mrf.mxu0
    %v6463 = vadd.f32 %v6374, %v6462
    %v6464 = vpop.f32.mrf.mxu0
    %v6465 = vadd.f32 %v6376, %v6464
    %6466 = vmatmul.bf16.gmra.mxu0 %v894
    %v6467 = vpop.f32.mrf.mxu0
    %v6468 = vadd.f32 %v6379, %v6467
    %v6469 = vpop.f32.mrf.mxu0
    %v6470 = vadd.f32 %v6381, %v6469
    %6471 = vmatmul.bf16.gmra.mxu0 %v896
    %v6472 = vpop.f32.mrf.mxu0
    %v6473 = vadd.f32 %v6384, %v6472
    %v6474 = vpop.f32.mrf.mxu0
    %v6475 = vadd.f32 %v6386, %v6474
    %6476 = vdwg.mxu0
    %v6477 = vpack.c.bf16 %v6044, %v6042
    %v6478 = vpack.c.bf16 %v6049, %v6047
    %v6479 = vpack.c.bf16 %v6054, %v6052
    %v6480 = vpack.c.bf16 %v6059, %v6057
    %v6481 = vpack.c.bf16 %v6064, %v6062
    %v6482 = vpack.c.bf16 %v6069, %v6067
    %v6483 = vpack.c.bf16 %v6074, %v6072
    %v6484 = vpack.c.bf16 %v6079, %v6077
    %v6485 = vpack.c.bf16 %v6084, %v6082
    %v6486 = vpack.c.bf16 %v6089, %v6087
    %v6487 = vpack.c.bf16 %v6094, %v6092
    %v6488 = vpack.c.bf16 %v6099, %v6097
    %v6489 = vpack.c.bf16 %v6104, %v6102
    %v6490 = vpack.c.bf16 %v6109, %v6107
    %v6491 = vpack.c.bf16 %v6114, %v6112
    %v6492 = vpack.c.bf16 %v6119, %v6117
    %v6493 = vpack.c.bf16 %v6222, %v6220
    %v6494 = vpack.c.bf16 %v6227, %v6225
    %v6495 = vpack.c.bf16 %v6232, %v6230
    %v6496 = vpack.c.bf16 %v6237, %v6235
    %v6497 = vpack.c.bf16 %v6242, %v6240
    %v6498 = vpack.c.bf16 %v6247, %v6245
    %v6499 = vpack.c.bf16 %v6252, %v6250
    %v6500 = vpack.c.bf16 %v6257, %v6255
    %v6501 = vpack.c.bf16 %v6262, %v6260
    %v6502 = vpack.c.bf16 %v6267, %v6265
    %v6503 = vpack.c.bf16 %v6272, %v6270
    %v6504 = vpack.c.bf16 %v6277, %v6275
    %v6505 = vpack.c.bf16 %v6282, %v6280
    %v6506 = vpack.c.bf16 %v6287, %v6285
    %v6507 = vpack.c.bf16 %v6292, %v6290
    %v6508 = vpack.c.bf16 %v6297, %v6295
    %6509 = vmatpush.bf16.xpose.msra.mxu0 %v6500
    %6510 = vmatpush.bf16.xpose.msra.mxu0 %v6499
    %6511 = vmatpush.bf16.xpose.msra.mxu0 %v6498
    %6512 = vmatpush.bf16.xpose.msra.mxu0 %v6497
    %6513 = vmatpush.bf16.xpose.msra.mxu0 %v6496
    %6514 = vmatpush.bf16.xpose.msra.mxu0 %v6495
    %6515 = vmatpush.bf16.xpose.msra.mxu0 %v6494
    %6516 = vmatpush.bf16.xpose.msra.mxu0 %v6493
    %6517 = vmatmul.bf16.gmra.mxu0 %v6477
    %v6518 = vpop.f32.mrf.mxu0
    %v6519 = vadd.f32 0.0, %v6518
    %v6520 = vpop.f32.mrf.mxu0
    %v6521 = vadd.f32 0.0, %v6520
    %6522 = vmatmul.bf16.gmra.mxu0 %v6478
    %v6523 = vpop.f32.mrf.mxu0
    %v6524 = vadd.f32 0.0, %v6523
    %v6525 = vpop.f32.mrf.mxu0
    %v6526 = vadd.f32 0.0, %v6525
    %6527 = vmatmul.bf16.gmra.mxu0 %v6479
    %v6528 = vpop.f32.mrf.mxu0
    %v6529 = vadd.f32 0.0, %v6528
    %v6530 = vpop.f32.mrf.mxu0
    %v6531 = vadd.f32 0.0, %v6530
    %6532 = vmatmul.bf16.gmra.mxu0 %v6480
    %v6533 = vpop.f32.mrf.mxu0
    %v6534 = vadd.f32 0.0, %v6533
    %v6535 = vpop.f32.mrf.mxu0
    %v6536 = vadd.f32 0.0, %v6535
    %6537 = vmatmul.bf16.gmra.mxu0 %v6481
    %v6538 = vpop.f32.mrf.mxu0
    %v6539 = vadd.f32 0.0, %v6538
    %v6540 = vpop.f32.mrf.mxu0
    %v6541 = vadd.f32 0.0, %v6540
    %6542 = vmatmul.bf16.gmra.mxu0 %v6482
    %v6543 = vpop.f32.mrf.mxu0
    %v6544 = vadd.f32 0.0, %v6543
    %v6545 = vpop.f32.mrf.mxu0
    %v6546 = vadd.f32 0.0, %v6545
    %6547 = vmatmul.bf16.gmra.mxu0 %v6483
    %v6548 = vpop.f32.mrf.mxu0
    %v6549 = vadd.f32 0.0, %v6548
    %v6550 = vpop.f32.mrf.mxu0
    %v6551 = vadd.f32 0.0, %v6550
    %6552 = vmatmul.bf16.gmra.mxu0 %v6484
    %v6553 = vpop.f32.mrf.mxu0
    %v6554 = vadd.f32 0.0, %v6553
    %v6555 = vpop.f32.mrf.mxu0
    %v6556 = vadd.f32 0.0, %v6555
    %6557 = vmatmul.bf16.gmra.mxu0 %v6485
    %v6558 = vpop.f32.mrf.mxu0
    %v6559 = vadd.f32 0.0, %v6558
    %v6560 = vpop.f32.mrf.mxu0
    %v6561 = vadd.f32 0.0, %v6560
    %6562 = vmatmul.bf16.gmra.mxu0 %v6486
    %v6563 = vpop.f32.mrf.mxu0
    %v6564 = vadd.f32 0.0, %v6563
    %v6565 = vpop.f32.mrf.mxu0
    %v6566 = vadd.f32 0.0, %v6565
    %6567 = vmatmul.bf16.gmra.mxu0 %v6487
    %v6568 = vpop.f32.mrf.mxu0
    %v6569 = vadd.f32 0.0, %v6568
    %v6570 = vpop.f32.mrf.mxu0
    %v6571 = vadd.f32 0.0, %v6570
    %6572 = vmatmul.bf16.gmra.mxu0 %v6488
    %v6573 = vpop.f32.mrf.mxu0
    %v6574 = vadd.f32 0.0, %v6573
    %v6575 = vpop.f32.mrf.mxu0
    %v6576 = vadd.f32 0.0, %v6575
    %6577 = vmatmul.bf16.gmra.mxu0 %v6489
    %v6578 = vpop.f32.mrf.mxu0
    %v6579 = vadd.f32 0.0, %v6578
    %v6580 = vpop.f32.mrf.mxu0
    %v6581 = vadd.f32 0.0, %v6580
    %6582 = vmatmul.bf16.gmra.mxu0 %v6490
    %v6583 = vpop.f32.mrf.mxu0
    %v6584 = vadd.f32 0.0, %v6583
    %v6585 = vpop.f32.mrf.mxu0
    %v6586 = vadd.f32 0.0, %v6585
    %6587 = vmatmul.bf16.gmra.mxu0 %v6491
    %v6588 = vpop.f32.mrf.mxu0
    %v6589 = vadd.f32 0.0, %v6588
    %v6590 = vpop.f32.mrf.mxu0
    %v6591 = vadd.f32 0.0, %v6590
    %6592 = vmatmul.bf16.gmra.mxu0 %v6492
    %v6593 = vpop.f32.mrf.mxu0
    %v6594 = vadd.f32 0.0, %v6593
    %v6595 = vpop.f32.mrf.mxu0
    %v6596 = vadd.f32 0.0, %v6595
    %6597 = vdwg.mxu0
    %6598 = vmatpush.bf16.xpose.msra.mxu0 %v6508
    %6599 = vmatpush.bf16.xpose.msra.mxu0 %v6507
    %6600 = vmatpush.bf16.xpose.msra.mxu0 %v6506
    %6601 = vmatpush.bf16.xpose.msra.mxu0 %v6505
    %6602 = vmatpush.bf16.xpose.msra.mxu0 %v6504
    %6603 = vmatpush.bf16.xpose.msra.mxu0 %v6503
    %6604 = vmatpush.bf16.xpose.msra.mxu0 %v6502
    %6605 = vmatpush.bf16.xpose.msra.mxu0 %v6501
    %6606 = vmatmul.bf16.gmra.mxu0 %v6477
    %v6607 = vpop.f32.mrf.mxu0
    %v6608 = vadd.f32 0.0, %v6607
    %v6609 = vpop.f32.mrf.mxu0
    %v6610 = vadd.f32 0.0, %v6609
    %6611 = vmatmul.bf16.gmra.mxu0 %v6478
    %v6612 = vpop.f32.mrf.mxu0
    %v6613 = vadd.f32 0.0, %v6612
    %v6614 = vpop.f32.mrf.mxu0
    %v6615 = vadd.f32 0.0, %v6614
    %6616 = vmatmul.bf16.gmra.mxu0 %v6479
    %v6617 = vpop.f32.mrf.mxu0
    %v6618 = vadd.f32 0.0, %v6617
    %v6619 = vpop.f32.mrf.mxu0
    %v6620 = vadd.f32 0.0, %v6619
    %6621 = vmatmul.bf16.gmra.mxu0 %v6480
    %v6622 = vpop.f32.mrf.mxu0
    %v6623 = vadd.f32 0.0, %v6622
    %v6624 = vpop.f32.mrf.mxu0
    %v6625 = vadd.f32 0.0, %v6624
    %6626 = vmatmul.bf16.gmra.mxu0 %v6481
    %v6627 = vpop.f32.mrf.mxu0
    %v6628 = vadd.f32 0.0, %v6627
    %v6629 = vpop.f32.mrf.mxu0
    %v6630 = vadd.f32 0.0, %v6629
    %6631 = vmatmul.bf16.gmra.mxu0 %v6482
    %v6632 = vpop.f32.mrf.mxu0
    %v6633 = vadd.f32 0.0, %v6632
    %v6634 = vpop.f32.mrf.mxu0
    %v6635 = vadd.f32 0.0, %v6634
    %6636 = vmatmul.bf16.gmra.mxu0 %v6483
    %v6637 = vpop.f32.mrf.mxu0
    %v6638 = vadd.f32 0.0, %v6637
    %v6639 = vpop.f32.mrf.mxu0
    %v6640 = vadd.f32 0.0, %v6639
    %6641 = vmatmul.bf16.gmra.mxu0 %v6484
    %v6642 = vpop.f32.mrf.mxu0
    %v6643 = vadd.f32 0.0, %v6642
    %v6644 = vpop.f32.mrf.mxu0
    %v6645 = vadd.f32 0.0, %v6644
    %6646 = vmatmul.bf16.gmra.mxu0 %v6485
    %v6647 = vpop.f32.mrf.mxu0
    %v6648 = vadd.f32 0.0, %v6647
    %v6649 = vpop.f32.mrf.mxu0
    %v6650 = vadd.f32 0.0, %v6649
    %6651 = vmatmul.bf16.gmra.mxu0 %v6486
    %v6652 = vpop.f32.mrf.mxu0
    %v6653 = vadd.f32 0.0, %v6652
    %v6654 = vpop.f32.mrf.mxu0
    %v6655 = vadd.f32 0.0, %v6654
    %6656 = vmatmul.bf16.gmra.mxu0 %v6487
    %v6657 = vpop.f32.mrf.mxu0
    %v6658 = vadd.f32 0.0, %v6657
    %v6659 = vpop.f32.mrf.mxu0
    %v6660 = vadd.f32 0.0, %v6659
    %6661 = vmatmul.bf16.gmra.mxu0 %v6488
    %v6662 = vpop.f32.mrf.mxu0
    %v6663 = vadd.f32 0.0, %v6662
    %v6664 = vpop.f32.mrf.mxu0
    %v6665 = vadd.f32 0.0, %v6664
    %6666 = vmatmul.bf16.gmra.mxu0 %v6489
    %v6667 = vpop.f32.mrf.mxu0
    %v6668 = vadd.f32 0.0, %v6667
    %v6669 = vpop.f32.mrf.mxu0
    %v6670 = vadd.f32 0.0, %v6669
    %6671 = vmatmul.bf16.gmra.mxu0 %v6490
    %v6672 = vpop.f32.mrf.mxu0
    %v6673 = vadd.f32 0.0, %v6672
    %v6674 = vpop.f32.mrf.mxu0
    %v6675 = vadd.f32 0.0, %v6674
    %6676 = vmatmul.bf16.gmra.mxu0 %v6491
    %v6677 = vpop.f32.mrf.mxu0
    %v6678 = vadd.f32 0.0, %v6677
    %v6679 = vpop.f32.mrf.mxu0
    %v6680 = vadd.f32 0.0, %v6679
    %6681 = vmatmul.bf16.gmra.mxu0 %v6492
    %v6682 = vpop.f32.mrf.mxu0
    %v6683 = vadd.f32 0.0, %v6682
    %v6684 = vpop.f32.mrf.mxu0
    %v6685 = vadd.f32 0.0, %v6684
    %6686 = vdwg.mxu0
    %v6687 = vmul.f32 %v6519, 0.17677669
    %v6688 = vmul.f32 %v6608, 0.17677669
    %v6689 = vmul.f32 %v6521, 0.17677669
    %v6690 = vmul.f32 %v6610, 0.17677669
    %v6691 = vmul.f32 %v6524, 0.17677669
    %v6692 = vmul.f32 %v6613, 0.17677669
    %v6693 = vmul.f32 %v6526, 0.17677669
    %v6694 = vmul.f32 %v6615, 0.17677669
    %v6695 = vmul.f32 %v6529, 0.17677669
    %v6696 = vmul.f32 %v6618, 0.17677669
    %v6697 = vmul.f32 %v6531, 0.17677669
    %v6698 = vmul.f32 %v6620, 0.17677669
    %v6699 = vmul.f32 %v6534, 0.17677669
    %v6700 = vmul.f32 %v6623, 0.17677669
    %v6701 = vmul.f32 %v6536, 0.17677669
    %v6702 = vmul.f32 %v6625, 0.17677669
    %v6703 = vmul.f32 %v6539, 0.17677669
    %v6704 = vmul.f32 %v6628, 0.17677669
    %v6705 = vmul.f32 %v6541, 0.17677669
    %v6706 = vmul.f32 %v6630, 0.17677669
    %v6707 = vmul.f32 %v6544, 0.17677669
    %v6708 = vmul.f32 %v6633, 0.17677669
    %v6709 = vmul.f32 %v6546, 0.17677669
    %v6710 = vmul.f32 %v6635, 0.17677669
    %v6711 = vmul.f32 %v6549, 0.17677669
    %v6712 = vmul.f32 %v6638, 0.17677669
    %v6713 = vmul.f32 %v6551, 0.17677669
    %v6714 = vmul.f32 %v6640, 0.17677669
    %v6715 = vmul.f32 %v6554, 0.17677669
    %v6716 = vmul.f32 %v6643, 0.17677669
    %v6717 = vmul.f32 %v6556, 0.17677669
    %v6718 = vmul.f32 %v6645, 0.17677669
    %v6719 = vmul.f32 %v6559, 0.17677669
    %v6720 = vmul.f32 %v6648, 0.17677669
    %v6721 = vmul.f32 %v6561, 0.17677669
    %v6722 = vmul.f32 %v6650, 0.17677669
    %v6723 = vmul.f32 %v6564, 0.17677669
    %v6724 = vmul.f32 %v6653, 0.17677669
    %v6725 = vmul.f32 %v6566, 0.17677669
    %v6726 = vmul.f32 %v6655, 0.17677669
    %v6727 = vmul.f32 %v6569, 0.17677669
    %v6728 = vmul.f32 %v6658, 0.17677669
    %v6729 = vmul.f32 %v6571, 0.17677669
    %v6730 = vmul.f32 %v6660, 0.17677669
    %v6731 = vmul.f32 %v6574, 0.17677669
    %v6732 = vmul.f32 %v6663, 0.17677669
    %v6733 = vmul.f32 %v6576, 0.17677669
    %v6734 = vmul.f32 %v6665, 0.17677669
    %v6735 = vmul.f32 %v6579, 0.17677669
    %v6736 = vmul.f32 %v6668, 0.17677669
    %v6737 = vmul.f32 %v6581, 0.17677669
    %v6738 = vmul.f32 %v6670, 0.17677669
    %v6739 = vmul.f32 %v6584, 0.17677669
    %v6740 = vmul.f32 %v6673, 0.17677669
    %v6741 = vmul.f32 %v6586, 0.17677669
    %v6742 = vmul.f32 %v6675, 0.17677669
    %v6743 = vmul.f32 %v6589, 0.17677669
    %v6744 = vmul.f32 %v6678, 0.17677669
    %v6745 = vmul.f32 %v6591, 0.17677669
    %v6746 = vmul.f32 %v6680, 0.17677669
    %v6747 = vmul.f32 %v6594, 0.17677669
    %v6748 = vmul.f32 %v6683, 0.17677669
    %v6749 = vmul.f32 %v6596, 0.17677669
    %v6750 = vmul.f32 %v6685, 0.17677669
    %v6751 = vunpack.c.l.bf16 %v2345
    %v6752 = vunpack.c.h.bf16 %v2345
    %v6753 = vunpack.c.l.bf16 %v2346
    %v6754 = vunpack.c.h.bf16 %v2346
    %v6755 = vunpack.c.l.bf16 %v2347
    %v6756 = vunpack.c.h.bf16 %v2347
    %v6757 = vunpack.c.l.bf16 %v2348
    %v6758 = vunpack.c.h.bf16 %v2348
    %v6759 = vunpack.c.l.bf16 %v2349
    %v6760 = vunpack.c.h.bf16 %v2349
    %v6761 = vunpack.c.l.bf16 %v2350
    %v6762 = vunpack.c.h.bf16 %v2350
    %v6763 = vunpack.c.l.bf16 %v2351
    %v6764 = vunpack.c.h.bf16 %v2351
    %v6765 = vunpack.c.l.bf16 %v2352
    %v6766 = vunpack.c.h.bf16 %v2352
    %v6767 = vunpack.c.l.bf16 %v2353
    %v6768 = vunpack.c.h.bf16 %v2353
    %v6769 = vunpack.c.l.bf16 %v2354
    %v6770 = vunpack.c.h.bf16 %v2354
    %v6771 = vunpack.c.l.bf16 %v2355
    %v6772 = vunpack.c.h.bf16 %v2355
    %v6773 = vunpack.c.l.bf16 %v2356
    %v6774 = vunpack.c.h.bf16 %v2356
    %v6775 = vunpack.c.l.bf16 %v2357
    %v6776 = vunpack.c.h.bf16 %v2357
    %v6777 = vunpack.c.l.bf16 %v2358
    %v6778 = vunpack.c.h.bf16 %v2358
    %v6779 = vunpack.c.l.bf16 %v2359
    %v6780 = vunpack.c.h.bf16 %v2359
    %v6781 = vunpack.c.l.bf16 %v2360
    %v6782 = vunpack.c.h.bf16 %v2360
    %v6783 = vunpack.c.l.bf16 %v2361
    %v6784 = vunpack.c.h.bf16 %v2361
    %v6785 = vunpack.c.l.bf16 %v2362
    %v6786 = vunpack.c.h.bf16 %v2362
    %v6787 = vunpack.c.l.bf16 %v2363
    %v6788 = vunpack.c.h.bf16 %v2363
    %v6789 = vunpack.c.l.bf16 %v2364
    %v6790 = vunpack.c.h.bf16 %v2364
    %v6791 = vunpack.c.l.bf16 %v2365
    %v6792 = vunpack.c.h.bf16 %v2365
    %v6793 = vunpack.c.l.bf16 %v2366
    %v6794 = vunpack.c.h.bf16 %v2366
    %v6795 = vunpack.c.l.bf16 %v2367
    %v6796 = vunpack.c.h.bf16 %v2367
    %v6797 = vunpack.c.l.bf16 %v2368
    %v6798 = vunpack.c.h.bf16 %v2368
    %v6799 = vunpack.c.l.bf16 %v2369
    %v6800 = vunpack.c.h.bf16 %v2369
    %v6801 = vunpack.c.l.bf16 %v2370
    %v6802 = vunpack.c.h.bf16 %v2370
    %v6803 = vunpack.c.l.bf16 %v2371
    %v6804 = vunpack.c.h.bf16 %v2371
    %v6805 = vunpack.c.l.bf16 %v2372
    %v6806 = vunpack.c.h.bf16 %v2372
    %v6807 = vunpack.c.l.bf16 %v2373
    %v6808 = vunpack.c.h.bf16 %v2373
    %v6809 = vunpack.c.l.bf16 %v2374
    %v6810 = vunpack.c.h.bf16 %v2374
    %v6811 = vunpack.c.l.bf16 %v2375
    %v6812 = vunpack.c.h.bf16 %v2375
    %v6813 = vunpack.c.l.bf16 %v2376
    %v6814 = vunpack.c.h.bf16 %v2376
    %v6815 = vadd.f32 %v6687, %v6751
    %v6816 = vadd.f32 %v6688, %v6752
    %v6817 = vadd.f32 %v6689, %v6753
    %v6818 = vadd.f32 %v6690, %v6754
    %v6819 = vadd.f32 %v6691, %v6755
    %v6820 = vadd.f32 %v6692, %v6756
    %v6821 = vadd.f32 %v6693, %v6757
    %v6822 = vadd.f32 %v6694, %v6758
    %v6823 = vadd.f32 %v6695, %v6759
    %v6824 = vadd.f32 %v6696, %v6760
    %v6825 = vadd.f32 %v6697, %v6761
    %v6826 = vadd.f32 %v6698, %v6762
    %v6827 = vadd.f32 %v6699, %v6763
    %v6828 = vadd.f32 %v6700, %v6764
    %v6829 = vadd.f32 %v6701, %v6765
    %v6830 = vadd.f32 %v6702, %v6766
    %v6831 = vadd.f32 %v6703, %v6767
    %v6832 = vadd.f32 %v6704, %v6768
    %v6833 = vadd.f32 %v6705, %v6769
    %v6834 = vadd.f32 %v6706, %v6770
    %v6835 = vadd.f32 %v6707, %v6771
    %v6836 = vadd.f32 %v6708, %v6772
    %v6837 = vadd.f32 %v6709, %v6773
    %v6838 = vadd.f32 %v6710, %v6774
    %v6839 = vadd.f32 %v6711, %v6775
    %v6840 = vadd.f32 %v6712, %v6776
    %v6841 = vadd.f32 %v6713, %v6777
    %v6842 = vadd.f32 %v6714, %v6778
    %v6843 = vadd.f32 %v6715, %v6779
    %v6844 = vadd.f32 %v6716, %v6780
    %v6845 = vadd.f32 %v6717, %v6781
    %v6846 = vadd.f32 %v6718, %v6782
    %v6847 = vadd.f32 %v6719, %v6783
    %v6848 = vadd.f32 %v6720, %v6784
    %v6849 = vadd.f32 %v6721, %v6785
    %v6850 = vadd.f32 %v6722, %v6786
    %v6851 = vadd.f32 %v6723, %v6787
    %v6852 = vadd.f32 %v6724, %v6788
    %v6853 = vadd.f32 %v6725, %v6789
    %v6854 = vadd.f32 %v6726, %v6790
    %v6855 = vadd.f32 %v6727, %v6791
    %v6856 = vadd.f32 %v6728, %v6792
    %v6857 = vadd.f32 %v6729, %v6793
    %v6858 = vadd.f32 %v6730, %v6794
    %v6859 = vadd.f32 %v6731, %v6795
    %v6860 = vadd.f32 %v6732, %v6796
    %v6861 = vadd.f32 %v6733, %v6797
    %v6862 = vadd.f32 %v6734, %v6798
    %v6863 = vadd.f32 %v6735, %v6799
    %v6864 = vadd.f32 %v6736, %v6800
    %v6865 = vadd.f32 %v6737, %v6801
    %v6866 = vadd.f32 %v6738, %v6802
    %v6867 = vadd.f32 %v6739, %v6803
    %v6868 = vadd.f32 %v6740, %v6804
    %v6869 = vadd.f32 %v6741, %v6805
    %v6870 = vadd.f32 %v6742, %v6806
    %v6871 = vadd.f32 %v6743, %v6807
    %v6872 = vadd.f32 %v6744, %v6808
    %v6873 = vadd.f32 %v6745, %v6809
    %v6874 = vadd.f32 %v6746, %v6810
    %v6875 = vadd.f32 %v6747, %v6811
    %v6876 = vadd.f32 %v6748, %v6812
    %v6877 = vadd.f32 %v6749, %v6813
    %v6878 = vadd.f32 %v6750, %v6814
    %v6879 = vadd.f32 %v6815, %v266
    %v6880 = vadd.f32 %v6816, %v267
    %v6881 = vadd.f32 %v6817, %v266
    %v6882 = vadd.f32 %v6818, %v267
    %v6883 = vadd.f32 %v6819, %v266
    %v6884 = vadd.f32 %v6820, %v267
    %v6885 = vadd.f32 %v6821, %v266
    %v6886 = vadd.f32 %v6822, %v267
    %v6887 = vadd.f32 %v6823, %v266
    %v6888 = vadd.f32 %v6824, %v267
    %v6889 = vadd.f32 %v6825, %v266
    %v6890 = vadd.f32 %v6826, %v267
    %v6891 = vadd.f32 %v6827, %v266
    %v6892 = vadd.f32 %v6828, %v267
    %v6893 = vadd.f32 %v6829, %v266
    %v6894 = vadd.f32 %v6830, %v267
    %v6895 = vadd.f32 %v6831, %v266
    %v6896 = vadd.f32 %v6832, %v267
    %v6897 = vadd.f32 %v6833, %v266
    %v6898 = vadd.f32 %v6834, %v267
    %v6899 = vadd.f32 %v6835, %v266
    %v6900 = vadd.f32 %v6836, %v267
    %v6901 = vadd.f32 %v6837, %v266
    %v6902 = vadd.f32 %v6838, %v267
    %v6903 = vadd.f32 %v6839, %v266
    %v6904 = vadd.f32 %v6840, %v267
    %v6905 = vadd.f32 %v6841, %v266
    %v6906 = vadd.f32 %v6842, %v267
    %v6907 = vadd.f32 %v6843, %v266
    %v6908 = vadd.f32 %v6844, %v267
    %v6909 = vadd.f32 %v6845, %v266
    %v6910 = vadd.f32 %v6846, %v267
    %v6911 = vadd.f32 %v6847, %v266
    %v6912 = vadd.f32 %v6848, %v267
    %v6913 = vadd.f32 %v6849, %v266
    %v6914 = vadd.f32 %v6850, %v267
    %v6915 = vadd.f32 %v6851, %v266
    %v6916 = vadd.f32 %v6852, %v267
    %v6917 = vadd.f32 %v6853, %v266
    %v6918 = vadd.f32 %v6854, %v267
    %v6919 = vadd.f32 %v6855, %v266
    %v6920 = vadd.f32 %v6856, %v267
    %v6921 = vadd.f32 %v6857, %v266
    %v6922 = vadd.f32 %v6858, %v267
    %v6923 = vadd.f32 %v6859, %v266
    %v6924 = vadd.f32 %v6860, %v267
    %v6925 = vadd.f32 %v6861, %v266
    %v6926 = vadd.f32 %v6862, %v267
    %v6927 = vadd.f32 %v6863, %v266
    %v6928 = vadd.f32 %v6864, %v267
    %v6929 = vadd.f32 %v6865, %v266
    %v6930 = vadd.f32 %v6866, %v267
    %v6931 = vadd.f32 %v6867, %v266
    %v6932 = vadd.f32 %v6868, %v267
    %v6933 = vadd.f32 %v6869, %v266
    %v6934 = vadd.f32 %v6870, %v267
    %v6935 = vadd.f32 %v6871, %v266
    %v6936 = vadd.f32 %v6872, %v267
    %v6937 = vadd.f32 %v6873, %v266
    %v6938 = vadd.f32 %v6874, %v267
    %v6939 = vadd.f32 %v6875, %v266
    %v6940 = vadd.f32 %v6876, %v267
    %v6941 = vadd.f32 %v6877, %v266
    %v6942 = vadd.f32 %v6878, %v267
    %v6943 = vmax.f32 %v6879, %v6880
    %6944 = vmax.xlane.f32.xlu0 %v6943
    %v6945 = vpop.xlane.xlu0 %6944
    %v6946 = vmax.f32 %v6881, %v6882
    %6947 = vmax.xlane.f32.xlu0 %v6946
    %v6948 = vpop.xlane.xlu0 %6947
    %v6949 = vmax.f32 %v6883, %v6884
    %6950 = vmax.xlane.f32.xlu0 %v6949
    %v6951 = vpop.xlane.xlu0 %6950
    %v6952 = vmax.f32 %v6885, %v6886
    %6953 = vmax.xlane.f32.xlu0 %v6952
    %v6954 = vpop.xlane.xlu0 %6953
    %v6955 = vmax.f32 %v6887, %v6888
    %6956 = vmax.xlane.f32.xlu0 %v6955
    %v6957 = vpop.xlane.xlu0 %6956
    %v6958 = vmax.f32 %v6889, %v6890
    %6959 = vmax.xlane.f32.xlu0 %v6958
    %v6960 = vpop.xlane.xlu0 %6959
    %v6961 = vmax.f32 %v6891, %v6892
    %6962 = vmax.xlane.f32.xlu0 %v6961
    %v6963 = vpop.xlane.xlu0 %6962
    %v6964 = vmax.f32 %v6893, %v6894
    %6965 = vmax.xlane.f32.xlu0 %v6964
    %v6966 = vpop.xlane.xlu0 %6965
    %v6967 = vmax.f32 %v6895, %v6896
    %6968 = vmax.xlane.f32.xlu0 %v6967
    %v6969 = vpop.xlane.xlu0 %6968
    %v6970 = vmax.f32 %v6897, %v6898
    %6971 = vmax.xlane.f32.xlu0 %v6970
    %v6972 = vpop.xlane.xlu0 %6971
    %v6973 = vmax.f32 %v6899, %v6900
    %6974 = vmax.xlane.f32.xlu0 %v6973
    %v6975 = vpop.xlane.xlu0 %6974
    %v6976 = vmax.f32 %v6901, %v6902
    %6977 = vmax.xlane.f32.xlu0 %v6976
    %v6978 = vpop.xlane.xlu0 %6977
    %v6979 = vmax.f32 %v6903, %v6904
    %6980 = vmax.xlane.f32.xlu0 %v6979
    %v6981 = vpop.xlane.xlu0 %6980
    %v6982 = vmax.f32 %v6905, %v6906
    %6983 = vmax.xlane.f32.xlu0 %v6982
    %v6984 = vpop.xlane.xlu0 %6983
    %v6985 = vmax.f32 %v6907, %v6908
    %6986 = vmax.xlane.f32.xlu0 %v6985
    %v6987 = vpop.xlane.xlu0 %6986
    %v6988 = vmax.f32 %v6909, %v6910
    %6989 = vmax.xlane.f32.xlu0 %v6988
    %v6990 = vpop.xlane.xlu0 %6989
    %v6991 = vmax.f32 %v6911, %v6912
    %6992 = vmax.xlane.f32.xlu0 %v6991
    %v6993 = vpop.xlane.xlu0 %6992
    %v6994 = vmax.f32 %v6913, %v6914
    %6995 = vmax.xlane.f32.xlu0 %v6994
    %v6996 = vpop.xlane.xlu0 %6995
    %v6997 = vmax.f32 %v6915, %v6916
    %6998 = vmax.xlane.f32.xlu0 %v6997
    %v6999 = vpop.xlane.xlu0 %6998
    %v7000 = vmax.f32 %v6917, %v6918
    %7001 = vmax.xlane.f32.xlu0 %v7000
    %v7002 = vpop.xlane.xlu0 %7001
    %v7003 = vmax.f32 %v6919, %v6920
    %7004 = vmax.xlane.f32.xlu0 %v7003
    %v7005 = vpop.xlane.xlu0 %7004
    %v7006 = vmax.f32 %v6921, %v6922
    %7007 = vmax.xlane.f32.xlu0 %v7006
    %v7008 = vpop.xlane.xlu0 %7007
    %v7009 = vmax.f32 %v6923, %v6924
    %7010 = vmax.xlane.f32.xlu0 %v7009
    %v7011 = vpop.xlane.xlu0 %7010
    %v7012 = vmax.f32 %v6925, %v6926
    %7013 = vmax.xlane.f32.xlu0 %v7012
    %v7014 = vpop.xlane.xlu0 %7013
    %v7015 = vmax.f32 %v6927, %v6928
    %7016 = vmax.xlane.f32.xlu0 %v7015
    %v7017 = vpop.xlane.xlu0 %7016
    %v7018 = vmax.f32 %v6929, %v6930
    %7019 = vmax.xlane.f32.xlu0 %v7018
    %v7020 = vpop.xlane.xlu0 %7019
    %v7021 = vmax.f32 %v6931, %v6932
    %7022 = vmax.xlane.f32.xlu0 %v7021
    %v7023 = vpop.xlane.xlu0 %7022
    %v7024 = vmax.f32 %v6933, %v6934
    %7025 = vmax.xlane.f32.xlu0 %v7024
    %v7026 = vpop.xlane.xlu0 %7025
    %v7027 = vmax.f32 %v6935, %v6936
    %7028 = vmax.xlane.f32.xlu0 %v7027
    %v7029 = vpop.xlane.xlu0 %7028
    %v7030 = vmax.f32 %v6937, %v6938
    %7031 = vmax.xlane.f32.xlu0 %v7030
    %v7032 = vpop.xlane.xlu0 %7031
    %v7033 = vmax.f32 %v6939, %v6940
    %7034 = vmax.xlane.f32.xlu0 %v7033
    %v7035 = vpop.xlane.xlu0 %7034
    %v7036 = vmax.f32 %v6941, %v6942
    %7037 = vmax.xlane.f32.xlu0 %v7036
    %v7038 = vpop.xlane.xlu0 %7037
    %v7039 = vsub.f32 %v6879, %v6945
    %v7040 = vsub.f32 %v6880, %v6945
    %v7041 = vsub.f32 %v6881, %v6948
    %v7042 = vsub.f32 %v6882, %v6948
    %v7043 = vsub.f32 %v6883, %v6951
    %v7044 = vsub.f32 %v6884, %v6951
    %v7045 = vsub.f32 %v6885, %v6954
    %v7046 = vsub.f32 %v6886, %v6954
    %v7047 = vsub.f32 %v6887, %v6957
    %v7048 = vsub.f32 %v6888, %v6957
    %v7049 = vsub.f32 %v6889, %v6960
    %v7050 = vsub.f32 %v6890, %v6960
    %v7051 = vsub.f32 %v6891, %v6963
    %v7052 = vsub.f32 %v6892, %v6963
    %v7053 = vsub.f32 %v6893, %v6966
    %v7054 = vsub.f32 %v6894, %v6966
    %v7055 = vsub.f32 %v6895, %v6969
    %v7056 = vsub.f32 %v6896, %v6969
    %v7057 = vsub.f32 %v6897, %v6972
    %v7058 = vsub.f32 %v6898, %v6972
    %v7059 = vsub.f32 %v6899, %v6975
    %v7060 = vsub.f32 %v6900, %v6975
    %v7061 = vsub.f32 %v6901, %v6978
    %v7062 = vsub.f32 %v6902, %v6978
    %v7063 = vsub.f32 %v6903, %v6981
    %v7064 = vsub.f32 %v6904, %v6981
    %v7065 = vsub.f32 %v6905, %v6984
    %v7066 = vsub.f32 %v6906, %v6984
    %v7067 = vsub.f32 %v6907, %v6987
    %v7068 = vsub.f32 %v6908, %v6987
    %v7069 = vsub.f32 %v6909, %v6990
    %v7070 = vsub.f32 %v6910, %v6990
    %v7071 = vsub.f32 %v6911, %v6993
    %v7072 = vsub.f32 %v6912, %v6993
    %v7073 = vsub.f32 %v6913, %v6996
    %v7074 = vsub.f32 %v6914, %v6996
    %v7075 = vsub.f32 %v6915, %v6999
    %v7076 = vsub.f32 %v6916, %v6999
    %v7077 = vsub.f32 %v6917, %v7002
    %v7078 = vsub.f32 %v6918, %v7002
    %v7079 = vsub.f32 %v6919, %v7005
    %v7080 = vsub.f32 %v6920, %v7005
    %v7081 = vsub.f32 %v6921, %v7008
    %v7082 = vsub.f32 %v6922, %v7008
    %v7083 = vsub.f32 %v6923, %v7011
    %v7084 = vsub.f32 %v6924, %v7011
    %v7085 = vsub.f32 %v6925, %v7014
    %v7086 = vsub.f32 %v6926, %v7014
    %v7087 = vsub.f32 %v6927, %v7017
    %v7088 = vsub.f32 %v6928, %v7017
    %v7089 = vsub.f32 %v6929, %v7020
    %v7090 = vsub.f32 %v6930, %v7020
    %v7091 = vsub.f32 %v6931, %v7023
    %v7092 = vsub.f32 %v6932, %v7023
    %v7093 = vsub.f32 %v6933, %v7026
    %v7094 = vsub.f32 %v6934, %v7026
    %v7095 = vsub.f32 %v6935, %v7029
    %v7096 = vsub.f32 %v6936, %v7029
    %v7097 = vsub.f32 %v6937, %v7032
    %v7098 = vsub.f32 %v6938, %v7032
    %v7099 = vsub.f32 %v6939, %v7035
    %v7100 = vsub.f32 %v6940, %v7035
    %v7101 = vsub.f32 %v6941, %v7038
    %v7102 = vsub.f32 %v6942, %v7038
    %v7103 = vmul.f32 %v7039, 1.442695
    %v7104 = vpow.pop %v7103
    %v7105 = vmul.f32 %v7040, 1.442695
    %v7106 = vpow.pop %v7105
    %v7107 = vmul.f32 %v7041, 1.442695
    %v7108 = vpow.pop %v7107
    %v7109 = vmul.f32 %v7042, 1.442695
    %v7110 = vpow.pop %v7109
    %v7111 = vmul.f32 %v7043, 1.442695
    %v7112 = vpow.pop %v7111
    %v7113 = vmul.f32 %v7044, 1.442695
    %v7114 = vpow.pop %v7113
    %v7115 = vmul.f32 %v7045, 1.442695
    %v7116 = vpow.pop %v7115
    %v7117 = vmul.f32 %v7046, 1.442695
    %v7118 = vpow.pop %v7117
    %v7119 = vmul.f32 %v7047, 1.442695
    %v7120 = vpow.pop %v7119
    %v7121 = vmul.f32 %v7048, 1.442695
    %v7122 = vpow.pop %v7121
    %v7123 = vmul.f32 %v7049, 1.442695
    %v7124 = vpow.pop %v7123
    %v7125 = vmul.f32 %v7050, 1.442695
    %v7126 = vpow.pop %v7125
    %v7127 = vmul.f32 %v7051, 1.442695
    %v7128 = vpow.pop %v7127
    %v7129 = vmul.f32 %v7052, 1.442695
    %v7130 = vpow.pop %v7129
    %v7131 = vmul.f32 %v7053, 1.442695
    %v7132 = vpow.pop %v7131
    %v7133 = vmul.f32 %v7054, 1.442695
    %v7134 = vpow.pop %v7133
    %v7135 = vmul.f32 %v7055, 1.442695
    %v7136 = vpow.pop %v7135
    %v7137 = vmul.f32 %v7056, 1.442695
    %v7138 = vpow.pop %v7137
    %v7139 = vmul.f32 %v7057, 1.442695
    %v7140 = vpow.pop %v7139
    %v7141 = vmul.f32 %v7058, 1.442695
    %v7142 = vpow.pop %v7141
    %v7143 = vmul.f32 %v7059, 1.442695
    %v7144 = vpow.pop %v7143
    %v7145 = vmul.f32 %v7060, 1.442695
    %v7146 = vpow.pop %v7145
    %v7147 = vmul.f32 %v7061, 1.442695
    %v7148 = vpow.pop %v7147
    %v7149 = vmul.f32 %v7062, 1.442695
    %v7150 = vpow.pop %v7149
    %v7151 = vmul.f32 %v7063, 1.442695
    %v7152 = vpow.pop %v7151
    %v7153 = vmul.f32 %v7064, 1.442695
    %v7154 = vpow.pop %v7153
    %v7155 = vmul.f32 %v7065, 1.442695
    %v7156 = vpow.pop %v7155
    %v7157 = vmul.f32 %v7066, 1.442695
    %v7158 = vpow.pop %v7157
    %v7159 = vmul.f32 %v7067, 1.442695
    %v7160 = vpow.pop %v7159
    %v7161 = vmul.f32 %v7068, 1.442695
    %v7162 = vpow.pop %v7161
    %v7163 = vmul.f32 %v7069, 1.442695
    %v7164 = vpow.pop %v7163
    %v7165 = vmul.f32 %v7070, 1.442695
    %v7166 = vpow.pop %v7165
    %v7167 = vmul.f32 %v7071, 1.442695
    %v7168 = vpow.pop %v7167
    %v7169 = vmul.f32 %v7072, 1.442695
    %v7170 = vpow.pop %v7169
    %v7171 = vmul.f32 %v7073, 1.442695
    %v7172 = vpow.pop %v7171
    %v7173 = vmul.f32 %v7074, 1.442695
    %v7174 = vpow.pop %v7173
    %v7175 = vmul.f32 %v7075, 1.442695
    %v7176 = vpow.pop %v7175
    %v7177 = vmul.f32 %v7076, 1.442695
    %v7178 = vpow.pop %v7177
    %v7179 = vmul.f32 %v7077, 1.442695
    %v7180 = vpow.pop %v7179
    %v7181 = vmul.f32 %v7078, 1.442695
    %v7182 = vpow.pop %v7181
    %v7183 = vmul.f32 %v7079, 1.442695
    %v7184 = vpow.pop %v7183
    %v7185 = vmul.f32 %v7080, 1.442695
    %v7186 = vpow.pop %v7185
    %v7187 = vmul.f32 %v7081, 1.442695
    %v7188 = vpow.pop %v7187
    %v7189 = vmul.f32 %v7082, 1.442695
    %v7190 = vpow.pop %v7189
    %v7191 = vmul.f32 %v7083, 1.442695
    %v7192 = vpow.pop %v7191
    %v7193 = vmul.f32 %v7084, 1.442695
    %v7194 = vpow.pop %v7193
    %v7195 = vmul.f32 %v7085, 1.442695
    %v7196 = vpow.pop %v7195
    %v7197 = vmul.f32 %v7086, 1.442695
    %v7198 = vpow.pop %v7197
    %v7199 = vmul.f32 %v7087, 1.442695
    %v7200 = vpow.pop %v7199
    %v7201 = vmul.f32 %v7088, 1.442695
    %v7202 = vpow.pop %v7201
    %v7203 = vmul.f32 %v7089, 1.442695
    %v7204 = vpow.pop %v7203
    %v7205 = vmul.f32 %v7090, 1.442695
    %v7206 = vpow.pop %v7205
    %v7207 = vmul.f32 %v7091, 1.442695
    %v7208 = vpow.pop %v7207
    %v7209 = vmul.f32 %v7092, 1.442695
    %v7210 = vpow.pop %v7209
    %v7211 = vmul.f32 %v7093, 1.442695
    %v7212 = vpow.pop %v7211
    %v7213 = vmul.f32 %v7094, 1.442695
    %v7214 = vpow.pop %v7213
    %v7215 = vmul.f32 %v7095, 1.442695
    %v7216 = vpow.pop %v7215
    %v7217 = vmul.f32 %v7096, 1.442695
    %v7218 = vpow.pop %v7217
    %v7219 = vmul.f32 %v7097, 1.442695
    %v7220 = vpow.pop %v7219
    %v7221 = vmul.f32 %v7098, 1.442695
    %v7222 = vpow.pop %v7221
    %v7223 = vmul.f32 %v7099, 1.442695
    %v7224 = vpow.pop %v7223
    %v7225 = vmul.f32 %v7100, 1.442695
    %v7226 = vpow.pop %v7225
    %v7227 = vmul.f32 %v7101, 1.442695
    %v7228 = vpow.pop %v7227
    %v7229 = vmul.f32 %v7102, 1.442695
    %v7230 = vpow.pop %v7229
    %v7231 = vadd.f32 %v7104, %v7106
    %7232 = vadd.xlane.f32.xlu0 %v7231
    %v7233 = vpop.xlane.xlu0 %7232
    %v7234 = vadd.f32 %v7108, %v7110
    %7235 = vadd.xlane.f32.xlu0 %v7234
    %v7236 = vpop.xlane.xlu0 %7235
    %v7237 = vadd.f32 %v7112, %v7114
    %7238 = vadd.xlane.f32.xlu0 %v7237
    %v7239 = vpop.xlane.xlu0 %7238
    %v7240 = vadd.f32 %v7116, %v7118
    %7241 = vadd.xlane.f32.xlu0 %v7240
    %v7242 = vpop.xlane.xlu0 %7241
    %v7243 = vadd.f32 %v7120, %v7122
    %7244 = vadd.xlane.f32.xlu0 %v7243
    %v7245 = vpop.xlane.xlu0 %7244
    %v7246 = vadd.f32 %v7124, %v7126
    %7247 = vadd.xlane.f32.xlu0 %v7246
    %v7248 = vpop.xlane.xlu0 %7247
    %v7249 = vadd.f32 %v7128, %v7130
    %7250 = vadd.xlane.f32.xlu0 %v7249
    %v7251 = vpop.xlane.xlu0 %7250
    %v7252 = vadd.f32 %v7132, %v7134
    %7253 = vadd.xlane.f32.xlu0 %v7252
    %v7254 = vpop.xlane.xlu0 %7253
    %v7255 = vadd.f32 %v7136, %v7138
    %7256 = vadd.xlane.f32.xlu0 %v7255
    %v7257 = vpop.xlane.xlu0 %7256
    %v7258 = vadd.f32 %v7140, %v7142
    %7259 = vadd.xlane.f32.xlu0 %v7258
    %v7260 = vpop.xlane.xlu0 %7259
    %v7261 = vadd.f32 %v7144, %v7146
    %7262 = vadd.xlane.f32.xlu0 %v7261
    %v7263 = vpop.xlane.xlu0 %7262
    %v7264 = vadd.f32 %v7148, %v7150
    %7265 = vadd.xlane.f32.xlu0 %v7264
    %v7266 = vpop.xlane.xlu0 %7265
    %v7267 = vadd.f32 %v7152, %v7154
    %7268 = vadd.xlane.f32.xlu0 %v7267
    %v7269 = vpop.xlane.xlu0 %7268
    %v7270 = vadd.f32 %v7156, %v7158
    %7271 = vadd.xlane.f32.xlu0 %v7270
    %v7272 = vpop.xlane.xlu0 %7271
    %v7273 = vadd.f32 %v7160, %v7162
    %7274 = vadd.xlane.f32.xlu0 %v7273
    %v7275 = vpop.xlane.xlu0 %7274
    %v7276 = vadd.f32 %v7164, %v7166
    %7277 = vadd.xlane.f32.xlu0 %v7276
    %v7278 = vpop.xlane.xlu0 %7277
    %v7279 = vadd.f32 %v7168, %v7170
    %7280 = vadd.xlane.f32.xlu0 %v7279
    %v7281 = vpop.xlane.xlu0 %7280
    %v7282 = vadd.f32 %v7172, %v7174
    %7283 = vadd.xlane.f32.xlu0 %v7282
    %v7284 = vpop.xlane.xlu0 %7283
    %v7285 = vadd.f32 %v7176, %v7178
    %7286 = vadd.xlane.f32.xlu0 %v7285
    %v7287 = vpop.xlane.xlu0 %7286
    %v7288 = vadd.f32 %v7180, %v7182
    %7289 = vadd.xlane.f32.xlu0 %v7288
    %v7290 = vpop.xlane.xlu0 %7289
    %v7291 = vadd.f32 %v7184, %v7186
    %7292 = vadd.xlane.f32.xlu0 %v7291
    %v7293 = vpop.xlane.xlu0 %7292
    %v7294 = vadd.f32 %v7188, %v7190
    %7295 = vadd.xlane.f32.xlu0 %v7294
    %v7296 = vpop.xlane.xlu0 %7295
    %v7297 = vadd.f32 %v7192, %v7194
    %7298 = vadd.xlane.f32.xlu0 %v7297
    %v7299 = vpop.xlane.xlu0 %7298
    %v7300 = vadd.f32 %v7196, %v7198
    %7301 = vadd.xlane.f32.xlu0 %v7300
    %v7302 = vpop.xlane.xlu0 %7301
    %v7303 = vadd.f32 %v7200, %v7202
    %7304 = vadd.xlane.f32.xlu0 %v7303
    %v7305 = vpop.xlane.xlu0 %7304
    %v7306 = vadd.f32 %v7204, %v7206
    %7307 = vadd.xlane.f32.xlu0 %v7306
    %v7308 = vpop.xlane.xlu0 %7307
    %v7309 = vadd.f32 %v7208, %v7210
    %7310 = vadd.xlane.f32.xlu0 %v7309
    %v7311 = vpop.xlane.xlu0 %7310
    %v7312 = vadd.f32 %v7212, %v7214
    %7313 = vadd.xlane.f32.xlu0 %v7312
    %v7314 = vpop.xlane.xlu0 %7313
    %v7315 = vadd.f32 %v7216, %v7218
    %7316 = vadd.xlane.f32.xlu0 %v7315
    %v7317 = vpop.xlane.xlu0 %7316
    %v7318 = vadd.f32 %v7220, %v7222
    %7319 = vadd.xlane.f32.xlu0 %v7318
    %v7320 = vpop.xlane.xlu0 %7319
    %v7321 = vadd.f32 %v7224, %v7226
    %7322 = vadd.xlane.f32.xlu0 %v7321
    %v7323 = vpop.xlane.xlu0 %7322
    %v7324 = vadd.f32 %v7228, %v7230
    %7325 = vadd.xlane.f32.xlu0 %v7324
    %v7326 = vpop.xlane.xlu0 %7325
    %v7327 = vrcp.pop %v7233
    %v7328 = vrcp.pop %v7236
    %v7329 = vrcp.pop %v7239
    %v7330 = vrcp.pop %v7242
    %v7331 = vrcp.pop %v7245
    %v7332 = vrcp.pop %v7248
    %v7333 = vrcp.pop %v7251
    %v7334 = vrcp.pop %v7254
    %v7335 = vrcp.pop %v7257
    %v7336 = vrcp.pop %v7260
    %v7337 = vrcp.pop %v7263
    %v7338 = vrcp.pop %v7266
    %v7339 = vrcp.pop %v7269
    %v7340 = vrcp.pop %v7272
    %v7341 = vrcp.pop %v7275
    %v7342 = vrcp.pop %v7278
    %v7343 = vrcp.pop %v7281
    %v7344 = vrcp.pop %v7284
    %v7345 = vrcp.pop %v7287
    %v7346 = vrcp.pop %v7290
    %v7347 = vrcp.pop %v7293
    %v7348 = vrcp.pop %v7296
    %v7349 = vrcp.pop %v7299
    %v7350 = vrcp.pop %v7302
    %v7351 = vrcp.pop %v7305
    %v7352 = vrcp.pop %v7308
    %v7353 = vrcp.pop %v7311
    %v7354 = vrcp.pop %v7314
    %v7355 = vrcp.pop %v7317
    %v7356 = vrcp.pop %v7320
    %v7357 = vrcp.pop %v7323
    %v7358 = vrcp.pop %v7326
    %v7359 = vmul.f32 %v7104, %v7327
    %v7360 = vmul.f32 %v7106, %v7327
    %v7361 = vmul.f32 %v7108, %v7328
    %v7362 = vmul.f32 %v7110, %v7328
    %v7363 = vmul.f32 %v7112, %v7329
    %v7364 = vmul.f32 %v7114, %v7329
    %v7365 = vmul.f32 %v7116, %v7330
    %v7366 = vmul.f32 %v7118, %v7330
    %v7367 = vmul.f32 %v7120, %v7331
    %v7368 = vmul.f32 %v7122, %v7331
    %v7369 = vmul.f32 %v7124, %v7332
    %v7370 = vmul.f32 %v7126, %v7332
    %v7371 = vmul.f32 %v7128, %v7333
    %v7372 = vmul.f32 %v7130, %v7333
    %v7373 = vmul.f32 %v7132, %v7334
    %v7374 = vmul.f32 %v7134, %v7334
    %v7375 = vmul.f32 %v7136, %v7335
    %v7376 = vmul.f32 %v7138, %v7335
    %v7377 = vmul.f32 %v7140, %v7336
    %v7378 = vmul.f32 %v7142, %v7336
    %v7379 = vmul.f32 %v7144, %v7337
    %v7380 = vmul.f32 %v7146, %v7337
    %v7381 = vmul.f32 %v7148, %v7338
    %v7382 = vmul.f32 %v7150, %v7338
    %v7383 = vmul.f32 %v7152, %v7339
    %v7384 = vmul.f32 %v7154, %v7339
    %v7385 = vmul.f32 %v7156, %v7340
    %v7386 = vmul.f32 %v7158, %v7340
    %v7387 = vmul.f32 %v7160, %v7341
    %v7388 = vmul.f32 %v7162, %v7341
    %v7389 = vmul.f32 %v7164, %v7342
    %v7390 = vmul.f32 %v7166, %v7342
    %v7391 = vmul.f32 %v7168, %v7343
    %v7392 = vmul.f32 %v7170, %v7343
    %v7393 = vmul.f32 %v7172, %v7344
    %v7394 = vmul.f32 %v7174, %v7344
    %v7395 = vmul.f32 %v7176, %v7345
    %v7396 = vmul.f32 %v7178, %v7345
    %v7397 = vmul.f32 %v7180, %v7346
    %v7398 = vmul.f32 %v7182, %v7346
    %v7399 = vmul.f32 %v7184, %v7347
    %v7400 = vmul.f32 %v7186, %v7347
    %v7401 = vmul.f32 %v7188, %v7348
    %v7402 = vmul.f32 %v7190, %v7348
    %v7403 = vmul.f32 %v7192, %v7349
    %v7404 = vmul.f32 %v7194, %v7349
    %v7405 = vmul.f32 %v7196, %v7350
    %v7406 = vmul.f32 %v7198, %v7350
    %v7407 = vmul.f32 %v7200, %v7351
    %v7408 = vmul.f32 %v7202, %v7351
    %v7409 = vmul.f32 %v7204, %v7352
    %v7410 = vmul.f32 %v7206, %v7352
    %v7411 = vmul.f32 %v7208, %v7353
    %v7412 = vmul.f32 %v7210, %v7353
    %v7413 = vmul.f32 %v7212, %v7354
    %v7414 = vmul.f32 %v7214, %v7354
    %v7415 = vmul.f32 %v7216, %v7355
    %v7416 = vmul.f32 %v7218, %v7355
    %v7417 = vmul.f32 %v7220, %v7356
    %v7418 = vmul.f32 %v7222, %v7356
    %v7419 = vmul.f32 %v7224, %v7357
    %v7420 = vmul.f32 %v7226, %v7357
    %v7421 = vmul.f32 %v7228, %v7358
    %v7422 = vmul.f32 %v7230, %v7358
    %v7423 = vpack.c.bf16 %v7361, %v7359
    %v7424 = vpack.c.bf16 %v7362, %v7360
    %v7425 = vpack.c.bf16 %v7365, %v7363
    %v7426 = vpack.c.bf16 %v7366, %v7364
    %v7427 = vpack.c.bf16 %v7369, %v7367
    %v7428 = vpack.c.bf16 %v7370, %v7368
    %v7429 = vpack.c.bf16 %v7373, %v7371
    %v7430 = vpack.c.bf16 %v7374, %v7372
    %v7431 = vpack.c.bf16 %v7377, %v7375
    %v7432 = vpack.c.bf16 %v7378, %v7376
    %v7433 = vpack.c.bf16 %v7381, %v7379
    %v7434 = vpack.c.bf16 %v7382, %v7380
    %v7435 = vpack.c.bf16 %v7385, %v7383
    %v7436 = vpack.c.bf16 %v7386, %v7384
    %v7437 = vpack.c.bf16 %v7389, %v7387
    %v7438 = vpack.c.bf16 %v7390, %v7388
    %v7439 = vpack.c.bf16 %v7393, %v7391
    %v7440 = vpack.c.bf16 %v7394, %v7392
    %v7441 = vpack.c.bf16 %v7397, %v7395
    %v7442 = vpack.c.bf16 %v7398, %v7396
    %v7443 = vpack.c.bf16 %v7401, %v7399
    %v7444 = vpack.c.bf16 %v7402, %v7400
    %v7445 = vpack.c.bf16 %v7405, %v7403
    %v7446 = vpack.c.bf16 %v7406, %v7404
    %v7447 = vpack.c.bf16 %v7409, %v7407
    %v7448 = vpack.c.bf16 %v7410, %v7408
    %v7449 = vpack.c.bf16 %v7413, %v7411
    %v7450 = vpack.c.bf16 %v7414, %v7412
    %v7451 = vpack.c.bf16 %v7417, %v7415
    %v7452 = vpack.c.bf16 %v7418, %v7416
    %v7453 = vpack.c.bf16 %v7421, %v7419
    %v7454 = vpack.c.bf16 %v7422, %v7420
    %v7455 = vpack.c.bf16 %v6400, %v6398
    %v7456 = vpack.c.bf16 %v6405, %v6403
    %v7457 = vpack.c.bf16 %v6410, %v6408
    %v7458 = vpack.c.bf16 %v6415, %v6413
    %v7459 = vpack.c.bf16 %v6420, %v6418
    %v7460 = vpack.c.bf16 %v6425, %v6423
    %v7461 = vpack.c.bf16 %v6430, %v6428
    %v7462 = vpack.c.bf16 %v6435, %v6433
    %v7463 = vpack.c.bf16 %v6440, %v6438
    %v7464 = vpack.c.bf16 %v6445, %v6443
    %v7465 = vpack.c.bf16 %v6450, %v6448
    %v7466 = vpack.c.bf16 %v6455, %v6453
    %v7467 = vpack.c.bf16 %v6460, %v6458
    %v7468 = vpack.c.bf16 %v6465, %v6463
    %v7469 = vpack.c.bf16 %v6470, %v6468
    %v7470 = vpack.c.bf16 %v6475, %v6473
    %7471 = vmatpush.bf16.msra.mxu0 %v7462
    %7472 = vmatpush.bf16.msra.mxu0 %v7461
    %7473 = vmatpush.bf16.msra.mxu0 %v7460
    %7474 = vmatpush.bf16.msra.mxu0 %v7459
    %7475 = vmatpush.bf16.msra.mxu0 %v7458
    %7476 = vmatpush.bf16.msra.mxu0 %v7457
    %7477 = vmatpush.bf16.msra.mxu0 %v7456
    %7478 = vmatpush.bf16.msra.mxu0 %v7455
    %7479 = vmatmul.bf16.gmra.mxu0 %v7423
    %v7480 = vpop.f32.mrf.mxu0
    %v7481 = vadd.f32 0.0, %v7480
    %v7482 = vpop.f32.mrf.mxu0
    %v7483 = vadd.f32 0.0, %v7482
    %7484 = vmatmul.bf16.gmra.mxu0 %v7425
    %v7485 = vpop.f32.mrf.mxu0
    %v7486 = vadd.f32 0.0, %v7485
    %v7487 = vpop.f32.mrf.mxu0
    %v7488 = vadd.f32 0.0, %v7487
    %7489 = vmatmul.bf16.gmra.mxu0 %v7427
    %v7490 = vpop.f32.mrf.mxu0
    %v7491 = vadd.f32 0.0, %v7490
    %v7492 = vpop.f32.mrf.mxu0
    %v7493 = vadd.f32 0.0, %v7492
    %7494 = vmatmul.bf16.gmra.mxu0 %v7429
    %v7495 = vpop.f32.mrf.mxu0
    %v7496 = vadd.f32 0.0, %v7495
    %v7497 = vpop.f32.mrf.mxu0
    %v7498 = vadd.f32 0.0, %v7497
    %7499 = vmatmul.bf16.gmra.mxu0 %v7431
    %v7500 = vpop.f32.mrf.mxu0
    %v7501 = vadd.f32 0.0, %v7500
    %v7502 = vpop.f32.mrf.mxu0
    %v7503 = vadd.f32 0.0, %v7502
    %7504 = vmatmul.bf16.gmra.mxu0 %v7433
    %v7505 = vpop.f32.mrf.mxu0
    %v7506 = vadd.f32 0.0, %v7505
    %v7507 = vpop.f32.mrf.mxu0
    %v7508 = vadd.f32 0.0, %v7507
    %7509 = vmatmul.bf16.gmra.mxu0 %v7435
    %v7510 = vpop.f32.mrf.mxu0
    %v7511 = vadd.f32 0.0, %v7510
    %v7512 = vpop.f32.mrf.mxu0
    %v7513 = vadd.f32 0.0, %v7512
    %7514 = vmatmul.bf16.gmra.mxu0 %v7437
    %v7515 = vpop.f32.mrf.mxu0
    %v7516 = vadd.f32 0.0, %v7515
    %v7517 = vpop.f32.mrf.mxu0
    %v7518 = vadd.f32 0.0, %v7517
    %7519 = vmatmul.bf16.gmra.mxu0 %v7439
    %v7520 = vpop.f32.mrf.mxu0
    %v7521 = vadd.f32 0.0, %v7520
    %v7522 = vpop.f32.mrf.mxu0
    %v7523 = vadd.f32 0.0, %v7522
    %7524 = vmatmul.bf16.gmra.mxu0 %v7441
    %v7525 = vpop.f32.mrf.mxu0
    %v7526 = vadd.f32 0.0, %v7525
    %v7527 = vpop.f32.mrf.mxu0
    %v7528 = vadd.f32 0.0, %v7527
    %7529 = vmatmul.bf16.gmra.mxu0 %v7443
    %v7530 = vpop.f32.mrf.mxu0
    %v7531 = vadd.f32 0.0, %v7530
    %v7532 = vpop.f32.mrf.mxu0
    %v7533 = vadd.f32 0.0, %v7532
    %7534 = vmatmul.bf16.gmra.mxu0 %v7445
    %v7535 = vpop.f32.mrf.mxu0
    %v7536 = vadd.f32 0.0, %v7535
    %v7537 = vpop.f32.mrf.mxu0
    %v7538 = vadd.f32 0.0, %v7537
    %7539 = vmatmul.bf16.gmra.mxu0 %v7447
    %v7540 = vpop.f32.mrf.mxu0
    %v7541 = vadd.f32 0.0, %v7540
    %v7542 = vpop.f32.mrf.mxu0
    %v7543 = vadd.f32 0.0, %v7542
    %7544 = vmatmul.bf16.gmra.mxu0 %v7449
    %v7545 = vpop.f32.mrf.mxu0
    %v7546 = vadd.f32 0.0, %v7545
    %v7547 = vpop.f32.mrf.mxu0
    %v7548 = vadd.f32 0.0, %v7547
    %7549 = vmatmul.bf16.gmra.mxu0 %v7451
    %v7550 = vpop.f32.mrf.mxu0
    %v7551 = vadd.f32 0.0, %v7550
    %v7552 = vpop.f32.mrf.mxu0
    %v7553 = vadd.f32 0.0, %v7552
    %7554 = vmatmul.bf16.gmra.mxu0 %v7453
    %v7555 = vpop.f32.mrf.mxu0
    %v7556 = vadd.f32 0.0, %v7555
    %v7557 = vpop.f32.mrf.mxu0
    %v7558 = vadd.f32 0.0, %v7557
    %7559 = vdwg.mxu0
    %7560 = vmatpush.bf16.msra.mxu0 %v7470
    %7561 = vmatpush.bf16.msra.mxu0 %v7469
    %7562 = vmatpush.bf16.msra.mxu0 %v7468
    %7563 = vmatpush.bf16.msra.mxu0 %v7467
    %7564 = vmatpush.bf16.msra.mxu0 %v7466
    %7565 = vmatpush.bf16.msra.mxu0 %v7465
    %7566 = vmatpush.bf16.msra.mxu0 %v7464
    %7567 = vmatpush.bf16.msra.mxu0 %v7463
    %7568 = vmatmul.bf16.gmra.mxu0 %v7424
    %v7569 = vpop.f32.mrf.mxu0
    %v7570 = vadd.f32 %v7481, %v7569
    %v7571 = vpop.f32.mrf.mxu0
    %v7572 = vadd.f32 %v7483, %v7571
    %7573 = vmatmul.bf16.gmra.mxu0 %v7426
    %v7574 = vpop.f32.mrf.mxu0
    %v7575 = vadd.f32 %v7486, %v7574
    %v7576 = vpop.f32.mrf.mxu0
    %v7577 = vadd.f32 %v7488, %v7576
    %7578 = vmatmul.bf16.gmra.mxu0 %v7428
    %v7579 = vpop.f32.mrf.mxu0
    %v7580 = vadd.f32 %v7491, %v7579
    %v7581 = vpop.f32.mrf.mxu0
    %v7582 = vadd.f32 %v7493, %v7581
    %7583 = vmatmul.bf16.gmra.mxu0 %v7430
    %v7584 = vpop.f32.mrf.mxu0
    %v7585 = vadd.f32 %v7496, %v7584
    %v7586 = vpop.f32.mrf.mxu0
    %v7587 = vadd.f32 %v7498, %v7586
    %7588 = vmatmul.bf16.gmra.mxu0 %v7432
    %v7589 = vpop.f32.mrf.mxu0
    %v7590 = vadd.f32 %v7501, %v7589
    %v7591 = vpop.f32.mrf.mxu0
    %v7592 = vadd.f32 %v7503, %v7591
    %7593 = vmatmul.bf16.gmra.mxu0 %v7434
    %v7594 = vpop.f32.mrf.mxu0
    %v7595 = vadd.f32 %v7506, %v7594
    %v7596 = vpop.f32.mrf.mxu0
    %v7597 = vadd.f32 %v7508, %v7596
    %7598 = vmatmul.bf16.gmra.mxu0 %v7436
    %v7599 = vpop.f32.mrf.mxu0
    %v7600 = vadd.f32 %v7511, %v7599
    %v7601 = vpop.f32.mrf.mxu0
    %v7602 = vadd.f32 %v7513, %v7601
    %7603 = vmatmul.bf16.gmra.mxu0 %v7438
    %v7604 = vpop.f32.mrf.mxu0
    %v7605 = vadd.f32 %v7516, %v7604
    %v7606 = vpop.f32.mrf.mxu0
    %v7607 = vadd.f32 %v7518, %v7606
    %7608 = vmatmul.bf16.gmra.mxu0 %v7440
    %v7609 = vpop.f32.mrf.mxu0
    %v7610 = vadd.f32 %v7521, %v7609
    %v7611 = vpop.f32.mrf.mxu0
    %v7612 = vadd.f32 %v7523, %v7611
    %7613 = vmatmul.bf16.gmra.mxu0 %v7442
    %v7614 = vpop.f32.mrf.mxu0
    %v7615 = vadd.f32 %v7526, %v7614
    %v7616 = vpop.f32.mrf.mxu0
    %v7617 = vadd.f32 %v7528, %v7616
    %7618 = vmatmul.bf16.gmra.mxu0 %v7444
    %v7619 = vpop.f32.mrf.mxu0
    %v7620 = vadd.f32 %v7531, %v7619
    %v7621 = vpop.f32.mrf.mxu0
    %v7622 = vadd.f32 %v7533, %v7621
    %7623 = vmatmul.bf16.gmra.mxu0 %v7446
    %v7624 = vpop.f32.mrf.mxu0
    %v7625 = vadd.f32 %v7536, %v7624
    %v7626 = vpop.f32.mrf.mxu0
    %v7627 = vadd.f32 %v7538, %v7626
    %7628 = vmatmul.bf16.gmra.mxu0 %v7448
    %v7629 = vpop.f32.mrf.mxu0
    %v7630 = vadd.f32 %v7541, %v7629
    %v7631 = vpop.f32.mrf.mxu0
    %v7632 = vadd.f32 %v7543, %v7631
    %7633 = vmatmul.bf16.gmra.mxu0 %v7450
    %v7634 = vpop.f32.mrf.mxu0
    %v7635 = vadd.f32 %v7546, %v7634
    %v7636 = vpop.f32.mrf.mxu0
    %v7637 = vadd.f32 %v7548, %v7636
    %7638 = vmatmul.bf16.gmra.mxu0 %v7452
    %v7639 = vpop.f32.mrf.mxu0
    %v7640 = vadd.f32 %v7551, %v7639
    %v7641 = vpop.f32.mrf.mxu0
    %v7642 = vadd.f32 %v7553, %v7641
    %7643 = vmatmul.bf16.gmra.mxu0 %v7454
    %v7644 = vpop.f32.mrf.mxu0
    %v7645 = vadd.f32 %v7556, %v7644
    %v7646 = vpop.f32.mrf.mxu0
    %v7647 = vadd.f32 %v7558, %v7646
    %7648 = vdwg.mxu0
    %s7649 = scalar_lea.vmem [#allocation10], 64
    %v7650 = vld [vmem:[%s7649] sm:$0xf]
    %v7651 = vld [vmem:[%s7649 + $0x4] sm:$0xf]
    %v7652 = vld [vmem:[%s7649 + $0x8] sm:$0xf]
    %v7653 = vld [vmem:[%s7649 + $0xc] sm:$0xf]
    %v7654 = vld [vmem:[%s7649 + $0x10] sm:$0xf]
    %v7655 = vld [vmem:[%s7649 + $0x14] sm:$0xf]
    %v7656 = vld [vmem:[%s7649 + $0x18] sm:$0xf]
    %v7657 = vld [vmem:[%s7649 + $0x1c] sm:$0xf]
    %v7658 = vld [vmem:[%s7649 + $0x20] sm:$0xf]
    %v7659 = vld [vmem:[%s7649 + $0x24] sm:$0xf]
    %v7660 = vld [vmem:[%s7649 + $0x28] sm:$0xf]
    %v7661 = vld [vmem:[%s7649 + $0x2c] sm:$0xf]
    %v7662 = vld [vmem:[%s7649 + $0x30] sm:$0xf]
    %v7663 = vld [vmem:[%s7649 + $0x34] sm:$0xf]
    %v7664 = vld [vmem:[%s7649 + $0x38] sm:$0xf]
    %v7665 = vld [vmem:[%s7649 + $0x3c] sm:$0xf]
    %s7666 = scalar_lea.vmem %s5, 1
    %v7667 = vld [vmem:[%s7666] sm:$0x1]
    %v7668 = vpack.c.bf16 %v7572, %v7570
    %v7669 = vpack.c.bf16 %v7577, %v7575
    %v7670 = vpack.c.bf16 %v7582, %v7580
    %v7671 = vpack.c.bf16 %v7587, %v7585
    %v7672 = vpack.c.bf16 %v7592, %v7590
    %v7673 = vpack.c.bf16 %v7597, %v7595
    %v7674 = vpack.c.bf16 %v7602, %v7600
    %v7675 = vpack.c.bf16 %v7607, %v7605
    %v7676 = vpack.c.bf16 %v7612, %v7610
    %v7677 = vpack.c.bf16 %v7617, %v7615
    %v7678 = vpack.c.bf16 %v7622, %v7620
    %v7679 = vpack.c.bf16 %v7627, %v7625
    %v7680 = vpack.c.bf16 %v7632, %v7630
    %v7681 = vpack.c.bf16 %v7637, %v7635
    %v7682 = vpack.c.bf16 %v7642, %v7640
    %v7683 = vpack.c.bf16 %v7647, %v7645
    %v7700 = vunpack.c.l.b16 %v7650
    %v7701 = vunpack.c.l.b16 %v7651
    %v7702 = vunpack.c.l.b16 %v7652
    %v7703 = vunpack.c.l.b16 %v7653
    %v7704 = vunpack.c.l.b16 %v7654
    %v7705 = vunpack.c.l.b16 %v7655
    %v7706 = vunpack.c.l.b16 %v7656
    %v7707 = vunpack.c.l.b16 %v7657
    %v7708 = vunpack.c.l.b16 %v7658
    %v7709 = vunpack.c.l.b16 %v7659
    %v7710 = vunpack.c.l.b16 %v7660
    %v7711 = vunpack.c.l.b16 %v7661
    %v7712 = vunpack.c.l.b16 %v7662
    %v7713 = vunpack.c.l.b16 %v7663
    %v7714 = vunpack.c.l.b16 %v7664
    %v7715 = vunpack.c.l.b16 %v7665
    %v7716 = vpack.c.b16 %v7701, %v7700
    %v7717 = vpack.c.b16 %v7703, %v7702
    %v7718 = vpack.c.b16 %v7705, %v7704
    %v7719 = vpack.c.b16 %v7707, %v7706
    %v7720 = vpack.c.b16 %v7709, %v7708
    %v7721 = vpack.c.b16 %v7711, %v7710
    %v7722 = vpack.c.b16 %v7713, %v7712
    %v7723 = vpack.c.b16 %v7715, %v7714
    %7732 = vmatpush.bf16.msra.mxu0 %v7723
    %7733 = vmatpush.bf16.msra.mxu0 %v7722
    %7734 = vmatpush.bf16.msra.mxu0 %v7721
    %7735 = vmatpush.bf16.msra.mxu0 %v7720
    %7736 = vmatpush.bf16.msra.mxu0 %v7719
    %7737 = vmatpush.bf16.msra.mxu0 %v7718
    %7738 = vmatpush.bf16.msra.mxu0 %v7717
    %7739 = vmatpush.bf16.msra.mxu0 %v7716
    %7740 = vmatmul.bf16.gmra.mxu0 %v7668
    %v7741 = vpop.f32.mrf.mxu0
    %v7742 = vadd.f32 0.0, %v7741
    %v7743 = vpop.f32.mrf.mxu0
    %v7744 = vadd.f32 0.0, %v7743
    %7745 = vmatmul.bf16.gmra.mxu0 %v7669
    %v7746 = vpop.f32.mrf.mxu0
    %v7747 = vadd.f32 0.0, %v7746
    %v7748 = vpop.f32.mrf.mxu0
    %v7749 = vadd.f32 0.0, %v7748
    %7750 = vmatmul.bf16.gmra.mxu0 %v7670
    %v7751 = vpop.f32.mrf.mxu0
    %v7752 = vadd.f32 0.0, %v7751
    %v7753 = vpop.f32.mrf.mxu0
    %v7754 = vadd.f32 0.0, %v7753
    %7755 = vmatmul.bf16.gmra.mxu0 %v7671
    %v7756 = vpop.f32.mrf.mxu0
    %v7757 = vadd.f32 0.0, %v7756
    %v7758 = vpop.f32.mrf.mxu0
    %v7759 = vadd.f32 0.0, %v7758
    %7760 = vmatmul.bf16.gmra.mxu0 %v7672
    %v7761 = vpop.f32.mrf.mxu0
    %v7762 = vadd.f32 0.0, %v7761
    %v7763 = vpop.f32.mrf.mxu0
    %v7764 = vadd.f32 0.0, %v7763
    %7765 = vmatmul.bf16.gmra.mxu0 %v7673
    %v7766 = vpop.f32.mrf.mxu0
    %v7767 = vadd.f32 0.0, %v7766
    %v7768 = vpop.f32.mrf.mxu0
    %v7769 = vadd.f32 0.0, %v7768
    %7770 = vmatmul.bf16.gmra.mxu0 %v7674
    %v7771 = vpop.f32.mrf.mxu0
    %v7772 = vadd.f32 0.0, %v7771
    %v7773 = vpop.f32.mrf.mxu0
    %v7774 = vadd.f32 0.0, %v7773
    %7775 = vmatmul.bf16.gmra.mxu0 %v7675
    %v7776 = vpop.f32.mrf.mxu0
    %v7777 = vadd.f32 0.0, %v7776
    %v7778 = vpop.f32.mrf.mxu0
    %v7779 = vadd.f32 0.0, %v7778
    %7780 = vmatmul.bf16.gmra.mxu0 %v7676
    %v7781 = vpop.f32.mrf.mxu0
    %v7782 = vadd.f32 0.0, %v7781
    %v7783 = vpop.f32.mrf.mxu0
    %v7784 = vadd.f32 0.0, %v7783
    %7785 = vmatmul.bf16.gmra.mxu0 %v7677
    %v7786 = vpop.f32.mrf.mxu0
    %v7787 = vadd.f32 0.0, %v7786
    %v7788 = vpop.f32.mrf.mxu0
    %v7789 = vadd.f32 0.0, %v7788
    %7790 = vmatmul.bf16.gmra.mxu0 %v7678
    %v7791 = vpop.f32.mrf.mxu0
    %v7792 = vadd.f32 0.0, %v7791
    %v7793 = vpop.f32.mrf.mxu0
    %v7794 = vadd.f32 0.0, %v7793
    %7795 = vmatmul.bf16.gmra.mxu0 %v7679
    %v7796 = vpop.f32.mrf.mxu0
    %v7797 = vadd.f32 0.0, %v7796
    %v7798 = vpop.f32.mrf.mxu0
    %v7799 = vadd.f32 0.0, %v7798
    %7800 = vmatmul.bf16.gmra.mxu0 %v7680
    %v7801 = vpop.f32.mrf.mxu0
    %v7802 = vadd.f32 0.0, %v7801
    %v7803 = vpop.f32.mrf.mxu0
    %v7804 = vadd.f32 0.0, %v7803
    %7805 = vmatmul.bf16.gmra.mxu0 %v7681
    %v7806 = vpop.f32.mrf.mxu0
    %v7807 = vadd.f32 0.0, %v7806
    %v7808 = vpop.f32.mrf.mxu0
    %v7809 = vadd.f32 0.0, %v7808
    %7810 = vmatmul.bf16.gmra.mxu0 %v7682
    %v7811 = vpop.f32.mrf.mxu0
    %v7812 = vadd.f32 0.0, %v7811
    %v7813 = vpop.f32.mrf.mxu0
    %v7814 = vadd.f32 0.0, %v7813
    %7815 = vmatmul.bf16.gmra.mxu0 %v7683
    %v7816 = vpop.f32.mrf.mxu0
    %v7817 = vadd.f32 0.0, %v7816
    %v7818 = vpop.f32.mrf.mxu0
    %v7819 = vadd.f32 0.0, %v7818
    %7820 = vdwg.mxu0
    %v7821 = vpack.c.bf16 %v7744, %v7742
    %v7822 = vpack.c.bf16 %v7749, %v7747
    %v7823 = vpack.c.bf16 %v7754, %v7752
    %v7824 = vpack.c.bf16 %v7759, %v7757
    %v7825 = vpack.c.bf16 %v7764, %v7762
    %v7826 = vpack.c.bf16 %v7769, %v7767
    %v7827 = vpack.c.bf16 %v7774, %v7772
    %v7828 = vpack.c.bf16 %v7779, %v7777
    %v7829 = vpack.c.bf16 %v7784, %v7782
    %v7830 = vpack.c.bf16 %v7789, %v7787
    %v7831 = vpack.c.bf16 %v7794, %v7792
    %v7832 = vpack.c.bf16 %v7799, %v7797
    %v7833 = vpack.c.bf16 %v7804, %v7802
    %v7834 = vpack.c.bf16 %v7809, %v7807
    %v7835 = vpack.c.bf16 %v7814, %v7812
    %v7836 = vpack.c.bf16 %v7819, %v7817
    %v7838 = vperm.slane %v7667, 0
    %7840 = vmatpush.bf16.msra.mxu0 %v7828
    %7841 = vmatpush.bf16.msra.mxu0 %v7827
    %7842 = vmatpush.bf16.msra.mxu0 %v7826
    %7843 = vmatpush.bf16.msra.mxu0 %v7825
    %7844 = vmatpush.bf16.msra.mxu0 %v7824
    %7845 = vmatpush.bf16.msra.mxu0 %v7823
    %7846 = vmatpush.bf16.msra.mxu0 %v7822
    %7847 = vmatpush.bf16.msra.mxu0 %v7821
    %7848 = vmatmul.bf16.gmra.mxu0 %v865
    %v7849 = vpop.f32.mrf.mxu0
    %v7850 = vadd.f32 %v7838, %v7849
    %v7851 = vpop.f32.mrf.mxu0
    %v7852 = vadd.f32 %v7838, %v7851
    %7853 = vmatmul.bf16.gmra.mxu0 %v867
    %v7854 = vpop.f32.mrf.mxu0
    %v7855 = vadd.f32 %v7838, %v7854
    %v7856 = vpop.f32.mrf.mxu0
    %v7857 = vadd.f32 %v7838, %v7856
    %7858 = vmatmul.bf16.gmra.mxu0 %v869
    %v7859 = vpop.f32.mrf.mxu0
    %v7860 = vadd.f32 %v7838, %v7859
    %v7861 = vpop.f32.mrf.mxu0
    %v7862 = vadd.f32 %v7838, %v7861
    %7863 = vmatmul.bf16.gmra.mxu0 %v871
    %v7864 = vpop.f32.mrf.mxu0
    %v7865 = vadd.f32 %v7838, %v7864
    %v7866 = vpop.f32.mrf.mxu0
    %v7867 = vadd.f32 %v7838, %v7866
    %7868 = vmatmul.bf16.gmra.mxu0 %v873
    %v7869 = vpop.f32.mrf.mxu0
    %v7870 = vadd.f32 %v7838, %v7869
    %v7871 = vpop.f32.mrf.mxu0
    %v7872 = vadd.f32 %v7838, %v7871
    %7873 = vmatmul.bf16.gmra.mxu0 %v875
    %v7874 = vpop.f32.mrf.mxu0
    %v7875 = vadd.f32 %v7838, %v7874
    %v7876 = vpop.f32.mrf.mxu0
    %v7877 = vadd.f32 %v7838, %v7876
    %7878 = vmatmul.bf16.gmra.mxu0 %v877
    %v7879 = vpop.f32.mrf.mxu0
    %v7880 = vadd.f32 %v7838, %v7879
    %v7881 = vpop.f32.mrf.mxu0
    %v7882 = vadd.f32 %v7838, %v7881
    %7883 = vmatmul.bf16.gmra.mxu0 %v879
    %v7884 = vpop.f32.mrf.mxu0
    %v7885 = vadd.f32 %v7838, %v7884
    %v7886 = vpop.f32.mrf.mxu0
    %v7887 = vadd.f32 %v7838, %v7886
    %7888 = vmatmul.bf16.gmra.mxu0 %v881
    %v7889 = vpop.f32.mrf.mxu0
    %v7890 = vadd.f32 %v7838, %v7889
    %v7891 = vpop.f32.mrf.mxu0
    %v7892 = vadd.f32 %v7838, %v7891
    %7893 = vmatmul.bf16.gmra.mxu0 %v883
    %v7894 = vpop.f32.mrf.mxu0
    %v7895 = vadd.f32 %v7838, %v7894
    %v7896 = vpop.f32.mrf.mxu0
    %v7897 = vadd.f32 %v7838, %v7896
    %7898 = vmatmul.bf16.gmra.mxu0 %v885
    %v7899 = vpop.f32.mrf.mxu0
    %v7900 = vadd.f32 %v7838, %v7899
    %v7901 = vpop.f32.mrf.mxu0
    %v7902 = vadd.f32 %v7838, %v7901
    %7903 = vmatmul.bf16.gmra.mxu0 %v887
    %v7904 = vpop.f32.mrf.mxu0
    %v7905 = vadd.f32 %v7838, %v7904
    %v7906 = vpop.f32.mrf.mxu0
    %v7907 = vadd.f32 %v7838, %v7906
    %7908 = vmatmul.bf16.gmra.mxu0 %v889
    %v7909 = vpop.f32.mrf.mxu0
    %v7910 = vadd.f32 %v7838, %v7909
    %v7911 = vpop.f32.mrf.mxu0
    %v7912 = vadd.f32 %v7838, %v7911
    %7913 = vmatmul.bf16.gmra.mxu0 %v891
    %v7914 = vpop.f32.mrf.mxu0
    %v7915 = vadd.f32 %v7838, %v7914
    %v7916 = vpop.f32.mrf.mxu0
    %v7917 = vadd.f32 %v7838, %v7916
    %7918 = vmatmul.bf16.gmra.mxu0 %v893
    %v7919 = vpop.f32.mrf.mxu0
    %v7920 = vadd.f32 %v7838, %v7919
    %v7921 = vpop.f32.mrf.mxu0
    %v7922 = vadd.f32 %v7838, %v7921
    %7923 = vmatmul.bf16.gmra.mxu0 %v895
    %v7924 = vpop.f32.mrf.mxu0
    %v7925 = vadd.f32 %v7838, %v7924
    %v7926 = vpop.f32.mrf.mxu0
    %v7927 = vadd.f32 %v7838, %v7926
    %7928 = vdwg.mxu0
    %7929 = vmatpush.bf16.msra.mxu0 %v7836
    %7930 = vmatpush.bf16.msra.mxu0 %v7835
    %7931 = vmatpush.bf16.msra.mxu0 %v7834
    %7932 = vmatpush.bf16.msra.mxu0 %v7833
    %7933 = vmatpush.bf16.msra.mxu0 %v7832
    %7934 = vmatpush.bf16.msra.mxu0 %v7831
    %7935 = vmatpush.bf16.msra.mxu0 %v7830
    %7936 = vmatpush.bf16.msra.mxu0 %v7829
    %7937 = vmatmul.bf16.gmra.mxu0 %v866
    %v7938 = vpop.f32.mrf.mxu0
    %v7939 = vadd.f32 %v7850, %v7938
    %v7940 = vpop.f32.mrf.mxu0
    %v7941 = vadd.f32 %v7852, %v7940
    %7942 = vmatmul.bf16.gmra.mxu0 %v868
    %v7943 = vpop.f32.mrf.mxu0
    %v7944 = vadd.f32 %v7855, %v7943
    %v7945 = vpop.f32.mrf.mxu0
    %v7946 = vadd.f32 %v7857, %v7945
    %7947 = vmatmul.bf16.gmra.mxu0 %v870
    %v7948 = vpop.f32.mrf.mxu0
    %v7949 = vadd.f32 %v7860, %v7948
    %v7950 = vpop.f32.mrf.mxu0
    %v7951 = vadd.f32 %v7862, %v7950
    %7952 = vmatmul.bf16.gmra.mxu0 %v872
    %v7953 = vpop.f32.mrf.mxu0
    %v7954 = vadd.f32 %v7865, %v7953
    %v7955 = vpop.f32.mrf.mxu0
    %v7956 = vadd.f32 %v7867, %v7955
    %7957 = vmatmul.bf16.gmra.mxu0 %v874
    %v7958 = vpop.f32.mrf.mxu0
    %v7959 = vadd.f32 %v7870, %v7958
    %v7960 = vpop.f32.mrf.mxu0
    %v7961 = vadd.f32 %v7872, %v7960
    %7962 = vmatmul.bf16.gmra.mxu0 %v876
    %v7963 = vpop.f32.mrf.mxu0
    %v7964 = vadd.f32 %v7875, %v7963
    %v7965 = vpop.f32.mrf.mxu0
    %v7966 = vadd.f32 %v7877, %v7965
    %7967 = vmatmul.bf16.gmra.mxu0 %v878
    %v7968 = vpop.f32.mrf.mxu0
    %v7969 = vadd.f32 %v7880, %v7968
    %v7970 = vpop.f32.mrf.mxu0
    %v7971 = vadd.f32 %v7882, %v7970
    %7972 = vmatmul.bf16.gmra.mxu0 %v880
    %v7973 = vpop.f32.mrf.mxu0
    %v7974 = vadd.f32 %v7885, %v7973
    %v7975 = vpop.f32.mrf.mxu0
    %v7976 = vadd.f32 %v7887, %v7975
    %7977 = vmatmul.bf16.gmra.mxu0 %v882
    %v7978 = vpop.f32.mrf.mxu0
    %v7979 = vadd.f32 %v7890, %v7978
    %v7980 = vpop.f32.mrf.mxu0
    %v7981 = vadd.f32 %v7892, %v7980
    %7982 = vmatmul.bf16.gmra.mxu0 %v884
    %v7983 = vpop.f32.mrf.mxu0
    %v7984 = vadd.f32 %v7895, %v7983
    %v7985 = vpop.f32.mrf.mxu0
    %v7986 = vadd.f32 %v7897, %v7985
    %7987 = vmatmul.bf16.gmra.mxu0 %v886
    %v7988 = vpop.f32.mrf.mxu0
    %v7989 = vadd.f32 %v7900, %v7988
    %v7990 = vpop.f32.mrf.mxu0
    %v7991 = vadd.f32 %v7902, %v7990
    %7992 = vmatmul.bf16.gmra.mxu0 %v888
    %v7993 = vpop.f32.mrf.mxu0
    %v7994 = vadd.f32 %v7905, %v7993
    %v7995 = vpop.f32.mrf.mxu0
    %v7996 = vadd.f32 %v7907, %v7995
    %7997 = vmatmul.bf16.gmra.mxu0 %v890
    %v7998 = vpop.f32.mrf.mxu0
    %v7999 = vadd.f32 %v7910, %v7998
    %v8000 = vpop.f32.mrf.mxu0
    %v8001 = vadd.f32 %v7912, %v8000
    %8002 = vmatmul.bf16.gmra.mxu0 %v892
    %v8003 = vpop.f32.mrf.mxu0
    %v8004 = vadd.f32 %v7915, %v8003
    %v8005 = vpop.f32.mrf.mxu0
    %v8006 = vadd.f32 %v7917, %v8005
    %8007 = vmatmul.bf16.gmra.mxu0 %v894
    %v8008 = vpop.f32.mrf.mxu0
    %v8009 = vadd.f32 %v7920, %v8008
    %v8010 = vpop.f32.mrf.mxu0
    %v8011 = vadd.f32 %v7922, %v8010
    %8012 = vmatmul.bf16.gmra.mxu0 %v896
    %v8013 = vpop.f32.mrf.mxu0
    %v8014 = vadd.f32 %v7925, %v8013
    %v8015 = vpop.f32.mrf.mxu0
    %v8016 = vadd.f32 %v7927, %v8015
    %8017 = vdwg.mxu0
    %8018 = vadd.xlane.f32.xlu0 %v7939
    %v8019 = vpop.xlane.xlu0 %8018
    %8020 = vadd.xlane.f32.xlu0 %v7941
    %v8021 = vpop.xlane.xlu0 %8020
    %8022 = vadd.xlane.f32.xlu0 %v7944
    %v8023 = vpop.xlane.xlu0 %8022
    %8024 = vadd.xlane.f32.xlu0 %v7946
    %v8025 = vpop.xlane.xlu0 %8024
    %8026 = vadd.xlane.f32.xlu0 %v7949
    %v8027 = vpop.xlane.xlu0 %8026
    %8028 = vadd.xlane.f32.xlu0 %v7951
    %v8029 = vpop.xlane.xlu0 %8028
    %8030 = vadd.xlane.f32.xlu0 %v7954
    %v8031 = vpop.xlane.xlu0 %8030
    %8032 = vadd.xlane.f32.xlu0 %v7956
    %v8033 = vpop.xlane.xlu0 %8032
    %8034 = vadd.xlane.f32.xlu0 %v7959
    %v8035 = vpop.xlane.xlu0 %8034
    %8036 = vadd.xlane.f32.xlu0 %v7961
    %v8037 = vpop.xlane.xlu0 %8036
    %8038 = vadd.xlane.f32.xlu0 %v7964
    %v8039 = vpop.xlane.xlu0 %8038
    %8040 = vadd.xlane.f32.xlu0 %v7966
    %v8041 = vpop.xlane.xlu0 %8040
    %8042 = vadd.xlane.f32.xlu0 %v7969
    %v8043 = vpop.xlane.xlu0 %8042
    %8044 = vadd.xlane.f32.xlu0 %v7971
    %v8045 = vpop.xlane.xlu0 %8044
    %8046 = vadd.xlane.f32.xlu0 %v7974
    %v8047 = vpop.xlane.xlu0 %8046
    %8048 = vadd.xlane.f32.xlu0 %v7976
    %v8049 = vpop.xlane.xlu0 %8048
    %8050 = vadd.xlane.f32.xlu0 %v7979
    %v8051 = vpop.xlane.xlu0 %8050
    %8052 = vadd.xlane.f32.xlu0 %v7981
    %v8053 = vpop.xlane.xlu0 %8052
    %8054 = vadd.xlane.f32.xlu0 %v7984
    %v8055 = vpop.xlane.xlu0 %8054
    %8056 = vadd.xlane.f32.xlu0 %v7986
    %v8057 = vpop.xlane.xlu0 %8056
    %8058 = vadd.xlane.f32.xlu0 %v7989
    %v8059 = vpop.xlane.xlu0 %8058
    %8060 = vadd.xlane.f32.xlu0 %v7991
    %v8061 = vpop.xlane.xlu0 %8060
    %8062 = vadd.xlane.f32.xlu0 %v7994
    %v8063 = vpop.xlane.xlu0 %8062
    %8064 = vadd.xlane.f32.xlu0 %v7996
    %v8065 = vpop.xlane.xlu0 %8064
    %8066 = vadd.xlane.f32.xlu0 %v7999
    %v8067 = vpop.xlane.xlu0 %8066
    %8068 = vadd.xlane.f32.xlu0 %v8001
    %v8069 = vpop.xlane.xlu0 %8068
    %8070 = vadd.xlane.f32.xlu0 %v8004
    %v8071 = vpop.xlane.xlu0 %8070
    %8072 = vadd.xlane.f32.xlu0 %v8006
    %v8073 = vpop.xlane.xlu0 %8072
    %8074 = vadd.xlane.f32.xlu0 %v8009
    %v8075 = vpop.xlane.xlu0 %8074
    %8076 = vadd.xlane.f32.xlu0 %v8011
    %v8077 = vpop.xlane.xlu0 %8076
    %8078 = vadd.xlane.f32.xlu0 %v8014
    %v8079 = vpop.xlane.xlu0 %8078
    %8080 = vadd.xlane.f32.xlu0 %v8016
    %v8081 = vpop.xlane.xlu0 %8080
    %v8082 = vmul.f32 %v8019, 0.03125
    %v8083 = vmul.f32 %v8021, 0.03125
    %v8084 = vmul.f32 %v8023, 0.03125
    %v8085 = vmul.f32 %v8025, 0.03125
    %v8086 = vmul.f32 %v8027, 0.03125
    %v8087 = vmul.f32 %v8029, 0.03125
    %v8088 = vmul.f32 %v8031, 0.03125
    %v8089 = vmul.f32 %v8033, 0.03125
    %v8090 = vmul.f32 %v8035, 0.03125
    %v8091 = vmul.f32 %v8037, 0.03125
    %v8092 = vmul.f32 %v8039, 0.03125
    %v8093 = vmul.f32 %v8041, 0.03125
    %v8094 = vmul.f32 %v8043, 0.03125
    %v8095 = vmul.f32 %v8045, 0.03125
    %v8096 = vmul.f32 %v8047, 0.03125
    %v8097 = vmul.f32 %v8049, 0.03125
    %v8098 = vmul.f32 %v8051, 0.03125
    %v8099 = vmul.f32 %v8053, 0.03125
    %v8100 = vmul.f32 %v8055, 0.03125
    %v8101 = vmul.f32 %v8057, 0.03125
    %v8102 = vmul.f32 %v8059, 0.03125
    %v8103 = vmul.f32 %v8061, 0.03125
    %v8104 = vmul.f32 %v8063, 0.03125
    %v8105 = vmul.f32 %v8065, 0.03125
    %v8106 = vmul.f32 %v8067, 0.03125
    %v8107 = vmul.f32 %v8069, 0.03125
    %v8108 = vmul.f32 %v8071, 0.03125
    %v8109 = vmul.f32 %v8073, 0.03125
    %v8110 = vmul.f32 %v8075, 0.03125
    %v8111 = vmul.f32 %v8077, 0.03125
    %v8112 = vmul.f32 %v8079, 0.03125
    %v8113 = vmul.f32 %v8081, 0.03125
    %v8114 = vmul.f32 %v7939, %v7939
    %v8115 = vmul.f32 %v7941, %v7941
    %v8116 = vmul.f32 %v7944, %v7944
    %v8117 = vmul.f32 %v7946, %v7946
    %v8118 = vmul.f32 %v7949, %v7949
    %v8119 = vmul.f32 %v7951, %v7951
    %v8120 = vmul.f32 %v7954, %v7954
    %v8121 = vmul.f32 %v7956, %v7956
    %v8122 = vmul.f32 %v7959, %v7959
    %v8123 = vmul.f32 %v7961, %v7961
    %v8124 = vmul.f32 %v7964, %v7964
    %v8125 = vmul.f32 %v7966, %v7966
    %v8126 = vmul.f32 %v7969, %v7969
    %v8127 = vmul.f32 %v7971, %v7971
    %v8128 = vmul.f32 %v7974, %v7974
    %v8129 = vmul.f32 %v7976, %v7976
    %v8130 = vmul.f32 %v7979, %v7979
    %v8131 = vmul.f32 %v7981, %v7981
    %v8132 = vmul.f32 %v7984, %v7984
    %v8133 = vmul.f32 %v7986, %v7986
    %v8134 = vmul.f32 %v7989, %v7989
    %v8135 = vmul.f32 %v7991, %v7991
    %v8136 = vmul.f32 %v7994, %v7994
    %v8137 = vmul.f32 %v7996, %v7996
    %v8138 = vmul.f32 %v7999, %v7999
    %v8139 = vmul.f32 %v8001, %v8001
    %v8140 = vmul.f32 %v8004, %v8004
    %v8141 = vmul.f32 %v8006, %v8006
    %v8142 = vmul.f32 %v8009, %v8009
    %v8143 = vmul.f32 %v8011, %v8011
    %v8144 = vmul.f32 %v8014, %v8014
    %v8145 = vmul.f32 %v8016, %v8016
    %8146 = vadd.xlane.f32.xlu0 %v8114
    %v8147 = vpop.xlane.xlu0 %8146
    %8148 = vadd.xlane.f32.xlu0 %v8115
    %v8149 = vpop.xlane.xlu0 %8148
    %8150 = vadd.xlane.f32.xlu0 %v8116
    %v8151 = vpop.xlane.xlu0 %8150
    %8152 = vadd.xlane.f32.xlu0 %v8117
    %v8153 = vpop.xlane.xlu0 %8152
    %8154 = vadd.xlane.f32.xlu0 %v8118
    %v8155 = vpop.xlane.xlu0 %8154
    %8156 = vadd.xlane.f32.xlu0 %v8119
    %v8157 = vpop.xlane.xlu0 %8156
    %8158 = vadd.xlane.f32.xlu0 %v8120
    %v8159 = vpop.xlane.xlu0 %8158
    %8160 = vadd.xlane.f32.xlu0 %v8121
    %v8161 = vpop.xlane.xlu0 %8160
    %8162 = vadd.xlane.f32.xlu0 %v8122
    %v8163 = vpop.xlane.xlu0 %8162
    %8164 = vadd.xlane.f32.xlu0 %v8123
    %v8165 = vpop.xlane.xlu0 %8164
    %8166 = vadd.xlane.f32.xlu0 %v8124
    %v8167 = vpop.xlane.xlu0 %8166
    %8168 = vadd.xlane.f32.xlu0 %v8125
    %v8169 = vpop.xlane.xlu0 %8168
    %8170 = vadd.xlane.f32.xlu0 %v8126
    %v8171 = vpop.xlane.xlu0 %8170
    %8172 = vadd.xlane.f32.xlu0 %v8127
    %v8173 = vpop.xlane.xlu0 %8172
    %8174 = vadd.xlane.f32.xlu0 %v8128
    %v8175 = vpop.xlane.xlu0 %8174
    %8176 = vadd.xlane.f32.xlu0 %v8129
    %v8177 = vpop.xlane.xlu0 %8176
    %8178 = vadd.xlane.f32.xlu0 %v8130
    %v8179 = vpop.xlane.xlu0 %8178
    %8180 = vadd.xlane.f32.xlu0 %v8131
    %v8181 = vpop.xlane.xlu0 %8180
    %8182 = vadd.xlane.f32.xlu0 %v8132
    %v8183 = vpop.xlane.xlu0 %8182
    %8184 = vadd.xlane.f32.xlu0 %v8133
    %v8185 = vpop.xlane.xlu0 %8184
    %8186 = vadd.xlane.f32.xlu0 %v8134
    %v8187 = vpop.xlane.xlu0 %8186
    %8188 = vadd.xlane.f32.xlu0 %v8135
    %v8189 = vpop.xlane.xlu0 %8188
    %8190 = vadd.xlane.f32.xlu0 %v8136
    %v8191 = vpop.xlane.xlu0 %8190
    %8192 = vadd.xlane.f32.xlu0 %v8137
    %v8193 = vpop.xlane.xlu0 %8192
    %8194 = vadd.xlane.f32.xlu0 %v8138
    %v8195 = vpop.xlane.xlu0 %8194
    %8196 = vadd.xlane.f32.xlu0 %v8139
    %v8197 = vpop.xlane.xlu0 %8196
    %8198 = vadd.xlane.f32.xlu0 %v8140
    %v8199 = vpop.xlane.xlu0 %8198
    %8200 = vadd.xlane.f32.xlu0 %v8141
    %v8201 = vpop.xlane.xlu0 %8200
    %8202 = vadd.xlane.f32.xlu0 %v8142
    %v8203 = vpop.xlane.xlu0 %8202
    %8204 = vadd.xlane.f32.xlu0 %v8143
    %v8205 = vpop.xlane.xlu0 %8204
    %8206 = vadd.xlane.f32.xlu0 %v8144
    %v8207 = vpop.xlane.xlu0 %8206
    %8208 = vadd.xlane.f32.xlu0 %v8145
    %v8209 = vpop.xlane.xlu0 %8208
    %v8210 = vmul.f32 %v8147, 0.03125
    %v8211 = vmul.f32 %v8149, 0.03125
    %v8212 = vmul.f32 %v8151, 0.03125
    %v8213 = vmul.f32 %v8153, 0.03125
    %v8214 = vmul.f32 %v8155, 0.03125
    %v8215 = vmul.f32 %v8157, 0.03125
    %v8216 = vmul.f32 %v8159, 0.03125
    %v8217 = vmul.f32 %v8161, 0.03125
    %v8218 = vmul.f32 %v8163, 0.03125
    %v8219 = vmul.f32 %v8165, 0.03125
    %v8220 = vmul.f32 %v8167, 0.03125
    %v8221 = vmul.f32 %v8169, 0.03125
    %v8222 = vmul.f32 %v8171, 0.03125
    %v8223 = vmul.f32 %v8173, 0.03125
    %v8224 = vmul.f32 %v8175, 0.03125
    %v8225 = vmul.f32 %v8177, 0.03125
    %v8226 = vmul.f32 %v8179, 0.03125
    %v8227 = vmul.f32 %v8181, 0.03125
    %v8228 = vmul.f32 %v8183, 0.03125
    %v8229 = vmul.f32 %v8185, 0.03125
    %v8230 = vmul.f32 %v8187, 0.03125
    %v8231 = vmul.f32 %v8189, 0.03125
    %v8232 = vmul.f32 %v8191, 0.03125
    %v8233 = vmul.f32 %v8193, 0.03125
    %v8234 = vmul.f32 %v8195, 0.03125
    %v8235 = vmul.f32 %v8197, 0.03125
    %v8236 = vmul.f32 %v8199, 0.03125
    %v8237 = vmul.f32 %v8201, 0.03125
    %v8238 = vmul.f32 %v8203, 0.03125
    %v8239 = vmul.f32 %v8205, 0.03125
    %v8240 = vmul.f32 %v8207, 0.03125
    %v8241 = vmul.f32 %v8209, 0.03125
    %v8242 = vsub.f32 %v7939, %v8082
    %v8243 = vsub.f32 %v7941, %v8083
    %v8244 = vsub.f32 %v7944, %v8084
    %v8245 = vsub.f32 %v7946, %v8085
    %v8246 = vsub.f32 %v7949, %v8086
    %v8247 = vsub.f32 %v7951, %v8087
    %v8248 = vsub.f32 %v7954, %v8088
    %v8249 = vsub.f32 %v7956, %v8089
    %v8250 = vsub.f32 %v7959, %v8090
    %v8251 = vsub.f32 %v7961, %v8091
    %v8252 = vsub.f32 %v7964, %v8092
    %v8253 = vsub.f32 %v7966, %v8093
    %v8254 = vsub.f32 %v7969, %v8094
    %v8255 = vsub.f32 %v7971, %v8095
    %v8256 = vsub.f32 %v7974, %v8096
    %v8257 = vsub.f32 %v7976, %v8097
    %v8258 = vsub.f32 %v7979, %v8098
    %v8259 = vsub.f32 %v7981, %v8099
    %v8260 = vsub.f32 %v7984, %v8100
    %v8261 = vsub.f32 %v7986, %v8101
    %v8262 = vsub.f32 %v7989, %v8102
    %v8263 = vsub.f32 %v7991, %v8103
    %v8264 = vsub.f32 %v7994, %v8104
    %v8265 = vsub.f32 %v7996, %v8105
    %v8266 = vsub.f32 %v7999, %v8106
    %v8267 = vsub.f32 %v8001, %v8107
    %v8268 = vsub.f32 %v8004, %v8108
    %v8269 = vsub.f32 %v8006, %v8109
    %v8270 = vsub.f32 %v8009, %v8110
    %v8271 = vsub.f32 %v8011, %v8111
    %v8272 = vsub.f32 %v8014, %v8112
    %v8273 = vsub.f32 %v8016, %v8113
    %v8274 = vmul.f32 %v8082, %v8082
    %v8275 = vmul.f32 %v8083, %v8083
    %v8276 = vmul.f32 %v8084, %v8084
    %v8277 = vmul.f32 %v8085, %v8085
    %v8278 = vmul.f32 %v8086, %v8086
    %v8279 = vmul.f32 %v8087, %v8087
    %v8280 = vmul.f32 %v8088, %v8088
    %v8281 = vmul.f32 %v8089, %v8089
    %v8282 = vmul.f32 %v8090, %v8090
    %v8283 = vmul.f32 %v8091, %v8091
    %v8284 = vmul.f32 %v8092, %v8092
    %v8285 = vmul.f32 %v8093, %v8093
    %v8286 = vmul.f32 %v8094, %v8094
    %v8287 = vmul.f32 %v8095, %v8095
    %v8288 = vmul.f32 %v8096, %v8096
    %v8289 = vmul.f32 %v8097, %v8097
    %v8290 = vmul.f32 %v8098, %v8098
    %v8291 = vmul.f32 %v8099, %v8099
    %v8292 = vmul.f32 %v8100, %v8100
    %v8293 = vmul.f32 %v8101, %v8101
    %v8294 = vmul.f32 %v8102, %v8102
    %v8295 = vmul.f32 %v8103, %v8103
    %v8296 = vmul.f32 %v8104, %v8104
    %v8297 = vmul.f32 %v8105, %v8105
    %v8298 = vmul.f32 %v8106, %v8106
    %v8299 = vmul.f32 %v8107, %v8107
    %v8300 = vmul.f32 %v8108, %v8108
    %v8301 = vmul.f32 %v8109, %v8109
    %v8302 = vmul.f32 %v8110, %v8110
    %v8303 = vmul.f32 %v8111, %v8111
    %v8304 = vmul.f32 %v8112, %v8112
    %v8305 = vmul.f32 %v8113, %v8113
    %v8306 = vsub.f32 %v8210, %v8274
    %v8307 = vsub.f32 %v8211, %v8275
    %v8308 = vsub.f32 %v8212, %v8276
    %v8309 = vsub.f32 %v8213, %v8277
    %v8310 = vsub.f32 %v8214, %v8278
    %v8311 = vsub.f32 %v8215, %v8279
    %v8312 = vsub.f32 %v8216, %v8280
    %v8313 = vsub.f32 %v8217, %v8281
    %v8314 = vsub.f32 %v8218, %v8282
    %v8315 = vsub.f32 %v8219, %v8283
    %v8316 = vsub.f32 %v8220, %v8284
    %v8317 = vsub.f32 %v8221, %v8285
    %v8318 = vsub.f32 %v8222, %v8286
    %v8319 = vsub.f32 %v8223, %v8287
    %v8320 = vsub.f32 %v8224, %v8288
    %v8321 = vsub.f32 %v8225, %v8289
    %v8322 = vsub.f32 %v8226, %v8290
    %v8323 = vsub.f32 %v8227, %v8291
    %v8324 = vsub.f32 %v8228, %v8292
    %v8325 = vsub.f32 %v8229, %v8293
    %v8326 = vsub.f32 %v8230, %v8294
    %v8327 = vsub.f32 %v8231, %v8295
    %v8328 = vsub.f32 %v8232, %v8296
    %v8329 = vsub.f32 %v8233, %v8297
    %v8330 = vsub.f32 %v8234, %v8298
    %v8331 = vsub.f32 %v8235, %v8299
    %v8332 = vsub.f32 %v8236, %v8300
    %v8333 = vsub.f32 %v8237, %v8301
    %v8334 = vsub.f32 %v8238, %v8302
    %v8335 = vsub.f32 %v8239, %v8303
    %v8336 = vsub.f32 %v8240, %v8304
    %v8337 = vsub.f32 %v8241, %v8305
    %v8338 = vadd.f32 %v8306, 1e-05
    %v8339 = vadd.f32 %v8307, 1e-05
    %v8340 = vadd.f32 %v8308, 1e-05
    %v8341 = vadd.f32 %v8309, 1e-05
    %v8342 = vadd.f32 %v8310, 1e-05
    %v8343 = vadd.f32 %v8311, 1e-05
    %v8344 = vadd.f32 %v8312, 1e-05
    %v8345 = vadd.f32 %v8313, 1e-05
    %v8346 = vadd.f32 %v8314, 1e-05
    %v8347 = vadd.f32 %v8315, 1e-05
    %v8348 = vadd.f32 %v8316, 1e-05
    %v8349 = vadd.f32 %v8317, 1e-05
    %v8350 = vadd.f32 %v8318, 1e-05
    %v8351 = vadd.f32 %v8319, 1e-05
    %v8352 = vadd.f32 %v8320, 1e-05
    %v8353 = vadd.f32 %v8321, 1e-05
    %v8354 = vadd.f32 %v8322, 1e-05
    %v8355 = vadd.f32 %v8323, 1e-05
    %v8356 = vadd.f32 %v8324, 1e-05
    %v8357 = vadd.f32 %v8325, 1e-05
    %v8358 = vadd.f32 %v8326, 1e-05
    %v8359 = vadd.f32 %v8327, 1e-05
    %v8360 = vadd.f32 %v8328, 1e-05
    %v8361 = vadd.f32 %v8329, 1e-05
    %v8362 = vadd.f32 %v8330, 1e-05
    %v8363 = vadd.f32 %v8331, 1e-05
    %v8364 = vadd.f32 %v8332, 1e-05
    %v8365 = vadd.f32 %v8333, 1e-05
    %v8366 = vadd.f32 %v8334, 1e-05
    %v8367 = vadd.f32 %v8335, 1e-05
    %v8368 = vadd.f32 %v8336, 1e-05
    %v8369 = vadd.f32 %v8337, 1e-05
    %v8370 = vrsqrt.pop %v8338
    %v8371 = vmul.f32 %v8370, %v8338
    %v8372 = vmul.f32 %v8371, %v8370
    %v8373 = vmul.f32 0.5, %v8372
    %v8374 = vsub.f32 1.5, %v8373
    %v8375 = vmul.f32 %v8370, %v8374
    %vm8376 = vweird.f32 %v8338
    %vm8377 = vweird.f32 %v8370
    %vm8378 = vmor %vm8376, %vm8377
    %v8379 = vsel %vm8378, %v8370, %v8375
    %v8380 = vrsqrt.pop %v8339
    %v8381 = vmul.f32 %v8380, %v8339
    %v8382 = vmul.f32 %v8381, %v8380
    %v8383 = vmul.f32 0.5, %v8382
    %v8384 = vsub.f32 1.5, %v8383
    %v8385 = vmul.f32 %v8380, %v8384
    %vm8386 = vweird.f32 %v8339
    %vm8387 = vweird.f32 %v8380
    %vm8388 = vmor %vm8386, %vm8387
    %v8389 = vsel %vm8388, %v8380, %v8385
    %v8390 = vrsqrt.pop %v8340
    %v8391 = vmul.f32 %v8390, %v8340
    %v8392 = vmul.f32 %v8391, %v8390
    %v8393 = vmul.f32 0.5, %v8392
    %v8394 = vsub.f32 1.5, %v8393
    %v8395 = vmul.f32 %v8390, %v8394
    %vm8396 = vweird.f32 %v8340
    %vm8397 = vweird.f32 %v8390
    %vm8398 = vmor %vm8396, %vm8397
    %v8399 = vsel %vm8398, %v8390, %v8395
    %v8400 = vrsqrt.pop %v8341
    %v8401 = vmul.f32 %v8400, %v8341
    %v8402 = vmul.f32 %v8401, %v8400
    %v8403 = vmul.f32 0.5, %v8402
    %v8404 = vsub.f32 1.5, %v8403
    %v8405 = vmul.f32 %v8400, %v8404
    %vm8406 = vweird.f32 %v8341
    %vm8407 = vweird.f32 %v8400
    %vm8408 = vmor %vm8406, %vm8407
    %v8409 = vsel %vm8408, %v8400, %v8405
    %v8410 = vrsqrt.pop %v8342
    %v8411 = vmul.f32 %v8410, %v8342
    %v8412 = vmul.f32 %v8411, %v8410
    %v8413 = vmul.f32 0.5, %v8412
    %v8414 = vsub.f32 1.5, %v8413
    %v8415 = vmul.f32 %v8410, %v8414
    %vm8416 = vweird.f32 %v8342
    %vm8417 = vweird.f32 %v8410
    %vm8418 = vmor %vm8416, %vm8417
    %v8419 = vsel %vm8418, %v8410, %v8415
    %v8420 = vrsqrt.pop %v8343
    %v8421 = vmul.f32 %v8420, %v8343
    %v8422 = vmul.f32 %v8421, %v8420
    %v8423 = vmul.f32 0.5, %v8422
    %v8424 = vsub.f32 1.5, %v8423
    %v8425 = vmul.f32 %v8420, %v8424
    %vm8426 = vweird.f32 %v8343
    %vm8427 = vweird.f32 %v8420
    %vm8428 = vmor %vm8426, %vm8427
    %v8429 = vsel %vm8428, %v8420, %v8425
    %v8430 = vrsqrt.pop %v8344
    %v8431 = vmul.f32 %v8430, %v8344
    %v8432 = vmul.f32 %v8431, %v8430
    %v8433 = vmul.f32 0.5, %v8432
    %v8434 = vsub.f32 1.5, %v8433
    %v8435 = vmul.f32 %v8430, %v8434
    %vm8436 = vweird.f32 %v8344
    %vm8437 = vweird.f32 %v8430
    %vm8438 = vmor %vm8436, %vm8437
    %v8439 = vsel %vm8438, %v8430, %v8435
    %v8440 = vrsqrt.pop %v8345
    %v8441 = vmul.f32 %v8440, %v8345
    %v8442 = vmul.f32 %v8441, %v8440
    %v8443 = vmul.f32 0.5, %v8442
    %v8444 = vsub.f32 1.5, %v8443
    %v8445 = vmul.f32 %v8440, %v8444
    %vm8446 = vweird.f32 %v8345
    %vm8447 = vweird.f32 %v8440
    %vm8448 = vmor %vm8446, %vm8447
    %v8449 = vsel %vm8448, %v8440, %v8445
    %v8450 = vrsqrt.pop %v8346
    %v8451 = vmul.f32 %v8450, %v8346
    %v8452 = vmul.f32 %v8451, %v8450
    %v8453 = vmul.f32 0.5, %v8452
    %v8454 = vsub.f32 1.5, %v8453
    %v8455 = vmul.f32 %v8450, %v8454
    %vm8456 = vweird.f32 %v8346
    %vm8457 = vweird.f32 %v8450
    %vm8458 = vmor %vm8456, %vm8457
    %v8459 = vsel %vm8458, %v8450, %v8455
    %v8460 = vrsqrt.pop %v8347
    %v8461 = vmul.f32 %v8460, %v8347
    %v8462 = vmul.f32 %v8461, %v8460
    %v8463 = vmul.f32 0.5, %v8462
    %v8464 = vsub.f32 1.5, %v8463
    %v8465 = vmul.f32 %v8460, %v8464
    %vm8466 = vweird.f32 %v8347
    %vm8467 = vweird.f32 %v8460
    %vm8468 = vmor %vm8466, %vm8467
    %v8469 = vsel %vm8468, %v8460, %v8465
    %v8470 = vrsqrt.pop %v8348
    %v8471 = vmul.f32 %v8470, %v8348
    %v8472 = vmul.f32 %v8471, %v8470
    %v8473 = vmul.f32 0.5, %v8472
    %v8474 = vsub.f32 1.5, %v8473
    %v8475 = vmul.f32 %v8470, %v8474
    %vm8476 = vweird.f32 %v8348
    %vm8477 = vweird.f32 %v8470
    %vm8478 = vmor %vm8476, %vm8477
    %v8479 = vsel %vm8478, %v8470, %v8475
    %v8480 = vrsqrt.pop %v8349
    %v8481 = vmul.f32 %v8480, %v8349
    %v8482 = vmul.f32 %v8481, %v8480
    %v8483 = vmul.f32 0.5, %v8482
    %v8484 = vsub.f32 1.5, %v8483
    %v8485 = vmul.f32 %v8480, %v8484
    %vm8486 = vweird.f32 %v8349
    %vm8487 = vweird.f32 %v8480
    %vm8488 = vmor %vm8486, %vm8487
    %v8489 = vsel %vm8488, %v8480, %v8485
    %v8490 = vrsqrt.pop %v8350
    %v8491 = vmul.f32 %v8490, %v8350
    %v8492 = vmul.f32 %v8491, %v8490
    %v8493 = vmul.f32 0.5, %v8492
    %v8494 = vsub.f32 1.5, %v8493
    %v8495 = vmul.f32 %v8490, %v8494
    %vm8496 = vweird.f32 %v8350
    %vm8497 = vweird.f32 %v8490
    %vm8498 = vmor %vm8496, %vm8497
    %v8499 = vsel %vm8498, %v8490, %v8495
    %v8500 = vrsqrt.pop %v8351
    %v8501 = vmul.f32 %v8500, %v8351
    %v8502 = vmul.f32 %v8501, %v8500
    %v8503 = vmul.f32 0.5, %v8502
    %v8504 = vsub.f32 1.5, %v8503
    %v8505 = vmul.f32 %v8500, %v8504
    %vm8506 = vweird.f32 %v8351
    %vm8507 = vweird.f32 %v8500
    %vm8508 = vmor %vm8506, %vm8507
    %v8509 = vsel %vm8508, %v8500, %v8505
    %v8510 = vrsqrt.pop %v8352
    %v8511 = vmul.f32 %v8510, %v8352
    %v8512 = vmul.f32 %v8511, %v8510
    %v8513 = vmul.f32 0.5, %v8512
    %v8514 = vsub.f32 1.5, %v8513
    %v8515 = vmul.f32 %v8510, %v8514
    %vm8516 = vweird.f32 %v8352
    %vm8517 = vweird.f32 %v8510
    %vm8518 = vmor %vm8516, %vm8517
    %v8519 = vsel %vm8518, %v8510, %v8515
    %v8520 = vrsqrt.pop %v8353
    %v8521 = vmul.f32 %v8520, %v8353
    %v8522 = vmul.f32 %v8521, %v8520
    %v8523 = vmul.f32 0.5, %v8522
    %v8524 = vsub.f32 1.5, %v8523
    %v8525 = vmul.f32 %v8520, %v8524
    %vm8526 = vweird.f32 %v8353
    %vm8527 = vweird.f32 %v8520
    %vm8528 = vmor %vm8526, %vm8527
    %v8529 = vsel %vm8528, %v8520, %v8525
    %v8530 = vrsqrt.pop %v8354
    %v8531 = vmul.f32 %v8530, %v8354
    %v8532 = vmul.f32 %v8531, %v8530
    %v8533 = vmul.f32 0.5, %v8532
    %v8534 = vsub.f32 1.5, %v8533
    %v8535 = vmul.f32 %v8530, %v8534
    %vm8536 = vweird.f32 %v8354
    %vm8537 = vweird.f32 %v8530
    %vm8538 = vmor %vm8536, %vm8537
    %v8539 = vsel %vm8538, %v8530, %v8535
    %v8540 = vrsqrt.pop %v8355
    %v8541 = vmul.f32 %v8540, %v8355
    %v8542 = vmul.f32 %v8541, %v8540
    %v8543 = vmul.f32 0.5, %v8542
    %v8544 = vsub.f32 1.5, %v8543
    %v8545 = vmul.f32 %v8540, %v8544
    %vm8546 = vweird.f32 %v8355
    %vm8547 = vweird.f32 %v8540
    %vm8548 = vmor %vm8546, %vm8547
    %v8549 = vsel %vm8548, %v8540, %v8545
    %v8550 = vrsqrt.pop %v8356
    %v8551 = vmul.f32 %v8550, %v8356
    %v8552 = vmul.f32 %v8551, %v8550
    %v8553 = vmul.f32 0.5, %v8552
    %v8554 = vsub.f32 1.5, %v8553
    %v8555 = vmul.f32 %v8550, %v8554
    %vm8556 = vweird.f32 %v8356
    %vm8557 = vweird.f32 %v8550
    %vm8558 = vmor %vm8556, %vm8557
    %v8559 = vsel %vm8558, %v8550, %v8555
    %v8560 = vrsqrt.pop %v8357
    %v8561 = vmul.f32 %v8560, %v8357
    %v8562 = vmul.f32 %v8561, %v8560
    %v8563 = vmul.f32 0.5, %v8562
    %v8564 = vsub.f32 1.5, %v8563
    %v8565 = vmul.f32 %v8560, %v8564
    %vm8566 = vweird.f32 %v8357
    %vm8567 = vweird.f32 %v8560
    %vm8568 = vmor %vm8566, %vm8567
    %v8569 = vsel %vm8568, %v8560, %v8565
    %v8570 = vrsqrt.pop %v8358
    %v8571 = vmul.f32 %v8570, %v8358
    %v8572 = vmul.f32 %v8571, %v8570
    %v8573 = vmul.f32 0.5, %v8572
    %v8574 = vsub.f32 1.5, %v8573
    %v8575 = vmul.f32 %v8570, %v8574
    %vm8576 = vweird.f32 %v8358
    %vm8577 = vweird.f32 %v8570
    %vm8578 = vmor %vm8576, %vm8577
    %v8579 = vsel %vm8578, %v8570, %v8575
    %v8580 = vrsqrt.pop %v8359
    %v8581 = vmul.f32 %v8580, %v8359
    %v8582 = vmul.f32 %v8581, %v8580
    %v8583 = vmul.f32 0.5, %v8582
    %v8584 = vsub.f32 1.5, %v8583
    %v8585 = vmul.f32 %v8580, %v8584
    %vm8586 = vweird.f32 %v8359
    %vm8587 = vweird.f32 %v8580
    %vm8588 = vmor %vm8586, %vm8587
    %v8589 = vsel %vm8588, %v8580, %v8585
    %v8590 = vrsqrt.pop %v8360
    %v8591 = vmul.f32 %v8590, %v8360
    %v8592 = vmul.f32 %v8591, %v8590
    %v8593 = vmul.f32 0.5, %v8592
    %v8594 = vsub.f32 1.5, %v8593
    %v8595 = vmul.f32 %v8590, %v8594
    %vm8596 = vweird.f32 %v8360
    %vm8597 = vweird.f32 %v8590
    %vm8598 = vmor %vm8596, %vm8597
    %v8599 = vsel %vm8598, %v8590, %v8595
    %v8600 = vrsqrt.pop %v8361
    %v8601 = vmul.f32 %v8600, %v8361
    %v8602 = vmul.f32 %v8601, %v8600
    %v8603 = vmul.f32 0.5, %v8602
    %v8604 = vsub.f32 1.5, %v8603
    %v8605 = vmul.f32 %v8600, %v8604
    %vm8606 = vweird.f32 %v8361
    %vm8607 = vweird.f32 %v8600
    %vm8608 = vmor %vm8606, %vm8607
    %v8609 = vsel %vm8608, %v8600, %v8605
    %v8610 = vrsqrt.pop %v8362
    %v8611 = vmul.f32 %v8610, %v8362
    %v8612 = vmul.f32 %v8611, %v8610
    %v8613 = vmul.f32 0.5, %v8612
    %v8614 = vsub.f32 1.5, %v8613
    %v8615 = vmul.f32 %v8610, %v8614
    %vm8616 = vweird.f32 %v8362
    %vm8617 = vweird.f32 %v8610
    %vm8618 = vmor %vm8616, %vm8617
    %v8619 = vsel %vm8618, %v8610, %v8615
    %v8620 = vrsqrt.pop %v8363
    %v8621 = vmul.f32 %v8620, %v8363
    %v8622 = vmul.f32 %v8621, %v8620
    %v8623 = vmul.f32 0.5, %v8622
    %v8624 = vsub.f32 1.5, %v8623
    %v8625 = vmul.f32 %v8620, %v8624
    %vm8626 = vweird.f32 %v8363
    %vm8627 = vweird.f32 %v8620
    %vm8628 = vmor %vm8626, %vm8627
    %v8629 = vsel %vm8628, %v8620, %v8625
    %v8630 = vrsqrt.pop %v8364
    %v8631 = vmul.f32 %v8630, %v8364
    %v8632 = vmul.f32 %v8631, %v8630
    %v8633 = vmul.f32 0.5, %v8632
    %v8634 = vsub.f32 1.5, %v8633
    %v8635 = vmul.f32 %v8630, %v8634
    %vm8636 = vweird.f32 %v8364
    %vm8637 = vweird.f32 %v8630
    %vm8638 = vmor %vm8636, %vm8637
    %v8639 = vsel %vm8638, %v8630, %v8635
    %v8640 = vrsqrt.pop %v8365
    %v8641 = vmul.f32 %v8640, %v8365
    %v8642 = vmul.f32 %v8641, %v8640
    %v8643 = vmul.f32 0.5, %v8642
    %v8644 = vsub.f32 1.5, %v8643
    %v8645 = vmul.f32 %v8640, %v8644
    %vm8646 = vweird.f32 %v8365
    %vm8647 = vweird.f32 %v8640
    %vm8648 = vmor %vm8646, %vm8647
    %v8649 = vsel %vm8648, %v8640, %v8645
    %v8650 = vrsqrt.pop %v8366
    %v8651 = vmul.f32 %v8650, %v8366
    %v8652 = vmul.f32 %v8651, %v8650
    %v8653 = vmul.f32 0.5, %v8652
    %v8654 = vsub.f32 1.5, %v8653
    %v8655 = vmul.f32 %v8650, %v8654
    %vm8656 = vweird.f32 %v8366
    %vm8657 = vweird.f32 %v8650
    %vm8658 = vmor %vm8656, %vm8657
    %v8659 = vsel %vm8658, %v8650, %v8655
    %v8660 = vrsqrt.pop %v8367
    %v8661 = vmul.f32 %v8660, %v8367
    %v8662 = vmul.f32 %v8661, %v8660
    %v8663 = vmul.f32 0.5, %v8662
    %v8664 = vsub.f32 1.5, %v8663
    %v8665 = vmul.f32 %v8660, %v8664
    %vm8666 = vweird.f32 %v8367
    %vm8667 = vweird.f32 %v8660
    %vm8668 = vmor %vm8666, %vm8667
    %v8669 = vsel %vm8668, %v8660, %v8665
    %v8670 = vrsqrt.pop %v8368
    %v8671 = vmul.f32 %v8670, %v8368
    %v8672 = vmul.f32 %v8671, %v8670
    %v8673 = vmul.f32 0.5, %v8672
    %v8674 = vsub.f32 1.5, %v8673
    %v8675 = vmul.f32 %v8670, %v8674
    %vm8676 = vweird.f32 %v8368
    %vm8677 = vweird.f32 %v8670
    %vm8678 = vmor %vm8676, %vm8677
    %v8679 = vsel %vm8678, %v8670, %v8675
    %v8680 = vrsqrt.pop %v8369
    %v8681 = vmul.f32 %v8680, %v8369
    %v8682 = vmul.f32 %v8681, %v8680
    %v8683 = vmul.f32 0.5, %v8682
    %v8684 = vsub.f32 1.5, %v8683
    %v8685 = vmul.f32 %v8680, %v8684
    %vm8686 = vweird.f32 %v8369
    %vm8687 = vweird.f32 %v8680
    %vm8688 = vmor %vm8686, %vm8687
    %v8689 = vsel %vm8688, %v8680, %v8685
    %v8690 = vmul.f32 %v8242, %v8379
    %v8691 = vmul.f32 %v8243, %v8389
    %v8692 = vmul.f32 %v8244, %v8399
    %v8693 = vmul.f32 %v8245, %v8409
    %v8694 = vmul.f32 %v8246, %v8419
    %v8695 = vmul.f32 %v8247, %v8429
    %v8696 = vmul.f32 %v8248, %v8439
    %v8697 = vmul.f32 %v8249, %v8449
    %v8698 = vmul.f32 %v8250, %v8459
    %v8699 = vmul.f32 %v8251, %v8469
    %v8700 = vmul.f32 %v8252, %v8479
    %v8701 = vmul.f32 %v8253, %v8489
    %v8702 = vmul.f32 %v8254, %v8499
    %v8703 = vmul.f32 %v8255, %v8509
    %v8704 = vmul.f32 %v8256, %v8519
    %v8705 = vmul.f32 %v8257, %v8529
    %v8706 = vmul.f32 %v8258, %v8539
    %v8707 = vmul.f32 %v8259, %v8549
    %v8708 = vmul.f32 %v8260, %v8559
    %v8709 = vmul.f32 %v8261, %v8569
    %v8710 = vmul.f32 %v8262, %v8579
    %v8711 = vmul.f32 %v8263, %v8589
    %v8712 = vmul.f32 %v8264, %v8599
    %v8713 = vmul.f32 %v8265, %v8609
    %v8714 = vmul.f32 %v8266, %v8619
    %v8715 = vmul.f32 %v8267, %v8629
    %v8716 = vmul.f32 %v8268, %v8639
    %v8717 = vmul.f32 %v8269, %v8649
    %v8718 = vmul.f32 %v8270, %v8659
    %v8719 = vmul.f32 %v8271, %v8669
    %v8720 = vmul.f32 %v8272, %v8679
    %v8721 = vmul.f32 %v8273, %v8689
    %v8723 = vperm.slane %v5439, 0
    %v8725 = vmul.f32 %v8690, %v8723
    %v8726 = vmul.f32 %v8691, %v8723
    %v8727 = vmul.f32 %v8692, %v8723
    %v8728 = vmul.f32 %v8693, %v8723
    %v8729 = vmul.f32 %v8694, %v8723
    %v8730 = vmul.f32 %v8695, %v8723
    %v8731 = vmul.f32 %v8696, %v8723
    %v8732 = vmul.f32 %v8697, %v8723
    %v8733 = vmul.f32 %v8698, %v8723
    %v8734 = vmul.f32 %v8699, %v8723
    %v8735 = vmul.f32 %v8700, %v8723
    %v8736 = vmul.f32 %v8701, %v8723
    %v8737 = vmul.f32 %v8702, %v8723
    %v8738 = vmul.f32 %v8703, %v8723
    %v8739 = vmul.f32 %v8704, %v8723
    %v8740 = vmul.f32 %v8705, %v8723
    %v8741 = vmul.f32 %v8706, %v8723
    %v8742 = vmul.f32 %v8707, %v8723
    %v8743 = vmul.f32 %v8708, %v8723
    %v8744 = vmul.f32 %v8709, %v8723
    %v8745 = vmul.f32 %v8710, %v8723
    %v8746 = vmul.f32 %v8711, %v8723
    %v8747 = vmul.f32 %v8712, %v8723
    %v8748 = vmul.f32 %v8713, %v8723
    %v8749 = vmul.f32 %v8714, %v8723
    %v8750 = vmul.f32 %v8715, %v8723
    %v8751 = vmul.f32 %v8716, %v8723
    %v8752 = vmul.f32 %v8717, %v8723
    %v8753 = vmul.f32 %v8718, %v8723
    %v8754 = vmul.f32 %v8719, %v8723
    %v8755 = vmul.f32 %v8720, %v8723
    %v8756 = vmul.f32 %v8721, %v8723
    %v8758 = vperm.slane %v5441, 0
    %v8760 = vadd.f32 %v8725, %v8758
    %v8761 = vadd.f32 %v8726, %v8758
    %v8762 = vadd.f32 %v8727, %v8758
    %v8763 = vadd.f32 %v8728, %v8758
    %v8764 = vadd.f32 %v8729, %v8758
    %v8765 = vadd.f32 %v8730, %v8758
    %v8766 = vadd.f32 %v8731, %v8758
    %v8767 = vadd.f32 %v8732, %v8758
    %v8768 = vadd.f32 %v8733, %v8758
    %v8769 = vadd.f32 %v8734, %v8758
    %v8770 = vadd.f32 %v8735, %v8758
    %v8771 = vadd.f32 %v8736, %v8758
    %v8772 = vadd.f32 %v8737, %v8758
    %v8773 = vadd.f32 %v8738, %v8758
    %v8774 = vadd.f32 %v8739, %v8758
    %v8775 = vadd.f32 %v8740, %v8758
    %v8776 = vadd.f32 %v8741, %v8758
    %v8777 = vadd.f32 %v8742, %v8758
    %v8778 = vadd.f32 %v8743, %v8758
    %v8779 = vadd.f32 %v8744, %v8758
    %v8780 = vadd.f32 %v8745, %v8758
    %v8781 = vadd.f32 %v8746, %v8758
    %v8782 = vadd.f32 %v8747, %v8758
    %v8783 = vadd.f32 %v8748, %v8758
    %v8784 = vadd.f32 %v8749, %v8758
    %v8785 = vadd.f32 %v8750, %v8758
    %v8786 = vadd.f32 %v8751, %v8758
    %v8787 = vadd.f32 %v8752, %v8758
    %v8788 = vadd.f32 %v8753, %v8758
    %v8789 = vadd.f32 %v8754, %v8758
    %v8790 = vadd.f32 %v8755, %v8758
    %v8791 = vadd.f32 %v8756, %v8758
    %v8792 = vadd.f32 %v8760, %v5406
    %v8793 = vadd.f32 %v8761, %v5407
    %v8794 = vadd.f32 %v8762, %v5408
    %v8795 = vadd.f32 %v8763, %v5409
    %v8796 = vadd.f32 %v8764, %v5410
    %v8797 = vadd.f32 %v8765, %v5411
    %v8798 = vadd.f32 %v8766, %v5412
    %v8799 = vadd.f32 %v8767, %v5413
    %v8800 = vadd.f32 %v8768, %v5414
    %v8801 = vadd.f32 %v8769, %v5415
    %v8802 = vadd.f32 %v8770, %v5416
    %v8803 = vadd.f32 %v8771, %v5417
    %v8804 = vadd.f32 %v8772, %v5418
    %v8805 = vadd.f32 %v8773, %v5419
    %v8806 = vadd.f32 %v8774, %v5420
    %v8807 = vadd.f32 %v8775, %v5421
    %v8808 = vadd.f32 %v8776, %v5422
    %v8809 = vadd.f32 %v8777, %v5423
    %v8810 = vadd.f32 %v8778, %v5424
    %v8811 = vadd.f32 %v8779, %v5425
    %v8812 = vadd.f32 %v8780, %v5426
    %v8813 = vadd.f32 %v8781, %v5427
    %v8814 = vadd.f32 %v8782, %v5428
    %v8815 = vadd.f32 %v8783, %v5429
    %v8816 = vadd.f32 %v8784, %v5430
    %v8817 = vadd.f32 %v8785, %v5431
    %v8818 = vadd.f32 %v8786, %v5432
    %v8819 = vadd.f32 %v8787, %v5433
    %v8820 = vadd.f32 %v8788, %v5434
    %v8821 = vadd.f32 %v8789, %v5435
    %v8822 = vadd.f32 %v8790, %v5436
    %v8823 = vadd.f32 %v8791, %v5437
    %s8824 = scalar_lea.vmem [#allocation11], 64
    %v8825 = vld [vmem:[%s8824] sm:$0xf]
    %v8826 = vld [vmem:[%s8824 + $0x4] sm:$0xf]
    %v8827 = vld [vmem:[%s8824 + $0x8] sm:$0xf]
    %v8828 = vld [vmem:[%s8824 + $0xc] sm:$0xf]
    %v8829 = vld [vmem:[%s8824 + $0x10] sm:$0xf]
    %v8830 = vld [vmem:[%s8824 + $0x14] sm:$0xf]
    %v8831 = vld [vmem:[%s8824 + $0x18] sm:$0xf]
    %v8832 = vld [vmem:[%s8824 + $0x1c] sm:$0xf]
    %v8833 = vld [vmem:[%s8824 + $0x20] sm:$0xf]
    %v8834 = vld [vmem:[%s8824 + $0x24] sm:$0xf]
    %v8835 = vld [vmem:[%s8824 + $0x28] sm:$0xf]
    %v8836 = vld [vmem:[%s8824 + $0x2c] sm:$0xf]
    %v8837 = vld [vmem:[%s8824 + $0x30] sm:$0xf]
    %v8838 = vld [vmem:[%s8824 + $0x34] sm:$0xf]
    %v8839 = vld [vmem:[%s8824 + $0x38] sm:$0xf]
    %v8840 = vld [vmem:[%s8824 + $0x3c] sm:$0xf]
    %s8841 = scalar_lea.vmem %s9, 1
    %v8842 = vld [vmem:[%s8841] sm:$0x1]
    %v8843 = vpack.c.bf16 %v8793, %v8792
    %v8844 = vpack.c.bf16 %v8795, %v8794
    %v8845 = vpack.c.bf16 %v8797, %v8796
    %v8846 = vpack.c.bf16 %v8799, %v8798
    %v8847 = vpack.c.bf16 %v8801, %v8800
    %v8848 = vpack.c.bf16 %v8803, %v8802
    %v8849 = vpack.c.bf16 %v8805, %v8804
    %v8850 = vpack.c.bf16 %v8807, %v8806
    %v8851 = vpack.c.bf16 %v8809, %v8808
    %v8852 = vpack.c.bf16 %v8811, %v8810
    %v8853 = vpack.c.bf16 %v8813, %v8812
    %v8854 = vpack.c.bf16 %v8815, %v8814
    %v8855 = vpack.c.bf16 %v8817, %v8816
    %v8856 = vpack.c.bf16 %v8819, %v8818
    %v8857 = vpack.c.bf16 %v8821, %v8820
    %v8858 = vpack.c.bf16 %v8823, %v8822
    %v8875 = vunpack.c.l.b16 %v8825
    %v8876 = vunpack.c.l.b16 %v8826
    %v8877 = vunpack.c.l.b16 %v8827
    %v8878 = vunpack.c.l.b16 %v8828
    %v8879 = vunpack.c.l.b16 %v8829
    %v8880 = vunpack.c.l.b16 %v8830
    %v8881 = vunpack.c.l.b16 %v8831
    %v8882 = vunpack.c.l.b16 %v8832
    %v8883 = vunpack.c.l.b16 %v8833
    %v8884 = vunpack.c.l.b16 %v8834
    %v8885 = vunpack.c.l.b16 %v8835
    %v8886 = vunpack.c.l.b16 %v8836
    %v8887 = vunpack.c.l.b16 %v8837
    %v8888 = vunpack.c.l.b16 %v8838
    %v8889 = vunpack.c.l.b16 %v8839
    %v8890 = vunpack.c.l.b16 %v8840
    %v8891 = vpack.c.b16 %v8876, %v8875
    %v8892 = vpack.c.b16 %v8878, %v8877
    %v8893 = vpack.c.b16 %v8880, %v8879
    %v8894 = vpack.c.b16 %v8882, %v8881
    %v8895 = vpack.c.b16 %v8884, %v8883
    %v8896 = vpack.c.b16 %v8886, %v8885
    %v8897 = vpack.c.b16 %v8888, %v8887
    %v8898 = vpack.c.b16 %v8890, %v8889
    %8907 = vmatpush.bf16.msra.mxu0 %v8898
    %8908 = vmatpush.bf16.msra.mxu0 %v8897
    %8909 = vmatpush.bf16.msra.mxu0 %v8896
    %8910 = vmatpush.bf16.msra.mxu0 %v8895
    %8911 = vmatpush.bf16.msra.mxu0 %v8894
    %8912 = vmatpush.bf16.msra.mxu0 %v8893
    %8913 = vmatpush.bf16.msra.mxu0 %v8892
    %8914 = vmatpush.bf16.msra.mxu0 %v8891
    %8915 = vmatmul.bf16.gmra.mxu0 %v8843
    %v8916 = vpop.f32.mrf.mxu0
    %v8917 = vadd.f32 0.0, %v8916
    %v8918 = vpop.f32.mrf.mxu0
    %v8919 = vadd.f32 0.0, %v8918
    %8920 = vmatmul.bf16.gmra.mxu0 %v8844
    %v8921 = vpop.f32.mrf.mxu0
    %v8922 = vadd.f32 0.0, %v8921
    %v8923 = vpop.f32.mrf.mxu0
    %v8924 = vadd.f32 0.0, %v8923
    %8925 = vmatmul.bf16.gmra.mxu0 %v8845
    %v8926 = vpop.f32.mrf.mxu0
    %v8927 = vadd.f32 0.0, %v8926
    %v8928 = vpop.f32.mrf.mxu0
    %v8929 = vadd.f32 0.0, %v8928
    %8930 = vmatmul.bf16.gmra.mxu0 %v8846
    %v8931 = vpop.f32.mrf.mxu0
    %v8932 = vadd.f32 0.0, %v8931
    %v8933 = vpop.f32.mrf.mxu0
    %v8934 = vadd.f32 0.0, %v8933
    %8935 = vmatmul.bf16.gmra.mxu0 %v8847
    %v8936 = vpop.f32.mrf.mxu0
    %v8937 = vadd.f32 0.0, %v8936
    %v8938 = vpop.f32.mrf.mxu0
    %v8939 = vadd.f32 0.0, %v8938
    %8940 = vmatmul.bf16.gmra.mxu0 %v8848
    %v8941 = vpop.f32.mrf.mxu0
    %v8942 = vadd.f32 0.0, %v8941
    %v8943 = vpop.f32.mrf.mxu0
    %v8944 = vadd.f32 0.0, %v8943
    %8945 = vmatmul.bf16.gmra.mxu0 %v8849
    %v8946 = vpop.f32.mrf.mxu0
    %v8947 = vadd.f32 0.0, %v8946
    %v8948 = vpop.f32.mrf.mxu0
    %v8949 = vadd.f32 0.0, %v8948
    %8950 = vmatmul.bf16.gmra.mxu0 %v8850
    %v8951 = vpop.f32.mrf.mxu0
    %v8952 = vadd.f32 0.0, %v8951
    %v8953 = vpop.f32.mrf.mxu0
    %v8954 = vadd.f32 0.0, %v8953
    %8955 = vmatmul.bf16.gmra.mxu0 %v8851
    %v8956 = vpop.f32.mrf.mxu0
    %v8957 = vadd.f32 0.0, %v8956
    %v8958 = vpop.f32.mrf.mxu0
    %v8959 = vadd.f32 0.0, %v8958
    %8960 = vmatmul.bf16.gmra.mxu0 %v8852
    %v8961 = vpop.f32.mrf.mxu0
    %v8962 = vadd.f32 0.0, %v8961
    %v8963 = vpop.f32.mrf.mxu0
    %v8964 = vadd.f32 0.0, %v8963
    %8965 = vmatmul.bf16.gmra.mxu0 %v8853
    %v8966 = vpop.f32.mrf.mxu0
    %v8967 = vadd.f32 0.0, %v8966
    %v8968 = vpop.f32.mrf.mxu0
    %v8969 = vadd.f32 0.0, %v8968
    %8970 = vmatmul.bf16.gmra.mxu0 %v8854
    %v8971 = vpop.f32.mrf.mxu0
    %v8972 = vadd.f32 0.0, %v8971
    %v8973 = vpop.f32.mrf.mxu0
    %v8974 = vadd.f32 0.0, %v8973
    %8975 = vmatmul.bf16.gmra.mxu0 %v8855
    %v8976 = vpop.f32.mrf.mxu0
    %v8977 = vadd.f32 0.0, %v8976
    %v8978 = vpop.f32.mrf.mxu0
    %v8979 = vadd.f32 0.0, %v8978
    %8980 = vmatmul.bf16.gmra.mxu0 %v8856
    %v8981 = vpop.f32.mrf.mxu0
    %v8982 = vadd.f32 0.0, %v8981
    %v8983 = vpop.f32.mrf.mxu0
    %v8984 = vadd.f32 0.0, %v8983
    %8985 = vmatmul.bf16.gmra.mxu0 %v8857
    %v8986 = vpop.f32.mrf.mxu0
    %v8987 = vadd.f32 0.0, %v8986
    %v8988 = vpop.f32.mrf.mxu0
    %v8989 = vadd.f32 0.0, %v8988
    %8990 = vmatmul.bf16.gmra.mxu0 %v8858
    %v8991 = vpop.f32.mrf.mxu0
    %v8992 = vadd.f32 0.0, %v8991
    %v8993 = vpop.f32.mrf.mxu0
    %v8994 = vadd.f32 0.0, %v8993
    %8995 = vdwg.mxu0
    %v8996 = vpack.c.bf16 %v8919, %v8917
    %v8997 = vpack.c.bf16 %v8924, %v8922
    %v8998 = vpack.c.bf16 %v8929, %v8927
    %v8999 = vpack.c.bf16 %v8934, %v8932
    %v9000 = vpack.c.bf16 %v8939, %v8937
    %v9001 = vpack.c.bf16 %v8944, %v8942
    %v9002 = vpack.c.bf16 %v8949, %v8947
    %v9003 = vpack.c.bf16 %v8954, %v8952
    %v9004 = vpack.c.bf16 %v8959, %v8957
    %v9005 = vpack.c.bf16 %v8964, %v8962
    %v9006 = vpack.c.bf16 %v8969, %v8967
    %v9007 = vpack.c.bf16 %v8974, %v8972
    %v9008 = vpack.c.bf16 %v8979, %v8977
    %v9009 = vpack.c.bf16 %v8984, %v8982
    %v9010 = vpack.c.bf16 %v8989, %v8987
    %v9011 = vpack.c.bf16 %v8994, %v8992
    %v9013 = vperm.slane %v8842, 0
    %9015 = vmatpush.bf16.msra.mxu0 %v9003
    %9016 = vmatpush.bf16.msra.mxu0 %v9002
    %9017 = vmatpush.bf16.msra.mxu0 %v9001
    %9018 = vmatpush.bf16.msra.mxu0 %v9000
    %9019 = vmatpush.bf16.msra.mxu0 %v8999
    %9020 = vmatpush.bf16.msra.mxu0 %v8998
    %9021 = vmatpush.bf16.msra.mxu0 %v8997
    %9022 = vmatpush.bf16.msra.mxu0 %v8996
    %9023 = vmatmul.bf16.gmra.mxu0 %v865
    %v9024 = vpop.f32.mrf.mxu0
    %v9025 = vadd.f32 %v9013, %v9024
    %v9026 = vpop.f32.mrf.mxu0
    %v9027 = vadd.f32 %v9013, %v9026
    %9028 = vmatmul.bf16.gmra.mxu0 %v867
    %v9029 = vpop.f32.mrf.mxu0
    %v9030 = vadd.f32 %v9013, %v9029
    %v9031 = vpop.f32.mrf.mxu0
    %v9032 = vadd.f32 %v9013, %v9031
    %9033 = vmatmul.bf16.gmra.mxu0 %v869
    %v9034 = vpop.f32.mrf.mxu0
    %v9035 = vadd.f32 %v9013, %v9034
    %v9036 = vpop.f32.mrf.mxu0
    %v9037 = vadd.f32 %v9013, %v9036
    %9038 = vmatmul.bf16.gmra.mxu0 %v871
    %v9039 = vpop.f32.mrf.mxu0
    %v9040 = vadd.f32 %v9013, %v9039
    %v9041 = vpop.f32.mrf.mxu0
    %v9042 = vadd.f32 %v9013, %v9041
    %9043 = vmatmul.bf16.gmra.mxu0 %v873
    %v9044 = vpop.f32.mrf.mxu0
    %v9045 = vadd.f32 %v9013, %v9044
    %v9046 = vpop.f32.mrf.mxu0
    %v9047 = vadd.f32 %v9013, %v9046
    %9048 = vmatmul.bf16.gmra.mxu0 %v875
    %v9049 = vpop.f32.mrf.mxu0
    %v9050 = vadd.f32 %v9013, %v9049
    %v9051 = vpop.f32.mrf.mxu0
    %v9052 = vadd.f32 %v9013, %v9051
    %9053 = vmatmul.bf16.gmra.mxu0 %v877
    %v9054 = vpop.f32.mrf.mxu0
    %v9055 = vadd.f32 %v9013, %v9054
    %v9056 = vpop.f32.mrf.mxu0
    %v9057 = vadd.f32 %v9013, %v9056
    %9058 = vmatmul.bf16.gmra.mxu0 %v879
    %v9059 = vpop.f32.mrf.mxu0
    %v9060 = vadd.f32 %v9013, %v9059
    %v9061 = vpop.f32.mrf.mxu0
    %v9062 = vadd.f32 %v9013, %v9061
    %9063 = vmatmul.bf16.gmra.mxu0 %v881
    %v9064 = vpop.f32.mrf.mxu0
    %v9065 = vadd.f32 %v9013, %v9064
    %v9066 = vpop.f32.mrf.mxu0
    %v9067 = vadd.f32 %v9013, %v9066
    %9068 = vmatmul.bf16.gmra.mxu0 %v883
    %v9069 = vpop.f32.mrf.mxu0
    %v9070 = vadd.f32 %v9013, %v9069
    %v9071 = vpop.f32.mrf.mxu0
    %v9072 = vadd.f32 %v9013, %v9071
    %9073 = vmatmul.bf16.gmra.mxu0 %v885
    %v9074 = vpop.f32.mrf.mxu0
    %v9075 = vadd.f32 %v9013, %v9074
    %v9076 = vpop.f32.mrf.mxu0
    %v9077 = vadd.f32 %v9013, %v9076
    %9078 = vmatmul.bf16.gmra.mxu0 %v887
    %v9079 = vpop.f32.mrf.mxu0
    %v9080 = vadd.f32 %v9013, %v9079
    %v9081 = vpop.f32.mrf.mxu0
    %v9082 = vadd.f32 %v9013, %v9081
    %9083 = vmatmul.bf16.gmra.mxu0 %v889
    %v9084 = vpop.f32.mrf.mxu0
    %v9085 = vadd.f32 %v9013, %v9084
    %v9086 = vpop.f32.mrf.mxu0
    %v9087 = vadd.f32 %v9013, %v9086
    %9088 = vmatmul.bf16.gmra.mxu0 %v891
    %v9089 = vpop.f32.mrf.mxu0
    %v9090 = vadd.f32 %v9013, %v9089
    %v9091 = vpop.f32.mrf.mxu0
    %v9092 = vadd.f32 %v9013, %v9091
    %9093 = vmatmul.bf16.gmra.mxu0 %v893
    %v9094 = vpop.f32.mrf.mxu0
    %v9095 = vadd.f32 %v9013, %v9094
    %v9096 = vpop.f32.mrf.mxu0
    %v9097 = vadd.f32 %v9013, %v9096
    %9098 = vmatmul.bf16.gmra.mxu0 %v895
    %v9099 = vpop.f32.mrf.mxu0
    %v9100 = vadd.f32 %v9013, %v9099
    %v9101 = vpop.f32.mrf.mxu0
    %v9102 = vadd.f32 %v9013, %v9101
    %9103 = vdwg.mxu0
    %9104 = vmatpush.bf16.msra.mxu0 %v9011
    %9105 = vmatpush.bf16.msra.mxu0 %v9010
    %9106 = vmatpush.bf16.msra.mxu0 %v9009
    %9107 = vmatpush.bf16.msra.mxu0 %v9008
    %9108 = vmatpush.bf16.msra.mxu0 %v9007
    %9109 = vmatpush.bf16.msra.mxu0 %v9006
    %9110 = vmatpush.bf16.msra.mxu0 %v9005
    %9111 = vmatpush.bf16.msra.mxu0 %v9004
    %9112 = vmatmul.bf16.gmra.mxu0 %v866
    %v9113 = vpop.f32.mrf.mxu0
    %v9114 = vadd.f32 %v9025, %v9113
    %v9115 = vpop.f32.mrf.mxu0
    %v9116 = vadd.f32 %v9027, %v9115
    %9117 = vmatmul.bf16.gmra.mxu0 %v868
    %v9118 = vpop.f32.mrf.mxu0
    %v9119 = vadd.f32 %v9030, %v9118
    %v9120 = vpop.f32.mrf.mxu0
    %v9121 = vadd.f32 %v9032, %v9120
    %9122 = vmatmul.bf16.gmra.mxu0 %v870
    %v9123 = vpop.f32.mrf.mxu0
    %v9124 = vadd.f32 %v9035, %v9123
    %v9125 = vpop.f32.mrf.mxu0
    %v9126 = vadd.f32 %v9037, %v9125
    %9127 = vmatmul.bf16.gmra.mxu0 %v872
    %v9128 = vpop.f32.mrf.mxu0
    %v9129 = vadd.f32 %v9040, %v9128
    %v9130 = vpop.f32.mrf.mxu0
    %v9131 = vadd.f32 %v9042, %v9130
    %9132 = vmatmul.bf16.gmra.mxu0 %v874
    %v9133 = vpop.f32.mrf.mxu0
    %v9134 = vadd.f32 %v9045, %v9133
    %v9135 = vpop.f32.mrf.mxu0
    %v9136 = vadd.f32 %v9047, %v9135
    %9137 = vmatmul.bf16.gmra.mxu0 %v876
    %v9138 = vpop.f32.mrf.mxu0
    %v9139 = vadd.f32 %v9050, %v9138
    %v9140 = vpop.f32.mrf.mxu0
    %v9141 = vadd.f32 %v9052, %v9140
    %9142 = vmatmul.bf16.gmra.mxu0 %v878
    %v9143 = vpop.f32.mrf.mxu0
    %v9144 = vadd.f32 %v9055, %v9143
    %v9145 = vpop.f32.mrf.mxu0
    %v9146 = vadd.f32 %v9057, %v9145
    %9147 = vmatmul.bf16.gmra.mxu0 %v880
    %v9148 = vpop.f32.mrf.mxu0
    %v9149 = vadd.f32 %v9060, %v9148
    %v9150 = vpop.f32.mrf.mxu0
    %v9151 = vadd.f32 %v9062, %v9150
    %9152 = vmatmul.bf16.gmra.mxu0 %v882
    %v9153 = vpop.f32.mrf.mxu0
    %v9154 = vadd.f32 %v9065, %v9153
    %v9155 = vpop.f32.mrf.mxu0
    %v9156 = vadd.f32 %v9067, %v9155
    %9157 = vmatmul.bf16.gmra.mxu0 %v884
    %v9158 = vpop.f32.mrf.mxu0
    %v9159 = vadd.f32 %v9070, %v9158
    %v9160 = vpop.f32.mrf.mxu0
    %v9161 = vadd.f32 %v9072, %v9160
    %9162 = vmatmul.bf16.gmra.mxu0 %v886
    %v9163 = vpop.f32.mrf.mxu0
    %v9164 = vadd.f32 %v9075, %v9163
    %v9165 = vpop.f32.mrf.mxu0
    %v9166 = vadd.f32 %v9077, %v9165
    %9167 = vmatmul.bf16.gmra.mxu0 %v888
    %v9168 = vpop.f32.mrf.mxu0
    %v9169 = vadd.f32 %v9080, %v9168
    %v9170 = vpop.f32.mrf.mxu0
    %v9171 = vadd.f32 %v9082, %v9170
    %9172 = vmatmul.bf16.gmra.mxu0 %v890
    %v9173 = vpop.f32.mrf.mxu0
    %v9174 = vadd.f32 %v9085, %v9173
    %v9175 = vpop.f32.mrf.mxu0
    %v9176 = vadd.f32 %v9087, %v9175
    %9177 = vmatmul.bf16.gmra.mxu0 %v892
    %v9178 = vpop.f32.mrf.mxu0
    %v9179 = vadd.f32 %v9090, %v9178
    %v9180 = vpop.f32.mrf.mxu0
    %v9181 = vadd.f32 %v9092, %v9180
    %9182 = vmatmul.bf16.gmra.mxu0 %v894
    %v9183 = vpop.f32.mrf.mxu0
    %v9184 = vadd.f32 %v9095, %v9183
    %v9185 = vpop.f32.mrf.mxu0
    %v9186 = vadd.f32 %v9097, %v9185
    %9187 = vmatmul.bf16.gmra.mxu0 %v896
    %v9188 = vpop.f32.mrf.mxu0
    %v9189 = vadd.f32 %v9100, %v9188
    %v9190 = vpop.f32.mrf.mxu0
    %v9191 = vadd.f32 %v9102, %v9190
    %9192 = vdwg.mxu0
    %v9193 = vmax.f32 %v9114, 0.0
    %v9194 = vmax.f32 %v9116, 0.0
    %v9195 = vmax.f32 %v9119, 0.0
    %v9196 = vmax.f32 %v9121, 0.0
    %v9197 = vmax.f32 %v9124, 0.0
    %v9198 = vmax.f32 %v9126, 0.0
    %v9199 = vmax.f32 %v9129, 0.0
    %v9200 = vmax.f32 %v9131, 0.0
    %v9201 = vmax.f32 %v9134, 0.0
    %v9202 = vmax.f32 %v9136, 0.0
    %v9203 = vmax.f32 %v9139, 0.0
    %v9204 = vmax.f32 %v9141, 0.0
    %v9205 = vmax.f32 %v9144, 0.0
    %v9206 = vmax.f32 %v9146, 0.0
    %v9207 = vmax.f32 %v9149, 0.0
    %v9208 = vmax.f32 %v9151, 0.0
    %v9209 = vmax.f32 %v9154, 0.0
    %v9210 = vmax.f32 %v9156, 0.0
    %v9211 = vmax.f32 %v9159, 0.0
    %v9212 = vmax.f32 %v9161, 0.0
    %v9213 = vmax.f32 %v9164, 0.0
    %v9214 = vmax.f32 %v9166, 0.0
    %v9215 = vmax.f32 %v9169, 0.0
    %v9216 = vmax.f32 %v9171, 0.0
    %v9217 = vmax.f32 %v9174, 0.0
    %v9218 = vmax.f32 %v9176, 0.0
    %v9219 = vmax.f32 %v9179, 0.0
    %v9220 = vmax.f32 %v9181, 0.0
    %v9221 = vmax.f32 %v9184, 0.0
    %v9222 = vmax.f32 %v9186, 0.0
    %v9223 = vmax.f32 %v9189, 0.0
    %v9224 = vmax.f32 %v9191, 0.0
    %s9225 = scalar_lea.vmem [#allocation13], 64
    %v9226 = vld [vmem:[%s9225] sm:$0xf]
    %v9227 = vld [vmem:[%s9225 + $0x4] sm:$0xf]
    %v9228 = vld [vmem:[%s9225 + $0x8] sm:$0xf]
    %v9229 = vld [vmem:[%s9225 + $0xc] sm:$0xf]
    %v9230 = vld [vmem:[%s9225 + $0x10] sm:$0xf]
    %v9231 = vld [vmem:[%s9225 + $0x14] sm:$0xf]
    %v9232 = vld [vmem:[%s9225 + $0x18] sm:$0xf]
    %v9233 = vld [vmem:[%s9225 + $0x1c] sm:$0xf]
    %v9234 = vld [vmem:[%s9225 + $0x20] sm:$0xf]
    %v9235 = vld [vmem:[%s9225 + $0x24] sm:$0xf]
    %v9236 = vld [vmem:[%s9225 + $0x28] sm:$0xf]
    %v9237 = vld [vmem:[%s9225 + $0x2c] sm:$0xf]
    %v9238 = vld [vmem:[%s9225 + $0x30] sm:$0xf]
    %v9239 = vld [vmem:[%s9225 + $0x34] sm:$0xf]
    %v9240 = vld [vmem:[%s9225 + $0x38] sm:$0xf]
    %v9241 = vld [vmem:[%s9225 + $0x3c] sm:$0xf]
    %s9242 = scalar_lea.vmem %s11, 1
    %v9243 = vld [vmem:[%s9242] sm:$0x1]
    %v9244 = vpack.c.bf16 %v9194, %v9193
    %v9245 = vpack.c.bf16 %v9196, %v9195
    %v9246 = vpack.c.bf16 %v9198, %v9197
    %v9247 = vpack.c.bf16 %v9200, %v9199
    %v9248 = vpack.c.bf16 %v9202, %v9201
    %v9249 = vpack.c.bf16 %v9204, %v9203
    %v9250 = vpack.c.bf16 %v9206, %v9205
    %v9251 = vpack.c.bf16 %v9208, %v9207
    %v9252 = vpack.c.bf16 %v9210, %v9209
    %v9253 = vpack.c.bf16 %v9212, %v9211
    %v9254 = vpack.c.bf16 %v9214, %v9213
    %v9255 = vpack.c.bf16 %v9216, %v9215
    %v9256 = vpack.c.bf16 %v9218, %v9217
    %v9257 = vpack.c.bf16 %v9220, %v9219
    %v9258 = vpack.c.bf16 %v9222, %v9221
    %v9259 = vpack.c.bf16 %v9224, %v9223
    %v9276 = vunpack.c.l.b16 %v9226
    %v9277 = vunpack.c.l.b16 %v9227
    %v9278 = vunpack.c.l.b16 %v9228
    %v9279 = vunpack.c.l.b16 %v9229
    %v9280 = vunpack.c.l.b16 %v9230
    %v9281 = vunpack.c.l.b16 %v9231
    %v9282 = vunpack.c.l.b16 %v9232
    %v9283 = vunpack.c.l.b16 %v9233
    %v9284 = vunpack.c.l.b16 %v9234
    %v9285 = vunpack.c.l.b16 %v9235
    %v9286 = vunpack.c.l.b16 %v9236
    %v9287 = vunpack.c.l.b16 %v9237
    %v9288 = vunpack.c.l.b16 %v9238
    %v9289 = vunpack.c.l.b16 %v9239
    %v9290 = vunpack.c.l.b16 %v9240
    %v9291 = vunpack.c.l.b16 %v9241
    %v9292 = vpack.c.b16 %v9277, %v9276
    %v9293 = vpack.c.b16 %v9279, %v9278
    %v9294 = vpack.c.b16 %v9281, %v9280
    %v9295 = vpack.c.b16 %v9283, %v9282
    %v9296 = vpack.c.b16 %v9285, %v9284
    %v9297 = vpack.c.b16 %v9287, %v9286
    %v9298 = vpack.c.b16 %v9289, %v9288
    %v9299 = vpack.c.b16 %v9291, %v9290
    %9308 = vmatpush.bf16.msra.mxu0 %v9299
    %9309 = vmatpush.bf16.msra.mxu0 %v9298
    %9310 = vmatpush.bf16.msra.mxu0 %v9297
    %9311 = vmatpush.bf16.msra.mxu0 %v9296
    %9312 = vmatpush.bf16.msra.mxu0 %v9295
    %9313 = vmatpush.bf16.msra.mxu0 %v9294
    %9314 = vmatpush.bf16.msra.mxu0 %v9293
    %9315 = vmatpush.bf16.msra.mxu0 %v9292
    %9316 = vmatmul.bf16.gmra.mxu0 %v9244
    %v9317 = vpop.f32.mrf.mxu0
    %v9318 = vadd.f32 0.0, %v9317
    %v9319 = vpop.f32.mrf.mxu0
    %v9320 = vadd.f32 0.0, %v9319
    %9321 = vmatmul.bf16.gmra.mxu0 %v9245
    %v9322 = vpop.f32.mrf.mxu0
    %v9323 = vadd.f32 0.0, %v9322
    %v9324 = vpop.f32.mrf.mxu0
    %v9325 = vadd.f32 0.0, %v9324
    %9326 = vmatmul.bf16.gmra.mxu0 %v9246
    %v9327 = vpop.f32.mrf.mxu0
    %v9328 = vadd.f32 0.0, %v9327
    %v9329 = vpop.f32.mrf.mxu0
    %v9330 = vadd.f32 0.0, %v9329
    %9331 = vmatmul.bf16.gmra.mxu0 %v9247
    %v9332 = vpop.f32.mrf.mxu0
    %v9333 = vadd.f32 0.0, %v9332
    %v9334 = vpop.f32.mrf.mxu0
    %v9335 = vadd.f32 0.0, %v9334
    %9336 = vmatmul.bf16.gmra.mxu0 %v9248
    %v9337 = vpop.f32.mrf.mxu0
    %v9338 = vadd.f32 0.0, %v9337
    %v9339 = vpop.f32.mrf.mxu0
    %v9340 = vadd.f32 0.0, %v9339
    %9341 = vmatmul.bf16.gmra.mxu0 %v9249
    %v9342 = vpop.f32.mrf.mxu0
    %v9343 = vadd.f32 0.0, %v9342
    %v9344 = vpop.f32.mrf.mxu0
    %v9345 = vadd.f32 0.0, %v9344
    %9346 = vmatmul.bf16.gmra.mxu0 %v9250
    %v9347 = vpop.f32.mrf.mxu0
    %v9348 = vadd.f32 0.0, %v9347
    %v9349 = vpop.f32.mrf.mxu0
    %v9350 = vadd.f32 0.0, %v9349
    %9351 = vmatmul.bf16.gmra.mxu0 %v9251
    %v9352 = vpop.f32.mrf.mxu0
    %v9353 = vadd.f32 0.0, %v9352
    %v9354 = vpop.f32.mrf.mxu0
    %v9355 = vadd.f32 0.0, %v9354
    %9356 = vmatmul.bf16.gmra.mxu0 %v9252
    %v9357 = vpop.f32.mrf.mxu0
    %v9358 = vadd.f32 0.0, %v9357
    %v9359 = vpop.f32.mrf.mxu0
    %v9360 = vadd.f32 0.0, %v9359
    %9361 = vmatmul.bf16.gmra.mxu0 %v9253
    %v9362 = vpop.f32.mrf.mxu0
    %v9363 = vadd.f32 0.0, %v9362
    %v9364 = vpop.f32.mrf.mxu0
    %v9365 = vadd.f32 0.0, %v9364
    %9366 = vmatmul.bf16.gmra.mxu0 %v9254
    %v9367 = vpop.f32.mrf.mxu0
    %v9368 = vadd.f32 0.0, %v9367
    %v9369 = vpop.f32.mrf.mxu0
    %v9370 = vadd.f32 0.0, %v9369
    %9371 = vmatmul.bf16.gmra.mxu0 %v9255
    %v9372 = vpop.f32.mrf.mxu0
    %v9373 = vadd.f32 0.0, %v9372
    %v9374 = vpop.f32.mrf.mxu0
    %v9375 = vadd.f32 0.0, %v9374
    %9376 = vmatmul.bf16.gmra.mxu0 %v9256
    %v9377 = vpop.f32.mrf.mxu0
    %v9378 = vadd.f32 0.0, %v9377
    %v9379 = vpop.f32.mrf.mxu0
    %v9380 = vadd.f32 0.0, %v9379
    %9381 = vmatmul.bf16.gmra.mxu0 %v9257
    %v9382 = vpop.f32.mrf.mxu0
    %v9383 = vadd.f32 0.0, %v9382
    %v9384 = vpop.f32.mrf.mxu0
    %v9385 = vadd.f32 0.0, %v9384
    %9386 = vmatmul.bf16.gmra.mxu0 %v9258
    %v9387 = vpop.f32.mrf.mxu0
    %v9388 = vadd.f32 0.0, %v9387
    %v9389 = vpop.f32.mrf.mxu0
    %v9390 = vadd.f32 0.0, %v9389
    %9391 = vmatmul.bf16.gmra.mxu0 %v9259
    %v9392 = vpop.f32.mrf.mxu0
    %v9393 = vadd.f32 0.0, %v9392
    %v9394 = vpop.f32.mrf.mxu0
    %v9395 = vadd.f32 0.0, %v9394
    %9396 = vdwg.mxu0
    %v9397 = vpack.c.bf16 %v9320, %v9318
    %v9398 = vpack.c.bf16 %v9325, %v9323
    %v9399 = vpack.c.bf16 %v9330, %v9328
    %v9400 = vpack.c.bf16 %v9335, %v9333
    %v9401 = vpack.c.bf16 %v9340, %v9338
    %v9402 = vpack.c.bf16 %v9345, %v9343
    %v9403 = vpack.c.bf16 %v9350, %v9348
    %v9404 = vpack.c.bf16 %v9355, %v9353
    %v9405 = vpack.c.bf16 %v9360, %v9358
    %v9406 = vpack.c.bf16 %v9365, %v9363
    %v9407 = vpack.c.bf16 %v9370, %v9368
    %v9408 = vpack.c.bf16 %v9375, %v9373
    %v9409 = vpack.c.bf16 %v9380, %v9378
    %v9410 = vpack.c.bf16 %v9385, %v9383
    %v9411 = vpack.c.bf16 %v9390, %v9388
    %v9412 = vpack.c.bf16 %v9395, %v9393
    %v9414 = vperm.slane %v9243, 0
    %9416 = vmatpush.bf16.msra.mxu0 %v9404
    %9417 = vmatpush.bf16.msra.mxu0 %v9403
    %9418 = vmatpush.bf16.msra.mxu0 %v9402
    %9419 = vmatpush.bf16.msra.mxu0 %v9401
    %9420 = vmatpush.bf16.msra.mxu0 %v9400
    %9421 = vmatpush.bf16.msra.mxu0 %v9399
    %9422 = vmatpush.bf16.msra.mxu0 %v9398
    %9423 = vmatpush.bf16.msra.mxu0 %v9397
    %9424 = vmatmul.bf16.gmra.mxu0 %v865
    %v9425 = vpop.f32.mrf.mxu0
    %v9426 = vadd.f32 %v9414, %v9425
    %v9427 = vpop.f32.mrf.mxu0
    %v9428 = vadd.f32 %v9414, %v9427
    %9429 = vmatmul.bf16.gmra.mxu0 %v867
    %v9430 = vpop.f32.mrf.mxu0
    %v9431 = vadd.f32 %v9414, %v9430
    %v9432 = vpop.f32.mrf.mxu0
    %v9433 = vadd.f32 %v9414, %v9432
    %9434 = vmatmul.bf16.gmra.mxu0 %v869
    %v9435 = vpop.f32.mrf.mxu0
    %v9436 = vadd.f32 %v9414, %v9435
    %v9437 = vpop.f32.mrf.mxu0
    %v9438 = vadd.f32 %v9414, %v9437
    %9439 = vmatmul.bf16.gmra.mxu0 %v871
    %v9440 = vpop.f32.mrf.mxu0
    %v9441 = vadd.f32 %v9414, %v9440
    %v9442 = vpop.f32.mrf.mxu0
    %v9443 = vadd.f32 %v9414, %v9442
    %9444 = vmatmul.bf16.gmra.mxu0 %v873
    %v9445 = vpop.f32.mrf.mxu0
    %v9446 = vadd.f32 %v9414, %v9445
    %v9447 = vpop.f32.mrf.mxu0
    %v9448 = vadd.f32 %v9414, %v9447
    %9449 = vmatmul.bf16.gmra.mxu0 %v875
    %v9450 = vpop.f32.mrf.mxu0
    %v9451 = vadd.f32 %v9414, %v9450
    %v9452 = vpop.f32.mrf.mxu0
    %v9453 = vadd.f32 %v9414, %v9452
    %9454 = vmatmul.bf16.gmra.mxu0 %v877
    %v9455 = vpop.f32.mrf.mxu0
    %v9456 = vadd.f32 %v9414, %v9455
    %v9457 = vpop.f32.mrf.mxu0
    %v9458 = vadd.f32 %v9414, %v9457
    %9459 = vmatmul.bf16.gmra.mxu0 %v879
    %v9460 = vpop.f32.mrf.mxu0
    %v9461 = vadd.f32 %v9414, %v9460
    %v9462 = vpop.f32.mrf.mxu0
    %v9463 = vadd.f32 %v9414, %v9462
    %9464 = vmatmul.bf16.gmra.mxu0 %v881
    %v9465 = vpop.f32.mrf.mxu0
    %v9466 = vadd.f32 %v9414, %v9465
    %v9467 = vpop.f32.mrf.mxu0
    %v9468 = vadd.f32 %v9414, %v9467
    %9469 = vmatmul.bf16.gmra.mxu0 %v883
    %v9470 = vpop.f32.mrf.mxu0
    %v9471 = vadd.f32 %v9414, %v9470
    %v9472 = vpop.f32.mrf.mxu0
    %v9473 = vadd.f32 %v9414, %v9472
    %9474 = vmatmul.bf16.gmra.mxu0 %v885
    %v9475 = vpop.f32.mrf.mxu0
    %v9476 = vadd.f32 %v9414, %v9475
    %v9477 = vpop.f32.mrf.mxu0
    %v9478 = vadd.f32 %v9414, %v9477
    %9479 = vmatmul.bf16.gmra.mxu0 %v887
    %v9480 = vpop.f32.mrf.mxu0
    %v9481 = vadd.f32 %v9414, %v9480
    %v9482 = vpop.f32.mrf.mxu0
    %v9483 = vadd.f32 %v9414, %v9482
    %9484 = vmatmul.bf16.gmra.mxu0 %v889
    %v9485 = vpop.f32.mrf.mxu0
    %v9486 = vadd.f32 %v9414, %v9485
    %v9487 = vpop.f32.mrf.mxu0
    %v9488 = vadd.f32 %v9414, %v9487
    %9489 = vmatmul.bf16.gmra.mxu0 %v891
    %v9490 = vpop.f32.mrf.mxu0
    %v9491 = vadd.f32 %v9414, %v9490
    %v9492 = vpop.f32.mrf.mxu0
    %v9493 = vadd.f32 %v9414, %v9492
    %9494 = vmatmul.bf16.gmra.mxu0 %v893
    %v9495 = vpop.f32.mrf.mxu0
    %v9496 = vadd.f32 %v9414, %v9495
    %v9497 = vpop.f32.mrf.mxu0
    %v9498 = vadd.f32 %v9414, %v9497
    %9499 = vmatmul.bf16.gmra.mxu0 %v895
    %v9500 = vpop.f32.mrf.mxu0
    %v9501 = vadd.f32 %v9414, %v9500
    %v9502 = vpop.f32.mrf.mxu0
    %v9503 = vadd.f32 %v9414, %v9502
    %9504 = vdwg.mxu0
    %9505 = vmatpush.bf16.msra.mxu0 %v9412
    %9506 = vmatpush.bf16.msra.mxu0 %v9411
    %9507 = vmatpush.bf16.msra.mxu0 %v9410
    %9508 = vmatpush.bf16.msra.mxu0 %v9409
    %9509 = vmatpush.bf16.msra.mxu0 %v9408
    %9510 = vmatpush.bf16.msra.mxu0 %v9407
    %9511 = vmatpush.bf16.msra.mxu0 %v9406
    %9512 = vmatpush.bf16.msra.mxu0 %v9405
    %9513 = vmatmul.bf16.gmra.mxu0 %v866
    %v9514 = vpop.f32.mrf.mxu0
    %v9515 = vadd.f32 %v9426, %v9514
    %v9516 = vpop.f32.mrf.mxu0
    %v9517 = vadd.f32 %v9428, %v9516
    %9518 = vmatmul.bf16.gmra.mxu0 %v868
    %v9519 = vpop.f32.mrf.mxu0
    %v9520 = vadd.f32 %v9431, %v9519
    %v9521 = vpop.f32.mrf.mxu0
    %v9522 = vadd.f32 %v9433, %v9521
    %9523 = vmatmul.bf16.gmra.mxu0 %v870
    %v9524 = vpop.f32.mrf.mxu0
    %v9525 = vadd.f32 %v9436, %v9524
    %v9526 = vpop.f32.mrf.mxu0
    %v9527 = vadd.f32 %v9438, %v9526
    %9528 = vmatmul.bf16.gmra.mxu0 %v872
    %v9529 = vpop.f32.mrf.mxu0
    %v9530 = vadd.f32 %v9441, %v9529
    %v9531 = vpop.f32.mrf.mxu0
    %v9532 = vadd.f32 %v9443, %v9531
    %9533 = vmatmul.bf16.gmra.mxu0 %v874
    %v9534 = vpop.f32.mrf.mxu0
    %v9535 = vadd.f32 %v9446, %v9534
    %v9536 = vpop.f32.mrf.mxu0
    %v9537 = vadd.f32 %v9448, %v9536
    %9538 = vmatmul.bf16.gmra.mxu0 %v876
    %v9539 = vpop.f32.mrf.mxu0
    %v9540 = vadd.f32 %v9451, %v9539
    %v9541 = vpop.f32.mrf.mxu0
    %v9542 = vadd.f32 %v9453, %v9541
    %9543 = vmatmul.bf16.gmra.mxu0 %v878
    %v9544 = vpop.f32.mrf.mxu0
    %v9545 = vadd.f32 %v9456, %v9544
    %v9546 = vpop.f32.mrf.mxu0
    %v9547 = vadd.f32 %v9458, %v9546
    %9548 = vmatmul.bf16.gmra.mxu0 %v880
    %v9549 = vpop.f32.mrf.mxu0
    %v9550 = vadd.f32 %v9461, %v9549
    %v9551 = vpop.f32.mrf.mxu0
    %v9552 = vadd.f32 %v9463, %v9551
    %9553 = vmatmul.bf16.gmra.mxu0 %v882
    %v9554 = vpop.f32.mrf.mxu0
    %v9555 = vadd.f32 %v9466, %v9554
    %v9556 = vpop.f32.mrf.mxu0
    %v9557 = vadd.f32 %v9468, %v9556
    %9558 = vmatmul.bf16.gmra.mxu0 %v884
    %v9559 = vpop.f32.mrf.mxu0
    %v9560 = vadd.f32 %v9471, %v9559
    %v9561 = vpop.f32.mrf.mxu0
    %v9562 = vadd.f32 %v9473, %v9561
    %9563 = vmatmul.bf16.gmra.mxu0 %v886
    %v9564 = vpop.f32.mrf.mxu0
    %v9565 = vadd.f32 %v9476, %v9564
    %v9566 = vpop.f32.mrf.mxu0
    %v9567 = vadd.f32 %v9478, %v9566
    %9568 = vmatmul.bf16.gmra.mxu0 %v888
    %v9569 = vpop.f32.mrf.mxu0
    %v9570 = vadd.f32 %v9481, %v9569
    %v9571 = vpop.f32.mrf.mxu0
    %v9572 = vadd.f32 %v9483, %v9571
    %9573 = vmatmul.bf16.gmra.mxu0 %v890
    %v9574 = vpop.f32.mrf.mxu0
    %v9575 = vadd.f32 %v9486, %v9574
    %v9576 = vpop.f32.mrf.mxu0
    %v9577 = vadd.f32 %v9488, %v9576
    %9578 = vmatmul.bf16.gmra.mxu0 %v892
    %v9579 = vpop.f32.mrf.mxu0
    %v9580 = vadd.f32 %v9491, %v9579
    %v9581 = vpop.f32.mrf.mxu0
    %v9582 = vadd.f32 %v9493, %v9581
    %9583 = vmatmul.bf16.gmra.mxu0 %v894
    %v9584 = vpop.f32.mrf.mxu0
    %v9585 = vadd.f32 %v9496, %v9584
    %v9586 = vpop.f32.mrf.mxu0
    %v9587 = vadd.f32 %v9498, %v9586
    %9588 = vmatmul.bf16.gmra.mxu0 %v896
    %v9589 = vpop.f32.mrf.mxu0
    %v9590 = vadd.f32 %v9501, %v9589
    %v9591 = vpop.f32.mrf.mxu0
    %v9592 = vadd.f32 %v9503, %v9591
    %9593 = vdwg.mxu0
    %9594 = vadd.xlane.f32.xlu0 %v9515
    %v9595 = vpop.xlane.xlu0 %9594
    %9596 = vadd.xlane.f32.xlu0 %v9517
    %v9597 = vpop.xlane.xlu0 %9596
    %9598 = vadd.xlane.f32.xlu0 %v9520
    %v9599 = vpop.xlane.xlu0 %9598
    %9600 = vadd.xlane.f32.xlu0 %v9522
    %v9601 = vpop.xlane.xlu0 %9600
    %9602 = vadd.xlane.f32.xlu0 %v9525
    %v9603 = vpop.xlane.xlu0 %9602
    %9604 = vadd.xlane.f32.xlu0 %v9527
    %v9605 = vpop.xlane.xlu0 %9604
    %9606 = vadd.xlane.f32.xlu0 %v9530
    %v9607 = vpop.xlane.xlu0 %9606
    %9608 = vadd.xlane.f32.xlu0 %v9532
    %v9609 = vpop.xlane.xlu0 %9608
    %9610 = vadd.xlane.f32.xlu0 %v9535
    %v9611 = vpop.xlane.xlu0 %9610
    %9612 = vadd.xlane.f32.xlu0 %v9537
    %v9613 = vpop.xlane.xlu0 %9612
    %9614 = vadd.xlane.f32.xlu0 %v9540
    %v9615 = vpop.xlane.xlu0 %9614
    %9616 = vadd.xlane.f32.xlu0 %v9542
    %v9617 = vpop.xlane.xlu0 %9616
    %9618 = vadd.xlane.f32.xlu0 %v9545
    %v9619 = vpop.xlane.xlu0 %9618
    %9620 = vadd.xlane.f32.xlu0 %v9547
    %v9621 = vpop.xlane.xlu0 %9620
    %9622 = vadd.xlane.f32.xlu0 %v9550
    %v9623 = vpop.xlane.xlu0 %9622
    %9624 = vadd.xlane.f32.xlu0 %v9552
    %v9625 = vpop.xlane.xlu0 %9624
    %9626 = vadd.xlane.f32.xlu0 %v9555
    %v9627 = vpop.xlane.xlu0 %9626
    %9628 = vadd.xlane.f32.xlu0 %v9557
    %v9629 = vpop.xlane.xlu0 %9628
    %9630 = vadd.xlane.f32.xlu0 %v9560
    %v9631 = vpop.xlane.xlu0 %9630
    %9632 = vadd.xlane.f32.xlu0 %v9562
    %v9633 = vpop.xlane.xlu0 %9632
    %9634 = vadd.xlane.f32.xlu0 %v9565
    %v9635 = vpop.xlane.xlu0 %9634
    %9636 = vadd.xlane.f32.xlu0 %v9567
    %v9637 = vpop.xlane.xlu0 %9636
    %9638 = vadd.xlane.f32.xlu0 %v9570
    %v9639 = vpop.xlane.xlu0 %9638
    %9640 = vadd.xlane.f32.xlu0 %v9572
    %v9641 = vpop.xlane.xlu0 %9640
    %9642 = vadd.xlane.f32.xlu0 %v9575
    %v9643 = vpop.xlane.xlu0 %9642
    %9644 = vadd.xlane.f32.xlu0 %v9577
    %v9645 = vpop.xlane.xlu0 %9644
    %9646 = vadd.xlane.f32.xlu0 %v9580
    %v9647 = vpop.xlane.xlu0 %9646
    %9648 = vadd.xlane.f32.xlu0 %v9582
    %v9649 = vpop.xlane.xlu0 %9648
    %9650 = vadd.xlane.f32.xlu0 %v9585
    %v9651 = vpop.xlane.xlu0 %9650
    %9652 = vadd.xlane.f32.xlu0 %v9587
    %v9653 = vpop.xlane.xlu0 %9652
    %9654 = vadd.xlane.f32.xlu0 %v9590
    %v9655 = vpop.xlane.xlu0 %9654
    %9656 = vadd.xlane.f32.xlu0 %v9592
    %v9657 = vpop.xlane.xlu0 %9656
    %v9658 = vmul.f32 %v9595, 0.03125
    %v9659 = vmul.f32 %v9597, 0.03125
    %v9660 = vmul.f32 %v9599, 0.03125
    %v9661 = vmul.f32 %v9601, 0.03125
    %v9662 = vmul.f32 %v9603, 0.03125
    %v9663 = vmul.f32 %v9605, 0.03125
    %v9664 = vmul.f32 %v9607, 0.03125
    %v9665 = vmul.f32 %v9609, 0.03125
    %v9666 = vmul.f32 %v9611, 0.03125
    %v9667 = vmul.f32 %v9613, 0.03125
    %v9668 = vmul.f32 %v9615, 0.03125
    %v9669 = vmul.f32 %v9617, 0.03125
    %v9670 = vmul.f32 %v9619, 0.03125
    %v9671 = vmul.f32 %v9621, 0.03125
    %v9672 = vmul.f32 %v9623, 0.03125
    %v9673 = vmul.f32 %v9625, 0.03125
    %v9674 = vmul.f32 %v9627, 0.03125
    %v9675 = vmul.f32 %v9629, 0.03125
    %v9676 = vmul.f32 %v9631, 0.03125
    %v9677 = vmul.f32 %v9633, 0.03125
    %v9678 = vmul.f32 %v9635, 0.03125
    %v9679 = vmul.f32 %v9637, 0.03125
    %v9680 = vmul.f32 %v9639, 0.03125
    %v9681 = vmul.f32 %v9641, 0.03125
    %v9682 = vmul.f32 %v9643, 0.03125
    %v9683 = vmul.f32 %v9645, 0.03125
    %v9684 = vmul.f32 %v9647, 0.03125
    %v9685 = vmul.f32 %v9649, 0.03125
    %v9686 = vmul.f32 %v9651, 0.03125
    %v9687 = vmul.f32 %v9653, 0.03125
    %v9688 = vmul.f32 %v9655, 0.03125
    %v9689 = vmul.f32 %v9657, 0.03125
    %v9690 = vmul.f32 %v9515, %v9515
    %v9691 = vmul.f32 %v9517, %v9517
    %v9692 = vmul.f32 %v9520, %v9520
    %v9693 = vmul.f32 %v9522, %v9522
    %v9694 = vmul.f32 %v9525, %v9525
    %v9695 = vmul.f32 %v9527, %v9527
    %v9696 = vmul.f32 %v9530, %v9530
    %v9697 = vmul.f32 %v9532, %v9532
    %v9698 = vmul.f32 %v9535, %v9535
    %v9699 = vmul.f32 %v9537, %v9537
    %v9700 = vmul.f32 %v9540, %v9540
    %v9701 = vmul.f32 %v9542, %v9542
    %v9702 = vmul.f32 %v9545, %v9545
    %v9703 = vmul.f32 %v9547, %v9547
    %v9704 = vmul.f32 %v9550, %v9550
    %v9705 = vmul.f32 %v9552, %v9552
    %v9706 = vmul.f32 %v9555, %v9555
    %v9707 = vmul.f32 %v9557, %v9557
    %v9708 = vmul.f32 %v9560, %v9560
    %v9709 = vmul.f32 %v9562, %v9562
    %v9710 = vmul.f32 %v9565, %v9565
    %v9711 = vmul.f32 %v9567, %v9567
    %v9712 = vmul.f32 %v9570, %v9570
    %v9713 = vmul.f32 %v9572, %v9572
    %v9714 = vmul.f32 %v9575, %v9575
    %v9715 = vmul.f32 %v9577, %v9577
    %v9716 = vmul.f32 %v9580, %v9580
    %v9717 = vmul.f32 %v9582, %v9582
    %v9718 = vmul.f32 %v9585, %v9585
    %v9719 = vmul.f32 %v9587, %v9587
    %v9720 = vmul.f32 %v9590, %v9590
    %v9721 = vmul.f32 %v9592, %v9592
    %9722 = vadd.xlane.f32.xlu0 %v9690
    %v9723 = vpop.xlane.xlu0 %9722
    %9724 = vadd.xlane.f32.xlu0 %v9691
    %v9725 = vpop.xlane.xlu0 %9724
    %9726 = vadd.xlane.f32.xlu0 %v9692
    %v9727 = vpop.xlane.xlu0 %9726
    %9728 = vadd.xlane.f32.xlu0 %v9693
    %v9729 = vpop.xlane.xlu0 %9728
    %9730 = vadd.xlane.f32.xlu0 %v9694
    %v9731 = vpop.xlane.xlu0 %9730
    %9732 = vadd.xlane.f32.xlu0 %v9695
    %v9733 = vpop.xlane.xlu0 %9732
    %9734 = vadd.xlane.f32.xlu0 %v9696
    %v9735 = vpop.xlane.xlu0 %9734
    %9736 = vadd.xlane.f32.xlu0 %v9697
    %v9737 = vpop.xlane.xlu0 %9736
    %9738 = vadd.xlane.f32.xlu0 %v9698
    %v9739 = vpop.xlane.xlu0 %9738
    %9740 = vadd.xlane.f32.xlu0 %v9699
    %v9741 = vpop.xlane.xlu0 %9740
    %9742 = vadd.xlane.f32.xlu0 %v9700
    %v9743 = vpop.xlane.xlu0 %9742
    %9744 = vadd.xlane.f32.xlu0 %v9701
    %v9745 = vpop.xlane.xlu0 %9744
    %9746 = vadd.xlane.f32.xlu0 %v9702
    %v9747 = vpop.xlane.xlu0 %9746
    %9748 = vadd.xlane.f32.xlu0 %v9703
    %v9749 = vpop.xlane.xlu0 %9748
    %9750 = vadd.xlane.f32.xlu0 %v9704
    %v9751 = vpop.xlane.xlu0 %9750
    %9752 = vadd.xlane.f32.xlu0 %v9705
    %v9753 = vpop.xlane.xlu0 %9752
    %9754 = vadd.xlane.f32.xlu0 %v9706
    %v9755 = vpop.xlane.xlu0 %9754
    %9756 = vadd.xlane.f32.xlu0 %v9707
    %v9757 = vpop.xlane.xlu0 %9756
    %9758 = vadd.xlane.f32.xlu0 %v9708
    %v9759 = vpop.xlane.xlu0 %9758
    %9760 = vadd.xlane.f32.xlu0 %v9709
    %v9761 = vpop.xlane.xlu0 %9760
    %9762 = vadd.xlane.f32.xlu0 %v9710
    %v9763 = vpop.xlane.xlu0 %9762
    %9764 = vadd.xlane.f32.xlu0 %v9711
    %v9765 = vpop.xlane.xlu0 %9764
    %9766 = vadd.xlane.f32.xlu0 %v9712
    %v9767 = vpop.xlane.xlu0 %9766
    %9768 = vadd.xlane.f32.xlu0 %v9713
    %v9769 = vpop.xlane.xlu0 %9768
    %9770 = vadd.xlane.f32.xlu0 %v9714
    %v9771 = vpop.xlane.xlu0 %9770
    %9772 = vadd.xlane.f32.xlu0 %v9715
    %v9773 = vpop.xlane.xlu0 %9772
    %9774 = vadd.xlane.f32.xlu0 %v9716
    %v9775 = vpop.xlane.xlu0 %9774
    %9776 = vadd.xlane.f32.xlu0 %v9717
    %v9777 = vpop.xlane.xlu0 %9776
    %9778 = vadd.xlane.f32.xlu0 %v9718
    %v9779 = vpop.xlane.xlu0 %9778
    %9780 = vadd.xlane.f32.xlu0 %v9719
    %v9781 = vpop.xlane.xlu0 %9780
    %9782 = vadd.xlane.f32.xlu0 %v9720
    %v9783 = vpop.xlane.xlu0 %9782
    %9784 = vadd.xlane.f32.xlu0 %v9721
    %v9785 = vpop.xlane.xlu0 %9784
    %v9786 = vmul.f32 %v9723, 0.03125
    %v9787 = vmul.f32 %v9725, 0.03125
    %v9788 = vmul.f32 %v9727, 0.03125
    %v9789 = vmul.f32 %v9729, 0.03125
    %v9790 = vmul.f32 %v9731, 0.03125
    %v9791 = vmul.f32 %v9733, 0.03125
    %v9792 = vmul.f32 %v9735, 0.03125
    %v9793 = vmul.f32 %v9737, 0.03125
    %v9794 = vmul.f32 %v9739, 0.03125
    %v9795 = vmul.f32 %v9741, 0.03125
    %v9796 = vmul.f32 %v9743, 0.03125
    %v9797 = vmul.f32 %v9745, 0.03125
    %v9798 = vmul.f32 %v9747, 0.03125
    %v9799 = vmul.f32 %v9749, 0.03125
    %v9800 = vmul.f32 %v9751, 0.03125
    %v9801 = vmul.f32 %v9753, 0.03125
    %v9802 = vmul.f32 %v9755, 0.03125
    %v9803 = vmul.f32 %v9757, 0.03125
    %v9804 = vmul.f32 %v9759, 0.03125
    %v9805 = vmul.f32 %v9761, 0.03125
    %v9806 = vmul.f32 %v9763, 0.03125
    %v9807 = vmul.f32 %v9765, 0.03125
    %v9808 = vmul.f32 %v9767, 0.03125
    %v9809 = vmul.f32 %v9769, 0.03125
    %v9810 = vmul.f32 %v9771, 0.03125
    %v9811 = vmul.f32 %v9773, 0.03125
    %v9812 = vmul.f32 %v9775, 0.03125
    %v9813 = vmul.f32 %v9777, 0.03125
    %v9814 = vmul.f32 %v9779, 0.03125
    %v9815 = vmul.f32 %v9781, 0.03125
    %v9816 = vmul.f32 %v9783, 0.03125
    %v9817 = vmul.f32 %v9785, 0.03125
    %v9818 = vsub.f32 %v9515, %v9658
    %v9819 = vsub.f32 %v9517, %v9659
    %v9820 = vsub.f32 %v9520, %v9660
    %v9821 = vsub.f32 %v9522, %v9661
    %v9822 = vsub.f32 %v9525, %v9662
    %v9823 = vsub.f32 %v9527, %v9663
    %v9824 = vsub.f32 %v9530, %v9664
    %v9825 = vsub.f32 %v9532, %v9665
    %v9826 = vsub.f32 %v9535, %v9666
    %v9827 = vsub.f32 %v9537, %v9667
    %v9828 = vsub.f32 %v9540, %v9668
    %v9829 = vsub.f32 %v9542, %v9669
    %v9830 = vsub.f32 %v9545, %v9670
    %v9831 = vsub.f32 %v9547, %v9671
    %v9832 = vsub.f32 %v9550, %v9672
    %v9833 = vsub.f32 %v9552, %v9673
    %v9834 = vsub.f32 %v9555, %v9674
    %v9835 = vsub.f32 %v9557, %v9675
    %v9836 = vsub.f32 %v9560, %v9676
    %v9837 = vsub.f32 %v9562, %v9677
    %v9838 = vsub.f32 %v9565, %v9678
    %v9839 = vsub.f32 %v9567, %v9679
    %v9840 = vsub.f32 %v9570, %v9680
    %v9841 = vsub.f32 %v9572, %v9681
    %v9842 = vsub.f32 %v9575, %v9682
    %v9843 = vsub.f32 %v9577, %v9683
    %v9844 = vsub.f32 %v9580, %v9684
    %v9845 = vsub.f32 %v9582, %v9685
    %v9846 = vsub.f32 %v9585, %v9686
    %v9847 = vsub.f32 %v9587, %v9687
    %v9848 = vsub.f32 %v9590, %v9688
    %v9849 = vsub.f32 %v9592, %v9689
    %v9850 = vmul.f32 %v9658, %v9658
    %v9851 = vmul.f32 %v9659, %v9659
    %v9852 = vmul.f32 %v9660, %v9660
    %v9853 = vmul.f32 %v9661, %v9661
    %v9854 = vmul.f32 %v9662, %v9662
    %v9855 = vmul.f32 %v9663, %v9663
    %v9856 = vmul.f32 %v9664, %v9664
    %v9857 = vmul.f32 %v9665, %v9665
    %v9858 = vmul.f32 %v9666, %v9666
    %v9859 = vmul.f32 %v9667, %v9667
    %v9860 = vmul.f32 %v9668, %v9668
    %v9861 = vmul.f32 %v9669, %v9669
    %v9862 = vmul.f32 %v9670, %v9670
    %v9863 = vmul.f32 %v9671, %v9671
    %v9864 = vmul.f32 %v9672, %v9672
    %v9865 = vmul.f32 %v9673, %v9673
    %v9866 = vmul.f32 %v9674, %v9674
    %v9867 = vmul.f32 %v9675, %v9675
    %v9868 = vmul.f32 %v9676, %v9676
    %v9869 = vmul.f32 %v9677, %v9677
    %v9870 = vmul.f32 %v9678, %v9678
    %v9871 = vmul.f32 %v9679, %v9679
    %v9872 = vmul.f32 %v9680, %v9680
    %v9873 = vmul.f32 %v9681, %v9681
    %v9874 = vmul.f32 %v9682, %v9682
    %v9875 = vmul.f32 %v9683, %v9683
    %v9876 = vmul.f32 %v9684, %v9684
    %v9877 = vmul.f32 %v9685, %v9685
    %v9878 = vmul.f32 %v9686, %v9686
    %v9879 = vmul.f32 %v9687, %v9687
    %v9880 = vmul.f32 %v9688, %v9688
    %v9881 = vmul.f32 %v9689, %v9689
    %v9882 = vsub.f32 %v9786, %v9850
    %v9883 = vsub.f32 %v9787, %v9851
    %v9884 = vsub.f32 %v9788, %v9852
    %v9885 = vsub.f32 %v9789, %v9853
    %v9886 = vsub.f32 %v9790, %v9854
    %v9887 = vsub.f32 %v9791, %v9855
    %v9888 = vsub.f32 %v9792, %v9856
    %v9889 = vsub.f32 %v9793, %v9857
    %v9890 = vsub.f32 %v9794, %v9858
    %v9891 = vsub.f32 %v9795, %v9859
    %v9892 = vsub.f32 %v9796, %v9860
    %v9893 = vsub.f32 %v9797, %v9861
    %v9894 = vsub.f32 %v9798, %v9862
    %v9895 = vsub.f32 %v9799, %v9863
    %v9896 = vsub.f32 %v9800, %v9864
    %v9897 = vsub.f32 %v9801, %v9865
    %v9898 = vsub.f32 %v9802, %v9866
    %v9899 = vsub.f32 %v9803, %v9867
    %v9900 = vsub.f32 %v9804, %v9868
    %v9901 = vsub.f32 %v9805, %v9869
    %v9902 = vsub.f32 %v9806, %v9870
    %v9903 = vsub.f32 %v9807, %v9871
    %v9904 = vsub.f32 %v9808, %v9872
    %v9905 = vsub.f32 %v9809, %v9873
    %v9906 = vsub.f32 %v9810, %v9874
    %v9907 = vsub.f32 %v9811, %v9875
    %v9908 = vsub.f32 %v9812, %v9876
    %v9909 = vsub.f32 %v9813, %v9877
    %v9910 = vsub.f32 %v9814, %v9878
    %v9911 = vsub.f32 %v9815, %v9879
    %v9912 = vsub.f32 %v9816, %v9880
    %v9913 = vsub.f32 %v9817, %v9881
    %v9914 = vadd.f32 %v9882, 1e-05
    %v9915 = vadd.f32 %v9883, 1e-05
    %v9916 = vadd.f32 %v9884, 1e-05
    %v9917 = vadd.f32 %v9885, 1e-05
    %v9918 = vadd.f32 %v9886, 1e-05
    %v9919 = vadd.f32 %v9887, 1e-05
    %v9920 = vadd.f32 %v9888, 1e-05
    %v9921 = vadd.f32 %v9889, 1e-05
    %v9922 = vadd.f32 %v9890, 1e-05
    %v9923 = vadd.f32 %v9891, 1e-05
    %v9924 = vadd.f32 %v9892, 1e-05
    %v9925 = vadd.f32 %v9893, 1e-05
    %v9926 = vadd.f32 %v9894, 1e-05
    %v9927 = vadd.f32 %v9895, 1e-05
    %v9928 = vadd.f32 %v9896, 1e-05
    %v9929 = vadd.f32 %v9897, 1e-05
    %v9930 = vadd.f32 %v9898, 1e-05
    %v9931 = vadd.f32 %v9899, 1e-05
    %v9932 = vadd.f32 %v9900, 1e-05
    %v9933 = vadd.f32 %v9901, 1e-05
    %v9934 = vadd.f32 %v9902, 1e-05
    %v9935 = vadd.f32 %v9903, 1e-05
    %v9936 = vadd.f32 %v9904, 1e-05
    %v9937 = vadd.f32 %v9905, 1e-05
    %v9938 = vadd.f32 %v9906, 1e-05
    %v9939 = vadd.f32 %v9907, 1e-05
    %v9940 = vadd.f32 %v9908, 1e-05
    %v9941 = vadd.f32 %v9909, 1e-05
    %v9942 = vadd.f32 %v9910, 1e-05
    %v9943 = vadd.f32 %v9911, 1e-05
    %v9944 = vadd.f32 %v9912, 1e-05
    %v9945 = vadd.f32 %v9913, 1e-05
    %v9946 = vrsqrt.pop %v9914
    %v9947 = vmul.f32 %v9946, %v9914
    %v9948 = vmul.f32 %v9947, %v9946
    %v9949 = vmul.f32 0.5, %v9948
    %v9950 = vsub.f32 1.5, %v9949
    %v9951 = vmul.f32 %v9946, %v9950
    %vm9952 = vweird.f32 %v9914
    %vm9953 = vweird.f32 %v9946
    %vm9954 = vmor %vm9952, %vm9953
    %v9955 = vsel %vm9954, %v9946, %v9951
    %v9956 = vrsqrt.pop %v9915
    %v9957 = vmul.f32 %v9956, %v9915
    %v9958 = vmul.f32 %v9957, %v9956
    %v9959 = vmul.f32 0.5, %v9958
    %v9960 = vsub.f32 1.5, %v9959
    %v9961 = vmul.f32 %v9956, %v9960
    %vm9962 = vweird.f32 %v9915
    %vm9963 = vweird.f32 %v9956
    %vm9964 = vmor %vm9962, %vm9963
    %v9965 = vsel %vm9964, %v9956, %v9961
    %v9966 = vrsqrt.pop %v9916
    %v9967 = vmul.f32 %v9966, %v9916
    %v9968 = vmul.f32 %v9967, %v9966
    %v9969 = vmul.f32 0.5, %v9968
    %v9970 = vsub.f32 1.5, %v9969
    %v9971 = vmul.f32 %v9966, %v9970
    %vm9972 = vweird.f32 %v9916
    %vm9973 = vweird.f32 %v9966
    %vm9974 = vmor %vm9972, %vm9973
    %v9975 = vsel %vm9974, %v9966, %v9971
    %v9976 = vrsqrt.pop %v9917
    %v9977 = vmul.f32 %v9976, %v9917
    %v9978 = vmul.f32 %v9977, %v9976
    %v9979 = vmul.f32 0.5, %v9978
    %v9980 = vsub.f32 1.5, %v9979
    %v9981 = vmul.f32 %v9976, %v9980
    %vm9982 = vweird.f32 %v9917
    %vm9983 = vweird.f32 %v9976
    %vm9984 = vmor %vm9982, %vm9983
    %v9985 = vsel %vm9984, %v9976, %v9981
    %v9986 = vrsqrt.pop %v9918
    %v9987 = vmul.f32 %v9986, %v9918
    %v9988 = vmul.f32 %v9987, %v9986
    %v9989 = vmul.f32 0.5, %v9988
    %v9990 = vsub.f32 1.5, %v9989
    %v9991 = vmul.f32 %v9986, %v9990
    %vm9992 = vweird.f32 %v9918
    %vm9993 = vweird.f32 %v9986
    %vm9994 = vmor %vm9992, %vm9993
    %v9995 = vsel %vm9994, %v9986, %v9991
    %v9996 = vrsqrt.pop %v9919
    %v9997 = vmul.f32 %v9996, %v9919
    %v9998 = vmul.f32 %v9997, %v9996
    %v9999 = vmul.f32 0.5, %v9998
    %v10000 = vsub.f32 1.5, %v9999
    %v10001 = vmul.f32 %v9996, %v10000
    %vm10002 = vweird.f32 %v9919
    %vm10003 = vweird.f32 %v9996
    %vm10004 = vmor %vm10002, %vm10003
    %v10005 = vsel %vm10004, %v9996, %v10001
    %v10006 = vrsqrt.pop %v9920
    %v10007 = vmul.f32 %v10006, %v9920
    %v10008 = vmul.f32 %v10007, %v10006
    %v10009 = vmul.f32 0.5, %v10008
    %v10010 = vsub.f32 1.5, %v10009
    %v10011 = vmul.f32 %v10006, %v10010
    %vm10012 = vweird.f32 %v9920
    %vm10013 = vweird.f32 %v10006
    %vm10014 = vmor %vm10012, %vm10013
    %v10015 = vsel %vm10014, %v10006, %v10011
    %v10016 = vrsqrt.pop %v9921
    %v10017 = vmul.f32 %v10016, %v9921
    %v10018 = vmul.f32 %v10017, %v10016
    %v10019 = vmul.f32 0.5, %v10018
    %v10020 = vsub.f32 1.5, %v10019
    %v10021 = vmul.f32 %v10016, %v10020
    %vm10022 = vweird.f32 %v9921
    %vm10023 = vweird.f32 %v10016
    %vm10024 = vmor %vm10022, %vm10023
    %v10025 = vsel %vm10024, %v10016, %v10021
    %v10026 = vrsqrt.pop %v9922
    %v10027 = vmul.f32 %v10026, %v9922
    %v10028 = vmul.f32 %v10027, %v10026
    %v10029 = vmul.f32 0.5, %v10028
    %v10030 = vsub.f32 1.5, %v10029
    %v10031 = vmul.f32 %v10026, %v10030
    %vm10032 = vweird.f32 %v9922
    %vm10033 = vweird.f32 %v10026
    %vm10034 = vmor %vm10032, %vm10033
    %v10035 = vsel %vm10034, %v10026, %v10031
    %v10036 = vrsqrt.pop %v9923
    %v10037 = vmul.f32 %v10036, %v9923
    %v10038 = vmul.f32 %v10037, %v10036
    %v10039 = vmul.f32 0.5, %v10038
    %v10040 = vsub.f32 1.5, %v10039
    %v10041 = vmul.f32 %v10036, %v10040
    %vm10042 = vweird.f32 %v9923
    %vm10043 = vweird.f32 %v10036
    %vm10044 = vmor %vm10042, %vm10043
    %v10045 = vsel %vm10044, %v10036, %v10041
    %v10046 = vrsqrt.pop %v9924
    %v10047 = vmul.f32 %v10046, %v9924
    %v10048 = vmul.f32 %v10047, %v10046
    %v10049 = vmul.f32 0.5, %v10048
    %v10050 = vsub.f32 1.5, %v10049
    %v10051 = vmul.f32 %v10046, %v10050
    %vm10052 = vweird.f32 %v9924
    %vm10053 = vweird.f32 %v10046
    %vm10054 = vmor %vm10052, %vm10053
    %v10055 = vsel %vm10054, %v10046, %v10051
    %v10056 = vrsqrt.pop %v9925
    %v10057 = vmul.f32 %v10056, %v9925
    %v10058 = vmul.f32 %v10057, %v10056
    %v10059 = vmul.f32 0.5, %v10058
    %v10060 = vsub.f32 1.5, %v10059
    %v10061 = vmul.f32 %v10056, %v10060
    %vm10062 = vweird.f32 %v9925
    %vm10063 = vweird.f32 %v10056
    %vm10064 = vmor %vm10062, %vm10063
    %v10065 = vsel %vm10064, %v10056, %v10061
    %v10066 = vrsqrt.pop %v9926
    %v10067 = vmul.f32 %v10066, %v9926
    %v10068 = vmul.f32 %v10067, %v10066
    %v10069 = vmul.f32 0.5, %v10068
    %v10070 = vsub.f32 1.5, %v10069
    %v10071 = vmul.f32 %v10066, %v10070
    %vm10072 = vweird.f32 %v9926
    %vm10073 = vweird.f32 %v10066
    %vm10074 = vmor %vm10072, %vm10073
    %v10075 = vsel %vm10074, %v10066, %v10071
    %v10076 = vrsqrt.pop %v9927
    %v10077 = vmul.f32 %v10076, %v9927
    %v10078 = vmul.f32 %v10077, %v10076
    %v10079 = vmul.f32 0.5, %v10078
    %v10080 = vsub.f32 1.5, %v10079
    %v10081 = vmul.f32 %v10076, %v10080
    %vm10082 = vweird.f32 %v9927
    %vm10083 = vweird.f32 %v10076
    %vm10084 = vmor %vm10082, %vm10083
    %v10085 = vsel %vm10084, %v10076, %v10081
    %v10086 = vrsqrt.pop %v9928
    %v10087 = vmul.f32 %v10086, %v9928
    %v10088 = vmul.f32 %v10087, %v10086
    %v10089 = vmul.f32 0.5, %v10088
    %v10090 = vsub.f32 1.5, %v10089
    %v10091 = vmul.f32 %v10086, %v10090
    %vm10092 = vweird.f32 %v9928
    %vm10093 = vweird.f32 %v10086
    %vm10094 = vmor %vm10092, %vm10093
    %v10095 = vsel %vm10094, %v10086, %v10091
    %v10096 = vrsqrt.pop %v9929
    %v10097 = vmul.f32 %v10096, %v9929
    %v10098 = vmul.f32 %v10097, %v10096
    %v10099 = vmul.f32 0.5, %v10098
    %v10100 = vsub.f32 1.5, %v10099
    %v10101 = vmul.f32 %v10096, %v10100
    %vm10102 = vweird.f32 %v9929
    %vm10103 = vweird.f32 %v10096
    %vm10104 = vmor %vm10102, %vm10103
    %v10105 = vsel %vm10104, %v10096, %v10101
    %v10106 = vrsqrt.pop %v9930
    %v10107 = vmul.f32 %v10106, %v9930
    %v10108 = vmul.f32 %v10107, %v10106
    %v10109 = vmul.f32 0.5, %v10108
    %v10110 = vsub.f32 1.5, %v10109
    %v10111 = vmul.f32 %v10106, %v10110
    %vm10112 = vweird.f32 %v9930
    %vm10113 = vweird.f32 %v10106
    %vm10114 = vmor %vm10112, %vm10113
    %v10115 = vsel %vm10114, %v10106, %v10111
    %v10116 = vrsqrt.pop %v9931
    %v10117 = vmul.f32 %v10116, %v9931
    %v10118 = vmul.f32 %v10117, %v10116
    %v10119 = vmul.f32 0.5, %v10118
    %v10120 = vsub.f32 1.5, %v10119
    %v10121 = vmul.f32 %v10116, %v10120
    %vm10122 = vweird.f32 %v9931
    %vm10123 = vweird.f32 %v10116
    %vm10124 = vmor %vm10122, %vm10123
    %v10125 = vsel %vm10124, %v10116, %v10121
    %v10126 = vrsqrt.pop %v9932
    %v10127 = vmul.f32 %v10126, %v9932
    %v10128 = vmul.f32 %v10127, %v10126
    %v10129 = vmul.f32 0.5, %v10128
    %v10130 = vsub.f32 1.5, %v10129
    %v10131 = vmul.f32 %v10126, %v10130
    %vm10132 = vweird.f32 %v9932
    %vm10133 = vweird.f32 %v10126
    %vm10134 = vmor %vm10132, %vm10133
    %v10135 = vsel %vm10134, %v10126, %v10131
    %v10136 = vrsqrt.pop %v9933
    %v10137 = vmul.f32 %v10136, %v9933
    %v10138 = vmul.f32 %v10137, %v10136
    %v10139 = vmul.f32 0.5, %v10138
    %v10140 = vsub.f32 1.5, %v10139
    %v10141 = vmul.f32 %v10136, %v10140
    %vm10142 = vweird.f32 %v9933
    %vm10143 = vweird.f32 %v10136
    %vm10144 = vmor %vm10142, %vm10143
    %v10145 = vsel %vm10144, %v10136, %v10141
    %v10146 = vrsqrt.pop %v9934
    %v10147 = vmul.f32 %v10146, %v9934
    %v10148 = vmul.f32 %v10147, %v10146
    %v10149 = vmul.f32 0.5, %v10148
    %v10150 = vsub.f32 1.5, %v10149
    %v10151 = vmul.f32 %v10146, %v10150
    %vm10152 = vweird.f32 %v9934
    %vm10153 = vweird.f32 %v10146
    %vm10154 = vmor %vm10152, %vm10153
    %v10155 = vsel %vm10154, %v10146, %v10151
    %v10156 = vrsqrt.pop %v9935
    %v10157 = vmul.f32 %v10156, %v9935
    %v10158 = vmul.f32 %v10157, %v10156
    %v10159 = vmul.f32 0.5, %v10158
    %v10160 = vsub.f32 1.5, %v10159
    %v10161 = vmul.f32 %v10156, %v10160
    %vm10162 = vweird.f32 %v9935
    %vm10163 = vweird.f32 %v10156
    %vm10164 = vmor %vm10162, %vm10163
    %v10165 = vsel %vm10164, %v10156, %v10161
    %v10166 = vrsqrt.pop %v9936
    %v10167 = vmul.f32 %v10166, %v9936
    %v10168 = vmul.f32 %v10167, %v10166
    %v10169 = vmul.f32 0.5, %v10168
    %v10170 = vsub.f32 1.5, %v10169
    %v10171 = vmul.f32 %v10166, %v10170
    %vm10172 = vweird.f32 %v9936
    %vm10173 = vweird.f32 %v10166
    %vm10174 = vmor %vm10172, %vm10173
    %v10175 = vsel %vm10174, %v10166, %v10171
    %v10176 = vrsqrt.pop %v9937
    %v10177 = vmul.f32 %v10176, %v9937
    %v10178 = vmul.f32 %v10177, %v10176
    %v10179 = vmul.f32 0.5, %v10178
    %v10180 = vsub.f32 1.5, %v10179
    %v10181 = vmul.f32 %v10176, %v10180
    %vm10182 = vweird.f32 %v9937
    %vm10183 = vweird.f32 %v10176
    %vm10184 = vmor %vm10182, %vm10183
    %v10185 = vsel %vm10184, %v10176, %v10181
    %v10186 = vrsqrt.pop %v9938
    %v10187 = vmul.f32 %v10186, %v9938
    %v10188 = vmul.f32 %v10187, %v10186
    %v10189 = vmul.f32 0.5, %v10188
    %v10190 = vsub.f32 1.5, %v10189
    %v10191 = vmul.f32 %v10186, %v10190
    %vm10192 = vweird.f32 %v9938
    %vm10193 = vweird.f32 %v10186
    %vm10194 = vmor %vm10192, %vm10193
    %v10195 = vsel %vm10194, %v10186, %v10191
    %v10196 = vrsqrt.pop %v9939
    %v10197 = vmul.f32 %v10196, %v9939
    %v10198 = vmul.f32 %v10197, %v10196
    %v10199 = vmul.f32 0.5, %v10198
    %v10200 = vsub.f32 1.5, %v10199
    %v10201 = vmul.f32 %v10196, %v10200
    %vm10202 = vweird.f32 %v9939
    %vm10203 = vweird.f32 %v10196
    %vm10204 = vmor %vm10202, %vm10203
    %v10205 = vsel %vm10204, %v10196, %v10201
    %v10206 = vrsqrt.pop %v9940
    %v10207 = vmul.f32 %v10206, %v9940
    %v10208 = vmul.f32 %v10207, %v10206
    %v10209 = vmul.f32 0.5, %v10208
    %v10210 = vsub.f32 1.5, %v10209
    %v10211 = vmul.f32 %v10206, %v10210
    %vm10212 = vweird.f32 %v9940
    %vm10213 = vweird.f32 %v10206
    %vm10214 = vmor %vm10212, %vm10213
    %v10215 = vsel %vm10214, %v10206, %v10211
    %v10216 = vrsqrt.pop %v9941
    %v10217 = vmul.f32 %v10216, %v9941
    %v10218 = vmul.f32 %v10217, %v10216
    %v10219 = vmul.f32 0.5, %v10218
    %v10220 = vsub.f32 1.5, %v10219
    %v10221 = vmul.f32 %v10216, %v10220
    %vm10222 = vweird.f32 %v9941
    %vm10223 = vweird.f32 %v10216
    %vm10224 = vmor %vm10222, %vm10223
    %v10225 = vsel %vm10224, %v10216, %v10221
    %v10226 = vrsqrt.pop %v9942
    %v10227 = vmul.f32 %v10226, %v9942
    %v10228 = vmul.f32 %v10227, %v10226
    %v10229 = vmul.f32 0.5, %v10228
    %v10230 = vsub.f32 1.5, %v10229
    %v10231 = vmul.f32 %v10226, %v10230
    %vm10232 = vweird.f32 %v9942
    %vm10233 = vweird.f32 %v10226
    %vm10234 = vmor %vm10232, %vm10233
    %v10235 = vsel %vm10234, %v10226, %v10231
    %v10236 = vrsqrt.pop %v9943
    %v10237 = vmul.f32 %v10236, %v9943
    %v10238 = vmul.f32 %v10237, %v10236
    %v10239 = vmul.f32 0.5, %v10238
    %v10240 = vsub.f32 1.5, %v10239
    %v10241 = vmul.f32 %v10236, %v10240
    %vm10242 = vweird.f32 %v9943
    %vm10243 = vweird.f32 %v10236
    %vm10244 = vmor %vm10242, %vm10243
    %v10245 = vsel %vm10244, %v10236, %v10241
    %v10246 = vrsqrt.pop %v9944
    %v10247 = vmul.f32 %v10246, %v9944
    %v10248 = vmul.f32 %v10247, %v10246
    %v10249 = vmul.f32 0.5, %v10248
    %v10250 = vsub.f32 1.5, %v10249
    %v10251 = vmul.f32 %v10246, %v10250
    %vm10252 = vweird.f32 %v9944
    %vm10253 = vweird.f32 %v10246
    %vm10254 = vmor %vm10252, %vm10253
    %v10255 = vsel %vm10254, %v10246, %v10251
    %v10256 = vrsqrt.pop %v9945
    %v10257 = vmul.f32 %v10256, %v9945
    %v10258 = vmul.f32 %v10257, %v10256
    %v10259 = vmul.f32 0.5, %v10258
    %v10260 = vsub.f32 1.5, %v10259
    %v10261 = vmul.f32 %v10256, %v10260
    %vm10262 = vweird.f32 %v9945
    %vm10263 = vweird.f32 %v10256
    %vm10264 = vmor %vm10262, %vm10263
    %v10265 = vsel %vm10264, %v10256, %v10261
    %v10266 = vmul.f32 %v9818, %v9955
    %v10267 = vmul.f32 %v9819, %v9965
    %v10268 = vmul.f32 %v9820, %v9975
    %v10269 = vmul.f32 %v9821, %v9985
    %v10270 = vmul.f32 %v9822, %v9995
    %v10271 = vmul.f32 %v9823, %v10005
    %v10272 = vmul.f32 %v9824, %v10015
    %v10273 = vmul.f32 %v9825, %v10025
    %v10274 = vmul.f32 %v9826, %v10035
    %v10275 = vmul.f32 %v9827, %v10045
    %v10276 = vmul.f32 %v9828, %v10055
    %v10277 = vmul.f32 %v9829, %v10065
    %v10278 = vmul.f32 %v9830, %v10075
    %v10279 = vmul.f32 %v9831, %v10085
    %v10280 = vmul.f32 %v9832, %v10095
    %v10281 = vmul.f32 %v9833, %v10105
    %v10282 = vmul.f32 %v9834, %v10115
    %v10283 = vmul.f32 %v9835, %v10125
    %v10284 = vmul.f32 %v9836, %v10135
    %v10285 = vmul.f32 %v9837, %v10145
    %v10286 = vmul.f32 %v9838, %v10155
    %v10287 = vmul.f32 %v9839, %v10165
    %v10288 = vmul.f32 %v9840, %v10175
    %v10289 = vmul.f32 %v9841, %v10185
    %v10290 = vmul.f32 %v9842, %v10195
    %v10291 = vmul.f32 %v9843, %v10205
    %v10292 = vmul.f32 %v9844, %v10215
    %v10293 = vmul.f32 %v9845, %v10225
    %v10294 = vmul.f32 %v9846, %v10235
    %v10295 = vmul.f32 %v9847, %v10245
    %v10296 = vmul.f32 %v9848, %v10255
    %v10297 = vmul.f32 %v9849, %v10265
    %v10298 = vmul.f32 %v10266, %v8723
    %v10299 = vmul.f32 %v10267, %v8723
    %v10300 = vmul.f32 %v10268, %v8723
    %v10301 = vmul.f32 %v10269, %v8723
    %v10302 = vmul.f32 %v10270, %v8723
    %v10303 = vmul.f32 %v10271, %v8723
    %v10304 = vmul.f32 %v10272, %v8723
    %v10305 = vmul.f32 %v10273, %v8723
    %v10306 = vmul.f32 %v10274, %v8723
    %v10307 = vmul.f32 %v10275, %v8723
    %v10308 = vmul.f32 %v10276, %v8723
    %v10309 = vmul.f32 %v10277, %v8723
    %v10310 = vmul.f32 %v10278, %v8723
    %v10311 = vmul.f32 %v10279, %v8723
    %v10312 = vmul.f32 %v10280, %v8723
    %v10313 = vmul.f32 %v10281, %v8723
    %v10314 = vmul.f32 %v10282, %v8723
    %v10315 = vmul.f32 %v10283, %v8723
    %v10316 = vmul.f32 %v10284, %v8723
    %v10317 = vmul.f32 %v10285, %v8723
    %v10318 = vmul.f32 %v10286, %v8723
    %v10319 = vmul.f32 %v10287, %v8723
    %v10320 = vmul.f32 %v10288, %v8723
    %v10321 = vmul.f32 %v10289, %v8723
    %v10322 = vmul.f32 %v10290, %v8723
    %v10323 = vmul.f32 %v10291, %v8723
    %v10324 = vmul.f32 %v10292, %v8723
    %v10325 = vmul.f32 %v10293, %v8723
    %v10326 = vmul.f32 %v10294, %v8723
    %v10327 = vmul.f32 %v10295, %v8723
    %v10328 = vmul.f32 %v10296, %v8723
    %v10329 = vmul.f32 %v10297, %v8723
    %v10330 = vadd.f32 %v10298, %v8758
    %v10331 = vadd.f32 %v10299, %v8758
    %v10332 = vadd.f32 %v10300, %v8758
    %v10333 = vadd.f32 %v10301, %v8758
    %v10334 = vadd.f32 %v10302, %v8758
    %v10335 = vadd.f32 %v10303, %v8758
    %v10336 = vadd.f32 %v10304, %v8758
    %v10337 = vadd.f32 %v10305, %v8758
    %v10338 = vadd.f32 %v10306, %v8758
    %v10339 = vadd.f32 %v10307, %v8758
    %v10340 = vadd.f32 %v10308, %v8758
    %v10341 = vadd.f32 %v10309, %v8758
    %v10342 = vadd.f32 %v10310, %v8758
    %v10343 = vadd.f32 %v10311, %v8758
    %v10344 = vadd.f32 %v10312, %v8758
    %v10345 = vadd.f32 %v10313, %v8758
    %v10346 = vadd.f32 %v10314, %v8758
    %v10347 = vadd.f32 %v10315, %v8758
    %v10348 = vadd.f32 %v10316, %v8758
    %v10349 = vadd.f32 %v10317, %v8758
    %v10350 = vadd.f32 %v10318, %v8758
    %v10351 = vadd.f32 %v10319, %v8758
    %v10352 = vadd.f32 %v10320, %v8758
    %v10353 = vadd.f32 %v10321, %v8758
    %v10354 = vadd.f32 %v10322, %v8758
    %v10355 = vadd.f32 %v10323, %v8758
    %v10356 = vadd.f32 %v10324, %v8758
    %v10357 = vadd.f32 %v10325, %v8758
    %v10358 = vadd.f32 %v10326, %v8758
    %v10359 = vadd.f32 %v10327, %v8758
    %v10360 = vadd.f32 %v10328, %v8758
    %v10361 = vadd.f32 %v10329, %v8758
    %v10362 = vpack.c.bf16 %v10331, %v10330
    %v10363 = vpack.c.bf16 %v10333, %v10332
    %v10364 = vpack.c.bf16 %v10335, %v10334
    %v10365 = vpack.c.bf16 %v10337, %v10336
    %v10366 = vpack.c.bf16 %v10339, %v10338
    %v10367 = vpack.c.bf16 %v10341, %v10340
    %v10368 = vpack.c.bf16 %v10343, %v10342
    %v10369 = vpack.c.bf16 %v10345, %v10344
    %v10370 = vpack.c.bf16 %v10347, %v10346
    %v10371 = vpack.c.bf16 %v10349, %v10348
    %v10372 = vpack.c.bf16 %v10351, %v10350
    %v10373 = vpack.c.bf16 %v10353, %v10352
    %v10374 = vpack.c.bf16 %v10355, %v10354
    %v10375 = vpack.c.bf16 %v10357, %v10356
    %v10376 = vpack.c.bf16 %v10359, %v10358
    %v10377 = vpack.c.bf16 %v10361, %v10360
    %v10378 = vld [vmem:[#allocation14] sm:$0xf]
    %v10379 = vld [vmem:[#allocation14 + $0x4] sm:$0xf]
    %v10380 = vld [vmem:[#allocation14 + $0x8] sm:$0xf]
    %v10381 = vld [vmem:[#allocation14 + $0xc] sm:$0xf]
    %v10382 = vld [vmem:[#allocation14 + $0x10] sm:$0xf]
    %v10383 = vld [vmem:[#allocation14 + $0x14] sm:$0xf]
    %v10384 = vld [vmem:[#allocation14 + $0x18] sm:$0xf]
    %v10385 = vld [vmem:[#allocation14 + $0x1c] sm:$0xf]
    %v10386 = vld [vmem:[#allocation14 + $0x20] sm:$0xf]
    %v10387 = vld [vmem:[#allocation14 + $0x24] sm:$0xf]
    %v10388 = vld [vmem:[#allocation14 + $0x28] sm:$0xf]
    %v10389 = vld [vmem:[#allocation14 + $0x2c] sm:$0xf]
    %v10390 = vld [vmem:[#allocation14 + $0x30] sm:$0xf]
    %v10391 = vld [vmem:[#allocation14 + $0x34] sm:$0xf]
    %v10392 = vld [vmem:[#allocation14 + $0x38] sm:$0xf]
    %v10393 = vld [vmem:[#allocation14 + $0x3c] sm:$0xf]
    %v10394 = vld [vmem:[%s13] sm:$0x1]
    %v10396 = vperm.slane %v10394, 0
    %v10414 = vunpack.c.l.b16 %v10378
    %v10415 = vunpack.c.l.b16 %v10379
    %v10416 = vunpack.c.l.b16 %v10380
    %v10417 = vunpack.c.l.b16 %v10381
    %v10418 = vunpack.c.l.b16 %v10382
    %v10419 = vunpack.c.l.b16 %v10383
    %v10420 = vunpack.c.l.b16 %v10384
    %v10421 = vunpack.c.l.b16 %v10385
    %v10422 = vunpack.c.l.b16 %v10386
    %v10423 = vunpack.c.l.b16 %v10387
    %v10424 = vunpack.c.l.b16 %v10388
    %v10425 = vunpack.c.l.b16 %v10389
    %v10426 = vunpack.c.l.b16 %v10390
    %v10427 = vunpack.c.l.b16 %v10391
    %v10428 = vunpack.c.l.b16 %v10392
    %v10429 = vunpack.c.l.b16 %v10393
    %v10430 = vpack.c.b16 %v10415, %v10414
    %v10431 = vpack.c.b16 %v10417, %v10416
    %v10432 = vpack.c.b16 %v10419, %v10418
    %v10433 = vpack.c.b16 %v10421, %v10420
    %v10434 = vpack.c.b16 %v10423, %v10422
    %v10435 = vpack.c.b16 %v10425, %v10424
    %v10436 = vpack.c.b16 %v10427, %v10426
    %v10437 = vpack.c.b16 %v10429, %v10428
    %10446 = vmatpush.bf16.msra.mxu0 %v10437
    %10447 = vmatpush.bf16.msra.mxu0 %v10436
    %10448 = vmatpush.bf16.msra.mxu0 %v10435
    %10449 = vmatpush.bf16.msra.mxu0 %v10434
    %10450 = vmatpush.bf16.msra.mxu0 %v10433
    %10451 = vmatpush.bf16.msra.mxu0 %v10432
    %10452 = vmatpush.bf16.msra.mxu0 %v10431
    %10453 = vmatpush.bf16.msra.mxu0 %v10430
    %10454 = vmatmul.bf16.gmra.mxu0 %v10362
    %v10455 = vpop.f32.mrf.mxu0
    %v10456 = vadd.f32 %v10396, %v10455
    %v10457 = vpop.f32.mrf.mxu0
    %v10458 = vadd.f32 %v10396, %v10457
    %10459 = vmatmul.bf16.gmra.mxu0 %v10363
    %v10460 = vpop.f32.mrf.mxu0
    %v10461 = vadd.f32 %v10396, %v10460
    %v10462 = vpop.f32.mrf.mxu0
    %v10463 = vadd.f32 %v10396, %v10462
    %10464 = vmatmul.bf16.gmra.mxu0 %v10364
    %v10465 = vpop.f32.mrf.mxu0
    %v10466 = vadd.f32 %v10396, %v10465
    %v10467 = vpop.f32.mrf.mxu0
    %v10468 = vadd.f32 %v10396, %v10467
    %10469 = vmatmul.bf16.gmra.mxu0 %v10365
    %v10470 = vpop.f32.mrf.mxu0
    %v10471 = vadd.f32 %v10396, %v10470
    %v10472 = vpop.f32.mrf.mxu0
    %v10473 = vadd.f32 %v10396, %v10472
    %10474 = vmatmul.bf16.gmra.mxu0 %v10366
    %v10475 = vpop.f32.mrf.mxu0
    %v10476 = vadd.f32 %v10396, %v10475
    %v10477 = vpop.f32.mrf.mxu0
    %v10478 = vadd.f32 %v10396, %v10477
    %10479 = vmatmul.bf16.gmra.mxu0 %v10367
    %v10480 = vpop.f32.mrf.mxu0
    %v10481 = vadd.f32 %v10396, %v10480
    %v10482 = vpop.f32.mrf.mxu0
    %v10483 = vadd.f32 %v10396, %v10482
    %10484 = vmatmul.bf16.gmra.mxu0 %v10368
    %v10485 = vpop.f32.mrf.mxu0
    %v10486 = vadd.f32 %v10396, %v10485
    %v10487 = vpop.f32.mrf.mxu0
    %v10488 = vadd.f32 %v10396, %v10487
    %10489 = vmatmul.bf16.gmra.mxu0 %v10369
    %v10490 = vpop.f32.mrf.mxu0
    %v10491 = vadd.f32 %v10396, %v10490
    %v10492 = vpop.f32.mrf.mxu0
    %v10493 = vadd.f32 %v10396, %v10492
    %10494 = vmatmul.bf16.gmra.mxu0 %v10370
    %v10495 = vpop.f32.mrf.mxu0
    %v10496 = vadd.f32 %v10396, %v10495
    %v10497 = vpop.f32.mrf.mxu0
    %v10498 = vadd.f32 %v10396, %v10497
    %10499 = vmatmul.bf16.gmra.mxu0 %v10371
    %v10500 = vpop.f32.mrf.mxu0
    %v10501 = vadd.f32 %v10396, %v10500
    %v10502 = vpop.f32.mrf.mxu0
    %v10503 = vadd.f32 %v10396, %v10502
    %10504 = vmatmul.bf16.gmra.mxu0 %v10372
    %v10505 = vpop.f32.mrf.mxu0
    %v10506 = vadd.f32 %v10396, %v10505
    %v10507 = vpop.f32.mrf.mxu0
    %v10508 = vadd.f32 %v10396, %v10507
    %10509 = vmatmul.bf16.gmra.mxu0 %v10373
    %v10510 = vpop.f32.mrf.mxu0
    %v10511 = vadd.f32 %v10396, %v10510
    %v10512 = vpop.f32.mrf.mxu0
    %v10513 = vadd.f32 %v10396, %v10512
    %10514 = vmatmul.bf16.gmra.mxu0 %v10374
    %v10515 = vpop.f32.mrf.mxu0
    %v10516 = vadd.f32 %v10396, %v10515
    %v10517 = vpop.f32.mrf.mxu0
    %v10518 = vadd.f32 %v10396, %v10517
    %10519 = vmatmul.bf16.gmra.mxu0 %v10375
    %v10520 = vpop.f32.mrf.mxu0
    %v10521 = vadd.f32 %v10396, %v10520
    %v10522 = vpop.f32.mrf.mxu0
    %v10523 = vadd.f32 %v10396, %v10522
    %10524 = vmatmul.bf16.gmra.mxu0 %v10376
    %v10525 = vpop.f32.mrf.mxu0
    %v10526 = vadd.f32 %v10396, %v10525
    %v10527 = vpop.f32.mrf.mxu0
    %v10528 = vadd.f32 %v10396, %v10527
    %10529 = vmatmul.bf16.gmra.mxu0 %v10377
    %v10530 = vpop.f32.mrf.mxu0
    %v10531 = vadd.f32 %v10396, %v10530
    %v10532 = vpop.f32.mrf.mxu0
    %v10533 = vadd.f32 %v10396, %v10532
    %10534 = vdwg.mxu0
    %v10535 = vmax.f32 %v10456, 0.0
    %v10536 = vmax.f32 %v10458, 0.0
    %v10537 = vmax.f32 %v10461, 0.0
    %v10538 = vmax.f32 %v10463, 0.0
    %v10539 = vmax.f32 %v10466, 0.0
    %v10540 = vmax.f32 %v10468, 0.0
    %v10541 = vmax.f32 %v10471, 0.0
    %v10542 = vmax.f32 %v10473, 0.0
    %v10543 = vmax.f32 %v10476, 0.0
    %v10544 = vmax.f32 %v10478, 0.0
    %v10545 = vmax.f32 %v10481, 0.0
    %v10546 = vmax.f32 %v10483, 0.0
    %v10547 = vmax.f32 %v10486, 0.0
    %v10548 = vmax.f32 %v10488, 0.0
    %v10549 = vmax.f32 %v10491, 0.0
    %v10550 = vmax.f32 %v10493, 0.0
    %v10551 = vmax.f32 %v10496, 0.0
    %v10552 = vmax.f32 %v10498, 0.0
    %v10553 = vmax.f32 %v10501, 0.0
    %v10554 = vmax.f32 %v10503, 0.0
    %v10555 = vmax.f32 %v10506, 0.0
    %v10556 = vmax.f32 %v10508, 0.0
    %v10557 = vmax.f32 %v10511, 0.0
    %v10558 = vmax.f32 %v10513, 0.0
    %v10559 = vmax.f32 %v10516, 0.0
    %v10560 = vmax.f32 %v10518, 0.0
    %v10561 = vmax.f32 %v10521, 0.0
    %v10562 = vmax.f32 %v10523, 0.0
    %v10563 = vmax.f32 %v10526, 0.0
    %v10564 = vmax.f32 %v10528, 0.0
    %v10565 = vmax.f32 %v10531, 0.0
    %v10566 = vmax.f32 %v10533, 0.0
    %10567 = vst [vmem:[#allocation18] sm:$0xff] %v10535
    %10568 = vst [vmem:[#allocation18 + $0x8] sm:$0xff] %v10536
    %10569 = vst [vmem:[#allocation18 + $0x10] sm:$0xff] %v10537
    %10570 = vst [vmem:[#allocation18 + $0x18] sm:$0xff] %v10538
    %10571 = vst [vmem:[#allocation18 + $0x20] sm:$0xff] %v10539
    %10572 = vst [vmem:[#allocation18 + $0x28] sm:$0xff] %v10540
    %10573 = vst [vmem:[#allocation18 + $0x30] sm:$0xff] %v10541
    %10574 = vst [vmem:[#allocation18 + $0x38] sm:$0xff] %v10542
    %10575 = vst [vmem:[#allocation18 + $0x40] sm:$0xff] %v10543
    %10576 = vst [vmem:[#allocation18 + $0x48] sm:$0xff] %v10544
    %10577 = vst [vmem:[#allocation18 + $0x50] sm:$0xff] %v10545
    %10578 = vst [vmem:[#allocation18 + $0x58] sm:$0xff] %v10546
    %10579 = vst [vmem:[#allocation18 + $0x60] sm:$0xff] %v10547
    %10580 = vst [vmem:[#allocation18 + $0x68] sm:$0xff] %v10548
    %10581 = vst [vmem:[#allocation18 + $0x70] sm:$0xff] %v10549
    %10582 = vst [vmem:[#allocation18 + $0x78] sm:$0xff] %v10550
    %10583 = vst [vmem:[#allocation18 + $0x80] sm:$0xff] %v10551
    %10584 = vst [vmem:[#allocation18 + $0x88] sm:$0xff] %v10552
    %10585 = vst [vmem:[#allocation18 + $0x90] sm:$0xff] %v10553
    %10586 = vst [vmem:[#allocation18 + $0x98] sm:$0xff] %v10554
    %10587 = vst [vmem:[#allocation18 + $0xa0] sm:$0xff] %v10555
    %10588 = vst [vmem:[#allocation18 + $0xa8] sm:$0xff] %v10556
    %10589 = vst [vmem:[#allocation18 + $0xb0] sm:$0xff] %v10557
    %10590 = vst [vmem:[#allocation18 + $0xb8] sm:$0xff] %v10558
    %10591 = vst [vmem:[#allocation18 + $0xc0] sm:$0xff] %v10559
    %10592 = vst [vmem:[#allocation18 + $0xc8] sm:$0xff] %v10560
    %10593 = vst [vmem:[#allocation18 + $0xd0] sm:$0xff] %v10561
    %10594 = vst [vmem:[#allocation18 + $0xd8] sm:$0xff] %v10562
    %10595 = vst [vmem:[#allocation18 + $0xe0] sm:$0xff] %v10563
    %10596 = vst [vmem:[#allocation18 + $0xe8] sm:$0xff] %v10564
    %10597 = vst [vmem:[#allocation18 + $0xf0] sm:$0xff] %v10565
    %10598 = vst [vmem:[#allocation18 + $0xf8] sm:$0xff] %v10566
    %v10599 = vpack.c.bf16 %v10536, %v10535
    %v10600 = vpack.c.bf16 %v10538, %v10537
    %v10601 = vpack.c.bf16 %v10540, %v10539
    %v10602 = vpack.c.bf16 %v10542, %v10541
    %v10603 = vpack.c.bf16 %v10544, %v10543
    %v10604 = vpack.c.bf16 %v10546, %v10545
    %v10605 = vpack.c.bf16 %v10548, %v10547
    %v10606 = vpack.c.bf16 %v10550, %v10549
    %v10607 = vpack.c.bf16 %v10552, %v10551
    %v10608 = vpack.c.bf16 %v10554, %v10553
    %v10609 = vpack.c.bf16 %v10556, %v10555
    %v10610 = vpack.c.bf16 %v10558, %v10557
    %v10611 = vpack.c.bf16 %v10560, %v10559
    %v10612 = vpack.c.bf16 %v10562, %v10561
    %v10613 = vpack.c.bf16 %v10564, %v10563
    %v10614 = vpack.c.bf16 %v10566, %v10565
    %v10615 = vld [vmem:[#allocation16] sm:$0xf]
    %v10616 = vld [vmem:[#allocation16 + $0x4] sm:$0xf]
    %v10617 = vld [vmem:[#allocation16 + $0x8] sm:$0xf]
    %v10618 = vld [vmem:[#allocation16 + $0xc] sm:$0xf]
    %v10619 = vld [vmem:[#allocation16 + $0x10] sm:$0xf]
    %v10620 = vld [vmem:[#allocation16 + $0x14] sm:$0xf]
    %v10621 = vld [vmem:[#allocation16 + $0x18] sm:$0xf]
    %v10622 = vld [vmem:[#allocation16 + $0x1c] sm:$0xf]
    %v10623 = vld [vmem:[#allocation16 + $0x20] sm:$0xf]
    %v10624 = vld [vmem:[#allocation16 + $0x24] sm:$0xf]
    %v10625 = vld [vmem:[#allocation16 + $0x28] sm:$0xf]
    %v10626 = vld [vmem:[#allocation16 + $0x2c] sm:$0xf]
    %v10627 = vld [vmem:[#allocation16 + $0x30] sm:$0xf]
    %v10628 = vld [vmem:[#allocation16 + $0x34] sm:$0xf]
    %v10629 = vld [vmem:[#allocation16 + $0x38] sm:$0xf]
    %v10630 = vld [vmem:[#allocation16 + $0x3c] sm:$0xf]
    %v10631 = vld [vmem:[%s15] sm:$0x1]
    %v10633 = vperm.slane %v10631, 0
    %v10651 = vunpack.c.l.b16 %v10615
    %v10652 = vunpack.c.l.b16 %v10616
    %v10653 = vunpack.c.l.b16 %v10617
    %v10654 = vunpack.c.l.b16 %v10618
    %v10655 = vunpack.c.l.b16 %v10619
    %v10656 = vunpack.c.l.b16 %v10620
    %v10657 = vunpack.c.l.b16 %v10621
    %v10658 = vunpack.c.l.b16 %v10622
    %v10659 = vunpack.c.l.b16 %v10623
    %v10660 = vunpack.c.l.b16 %v10624
    %v10661 = vunpack.c.l.b16 %v10625
    %v10662 = vunpack.c.l.b16 %v10626
    %v10663 = vunpack.c.l.b16 %v10627
    %v10664 = vunpack.c.l.b16 %v10628
    %v10665 = vunpack.c.l.b16 %v10629
    %v10666 = vunpack.c.l.b16 %v10630
    %v10667 = vpack.c.b16 %v10652, %v10651
    %v10668 = vpack.c.b16 %v10654, %v10653
    %v10669 = vpack.c.b16 %v10656, %v10655
    %v10670 = vpack.c.b16 %v10658, %v10657
    %v10671 = vpack.c.b16 %v10660, %v10659
    %v10672 = vpack.c.b16 %v10662, %v10661
    %v10673 = vpack.c.b16 %v10664, %v10663
    %v10674 = vpack.c.b16 %v10666, %v10665
    %10683 = vmatpush.bf16.msra.mxu0 %v10674
    %10684 = vmatpush.bf16.msra.mxu0 %v10673
    %10685 = vmatpush.bf16.msra.mxu0 %v10672
    %10686 = vmatpush.bf16.msra.mxu0 %v10671
    %10687 = vmatpush.bf16.msra.mxu0 %v10670
    %10688 = vmatpush.bf16.msra.mxu0 %v10669
    %10689 = vmatpush.bf16.msra.mxu0 %v10668
    %10690 = vmatpush.bf16.msra.mxu0 %v10667
    %10691 = vmatmul.bf16.gmra.mxu0 %v10599
    %v10692 = vpop.f32.mrf.mxu0
    %v10693 = vadd.f32 %v10633, %v10692
    %v10694 = vpop.f32.mrf.mxu0
    %v10695 = vadd.f32 %v10633, %v10694
    %10696 = vmatmul.bf16.gmra.mxu0 %v10600
    %v10697 = vpop.f32.mrf.mxu0
    %v10698 = vadd.f32 %v10633, %v10697
    %v10699 = vpop.f32.mrf.mxu0
    %v10700 = vadd.f32 %v10633, %v10699
    %10701 = vmatmul.bf16.gmra.mxu0 %v10601
    %v10702 = vpop.f32.mrf.mxu0
    %v10703 = vadd.f32 %v10633, %v10702
    %v10704 = vpop.f32.mrf.mxu0
    %v10705 = vadd.f32 %v10633, %v10704
    %10706 = vmatmul.bf16.gmra.mxu0 %v10602
    %v10707 = vpop.f32.mrf.mxu0
    %v10708 = vadd.f32 %v10633, %v10707
    %v10709 = vpop.f32.mrf.mxu0
    %v10710 = vadd.f32 %v10633, %v10709
    %10711 = vmatmul.bf16.gmra.mxu0 %v10603
    %v10712 = vpop.f32.mrf.mxu0
    %v10713 = vadd.f32 %v10633, %v10712
    %v10714 = vpop.f32.mrf.mxu0
    %v10715 = vadd.f32 %v10633, %v10714
    %10716 = vmatmul.bf16.gmra.mxu0 %v10604
    %v10717 = vpop.f32.mrf.mxu0
    %v10718 = vadd.f32 %v10633, %v10717
    %v10719 = vpop.f32.mrf.mxu0
    %v10720 = vadd.f32 %v10633, %v10719
    %10721 = vmatmul.bf16.gmra.mxu0 %v10605
    %v10722 = vpop.f32.mrf.mxu0
    %v10723 = vadd.f32 %v10633, %v10722
    %v10724 = vpop.f32.mrf.mxu0
    %v10725 = vadd.f32 %v10633, %v10724
    %10726 = vmatmul.bf16.gmra.mxu0 %v10606
    %v10727 = vpop.f32.mrf.mxu0
    %v10728 = vadd.f32 %v10633, %v10727
    %v10729 = vpop.f32.mrf.mxu0
    %v10730 = vadd.f32 %v10633, %v10729
    %10731 = vmatmul.bf16.gmra.mxu0 %v10607
    %v10732 = vpop.f32.mrf.mxu0
    %v10733 = vadd.f32 %v10633, %v10732
    %v10734 = vpop.f32.mrf.mxu0
    %v10735 = vadd.f32 %v10633, %v10734
    %10736 = vmatmul.bf16.gmra.mxu0 %v10608
    %v10737 = vpop.f32.mrf.mxu0
    %v10738 = vadd.f32 %v10633, %v10737
    %v10739 = vpop.f32.mrf.mxu0
    %v10740 = vadd.f32 %v10633, %v10739
    %10741 = vmatmul.bf16.gmra.mxu0 %v10609
    %v10742 = vpop.f32.mrf.mxu0
    %v10743 = vadd.f32 %v10633, %v10742
    %v10744 = vpop.f32.mrf.mxu0
    %v10745 = vadd.f32 %v10633, %v10744
    %10746 = vmatmul.bf16.gmra.mxu0 %v10610
    %v10747 = vpop.f32.mrf.mxu0
    %v10748 = vadd.f32 %v10633, %v10747
    %v10749 = vpop.f32.mrf.mxu0
    %v10750 = vadd.f32 %v10633, %v10749
    %10751 = vmatmul.bf16.gmra.mxu0 %v10611
    %v10752 = vpop.f32.mrf.mxu0
    %v10753 = vadd.f32 %v10633, %v10752
    %v10754 = vpop.f32.mrf.mxu0
    %v10755 = vadd.f32 %v10633, %v10754
    %10756 = vmatmul.bf16.gmra.mxu0 %v10612
    %v10757 = vpop.f32.mrf.mxu0
    %v10758 = vadd.f32 %v10633, %v10757
    %v10759 = vpop.f32.mrf.mxu0
    %v10760 = vadd.f32 %v10633, %v10759
    %10761 = vmatmul.bf16.gmra.mxu0 %v10613
    %v10762 = vpop.f32.mrf.mxu0
    %v10763 = vadd.f32 %v10633, %v10762
    %v10764 = vpop.f32.mrf.mxu0
    %v10765 = vadd.f32 %v10633, %v10764
    %10766 = vmatmul.bf16.gmra.mxu0 %v10614
    %v10767 = vpop.f32.mrf.mxu0
    %v10768 = vadd.f32 %v10633, %v10767
    %v10769 = vpop.f32.mrf.mxu0
    %v10770 = vadd.f32 %v10633, %v10769
    %10771 = vdwg.mxu0
    %10772 = vst [vmem:[#allocation17] sm:$0xff] %v10693
    %10773 = vst [vmem:[#allocation17 + $0x8] sm:$0xff] %v10695
    %10774 = vst [vmem:[#allocation17 + $0x10] sm:$0xff] %v10698
    %10775 = vst [vmem:[#allocation17 + $0x18] sm:$0xff] %v10700
    %10776 = vst [vmem:[#allocation17 + $0x20] sm:$0xff] %v10703
    %10777 = vst [vmem:[#allocation17 + $0x28] sm:$0xff] %v10705
    %10778 = vst [vmem:[#allocation17 + $0x30] sm:$0xff] %v10708
    %10779 = vst [vmem:[#allocation17 + $0x38] sm:$0xff] %v10710
    %10780 = vst [vmem:[#allocation17 + $0x40] sm:$0xff] %v10713
    %10781 = vst [vmem:[#allocation17 + $0x48] sm:$0xff] %v10715
    %10782 = vst [vmem:[#allocation17 + $0x50] sm:$0xff] %v10718
    %10783 = vst [vmem:[#allocation17 + $0x58] sm:$0xff] %v10720
    %10784 = vst [vmem:[#allocation17 + $0x60] sm:$0xff] %v10723
    %10785 = vst [vmem:[#allocation17 + $0x68] sm:$0xff] %v10725
    %10786 = vst [vmem:[#allocation17 + $0x70] sm:$0xff] %v10728
    %10787 = vst [vmem:[#allocation17 + $0x78] sm:$0xff] %v10730
    %10788 = vst [vmem:[#allocation17 + $0x80] sm:$0xff] %v10733
    %10789 = vst [vmem:[#allocation17 + $0x88] sm:$0xff] %v10735
    %10790 = vst [vmem:[#allocation17 + $0x90] sm:$0xff] %v10738
    %10791 = vst [vmem:[#allocation17 + $0x98] sm:$0xff] %v10740
    %10792 = vst [vmem:[#allocation17 + $0xa0] sm:$0xff] %v10743
    %10793 = vst [vmem:[#allocation17 + $0xa8] sm:$0xff] %v10745
    %10794 = vst [vmem:[#allocation17 + $0xb0] sm:$0xff] %v10748
    %10795 = vst [vmem:[#allocation17 + $0xb8] sm:$0xff] %v10750
    %10796 = vst [vmem:[#allocation17 + $0xc0] sm:$0xff] %v10753
    %10797 = vst [vmem:[#allocation17 + $0xc8] sm:$0xff] %v10755
    %10798 = vst [vmem:[#allocation17 + $0xd0] sm:$0xff] %v10758
    %10799 = vst [vmem:[#allocation17 + $0xd8] sm:$0xff] %v10760
    %10800 = vst [vmem:[#allocation17 + $0xe0] sm:$0xff] %v10763
    %10801 = vst [vmem:[#allocation17 + $0xe8] sm:$0xff] %v10765
    %10802 = vst [vmem:[#allocation17 + $0xf0] sm:$0xff] %v10768
    %10803 = vst [vmem:[#allocation17 + $0xf8] sm:$0xff] %v10770
    // Predicated region
    $region102: #{tpu_custom_call.1} parent=1 // pred_check
      _
    $region103: #{tpu_custom_call.1} parent=1 // pred_check_branch
      %10805 = sbr.rel (0) target = $region105
    $region104: #{tpu_custom_call.1} parent=1 // pred_region
      %10807 = vsyncadd [#allocation4], 0
      %s10808 = sshll.u32 [#allocation17], 4
      %s10809 = int_to_ptr.vmem [resolvable:$true] %s10808
      %s10810 = sshll.u32 %s16, 4
      %s10811 = int_to_ptr.hbm [resolvable:$true] %s10810
      %10816 = dma.vmem_to_hbm [thread:$0]  %s10809, 4096, %s10811, [#allocation4], 128, 128, 8
    $region105: #{tpu_custom_call.1} parent=1 // pred_fallthru
      _
    // Predicated region
    $region106: #{tpu_custom_call.1} parent=1 // pred_check
      _
    $region107: #{tpu_custom_call.1} parent=1 // pred_check_branch
      %10818 = sbr.rel (0) target = $region109
    $region108: #{tpu_custom_call.1} parent=1 // pred_region
      %10820 = vsyncadd [#allocation19], 0
      %s10821 = sshll.u32 [#allocation18], 4
      %s10822 = int_to_ptr.vmem [resolvable:$true] %s10821
      %s10823 = sshll.u32 %s17, 4
      %s10824 = int_to_ptr.hbm [resolvable:$true] %s10823
      %10829 = dma.vmem_to_hbm [thread:$0]  %s10822, 4096, %s10824, [#allocation19], 128, 128, 8
    $region109: #{tpu_custom_call.1} parent=1 // pred_fallthru
      _
    // Predicated region
    $region110: #{tpu_custom_call.1} parent=1 // pred_check
      _
    $region111: #{tpu_custom_call.1} parent=1 // pred_check_branch
      %10831 = sbr.rel (0) target = $region113
    $region112: #{tpu_custom_call.1} parent=1 // pred_region
      %10833 = dma.done [#allocation4], 4096
    $region113: #{tpu_custom_call.1} parent=1 // pred_fallthru
      _
    // Predicated region
    $region114: #{tpu_custom_call.1} parent=1 // pred_check
      _
    $region115: #{tpu_custom_call.1} parent=1 // pred_check_branch
      %10835 = sbr.rel (0) target = $region117
    $region116: #{tpu_custom_call.1} parent=1 // pred_region
      %10837 = dma.done [#allocation19], 4096
    $region117: #{tpu_custom_call.1} parent=1 // pred_fallthru
      _
    %10838 = vsyncpa [#allocation3], 1
    %10839 = vsyncpa [#allocation6], 1
    %10840 = vsyncpa [#allocation9], 1
    %10841 = vsyncpa [#allocation12], 1
    %10842 = vsyncpa [#allocation15], 1
    %10843 = vsyncpa [#allocation4], 1
    %10844 = vsyncpa [#allocation19], 1

</llo_original>
